<compile_context>
chip_gen: v5e
topology: v5e:2x2
jax: 0.10.0
libtpu: 0.0.40
codegen_flags: <defaults>
</compile_context>

<pallas_src>
import functools

import jax
import jax.numpy as jnp
from jax.experimental import pallas as pl
from jax.experimental.pallas import tpu as pltpu


def _round_up(x, m):
    return (x + m - 1) // m * m


def _silu(v):
    # SiLU = v * sigmoid(v); keep the divide on the EUP approx path.
    if hasattr(pl, "reciprocal"):
        return v * pl.reciprocal(1.0 + jnp.exp(-v), approx=True)
    return v * jax.nn.sigmoid(v)


def _bottleneck_kernel(xp_ref, mask_ref, w1_ref, b1_ref, w2_ref, b2_ref,
                       o_ref, *, add, wpad):
    # xp_ref  : (Np, C1)    flattened zero-padded input, Np = (H+2)*Wpad
    # mask_ref: (Np, 1)     1.0 inside the valid HxW interior, 0.0 on padding
    # w1_ref  : (9, C1, Cm) tap-major cv1 weights (BN scale pre-folded)
    # b1_ref  : (1, Cm)     cv1 folded BN bias (f32)
    # w2_ref  : (9, Cm, C2) tap-major cv2 weights (BN scale pre-folded)
    # b2_ref  : (1, C2)     cv2 folded BN bias (f32)
    # o_ref   : (Np, C2)    output, same padded coordinates as the input
    n_rows = xp_ref.shape[0]
    # Flat offset of tap (dy, dx) relative to the output pixel (padded coords).
    offsets = tuple((dy - 1) * wpad + (dx - 1)
                    for dy in range(3) for dx in range(3))

    def conv3x3(act, w_ref):
        # 9 full-slab matmuls; tap alignment applied to the matmul OUTPUT with
        # a circular roll along the flattened row axis. Wrap-around values only
        # land on padding-ring rows/columns, never in the valid interior.
        acc = None
        for k, off in enumerate(offsets):
            m = jnp.dot(act, w_ref[k], preferred_element_type=jnp.float32)
            if off != 0:
                m = pltpu.roll(m, (-off) % n_rows, axis=0)
            acc = m if acc is None else acc + m
        return acc

    x = xp_ref[...]                                    # activation dtype

    # ---- cv1: conv + folded-BN bias + SiLU ----
    y = _silu(conv3x3(x, w1_ref) + b1_ref[...])
    # Zero the padding ring so cv2 sees correct zero padding; cast back to the
    # activation dtype so the second matmul stays on the native MXU path.
    mid = (y * mask_ref[...]).astype(x.dtype)

    # ---- cv2: conv + folded-BN bias + SiLU ----
    z = _silu(conv3x3(mid, w2_ref) + b2_ref[...])

    if add:  # residual shortcut (static: shortcut and C1 == C2)
        z = z + x.astype(jnp.float32)                  # fully aligned slab add

    o_ref[...] = z.astype(o_ref.dtype)


def _fold_bn(gamma, beta, mean, var, eps=1e-5):
    scale = gamma / jnp.sqrt(var + eps)                # (C,)
    bias = beta - mean * scale                         # (C,)
    return scale.astype(jnp.float32), bias.astype(jnp.float32)


def bottleneck(x, w1, bn1, w2, bn2, *, shortcut=True, eps=1e-5):
    """Bottleneck forward: x + cv2(cv1(x)) (each conv = 3x3 Conv + BN + SiLU).

    x  : (B, C1, H, W)   NCHW (PyTorch layout)
    w1 : (Cm, C1, 3, 3)  torch Conv2d weight; bn1 = (gamma, beta, mean, var)
    w2 : (C2, Cm, 3, 3)                       bn2 = (gamma, beta, mean, var)
    """
    B, C1, H, W = x.shape
    Cm = w1.shape[0]
    C2 = w2.shape[0]
    assert w1.shape == (Cm, C1, 3, 3) and w2.shape == (C2, Cm, 3, 3)

    add = bool(shortcut) and (C1 == C2)
    dt = x.dtype
    Hp = H + 2
    wpad = _round_up(W + 2, 8)          # sublane-exact flattening and rolls
    n_rows = Hp * wpad

    # Padded, lane-dense, flattened input: pixel (h, w) -> row (h+1)*wpad+(w+1).
    x_nhwc = jnp.transpose(x, (0, 2, 3, 1))
    xp = jnp.pad(x_nhwc, ((0, 0), (1, 1), (1, wpad - W - 1), (0, 0)))
    xp = xp.reshape(B, n_rows, C1)

    # Fold BN (inference) into a per-channel scale/bias; the scale is folded
    # into the conv weights so the kernel only does bias + SiLU.
    s1, b1 = _fold_bn(*bn1, eps=eps)
    s2, b2 = _fold_bn(*bn2, eps=eps)
    w1k = (jnp.transpose(w1, (2, 3, 1, 0)).reshape(9, C1, Cm)
           * s1[None, None, :]).astype(dt)
    w2k = (jnp.transpose(w2, (2, 3, 1, 0)).reshape(9, Cm, C2)
           * s2[None, None, :]).astype(dt)
    b1 = b1.reshape(1, Cm)
    b2 = b2.reshape(1, C2)

    # 0/1 interior mask (zeroes the padding ring of the cv1 intermediate).
    mask = jnp.zeros((Hp, wpad), jnp.float32).at[1:H + 1, 1:W + 1].set(1.0)
    mask = mask.reshape(n_rows, 1)

    # VMEM budget: pipelined in/out blocks, resident constants, f32 temps.
    isz = dt.itemsize
    need = (2 * n_rows * (C1 + C2) * isz                    # in/out blocks (x2)
            + 2 * (9 * C1 * Cm + 9 * Cm * C2) * isz         # weights (<= 2 bufs)
            + 2 * (Cm + C2 + n_rows) * 4                    # bias + mask
            + n_rows * (C1 + 3 * Cm + 3 * C2) * 4           # f32 temporaries
            + n_rows * Cm * isz                             # cv1 intermediate
            + (4 << 20))                                    # headroom
    try:
        cap = int(getattr(pltpu.get_tpu_info(), "vmem_capacity_bytes", 64 << 20))
    except Exception:  # older jax without get_tpu_info
        cap = 64 << 20
    vmem_limit = int(min(max(need, 32 << 20), int(cap * 0.85)))

    def _const_spec(shape):
        idx = lambda b: (0,) * len(shape)
        if hasattr(pl, "Buffered"):       # single-buffer constant-index inputs
            try:
                return pl.BlockSpec(shape, idx, pipeline_mode=pl.Buffered(1))
            except TypeError:             # older jax: no pipeline_mode kwarg
                pass
        return pl.BlockSpec(shape, idx)

    kernel = functools.partial(_bottleneck_kernel, add=add, wpad=wpad)

    out_flat = pl.pallas_call(
        kernel,
        out_shape=jax.ShapeDtypeStruct((B, n_rows, C2), dt),
        grid=(B,),
        in_specs=[
            pl.BlockSpec((None, n_rows, C1), lambda b: (b, 0, 0)),
            _const_spec((n_rows, 1)),     # interior mask
            _const_spec((9, C1, Cm)),     # cv1 weights (scale folded)
            _const_spec((1, Cm)),         # cv1 bias
            _const_spec((9, Cm, C2)),     # cv2 weights (scale folded)
            _const_spec((1, C2)),         # cv2 bias
        ],
        out_specs=pl.BlockSpec((None, n_rows, C2), lambda b: (b, 0, 0)),
        compiler_params=pltpu.CompilerParams(
            dimension_semantics=("parallel",),
            vmem_limit_bytes=vmem_limit,
        ),
    )(xp, mask, w1k, b1, w2k, b2)

    # Drop the padding ring / width padding and return to NCHW.
    out = out_flat.reshape(B, Hp, wpad, C2)[:, 1:H + 1, 1:W + 1, :]
    return jnp.transpose(out, (0, 3, 1, 2))


def _ref_conv_bn_silu(x, w, gamma, beta, mean, var, eps=1e-5):
    y = jax.lax.conv_general_dilated(
        x, w, window_strides=(1, 1), padding=((1, 1), (1, 1)),
        dimension_numbers=("NCHW", "OIHW", "NCHW"))
    scale = gamma / jnp.sqrt(var + eps)
    bias = beta - mean * scale
    y = y * scale[None, :, None, None] + bias[None, :, None, None]
    return y * jax.nn.sigmoid(y)


if __name__ == "__main__":
    B, C = 2, 8
    H = W = 16
    e = 0.5
    Cm = int(C * e)  # hidden channels of the bottleneck

    key = jax.random.PRNGKey(0)
    ks = jax.random.split(key, 11)
    x = jax.random.normal(ks[0], (B, C, H, W), jnp.float32)
    w1 = jax.random.normal(ks[1], (Cm, C, 3, 3), jnp.float32) * 0.1
    w2 = jax.random.normal(ks[2], (C, Cm, 3, 3), jnp.float32) * 0.1
    bn1 = (1.0 + 0.1 * jax.random.normal(ks[3], (Cm,), jnp.float32),   # gamma
           0.1 * jax.random.normal(ks[4], (Cm,), jnp.float32),         # beta
           0.1 * jax.random.normal(ks[5], (Cm,), jnp.float32),         # mean
           1.0 + 0.1 * jax.random.uniform(ks[6], (Cm,), jnp.float32))  # var
    bn2 = (1.0 + 0.1 * jax.random.normal(ks[7], (C,), jnp.float32),
           0.1 * jax.random.normal(ks[8], (C,), jnp.float32),
           0.1 * jax.random.normal(ks[9], (C,), jnp.float32),
           1.0 + 0.1 * jax.random.uniform(ks[10], (C,), jnp.float32))

    out = bottleneck(x, w1, bn1, w2, bn2, shortcut=True)
    jax.block_until_ready(out)

    # Pure-JAX reference of the Bottleneck forward (shortcut since C1 == C2).
    ref = x + _ref_conv_bn_silu(_ref_conv_bn_silu(x, w1, *bn1), w2, *bn2)
    assert out.shape == ref.shape
    max_err = float(jnp.max(jnp.abs(out - ref)))
    # SiLU uses the EUP approx-reciprocal path -> slightly looser tolerance.
    assert jnp.allclose(out, ref, atol=2e-2, rtol=2e-2), max_err

    print("KERNEL_OK")
</pallas_src>

<mosaic_0001>
module attributes {stable_mosaic.version = 11 : i64} {
  func.func @_bottleneck_kernel(%arg0: i32, %arg1: memref<1x432x8xf32, #tpu.memory_space<vmem>>, %arg2: memref<432x1xf32, #tpu.memory_space<vmem>>, %arg3: memref<9x8x4xf32, #tpu.memory_space<vmem>>, %arg4: memref<1x4xf32, #tpu.memory_space<vmem>>, %arg5: memref<9x4x8xf32, #tpu.memory_space<vmem>>, %arg6: memref<1x8xf32, #tpu.memory_space<vmem>>, %arg7: memref<1x432x8xf32, #tpu.memory_space<vmem>>) attributes {dimension_semantics = [#tpu.dimension_semantics<parallel>], iteration_bounds = array<i64: 2>, scalar_prefetch = 0 : i64, scratch_operands = 0 : i64, tpu.core_type = #tpu.core_type<tc>, window_params = [{transform_indices = @transform_0, window_bounds = array<i64: 1, 432, 8>}, {pipeline_mode = #tpu.pipeline_mode<synchronous>, transform_indices = @transform_1, window_bounds = array<i64: 432, 1>}, {pipeline_mode = #tpu.pipeline_mode<synchronous>, transform_indices = @transform_2, window_bounds = array<i64: 9, 8, 4>}, {pipeline_mode = #tpu.pipeline_mode<synchronous>, transform_indices = @transform_3, window_bounds = array<i64: 1, 4>}, {pipeline_mode = #tpu.pipeline_mode<synchronous>, transform_indices = @transform_4, window_bounds = array<i64: 9, 4, 8>}, {pipeline_mode = #tpu.pipeline_mode<synchronous>, transform_indices = @transform_5, window_bounds = array<i64: 1, 8>}, {transform_indices = @transform_6, window_bounds = array<i64: 1, 432, 8>}]} {
    %c0 = arith.constant 0 : index
    %c0_0 = arith.constant 0 : index
    %c0_1 = arith.constant 0 : index
    %0 = vector.load %arg1[%c0, %c0_0, %c0_1] : memref<1x432x8xf32, #tpu.memory_space<vmem>>, vector<1x432x8xf32>
    %1 = vector.shape_cast %0 : vector<1x432x8xf32> to vector<432x8xf32>
    %c0_2 = arith.constant 0 : index
    %c0_3 = arith.constant 0 : index
    %c0_4 = arith.constant 0 : index
    %2 = vector.load %arg3[%c0_2, %c0_3, %c0_4] : memref<9x8x4xf32, #tpu.memory_space<vmem>>, vector<1x8x4xf32>
    %3 = vector.shape_cast %2 : vector<1x8x4xf32> to vector<8x4xf32>
    %cst = arith.constant dense<0.000000e+00> : vector<432x4xf32>
    %4 = tpu.matmul %1, %3, %cst {dimension_numbers = #tpu.dot_dimension_numbers<[1], [0], [0], [1], [0, 0, 1, 1], [], []>} : vector<432x8xf32>, vector<8x4xf32>, vector<432x4xf32> -> vector<432x4xf32>
    %c25_i32 = arith.constant 25 : i32
    %5 = tpu.dynamic_rotate %4 by %c25_i32 dim 0 : vector<432x4xf32>, i32 -> vector<432x4xf32>
    %c1 = arith.constant 1 : index
    %c0_5 = arith.constant 0 : index
    %c0_6 = arith.constant 0 : index
    %6 = vector.load %arg3[%c1, %c0_5, %c0_6] : memref<9x8x4xf32, #tpu.memory_space<vmem>>, vector<1x8x4xf32>
    %7 = vector.shape_cast %6 : vector<1x8x4xf32> to vector<8x4xf32>
    %cst_7 = arith.constant dense<0.000000e+00> : vector<432x4xf32>
    %8 = tpu.matmul %1, %7, %cst_7 {dimension_numbers = #tpu.dot_dimension_numbers<[1], [0], [0], [1], [0, 0, 1, 1], [], []>} : vector<432x8xf32>, vector<8x4xf32>, vector<432x4xf32> -> vector<432x4xf32>
    %c24_i32 = arith.constant 24 : i32
    %9 = tpu.dynamic_rotate %8 by %c24_i32 dim 0 : vector<432x4xf32>, i32 -> vector<432x4xf32>
    %10 = arith.addf %5, %9 : vector<432x4xf32>
    %c2 = arith.constant 2 : index
    %c0_8 = arith.constant 0 : index
    %c0_9 = arith.constant 0 : index
    %11 = vector.load %arg3[%c2, %c0_8, %c0_9] : memref<9x8x4xf32, #tpu.memory_space<vmem>>, vector<1x8x4xf32>
    %12 = vector.shape_cast %11 : vector<1x8x4xf32> to vector<8x4xf32>
    %cst_10 = arith.constant dense<0.000000e+00> : vector<432x4xf32>
    %13 = tpu.matmul %1, %12, %cst_10 {dimension_numbers = #tpu.dot_dimension_numbers<[1], [0], [0], [1], [0, 0, 1, 1], [], []>} : vector<432x8xf32>, vector<8x4xf32>, vector<432x4xf32> -> vector<432x4xf32>
    %c23_i32 = arith.constant 23 : i32
    %14 = tpu.dynamic_rotate %13 by %c23_i32 dim 0 : vector<432x4xf32>, i32 -> vector<432x4xf32>
    %15 = arith.addf %10, %14 : vector<432x4xf32>
    %c3 = arith.constant 3 : index
    %c0_11 = arith.constant 0 : index
    %c0_12 = arith.constant 0 : index
    %16 = vector.load %arg3[%c3, %c0_11, %c0_12] : memref<9x8x4xf32, #tpu.memory_space<vmem>>, vector<1x8x4xf32>
    %17 = vector.shape_cast %16 : vector<1x8x4xf32> to vector<8x4xf32>
    %cst_13 = arith.constant dense<0.000000e+00> : vector<432x4xf32>
    %18 = tpu.matmul %1, %17, %cst_13 {dimension_numbers = #tpu.dot_dimension_numbers<[1], [0], [0], [1], [0, 0, 1, 1], [], []>} : vector<432x8xf32>, vector<8x4xf32>, vector<432x4xf32> -> vector<432x4xf32>
    %c1_i32 = arith.constant 1 : i32
    %19 = tpu.dynamic_rotate %18 by %c1_i32 dim 0 : vector<432x4xf32>, i32 -> vector<432x4xf32>
    %20 = arith.addf %15, %19 : vector<432x4xf32>
    %c4 = arith.constant 4 : index
    %c0_14 = arith.constant 0 : index
    %c0_15 = arith.constant 0 : index
    %21 = vector.load %arg3[%c4, %c0_14, %c0_15] : memref<9x8x4xf32, #tpu.memory_space<vmem>>, vector<1x8x4xf32>
    %22 = vector.shape_cast %21 : vector<1x8x4xf32> to vector<8x4xf32>
    %cst_16 = arith.constant dense<0.000000e+00> : vector<432x4xf32>
    %23 = tpu.matmul %1, %22, %cst_16 {dimension_numbers = #tpu.dot_dimension_numbers<[1], [0], [0], [1], [0, 0, 1, 1], [], []>} : vector<432x8xf32>, vector<8x4xf32>, vector<432x4xf32> -> vector<432x4xf32>
    %24 = arith.addf %20, %23 : vector<432x4xf32>
    %c5 = arith.constant 5 : index
    %c0_17 = arith.constant 0 : index
    %c0_18 = arith.constant 0 : index
    %25 = vector.load %arg3[%c5, %c0_17, %c0_18] : memref<9x8x4xf32, #tpu.memory_space<vmem>>, vector<1x8x4xf32>
    %26 = vector.shape_cast %25 : vector<1x8x4xf32> to vector<8x4xf32>
    %cst_19 = arith.constant dense<0.000000e+00> : vector<432x4xf32>
    %27 = tpu.matmul %1, %26, %cst_19 {dimension_numbers = #tpu.dot_dimension_numbers<[1], [0], [0], [1], [0, 0, 1, 1], [], []>} : vector<432x8xf32>, vector<8x4xf32>, vector<432x4xf32> -> vector<432x4xf32>
    %c431_i32 = arith.constant 431 : i32
    %28 = tpu.dynamic_rotate %27 by %c431_i32 dim 0 : vector<432x4xf32>, i32 -> vector<432x4xf32>
    %29 = arith.addf %24, %28 : vector<432x4xf32>
    %c6 = arith.constant 6 : index
    %c0_20 = arith.constant 0 : index
    %c0_21 = arith.constant 0 : index
    %30 = vector.load %arg3[%c6, %c0_20, %c0_21] : memref<9x8x4xf32, #tpu.memory_space<vmem>>, vector<1x8x4xf32>
    %31 = vector.shape_cast %30 : vector<1x8x4xf32> to vector<8x4xf32>
    %cst_22 = arith.constant dense<0.000000e+00> : vector<432x4xf32>
    %32 = tpu.matmul %1, %31, %cst_22 {dimension_numbers = #tpu.dot_dimension_numbers<[1], [0], [0], [1], [0, 0, 1, 1], [], []>} : vector<432x8xf32>, vector<8x4xf32>, vector<432x4xf32> -> vector<432x4xf32>
    %c409_i32 = arith.constant 409 : i32
    %33 = tpu.dynamic_rotate %32 by %c409_i32 dim 0 : vector<432x4xf32>, i32 -> vector<432x4xf32>
    %34 = arith.addf %29, %33 : vector<432x4xf32>
    %c7 = arith.constant 7 : index
    %c0_23 = arith.constant 0 : index
    %c0_24 = arith.constant 0 : index
    %35 = vector.load %arg3[%c7, %c0_23, %c0_24] : memref<9x8x4xf32, #tpu.memory_space<vmem>>, vector<1x8x4xf32>
    %36 = vector.shape_cast %35 : vector<1x8x4xf32> to vector<8x4xf32>
    %cst_25 = arith.constant dense<0.000000e+00> : vector<432x4xf32>
    %37 = tpu.matmul %1, %36, %cst_25 {dimension_numbers = #tpu.dot_dimension_numbers<[1], [0], [0], [1], [0, 0, 1, 1], [], []>} : vector<432x8xf32>, vector<8x4xf32>, vector<432x4xf32> -> vector<432x4xf32>
    %c408_i32 = arith.constant 408 : i32
    %38 = tpu.dynamic_rotate %37 by %c408_i32 dim 0 : vector<432x4xf32>, i32 -> vector<432x4xf32>
    %39 = arith.addf %34, %38 : vector<432x4xf32>
    %c8 = arith.constant 8 : index
    %c0_26 = arith.constant 0 : index
    %c0_27 = arith.constant 0 : index
    %40 = vector.load %arg3[%c8, %c0_26, %c0_27] : memref<9x8x4xf32, #tpu.memory_space<vmem>>, vector<1x8x4xf32>
    %41 = vector.shape_cast %40 : vector<1x8x4xf32> to vector<8x4xf32>
    %cst_28 = arith.constant dense<0.000000e+00> : vector<432x4xf32>
    %42 = tpu.matmul %1, %41, %cst_28 {dimension_numbers = #tpu.dot_dimension_numbers<[1], [0], [0], [1], [0, 0, 1, 1], [], []>} : vector<432x8xf32>, vector<8x4xf32>, vector<432x4xf32> -> vector<432x4xf32>
    %c407_i32 = arith.constant 407 : i32
    %43 = tpu.dynamic_rotate %42 by %c407_i32 dim 0 : vector<432x4xf32>, i32 -> vector<432x4xf32>
    %44 = arith.addf %39, %43 : vector<432x4xf32>
    %c0_29 = arith.constant 0 : index
    %c0_30 = arith.constant 0 : index
    %45 = vector.load %arg4[%c0_29, %c0_30] : memref<1x4xf32, #tpu.memory_space<vmem>>, vector<1x4xf32>
    %46 = vector.broadcast %45 : vector<1x4xf32> to vector<432x4xf32>
    %47 = arith.addf %44, %46 : vector<432x4xf32>
    %cst_31 = arith.constant 0.000000e+00 : f32
    %48 = vector.broadcast %cst_31 : f32 to vector<432x4xf32>
    %49 = arith.subf %48, %47 : vector<432x4xf32>
    %50 = math.exp %49 : vector<432x4xf32>
    %cst_32 = arith.constant 1.000000e+00 : f32
    %51 = vector.broadcast %cst_32 : f32 to vector<432x4xf32>
    %52 = arith.addf %51, %50 : vector<432x4xf32>
    %53 = tpu.reciprocal %52 {approx = true} : vector<432x4xf32> -> vector<432x4xf32>
    %54 = arith.mulf %47, %53 : vector<432x4xf32>
    %c0_33 = arith.constant 0 : index
    %c0_34 = arith.constant 0 : index
    %55 = vector.load %arg2[%c0_33, %c0_34] : memref<432x1xf32, #tpu.memory_space<vmem>>, vector<432x1xf32>
    %56 = vector.broadcast %55 : vector<432x1xf32> to vector<432x4xf32>
    %57 = arith.mulf %54, %56 : vector<432x4xf32>
    %c0_35 = arith.constant 0 : index
    %c0_36 = arith.constant 0 : index
    %c0_37 = arith.constant 0 : index
    %58 = vector.load %arg5[%c0_35, %c0_36, %c0_37] : memref<9x4x8xf32, #tpu.memory_space<vmem>>, vector<1x4x8xf32>
    %59 = vector.shape_cast %58 : vector<1x4x8xf32> to vector<4x8xf32>
    %cst_38 = arith.constant dense<0.000000e+00> : vector<432x8xf32>
    %60 = tpu.matmul %57, %59, %cst_38 {dimension_numbers = #tpu.dot_dimension_numbers<[1], [0], [0], [1], [0, 0, 1, 1], [], []>} : vector<432x4xf32>, vector<4x8xf32>, vector<432x8xf32> -> vector<432x8xf32>
    %c25_i32_39 = arith.constant 25 : i32
    %61 = tpu.dynamic_rotate %60 by %c25_i32_39 dim 0 : vector<432x8xf32>, i32 -> vector<432x8xf32>
    %c1_40 = arith.constant 1 : index
    %c0_41 = arith.constant 0 : index
    %c0_42 = arith.constant 0 : index
    %62 = vector.load %arg5[%c1_40, %c0_41, %c0_42] : memref<9x4x8xf32, #tpu.memory_space<vmem>>, vector<1x4x8xf32>
    %63 = vector.shape_cast %62 : vector<1x4x8xf32> to vector<4x8xf32>
    %cst_43 = arith.constant dense<0.000000e+00> : vector<432x8xf32>
    %64 = tpu.matmul %57, %63, %cst_43 {dimension_numbers = #tpu.dot_dimension_numbers<[1], [0], [0], [1], [0, 0, 1, 1], [], []>} : vector<432x4xf32>, vector<4x8xf32>, vector<432x8xf32> -> vector<432x8xf32>
    %c24_i32_44 = arith.constant 24 : i32
    %65 = tpu.dynamic_rotate %64 by %c24_i32_44 dim 0 : vector<432x8xf32>, i32 -> vector<432x8xf32>
    %66 = arith.addf %61, %65 : vector<432x8xf32>
    %c2_45 = arith.constant 2 : index
    %c0_46 = arith.constant 0 : index
    %c0_47 = arith.constant 0 : index
    %67 = vector.load %arg5[%c2_45, %c0_46, %c0_47] : memref<9x4x8xf32, #tpu.memory_space<vmem>>, vector<1x4x8xf32>
    %68 = vector.shape_cast %67 : vector<1x4x8xf32> to vector<4x8xf32>
    %cst_48 = arith.constant dense<0.000000e+00> : vector<432x8xf32>
    %69 = tpu.matmul %57, %68, %cst_48 {dimension_numbers = #tpu.dot_dimension_numbers<[1], [0], [0], [1], [0, 0, 1, 1], [], []>} : vector<432x4xf32>, vector<4x8xf32>, vector<432x8xf32> -> vector<432x8xf32>
    %c23_i32_49 = arith.constant 23 : i32
    %70 = tpu.dynamic_rotate %69 by %c23_i32_49 dim 0 : vector<432x8xf32>, i32 -> vector<432x8xf32>
    %71 = arith.addf %66, %70 : vector<432x8xf32>
    %c3_50 = arith.constant 3 : index
    %c0_51 = arith.constant 0 : index
    %c0_52 = arith.constant 0 : index
    %72 = vector.load %arg5[%c3_50, %c0_51, %c0_52] : memref<9x4x8xf32, #tpu.memory_space<vmem>>, vector<1x4x8xf32>
    %73 = vector.shape_cast %72 : vector<1x4x8xf32> to vector<4x8xf32>
    %cst_53 = arith.constant dense<0.000000e+00> : vector<432x8xf32>
    %74 = tpu.matmul %57, %73, %cst_53 {dimension_numbers = #tpu.dot_dimension_numbers<[1], [0], [0], [1], [0, 0, 1, 1], [], []>} : vector<432x4xf32>, vector<4x8xf32>, vector<432x8xf32> -> vector<432x8xf32>
    %c1_i32_54 = arith.constant 1 : i32
    %75 = tpu.dynamic_rotate %74 by %c1_i32_54 dim 0 : vector<432x8xf32>, i32 -> vector<432x8xf32>
    %76 = arith.addf %71, %75 : vector<432x8xf32>
    %c4_55 = arith.constant 4 : index
    %c0_56 = arith.constant 0 : index
    %c0_57 = arith.constant 0 : index
    %77 = vector.load %arg5[%c4_55, %c0_56, %c0_57] : memref<9x4x8xf32, #tpu.memory_space<vmem>>, vector<1x4x8xf32>
    %78 = vector.shape_cast %77 : vector<1x4x8xf32> to vector<4x8xf32>
    %cst_58 = arith.constant dense<0.000000e+00> : vector<432x8xf32>
    %79 = tpu.matmul %57, %78, %cst_58 {dimension_numbers = #tpu.dot_dimension_numbers<[1], [0], [0], [1], [0, 0, 1, 1], [], []>} : vector<432x4xf32>, vector<4x8xf32>, vector<432x8xf32> -> vector<432x8xf32>
    %80 = arith.addf %76, %79 : vector<432x8xf32>
    %c5_59 = arith.constant 5 : index
    %c0_60 = arith.constant 0 : index
    %c0_61 = arith.constant 0 : index
    %81 = vector.load %arg5[%c5_59, %c0_60, %c0_61] : memref<9x4x8xf32, #tpu.memory_space<vmem>>, vector<1x4x8xf32>
    %82 = vector.shape_cast %81 : vector<1x4x8xf32> to vector<4x8xf32>
    %cst_62 = arith.constant dense<0.000000e+00> : vector<432x8xf32>
    %83 = tpu.matmul %57, %82, %cst_62 {dimension_numbers = #tpu.dot_dimension_numbers<[1], [0], [0], [1], [0, 0, 1, 1], [], []>} : vector<432x4xf32>, vector<4x8xf32>, vector<432x8xf32> -> vector<432x8xf32>
    %c431_i32_63 = arith.constant 431 : i32
    %84 = tpu.dynamic_rotate %83 by %c431_i32_63 dim 0 : vector<432x8xf32>, i32 -> vector<432x8xf32>
    %85 = arith.addf %80, %84 : vector<432x8xf32>
    %c6_64 = arith.constant 6 : index
    %c0_65 = arith.constant 0 : index
    %c0_66 = arith.constant 0 : index
    %86 = vector.load %arg5[%c6_64, %c0_65, %c0_66] : memref<9x4x8xf32, #tpu.memory_space<vmem>>, vector<1x4x8xf32>
    %87 = vector.shape_cast %86 : vector<1x4x8xf32> to vector<4x8xf32>
    %cst_67 = arith.constant dense<0.000000e+00> : vector<432x8xf32>
    %88 = tpu.matmul %57, %87, %cst_67 {dimension_numbers = #tpu.dot_dimension_numbers<[1], [0], [0], [1], [0, 0, 1, 1], [], []>} : vector<432x4xf32>, vector<4x8xf32>, vector<432x8xf32> -> vector<432x8xf32>
    %c409_i32_68 = arith.constant 409 : i32
    %89 = tpu.dynamic_rotate %88 by %c409_i32_68 dim 0 : vector<432x8xf32>, i32 -> vector<432x8xf32>
    %90 = arith.addf %85, %89 : vector<432x8xf32>
    %c7_69 = arith.constant 7 : index
    %c0_70 = arith.constant 0 : index
    %c0_71 = arith.constant 0 : index
    %91 = vector.load %arg5[%c7_69, %c0_70, %c0_71] : memref<9x4x8xf32, #tpu.memory_space<vmem>>, vector<1x4x8xf32>
    %92 = vector.shape_cast %91 : vector<1x4x8xf32> to vector<4x8xf32>
    %cst_72 = arith.constant dense<0.000000e+00> : vector<432x8xf32>
    %93 = tpu.matmul %57, %92, %cst_72 {dimension_numbers = #tpu.dot_dimension_numbers<[1], [0], [0], [1], [0, 0, 1, 1], [], []>} : vector<432x4xf32>, vector<4x8xf32>, vector<432x8xf32> -> vector<432x8xf32>
    %c408_i32_73 = arith.constant 408 : i32
    %94 = tpu.dynamic_rotate %93 by %c408_i32_73 dim 0 : vector<432x8xf32>, i32 -> vector<432x8xf32>
    %95 = arith.addf %90, %94 : vector<432x8xf32>
    %c8_74 = arith.constant 8 : index
    %c0_75 = arith.constant 0 : index
    %c0_76 = arith.constant 0 : index
    %96 = vector.load %arg5[%c8_74, %c0_75, %c0_76] : memref<9x4x8xf32, #tpu.memory_space<vmem>>, vector<1x4x8xf32>
    %97 = vector.shape_cast %96 : vector<1x4x8xf32> to vector<4x8xf32>
    %cst_77 = arith.constant dense<0.000000e+00> : vector<432x8xf32>
    %98 = tpu.matmul %57, %97, %cst_77 {dimension_numbers = #tpu.dot_dimension_numbers<[1], [0], [0], [1], [0, 0, 1, 1], [], []>} : vector<432x4xf32>, vector<4x8xf32>, vector<432x8xf32> -> vector<432x8xf32>
    %c407_i32_78 = arith.constant 407 : i32
    %99 = tpu.dynamic_rotate %98 by %c407_i32_78 dim 0 : vector<432x8xf32>, i32 -> vector<432x8xf32>
    %100 = arith.addf %95, %99 : vector<432x8xf32>
    %c0_79 = arith.constant 0 : index
    %c0_80 = arith.constant 0 : index
    %101 = vector.load %arg6[%c0_79, %c0_80] : memref<1x8xf32, #tpu.memory_space<vmem>>, vector<1x8xf32>
    %102 = vector.broadcast %101 : vector<1x8xf32> to vector<432x8xf32>
    %103 = arith.addf %100, %102 : vector<432x8xf32>
    %cst_81 = arith.constant 0.000000e+00 : f32
    %104 = vector.broadcast %cst_81 : f32 to vector<432x8xf32>
    %105 = arith.subf %104, %103 : vector<432x8xf32>
    %106 = math.exp %105 : vector<432x8xf32>
    %cst_82 = arith.constant 1.000000e+00 : f32
    %107 = vector.broadcast %cst_82 : f32 to vector<432x8xf32>
    %108 = arith.addf %107, %106 : vector<432x8xf32>
    %109 = tpu.reciprocal %108 {approx = true} : vector<432x8xf32> -> vector<432x8xf32>
    %110 = arith.mulf %103, %109 : vector<432x8xf32>
    %111 = arith.addf %110, %1 : vector<432x8xf32>
    %c0_83 = arith.constant 0 : index
    %c0_84 = arith.constant 0 : index
    %c0_85 = arith.constant 0 : index
    %112 = vector.load %arg7[%c0_83, %c0_84, %c0_85] : memref<1x432x8xf32, #tpu.memory_space<vmem>>, vector<1x432x8xf32>
    %113 = vector.shape_cast %112 : vector<1x432x8xf32> to vector<432x8xf32>
    %114 = vector.shape_cast %111 : vector<432x8xf32> to vector<1x432x8xf32>
    tpu.vector_store %arg7[%c0_83, %c0_84, %c0_85], %114 {strides = array<i32>} : memref<1x432x8xf32, #tpu.memory_space<vmem>>, vector<1x432x8xf32>,
    return
  }
  func.func @transform_0(%arg0: i32) -> (i32, i32, i32) {
    %c0_i32 = arith.constant 0 : i32
    %c0_i32_0 = arith.constant 0 : i32
    %c0_i32_1 = arith.constant 0 : i32
    return %arg0, %c0_i32, %c0_i32_0 : i32, i32, i32
  }
  func.func @transform_1(%arg0: i32) -> (i32, i32) {
    %c0_i32 = arith.constant 0 : i32
    %c0_i32_0 = arith.constant 0 : i32
    %c0_i32_1 = arith.constant 0 : i32
    return %c0_i32, %c0_i32_0 : i32, i32
  }
  func.func @transform_2(%arg0: i32) -> (i32, i32, i32) {
    %c0_i32 = arith.constant 0 : i32
    %c0_i32_0 = arith.constant 0 : i32
    %c0_i32_1 = arith.constant 0 : i32
    %c0_i32_2 = arith.constant 0 : i32
    return %c0_i32, %c0_i32_0, %c0_i32_1 : i32, i32, i32
  }
  func.func @transform_3(%arg0: i32) -> (i32, i32) {
    %c0_i32 = arith.constant 0 : i32
    %c0_i32_0 = arith.constant 0 : i32
    %c0_i32_1 = arith.constant 0 : i32
    return %c0_i32, %c0_i32_0 : i32, i32
  }
  func.func @transform_4(%arg0: i32) -> (i32, i32, i32) {
    %c0_i32 = arith.constant 0 : i32
    %c0_i32_0 = arith.constant 0 : i32
    %c0_i32_1 = arith.constant 0 : i32
    %c0_i32_2 = arith.constant 0 : i32
    return %c0_i32, %c0_i32_0, %c0_i32_1 : i32, i32, i32
  }
  func.func @transform_5(%arg0: i32) -> (i32, i32) {
    %c0_i32 = arith.constant 0 : i32
    %c0_i32_0 = arith.constant 0 : i32
    %c0_i32_1 = arith.constant 0 : i32
    return %c0_i32, %c0_i32_0 : i32, i32
  }
  func.func @transform_6(%arg0: i32) -> (i32, i32, i32) {
    %c0_i32 = arith.constant 0 : i32
    %c0_i32_0 = arith.constant 0 : i32
    %c0_i32_1 = arith.constant 0 : i32
    return %arg0, %c0_i32, %c0_i32_0 : i32, i32, i32
  }
}

</mosaic_0001>

<llo_original>
// kernel: tpu_custom_call.1
$region0: #{tpu_custom_call.1}
  #allocation0 [shape = 'u32[]', space=smem, size = 0x4, offset = 0x4, fixed_abs, tag = 'smem constant byte address 0x4 - core index']
  #allocation1 [shape = 'u32[72,128]{1,0:T(1,128)}', space=vmem, size = 0x9000, scoped, tag = 'internal scratch']
  %s0 = inlined_call_operand.vmem [shape: f32[2,432,8], index: 0, kind: input, shape index: {}]
  %s1 = inlined_call_operand.vmem [shape: f32[432,1], index: 1, kind: input, shape index: {}]
  %s2 = inlined_call_operand.vmem [shape: f32[9,8,4], index: 2, kind: input, shape index: {}]
  %s3 = inlined_call_operand.vmem [shape: f32[1,4], index: 3, kind: input, shape index: {}]
  %s4 = inlined_call_operand.vmem [shape: f32[9,4,8], index: 4, kind: input, shape index: {}]
  %s5 = inlined_call_operand.vmem [shape: f32[1,8], index: 5, kind: input, shape index: {}]
  %s6 = inlined_call_operand.vmem [shape: f32[2,432,8], index: 6, kind: output, shape index: {}]
  %s7 = sld [smem:[#allocation0]]
  $region57: #{tpu_custom_call.1} parent=0
    _
  %s9 = ssub.s32 1, %s7
  %s10 = scalar_select 0, %s9, %s7
  loop: start=0, step=1, limit=4
  $region2: #{tpu_custom_call.1} parent=0 // loop_pre_header
    _
  $region3: #{tpu_custom_call.1} parent=0 // loop_header
    %s12 = sphi 0, %s16
    %p13 = scmp.ge.s32.totalorder %s12, 4
    %s22 = sphi 0, %s24
    %s25 = sphi 0, %s22
    %s26 = sphi 0, %s25
    %s42 = sphi 0, %s26
    %s46 = sphi 0, %s46
    %s48 = sphi 0, %s46
    %s49 = sphi 0, %s48
    %s63 = sphi 0, %s49
    %s67 = sphi 0, %s67
    %s69 = sphi 0, %s67
    %s70 = sphi 0, %s69
    %s84 = sphi 0, %s70
    %s88 = sphi 0, %s88
    %s90 = sphi 0, %s88
    %s91 = sphi 0, %s90
    %s105 = sphi 0, %s91
    %s109 = sphi 0, %s109
    %s111 = sphi 0, %s109
    %s112 = sphi 0, %s111
    %s126 = sphi 0, %s112
    %s130 = sphi 0, %s130
    %s132 = sphi 0, %s130
    %s133 = sphi 0, %s132
    %s147 = sphi 0, %s133
    %s153 = sphi 0, %s155
    %s156 = sphi 0, %s153
    %s157 = sphi 0, %s156
    %s173 = sphi 0, %s157
  $region4: #{tpu_custom_call.1} parent=0 // loop_header_branch
    %15 = sbr.rel (%p13) target = $region8
  $region5: #{tpu_custom_call.1} parent=0 // loop_body
    %s17 = ssub.s32 %s12, 1
    %s18 = ssub.s32 %s12, 2
    %s19 = sadd.s32 %s12, 1
    %s20 = ssub.s32 %s12, %s19
    %p21 = scmp.eq.s32.totalorder %s20, 0
    %s23 = sadd.s32 %s22, 1
    %s24 = scalar_select %p21, %s22, %s23
    %p27 = pneg %p21
    %p28 = scmp.eq.s32.totalorder %s12, 1
    %p29 = por %p27, %p28
    %p30 = scmp.ne.s32.totalorder %s22, %s25
    %p31 = scmp.eq.s32.totalorder %s12, 0
    %p32 = por %p30, %p31
    %p33 = scmp.ne.s32.totalorder %s22, %s25
    %p34 = scmp.eq.s32.totalorder %s17, 1
    %p35 = por %p33, %p34
    %p36 = scmp.ne.s32.totalorder %s25, %s26
    %p37 = scmp.eq.s32.totalorder %s17, 0
    %p38 = por %p36, %p37
    %p39 = scmp.ne.s32.totalorder %s25, %s26
    %p40 = scmp.eq.s32.totalorder %s18, 1
    %p41 = por %p39, %p40
    %p43 = scmp.ne.s32.totalorder %s26, %s42
    %p44 = scmp.eq.s32.totalorder %s18, 0
    %p45 = por %p43, %p44
    %s47 = sadd.s32 %s46, 1
    %p50 = scmp.eq.s32.totalorder %s12, 1
    %p51 = scmp.ne.s32.totalorder %s46, %s48
    %p52 = scmp.eq.s32.totalorder %s12, 0
    %p53 = por %p51, %p52
    %p54 = scmp.ne.s32.totalorder %s46, %s48
    %p55 = scmp.eq.s32.totalorder %s17, 1
    %p56 = por %p54, %p55
    %p57 = scmp.ne.s32.totalorder %s48, %s49
    %p58 = scmp.eq.s32.totalorder %s17, 0
    %p59 = por %p57, %p58
    %p60 = scmp.ne.s32.totalorder %s48, %s49
    %p61 = scmp.eq.s32.totalorder %s18, 1
    %p62 = por %p60, %p61
    %p64 = scmp.ne.s32.totalorder %s49, %s63
    %p65 = scmp.eq.s32.totalorder %s18, 0
    %p66 = por %p64, %p65
    %s68 = sadd.s32 %s67, 1
    %p71 = scmp.eq.s32.totalorder %s12, 1
    %p72 = scmp.ne.s32.totalorder %s67, %s69
    %p73 = scmp.eq.s32.totalorder %s12, 0
    %p74 = por %p72, %p73
    %p75 = scmp.ne.s32.totalorder %s67, %s69
    %p76 = scmp.eq.s32.totalorder %s17, 1
    %p77 = por %p75, %p76
    %p78 = scmp.ne.s32.totalorder %s69, %s70
    %p79 = scmp.eq.s32.totalorder %s17, 0
    %p80 = por %p78, %p79
    %p81 = scmp.ne.s32.totalorder %s69, %s70
    %p82 = scmp.eq.s32.totalorder %s18, 1
    %p83 = por %p81, %p82
    %p85 = scmp.ne.s32.totalorder %s70, %s84
    %p86 = scmp.eq.s32.totalorder %s18, 0
    %p87 = por %p85, %p86
    %s89 = sadd.s32 %s88, 1
    %p92 = scmp.eq.s32.totalorder %s12, 1
    %p93 = scmp.ne.s32.totalorder %s88, %s90
    %p94 = scmp.eq.s32.totalorder %s12, 0
    %p95 = por %p93, %p94
    %p96 = scmp.ne.s32.totalorder %s88, %s90
    %p97 = scmp.eq.s32.totalorder %s17, 1
    %p98 = por %p96, %p97
    %p99 = scmp.ne.s32.totalorder %s90, %s91
    %p100 = scmp.eq.s32.totalorder %s17, 0
    %p101 = por %p99, %p100
    %p102 = scmp.ne.s32.totalorder %s90, %s91
    %p103 = scmp.eq.s32.totalorder %s18, 1
    %p104 = por %p102, %p103
    %p106 = scmp.ne.s32.totalorder %s91, %s105
    %p107 = scmp.eq.s32.totalorder %s18, 0
    %p108 = por %p106, %p107
    %s110 = sadd.s32 %s109, 1
    %p113 = scmp.eq.s32.totalorder %s12, 1
    %p114 = scmp.ne.s32.totalorder %s109, %s111
    %p115 = scmp.eq.s32.totalorder %s12, 0
    %p116 = por %p114, %p115
    %p117 = scmp.ne.s32.totalorder %s109, %s111
    %p118 = scmp.eq.s32.totalorder %s17, 1
    %p119 = por %p117, %p118
    %p120 = scmp.ne.s32.totalorder %s111, %s112
    %p121 = scmp.eq.s32.totalorder %s17, 0
    %p122 = por %p120, %p121
    %p123 = scmp.ne.s32.totalorder %s111, %s112
    %p124 = scmp.eq.s32.totalorder %s18, 1
    %p125 = por %p123, %p124
    %p127 = scmp.ne.s32.totalorder %s112, %s126
    %p128 = scmp.eq.s32.totalorder %s18, 0
    %p129 = por %p127, %p128
    %s131 = sadd.s32 %s130, 1
    %p134 = scmp.eq.s32.totalorder %s12, 1
    %p135 = scmp.ne.s32.totalorder %s130, %s132
    %p136 = scmp.eq.s32.totalorder %s12, 0
    %p137 = por %p135, %p136
    %p138 = scmp.ne.s32.totalorder %s130, %s132
    %p139 = scmp.eq.s32.totalorder %s17, 1
    %p140 = por %p138, %p139
    %p141 = scmp.ne.s32.totalorder %s132, %s133
    %p142 = scmp.eq.s32.totalorder %s17, 0
    %p143 = por %p141, %p142
    %p144 = scmp.ne.s32.totalorder %s132, %s133
    %p145 = scmp.eq.s32.totalorder %s18, 1
    %p146 = por %p144, %p145
    %p148 = scmp.ne.s32.totalorder %s133, %s147
    %p149 = scmp.eq.s32.totalorder %s18, 0
    %p150 = por %p148, %p149
    %s151 = ssub.s32 %s12, %s19
    %p152 = scmp.eq.s32.totalorder %s151, 0
    %s154 = sadd.s32 %s153, 1
    %s155 = scalar_select %p152, %s153, %s154
    %p158 = pneg %p152
    %p159 = scmp.eq.s32.totalorder %s12, 1
    %p160 = por %p158, %p159
    %p161 = scmp.ne.s32.totalorder %s153, %s156
    %p162 = scmp.eq.s32.totalorder %s12, 0
    %p163 = por %p161, %p162
    %p164 = scmp.ne.s32.totalorder %s153, %s156
    %p165 = scmp.eq.s32.totalorder %s17, 1
    %p166 = por %p164, %p165
    %p167 = scmp.ne.s32.totalorder %s156, %s157
    %p168 = scmp.eq.s32.totalorder %s17, 0
    %p169 = por %p167, %p168
    %p170 = scmp.ne.s32.totalorder %s156, %s157
    %p171 = scmp.eq.s32.totalorder %s18, 1
    %p172 = por %p170, %p171
    %p174 = scmp.ne.s32.totalorder %s157, %s173
    %p175 = scmp.eq.s32.totalorder %s18, 0
    %p176 = por %p174, %p175
    %p177 = scmp.le.s32.totalorder 1, %s12
    %p178 = scmp.lt.s32.totalorder %s12, 3
    %p179 = pnand %p177, %p178
    %p180 = pneg %p179
    // Predicated region
    $region9: #{tpu_custom_call.1} parent=5 // pred_check
      _
    $region10: #{tpu_custom_call.1} parent=5 // pred_check_branch
      %182 = sbr.rel (%p179) target = $region12
    $region11: #{tpu_custom_call.1} parent=5 // pred_region
      %s183 = ssub.s32 %s12, 1
      // Predicated region
      $region13: #{tpu_custom_call.1} parent=11 // pred_check
        %p184 = pneg %p59
      $region14: #{tpu_custom_call.1} parent=11 // pred_check_branch
        %186 = sbr.rel (%p184) target = $region16
      $region15: #{tpu_custom_call.1} parent=11 // pred_region
        _
      $region16: #{tpu_custom_call.1} parent=11 // pred_fallthru
        _
      // Predicated region
      $region17: #{tpu_custom_call.1} parent=11 // pred_check
        %p187 = pneg %p80
      $region18: #{tpu_custom_call.1} parent=11 // pred_check_branch
        %189 = sbr.rel (%p187) target = $region20
      $region19: #{tpu_custom_call.1} parent=11 // pred_region
        _
      $region20: #{tpu_custom_call.1} parent=11 // pred_fallthru
        _
      // Predicated region
      $region21: #{tpu_custom_call.1} parent=11 // pred_check
        %p190 = pneg %p101
      $region22: #{tpu_custom_call.1} parent=11 // pred_check_branch
        %192 = sbr.rel (%p190) target = $region24
      $region23: #{tpu_custom_call.1} parent=11 // pred_region
        _
      $region24: #{tpu_custom_call.1} parent=11 // pred_fallthru
        _
      // Predicated region
      $region25: #{tpu_custom_call.1} parent=11 // pred_check
        %p193 = pneg %p122
      $region26: #{tpu_custom_call.1} parent=11 // pred_check_branch
        %195 = sbr.rel (%p193) target = $region28
      $region27: #{tpu_custom_call.1} parent=11 // pred_region
        _
      $region28: #{tpu_custom_call.1} parent=11 // pred_fallthru
        _
      // Predicated region
      $region29: #{tpu_custom_call.1} parent=11 // pred_check
        %p196 = pneg %p143
      $region30: #{tpu_custom_call.1} parent=11 // pred_check_branch
        %198 = sbr.rel (%p196) target = $region32
      $region31: #{tpu_custom_call.1} parent=11 // pred_region
        _
      $region32: #{tpu_custom_call.1} parent=11 // pred_fallthru
        _
    $region12: #{tpu_custom_call.1} parent=5 // pred_fallthru
      _
    %p199 = scmp.lt.s32.totalorder %s12, 2
    // Predicated region
    $region33: #{tpu_custom_call.1} parent=5 // pred_check
      %p200 = pneg %p199
    $region34: #{tpu_custom_call.1} parent=5 // pred_check_branch
      %202 = sbr.rel (%p200) target = $region36
    $region35: #{tpu_custom_call.1} parent=5 // pred_region
      // Predicated region
      $region37: #{tpu_custom_call.1} parent=35 // pred_check
        %p203 = pneg %p32
      $region38: #{tpu_custom_call.1} parent=35 // pred_check_branch
        %205 = sbr.rel (%p203) target = $region40
      $region39: #{tpu_custom_call.1} parent=35 // pred_region
        %p206 = scmp.lt.s32.totalorder %s12, 1
        %s207 = scalar_select %p206, %s12, 1
        %s208 = smul.addr %s207, 54
        %s209 = smul.addr %s208, 8
        %s210 = scalar_lea.vmem %s0, %s209
      $region40: #{tpu_custom_call.1} parent=35 // pred_fallthru
        _
    $region36: #{tpu_custom_call.1} parent=5 // pred_fallthru
      _
    %p211 = scmp.le.s32.totalorder 1, %s12
    %p212 = scmp.lt.s32.totalorder %s12, 3
    %p213 = pnand %p211, %p212
    %p214 = pneg %p213
    // Predicated region
    $region41: #{tpu_custom_call.1} parent=5 // pred_check
      _
    $region42: #{tpu_custom_call.1} parent=5 // pred_check_branch
      %216 = sbr.rel (%p213) target = $region44
    $region43: #{tpu_custom_call.1} parent=5 // pred_region
      %s217 = ssub.s32 %s12, 1
      %p218 = scmp.lt.s32.totalorder %s17, 1
      %s219 = scalar_select %p218, %s17, 1
      %s220 = smul.addr %s219, 54
      %s221 = smul.addr %s220, 8
      %s222 = scalar_lea.vmem %s0, %s221
      %p223 = pneg %p38
      %p224 = pneg %p35
      %p225 = pneg %p59
      %p226 = pneg %p56
      %p227 = pneg %p80
      %p228 = pneg %p77
      %p229 = pneg %p101
      %p230 = pneg %p98
      %p231 = pneg %p122
      %p232 = pneg %p119
      %p233 = pneg %p143
      %p234 = pneg %p140
      %p235 = pneg %p169
      %p236 = pneg %p166
      %p237 = scmp.lt.s32.totalorder %s17, 1
      %s238 = scalar_select %p237, %s17, 1
      %s239 = smul.addr %s238, 54
      %s240 = smul.addr %s239, 8
      %s241 = scalar_lea.vmem %s6, %s240
      %p242 = scmp.lt.s32.totalorder %s17, 1
      %s243 = scalar_select %p242, %s17, 1
      %s244 = smul.addr %s243, 54
      %s245 = smul.addr %s244, 8
      %s246 = scalar_lea.vmem %s0, %s245
      %p247 = scmp.lt.s32.totalorder %s17, 1
      %s248 = scalar_select %p247, %s17, 1
      %s249 = smul.addr %s248, 54
      %s250 = smul.addr %s249, 8
      %s251 = scalar_lea.vmem %s6, %s250
      %v252 = vld [vmem:[%s246] sm:$0xff]
      %v253 = vld [vmem:[%s246 + $0x8] sm:$0xff]
      %v254 = vld [vmem:[%s246 + $0x10] sm:$0xff]
      %v255 = vld [vmem:[%s246 + $0x18] sm:$0xff]
      %v256 = vld [vmem:[%s246 + $0x20] sm:$0xff]
      %v257 = vld [vmem:[%s246 + $0x28] sm:$0xff]
      %v258 = vld [vmem:[%s246 + $0x30] sm:$0xff]
      %v259 = vld [vmem:[%s246 + $0x38] sm:$0xff]
      %v260 = vld [vmem:[%s246 + $0x40] sm:$0xff]
      %v261 = vld [vmem:[%s246 + $0x48] sm:$0xff]
      %v262 = vld [vmem:[%s246 + $0x50] sm:$0xff]
      %v263 = vld [vmem:[%s246 + $0x58] sm:$0xff]
      %v264 = vld [vmem:[%s246 + $0x60] sm:$0xff]
      %v265 = vld [vmem:[%s246 + $0x68] sm:$0xff]
      %v266 = vld [vmem:[%s246 + $0x70] sm:$0xff]
      %v267 = vld [vmem:[%s246 + $0x78] sm:$0xff]
      %v268 = vld [vmem:[%s246 + $0x80] sm:$0xff]
      %v269 = vld [vmem:[%s246 + $0x88] sm:$0xff]
      %v270 = vld [vmem:[%s246 + $0x90] sm:$0xff]
      %v271 = vld [vmem:[%s246 + $0x98] sm:$0xff]
      %v272 = vld [vmem:[%s246 + $0xa0] sm:$0xff]
      %v273 = vld [vmem:[%s246 + $0xa8] sm:$0xff]
      %v274 = vld [vmem:[%s246 + $0xb0] sm:$0xff]
      %v275 = vld [vmem:[%s246 + $0xb8] sm:$0xff]
      %v276 = vld [vmem:[%s246 + $0xc0] sm:$0xff]
      %v277 = vld [vmem:[%s246 + $0xc8] sm:$0xff]
      %v278 = vld [vmem:[%s246 + $0xd0] sm:$0xff]
      %v279 = vld [vmem:[%s246 + $0xd8] sm:$0xff]
      %v280 = vld [vmem:[%s246 + $0xe0] sm:$0xff]
      %v281 = vld [vmem:[%s246 + $0xe8] sm:$0xff]
      %v282 = vld [vmem:[%s246 + $0xf0] sm:$0xff]
      %v283 = vld [vmem:[%s246 + $0xf8] sm:$0xff]
      %v284 = vld [vmem:[%s246 + $0x100] sm:$0xff]
      %v285 = vld [vmem:[%s246 + $0x108] sm:$0xff]
      %v286 = vld [vmem:[%s246 + $0x110] sm:$0xff]
      %v287 = vld [vmem:[%s246 + $0x118] sm:$0xff]
      %v288 = vld [vmem:[%s246 + $0x120] sm:$0xff]
      %v289 = vld [vmem:[%s246 + $0x128] sm:$0xff]
      %v290 = vld [vmem:[%s246 + $0x130] sm:$0xff]
      %v291 = vld [vmem:[%s246 + $0x138] sm:$0xff]
      %v292 = vld [vmem:[%s246 + $0x140] sm:$0xff]
      %v293 = vld [vmem:[%s246 + $0x148] sm:$0xff]
      %v294 = vld [vmem:[%s246 + $0x150] sm:$0xff]
      %v295 = vld [vmem:[%s246 + $0x158] sm:$0xff]
      %v296 = vld [vmem:[%s246 + $0x160] sm:$0xff]
      %v297 = vld [vmem:[%s246 + $0x168] sm:$0xff]
      %v298 = vld [vmem:[%s246 + $0x170] sm:$0xff]
      %v299 = vld [vmem:[%s246 + $0x178] sm:$0xff]
      %v300 = vld [vmem:[%s246 + $0x180] sm:$0xff]
      %v301 = vld [vmem:[%s246 + $0x188] sm:$0xff]
      %v302 = vld [vmem:[%s246 + $0x190] sm:$0xff]
      %v303 = vld [vmem:[%s246 + $0x198] sm:$0xff]
      %v304 = vld [vmem:[%s246 + $0x1a0] sm:$0xff]
      %v305 = vld [vmem:[%s246 + $0x1a8] sm:$0xff]
      %v306 = vld [vmem:[%s2] sm:$0xff]
      %vm307 = vcmask 64512
      %v309 = vsel %vm307, %v252, 0
      %v312 = vsel %vm307, %v253, 0
      %v315 = vsel %vm307, %v254, 0
      %v318 = vsel %vm307, %v255, 0
      %v321 = vsel %vm307, %v256, 0
      %v324 = vsel %vm307, %v257, 0
      %v327 = vsel %vm307, %v258, 0
      %v330 = vsel %vm307, %v259, 0
      %v333 = vsel %vm307, %v260, 0
      %v336 = vsel %vm307, %v261, 0
      %v339 = vsel %vm307, %v262, 0
      %v342 = vsel %vm307, %v263, 0
      %v345 = vsel %vm307, %v264, 0
      %v348 = vsel %vm307, %v265, 0
      %v351 = vsel %vm307, %v266, 0
      %v354 = vsel %vm307, %v267, 0
      %v357 = vsel %vm307, %v268, 0
      %v360 = vsel %vm307, %v269, 0
      %v363 = vsel %vm307, %v270, 0
      %v366 = vsel %vm307, %v271, 0
      %v369 = vsel %vm307, %v272, 0
      %v372 = vsel %vm307, %v273, 0
      %v375 = vsel %vm307, %v274, 0
      %v378 = vsel %vm307, %v275, 0
      %v381 = vsel %vm307, %v276, 0
      %v384 = vsel %vm307, %v277, 0
      %v387 = vsel %vm307, %v278, 0
      %v390 = vsel %vm307, %v279, 0
      %v393 = vsel %vm307, %v280, 0
      %v396 = vsel %vm307, %v281, 0
      %v399 = vsel %vm307, %v282, 0
      %v402 = vsel %vm307, %v283, 0
      %v405 = vsel %vm307, %v284, 0
      %v408 = vsel %vm307, %v285, 0
      %v411 = vsel %vm307, %v286, 0
      %v414 = vsel %vm307, %v287, 0
      %v417 = vsel %vm307, %v288, 0
      %v420 = vsel %vm307, %v289, 0
      %v423 = vsel %vm307, %v290, 0
      %v426 = vsel %vm307, %v291, 0
      %v429 = vsel %vm307, %v292, 0
      %v432 = vsel %vm307, %v293, 0
      %v435 = vsel %vm307, %v294, 0
      %v438 = vsel %vm307, %v295, 0
      %v441 = vsel %vm307, %v296, 0
      %v444 = vsel %vm307, %v297, 0
      %v447 = vsel %vm307, %v298, 0
      %v450 = vsel %vm307, %v299, 0
      %v453 = vsel %vm307, %v300, 0
      %v456 = vsel %vm307, %v301, 0
      %v459 = vsel %vm307, %v302, 0
      %v462 = vsel %vm307, %v303, 0
      %v465 = vsel %vm307, %v304, 0
      %v468 = vsel %vm307, %v305, 0
      %470 = vmatpush.msra.mxu0 0.0
      %471 = vmatpush.msra.mxu0 0.0
      %472 = vmatpush.msra.mxu0 0.0
      %473 = vmatpush.msra.mxu0 0.0
      %474 = vmatpush.msra.mxu0 0.0
      %475 = vmatpush.msra.mxu0 0.0
      %476 = vmatpush.msra.mxu0 0.0
      %477 = vmatpush.msra.mxu0 0.0
      %478 = vmatpush.msra.mxu0 0.0
      %479 = vmatpush.msra.mxu0 0.0
      %480 = vmatpush.msra.mxu0 0.0
      %481 = vmatpush.msra.mxu0 0.0
      %482 = vmatpush.msra.mxu0 0.0
      %483 = vmatpush.msra.mxu0 0.0
      %484 = vmatpush.msra.mxu0 0.0
      %485 = vmatpush.msra.mxu0 %v306
      %486 = vmatmul.f32.gmra.mxu0 %v309
      %v487 = vpop.f32.mrf.mxu0
      %v488 = vadd.f32 0.0, %v487
      %489 = vmatmul.f32.gmra.mxu0 %v312
      %v490 = vpop.f32.mrf.mxu0
      %v491 = vadd.f32 0.0, %v490
      %492 = vmatmul.f32.gmra.mxu0 %v315
      %v493 = vpop.f32.mrf.mxu0
      %v494 = vadd.f32 0.0, %v493
      %495 = vmatmul.f32.gmra.mxu0 %v318
      %v496 = vpop.f32.mrf.mxu0
      %v497 = vadd.f32 0.0, %v496
      %498 = vmatmul.f32.gmra.mxu0 %v321
      %v499 = vpop.f32.mrf.mxu0
      %v500 = vadd.f32 0.0, %v499
      %501 = vmatmul.f32.gmra.mxu0 %v324
      %v502 = vpop.f32.mrf.mxu0
      %v503 = vadd.f32 0.0, %v502
      %504 = vmatmul.f32.gmra.mxu0 %v327
      %v505 = vpop.f32.mrf.mxu0
      %v506 = vadd.f32 0.0, %v505
      %507 = vmatmul.f32.gmra.mxu0 %v330
      %v508 = vpop.f32.mrf.mxu0
      %v509 = vadd.f32 0.0, %v508
      %510 = vmatmul.f32.gmra.mxu0 %v333
      %v511 = vpop.f32.mrf.mxu0
      %v512 = vadd.f32 0.0, %v511
      %513 = vmatmul.f32.gmra.mxu0 %v336
      %v514 = vpop.f32.mrf.mxu0
      %v515 = vadd.f32 0.0, %v514
      %516 = vmatmul.f32.gmra.mxu0 %v339
      %v517 = vpop.f32.mrf.mxu0
      %v518 = vadd.f32 0.0, %v517
      %519 = vmatmul.f32.gmra.mxu0 %v342
      %v520 = vpop.f32.mrf.mxu0
      %v521 = vadd.f32 0.0, %v520
      %522 = vmatmul.f32.gmra.mxu0 %v345
      %v523 = vpop.f32.mrf.mxu0
      %v524 = vadd.f32 0.0, %v523
      %525 = vmatmul.f32.gmra.mxu0 %v348
      %v526 = vpop.f32.mrf.mxu0
      %v527 = vadd.f32 0.0, %v526
      %528 = vmatmul.f32.gmra.mxu0 %v351
      %v529 = vpop.f32.mrf.mxu0
      %v530 = vadd.f32 0.0, %v529
      %531 = vmatmul.f32.gmra.mxu0 %v354
      %v532 = vpop.f32.mrf.mxu0
      %v533 = vadd.f32 0.0, %v532
      %534 = vmatmul.f32.gmra.mxu0 %v357
      %v535 = vpop.f32.mrf.mxu0
      %v536 = vadd.f32 0.0, %v535
      %537 = vmatmul.f32.gmra.mxu0 %v360
      %v538 = vpop.f32.mrf.mxu0
      %v539 = vadd.f32 0.0, %v538
      %540 = vmatmul.f32.gmra.mxu0 %v363
      %v541 = vpop.f32.mrf.mxu0
      %v542 = vadd.f32 0.0, %v541
      %543 = vmatmul.f32.gmra.mxu0 %v366
      %v544 = vpop.f32.mrf.mxu0
      %v545 = vadd.f32 0.0, %v544
      %546 = vmatmul.f32.gmra.mxu0 %v369
      %v547 = vpop.f32.mrf.mxu0
      %v548 = vadd.f32 0.0, %v547
      %549 = vmatmul.f32.gmra.mxu0 %v372
      %v550 = vpop.f32.mrf.mxu0
      %v551 = vadd.f32 0.0, %v550
      %552 = vmatmul.f32.gmra.mxu0 %v375
      %v553 = vpop.f32.mrf.mxu0
      %v554 = vadd.f32 0.0, %v553
      %555 = vmatmul.f32.gmra.mxu0 %v378
      %v556 = vpop.f32.mrf.mxu0
      %v557 = vadd.f32 0.0, %v556
      %558 = vmatmul.f32.gmra.mxu0 %v381
      %v559 = vpop.f32.mrf.mxu0
      %v560 = vadd.f32 0.0, %v559
      %561 = vmatmul.f32.gmra.mxu0 %v384
      %v562 = vpop.f32.mrf.mxu0
      %v563 = vadd.f32 0.0, %v562
      %564 = vmatmul.f32.gmra.mxu0 %v387
      %v565 = vpop.f32.mrf.mxu0
      %v566 = vadd.f32 0.0, %v565
      %567 = vmatmul.f32.gmra.mxu0 %v390
      %v568 = vpop.f32.mrf.mxu0
      %v569 = vadd.f32 0.0, %v568
      %570 = vmatmul.f32.gmra.mxu0 %v393
      %v571 = vpop.f32.mrf.mxu0
      %v572 = vadd.f32 0.0, %v571
      %573 = vmatmul.f32.gmra.mxu0 %v396
      %v574 = vpop.f32.mrf.mxu0
      %v575 = vadd.f32 0.0, %v574
      %576 = vmatmul.f32.gmra.mxu0 %v399
      %v577 = vpop.f32.mrf.mxu0
      %v578 = vadd.f32 0.0, %v577
      %579 = vmatmul.f32.gmra.mxu0 %v402
      %v580 = vpop.f32.mrf.mxu0
      %v581 = vadd.f32 0.0, %v580
      %582 = vmatmul.f32.gmra.mxu0 %v405
      %v583 = vpop.f32.mrf.mxu0
      %v584 = vadd.f32 0.0, %v583
      %585 = vmatmul.f32.gmra.mxu0 %v408
      %v586 = vpop.f32.mrf.mxu0
      %v587 = vadd.f32 0.0, %v586
      %588 = vmatmul.f32.gmra.mxu0 %v411
      %v589 = vpop.f32.mrf.mxu0
      %v590 = vadd.f32 0.0, %v589
      %591 = vmatmul.f32.gmra.mxu0 %v414
      %v592 = vpop.f32.mrf.mxu0
      %v593 = vadd.f32 0.0, %v592
      %594 = vmatmul.f32.gmra.mxu0 %v417
      %v595 = vpop.f32.mrf.mxu0
      %v596 = vadd.f32 0.0, %v595
      %597 = vmatmul.f32.gmra.mxu0 %v420
      %v598 = vpop.f32.mrf.mxu0
      %v599 = vadd.f32 0.0, %v598
      %600 = vmatmul.f32.gmra.mxu0 %v423
      %v601 = vpop.f32.mrf.mxu0
      %v602 = vadd.f32 0.0, %v601
      %603 = vmatmul.f32.gmra.mxu0 %v426
      %v604 = vpop.f32.mrf.mxu0
      %v605 = vadd.f32 0.0, %v604
      %606 = vmatmul.f32.gmra.mxu0 %v429
      %v607 = vpop.f32.mrf.mxu0
      %v608 = vadd.f32 0.0, %v607
      %609 = vmatmul.f32.gmra.mxu0 %v432
      %v610 = vpop.f32.mrf.mxu0
      %v611 = vadd.f32 0.0, %v610
      %612 = vmatmul.f32.gmra.mxu0 %v435
      %v613 = vpop.f32.mrf.mxu0
      %v614 = vadd.f32 0.0, %v613
      %615 = vmatmul.f32.gmra.mxu0 %v438
      %v616 = vpop.f32.mrf.mxu0
      %v617 = vadd.f32 0.0, %v616
      %618 = vmatmul.f32.gmra.mxu0 %v441
      %v619 = vpop.f32.mrf.mxu0
      %v620 = vadd.f32 0.0, %v619
      %621 = vmatmul.f32.gmra.mxu0 %v444
      %v622 = vpop.f32.mrf.mxu0
      %v623 = vadd.f32 0.0, %v622
      %624 = vmatmul.f32.gmra.mxu0 %v447
      %v625 = vpop.f32.mrf.mxu0
      %v626 = vadd.f32 0.0, %v625
      %627 = vmatmul.f32.gmra.mxu0 %v450
      %v628 = vpop.f32.mrf.mxu0
      %v629 = vadd.f32 0.0, %v628
      %630 = vmatmul.f32.gmra.mxu0 %v453
      %v631 = vpop.f32.mrf.mxu0
      %v632 = vadd.f32 0.0, %v631
      %633 = vmatmul.f32.gmra.mxu0 %v456
      %v634 = vpop.f32.mrf.mxu0
      %v635 = vadd.f32 0.0, %v634
      %636 = vmatmul.f32.gmra.mxu0 %v459
      %v637 = vpop.f32.mrf.mxu0
      %v638 = vadd.f32 0.0, %v637
      %639 = vmatmul.f32.gmra.mxu0 %v462
      %v640 = vpop.f32.mrf.mxu0
      %v641 = vadd.f32 0.0, %v640
      %642 = vmatmul.f32.gmra.mxu0 %v465
      %v643 = vpop.f32.mrf.mxu0
      %v644 = vadd.f32 0.0, %v643
      %645 = vmatmul.f32.gmra.mxu0 %v468
      %v646 = vpop.f32.mrf.mxu0
      %v647 = vadd.f32 0.0, %v646
      %648 = vdwg.mxu0
      %v649 = vrot.slane %v488, 7
      %v650 = vrot.slane %v491, 7
      %v651 = vrot.slane %v494, 7
      %v652 = vrot.slane %v497, 7
      %v653 = vrot.slane %v500, 7
      %v654 = vrot.slane %v503, 7
      %v655 = vrot.slane %v506, 7
      %v656 = vrot.slane %v509, 7
      %v657 = vrot.slane %v512, 7
      %v658 = vrot.slane %v515, 7
      %v659 = vrot.slane %v518, 7
      %v660 = vrot.slane %v521, 7
      %v661 = vrot.slane %v524, 7
      %v662 = vrot.slane %v527, 7
      %v663 = vrot.slane %v530, 7
      %v664 = vrot.slane %v533, 7
      %v665 = vrot.slane %v536, 7
      %v666 = vrot.slane %v539, 7
      %v667 = vrot.slane %v542, 7
      %v668 = vrot.slane %v545, 7
      %v669 = vrot.slane %v548, 7
      %v670 = vrot.slane %v551, 7
      %v671 = vrot.slane %v554, 7
      %v672 = vrot.slane %v557, 7
      %v673 = vrot.slane %v560, 7
      %v674 = vrot.slane %v563, 7
      %v675 = vrot.slane %v566, 7
      %v676 = vrot.slane %v569, 7
      %v677 = vrot.slane %v572, 7
      %v678 = vrot.slane %v575, 7
      %v679 = vrot.slane %v578, 7
      %v680 = vrot.slane %v581, 7
      %v681 = vrot.slane %v584, 7
      %v682 = vrot.slane %v587, 7
      %v683 = vrot.slane %v590, 7
      %v684 = vrot.slane %v593, 7
      %v685 = vrot.slane %v596, 7
      %v686 = vrot.slane %v599, 7
      %v687 = vrot.slane %v602, 7
      %v688 = vrot.slane %v605, 7
      %v689 = vrot.slane %v608, 7
      %v690 = vrot.slane %v611, 7
      %v691 = vrot.slane %v614, 7
      %v692 = vrot.slane %v617, 7
      %v693 = vrot.slane %v620, 7
      %v694 = vrot.slane %v623, 7
      %v695 = vrot.slane %v626, 7
      %v696 = vrot.slane %v629, 7
      %v697 = vrot.slane %v632, 7
      %v698 = vrot.slane %v635, 7
      %v699 = vrot.slane %v638, 7
      %v700 = vrot.slane %v641, 7
      %v701 = vrot.slane %v644, 7
      %v702 = vrot.slane %v647, 7
      %v703 = vlaneseq
      %v704 = vshrl.u32 %v703, 7
      %vm705 = vcmp.lt.s32.totalorder %v704, 1
      %v706 = vsel %vm705, %v701, %v702
      %v707 = vsel %vm705, %v700, %v701
      %v708 = vsel %vm705, %v699, %v700
      %v709 = vsel %vm705, %v698, %v699
      %v710 = vsel %vm705, %v697, %v698
      %v711 = vsel %vm705, %v696, %v697
      %v712 = vsel %vm705, %v695, %v696
      %v713 = vsel %vm705, %v694, %v695
      %v714 = vsel %vm705, %v693, %v694
      %v715 = vsel %vm705, %v692, %v693
      %v716 = vsel %vm705, %v691, %v692
      %v717 = vsel %vm705, %v690, %v691
      %v718 = vsel %vm705, %v689, %v690
      %v719 = vsel %vm705, %v688, %v689
      %v720 = vsel %vm705, %v687, %v688
      %v721 = vsel %vm705, %v686, %v687
      %v722 = vsel %vm705, %v685, %v686
      %v723 = vsel %vm705, %v684, %v685
      %v724 = vsel %vm705, %v683, %v684
      %v725 = vsel %vm705, %v682, %v683
      %v726 = vsel %vm705, %v681, %v682
      %v727 = vsel %vm705, %v680, %v681
      %v728 = vsel %vm705, %v679, %v680
      %v729 = vsel %vm705, %v678, %v679
      %v730 = vsel %vm705, %v677, %v678
      %v731 = vsel %vm705, %v676, %v677
      %v732 = vsel %vm705, %v675, %v676
      %v733 = vsel %vm705, %v674, %v675
      %v734 = vsel %vm705, %v673, %v674
      %v735 = vsel %vm705, %v672, %v673
      %v736 = vsel %vm705, %v671, %v672
      %v737 = vsel %vm705, %v670, %v671
      %v738 = vsel %vm705, %v669, %v670
      %v739 = vsel %vm705, %v668, %v669
      %v740 = vsel %vm705, %v667, %v668
      %v741 = vsel %vm705, %v666, %v667
      %v742 = vsel %vm705, %v665, %v666
      %v743 = vsel %vm705, %v664, %v665
      %v744 = vsel %vm705, %v663, %v664
      %v745 = vsel %vm705, %v662, %v663
      %v746 = vsel %vm705, %v661, %v662
      %v747 = vsel %vm705, %v660, %v661
      %v748 = vsel %vm705, %v659, %v660
      %v749 = vsel %vm705, %v658, %v659
      %v750 = vsel %vm705, %v657, %v658
      %v751 = vsel %vm705, %v656, %v657
      %v752 = vsel %vm705, %v655, %v656
      %v753 = vsel %vm705, %v654, %v655
      %v754 = vsel %vm705, %v653, %v654
      %v755 = vsel %vm705, %v652, %v653
      %v756 = vsel %vm705, %v651, %v652
      %v757 = vsel %vm705, %v650, %v651
      %v758 = vsel %vm705, %v649, %v650
      %v759 = vsel %vm705, %v702, %v649
      %s760 = scalar_lea.vmem %s2, 8
      %v761 = vld [vmem:[%s760] sm:$0xff]
      %762 = vmatpush.msra.mxu0 0.0
      %763 = vmatpush.msra.mxu0 0.0
      %764 = vmatpush.msra.mxu0 0.0
      %765 = vmatpush.msra.mxu0 0.0
      %766 = vmatpush.msra.mxu0 0.0
      %767 = vmatpush.msra.mxu0 0.0
      %768 = vmatpush.msra.mxu0 0.0
      %769 = vmatpush.msra.mxu0 0.0
      %770 = vmatpush.msra.mxu0 0.0
      %771 = vmatpush.msra.mxu0 0.0
      %772 = vmatpush.msra.mxu0 0.0
      %773 = vmatpush.msra.mxu0 0.0
      %774 = vmatpush.msra.mxu0 0.0
      %775 = vmatpush.msra.mxu0 0.0
      %776 = vmatpush.msra.mxu0 0.0
      %777 = vmatpush.msra.mxu0 %v761
      %778 = vmatmul.f32.gmra.mxu0 %v309
      %v779 = vpop.f32.mrf.mxu0
      %v780 = vadd.f32 0.0, %v779
      %781 = vmatmul.f32.gmra.mxu0 %v312
      %v782 = vpop.f32.mrf.mxu0
      %v783 = vadd.f32 0.0, %v782
      %784 = vmatmul.f32.gmra.mxu0 %v315
      %v785 = vpop.f32.mrf.mxu0
      %v786 = vadd.f32 0.0, %v785
      %787 = vmatmul.f32.gmra.mxu0 %v318
      %v788 = vpop.f32.mrf.mxu0
      %v789 = vadd.f32 0.0, %v788
      %790 = vmatmul.f32.gmra.mxu0 %v321
      %v791 = vpop.f32.mrf.mxu0
      %v792 = vadd.f32 0.0, %v791
      %793 = vmatmul.f32.gmra.mxu0 %v324
      %v794 = vpop.f32.mrf.mxu0
      %v795 = vadd.f32 0.0, %v794
      %796 = vmatmul.f32.gmra.mxu0 %v327
      %v797 = vpop.f32.mrf.mxu0
      %v798 = vadd.f32 0.0, %v797
      %799 = vmatmul.f32.gmra.mxu0 %v330
      %v800 = vpop.f32.mrf.mxu0
      %v801 = vadd.f32 0.0, %v800
      %802 = vmatmul.f32.gmra.mxu0 %v333
      %v803 = vpop.f32.mrf.mxu0
      %v804 = vadd.f32 0.0, %v803
      %805 = vmatmul.f32.gmra.mxu0 %v336
      %v806 = vpop.f32.mrf.mxu0
      %v807 = vadd.f32 0.0, %v806
      %808 = vmatmul.f32.gmra.mxu0 %v339
      %v809 = vpop.f32.mrf.mxu0
      %v810 = vadd.f32 0.0, %v809
      %811 = vmatmul.f32.gmra.mxu0 %v342
      %v812 = vpop.f32.mrf.mxu0
      %v813 = vadd.f32 0.0, %v812
      %814 = vmatmul.f32.gmra.mxu0 %v345
      %v815 = vpop.f32.mrf.mxu0
      %v816 = vadd.f32 0.0, %v815
      %817 = vmatmul.f32.gmra.mxu0 %v348
      %v818 = vpop.f32.mrf.mxu0
      %v819 = vadd.f32 0.0, %v818
      %820 = vmatmul.f32.gmra.mxu0 %v351
      %v821 = vpop.f32.mrf.mxu0
      %v822 = vadd.f32 0.0, %v821
      %823 = vmatmul.f32.gmra.mxu0 %v354
      %v824 = vpop.f32.mrf.mxu0
      %v825 = vadd.f32 0.0, %v824
      %826 = vmatmul.f32.gmra.mxu0 %v357
      %v827 = vpop.f32.mrf.mxu0
      %v828 = vadd.f32 0.0, %v827
      %829 = vmatmul.f32.gmra.mxu0 %v360
      %v830 = vpop.f32.mrf.mxu0
      %v831 = vadd.f32 0.0, %v830
      %832 = vmatmul.f32.gmra.mxu0 %v363
      %v833 = vpop.f32.mrf.mxu0
      %v834 = vadd.f32 0.0, %v833
      %835 = vmatmul.f32.gmra.mxu0 %v366
      %v836 = vpop.f32.mrf.mxu0
      %v837 = vadd.f32 0.0, %v836
      %838 = vmatmul.f32.gmra.mxu0 %v369
      %v839 = vpop.f32.mrf.mxu0
      %v840 = vadd.f32 0.0, %v839
      %841 = vmatmul.f32.gmra.mxu0 %v372
      %v842 = vpop.f32.mrf.mxu0
      %v843 = vadd.f32 0.0, %v842
      %844 = vmatmul.f32.gmra.mxu0 %v375
      %v845 = vpop.f32.mrf.mxu0
      %v846 = vadd.f32 0.0, %v845
      %847 = vmatmul.f32.gmra.mxu0 %v378
      %v848 = vpop.f32.mrf.mxu0
      %v849 = vadd.f32 0.0, %v848
      %850 = vmatmul.f32.gmra.mxu0 %v381
      %v851 = vpop.f32.mrf.mxu0
      %v852 = vadd.f32 0.0, %v851
      %853 = vmatmul.f32.gmra.mxu0 %v384
      %v854 = vpop.f32.mrf.mxu0
      %v855 = vadd.f32 0.0, %v854
      %856 = vmatmul.f32.gmra.mxu0 %v387
      %v857 = vpop.f32.mrf.mxu0
      %v858 = vadd.f32 0.0, %v857
      %859 = vmatmul.f32.gmra.mxu0 %v390
      %v860 = vpop.f32.mrf.mxu0
      %v861 = vadd.f32 0.0, %v860
      %862 = vmatmul.f32.gmra.mxu0 %v393
      %v863 = vpop.f32.mrf.mxu0
      %v864 = vadd.f32 0.0, %v863
      %865 = vmatmul.f32.gmra.mxu0 %v396
      %v866 = vpop.f32.mrf.mxu0
      %v867 = vadd.f32 0.0, %v866
      %868 = vmatmul.f32.gmra.mxu0 %v399
      %v869 = vpop.f32.mrf.mxu0
      %v870 = vadd.f32 0.0, %v869
      %871 = vmatmul.f32.gmra.mxu0 %v402
      %v872 = vpop.f32.mrf.mxu0
      %v873 = vadd.f32 0.0, %v872
      %874 = vmatmul.f32.gmra.mxu0 %v405
      %v875 = vpop.f32.mrf.mxu0
      %v876 = vadd.f32 0.0, %v875
      %877 = vmatmul.f32.gmra.mxu0 %v408
      %v878 = vpop.f32.mrf.mxu0
      %v879 = vadd.f32 0.0, %v878
      %880 = vmatmul.f32.gmra.mxu0 %v411
      %v881 = vpop.f32.mrf.mxu0
      %v882 = vadd.f32 0.0, %v881
      %883 = vmatmul.f32.gmra.mxu0 %v414
      %v884 = vpop.f32.mrf.mxu0
      %v885 = vadd.f32 0.0, %v884
      %886 = vmatmul.f32.gmra.mxu0 %v417
      %v887 = vpop.f32.mrf.mxu0
      %v888 = vadd.f32 0.0, %v887
      %889 = vmatmul.f32.gmra.mxu0 %v420
      %v890 = vpop.f32.mrf.mxu0
      %v891 = vadd.f32 0.0, %v890
      %892 = vmatmul.f32.gmra.mxu0 %v423
      %v893 = vpop.f32.mrf.mxu0
      %v894 = vadd.f32 0.0, %v893
      %895 = vmatmul.f32.gmra.mxu0 %v426
      %v896 = vpop.f32.mrf.mxu0
      %v897 = vadd.f32 0.0, %v896
      %898 = vmatmul.f32.gmra.mxu0 %v429
      %v899 = vpop.f32.mrf.mxu0
      %v900 = vadd.f32 0.0, %v899
      %901 = vmatmul.f32.gmra.mxu0 %v432
      %v902 = vpop.f32.mrf.mxu0
      %v903 = vadd.f32 0.0, %v902
      %904 = vmatmul.f32.gmra.mxu0 %v435
      %v905 = vpop.f32.mrf.mxu0
      %v906 = vadd.f32 0.0, %v905
      %907 = vmatmul.f32.gmra.mxu0 %v438
      %v908 = vpop.f32.mrf.mxu0
      %v909 = vadd.f32 0.0, %v908
      %910 = vmatmul.f32.gmra.mxu0 %v441
      %v911 = vpop.f32.mrf.mxu0
      %v912 = vadd.f32 0.0, %v911
      %913 = vmatmul.f32.gmra.mxu0 %v444
      %v914 = vpop.f32.mrf.mxu0
      %v915 = vadd.f32 0.0, %v914
      %916 = vmatmul.f32.gmra.mxu0 %v447
      %v917 = vpop.f32.mrf.mxu0
      %v918 = vadd.f32 0.0, %v917
      %919 = vmatmul.f32.gmra.mxu0 %v450
      %v920 = vpop.f32.mrf.mxu0
      %v921 = vadd.f32 0.0, %v920
      %922 = vmatmul.f32.gmra.mxu0 %v453
      %v923 = vpop.f32.mrf.mxu0
      %v924 = vadd.f32 0.0, %v923
      %925 = vmatmul.f32.gmra.mxu0 %v456
      %v926 = vpop.f32.mrf.mxu0
      %v927 = vadd.f32 0.0, %v926
      %928 = vmatmul.f32.gmra.mxu0 %v459
      %v929 = vpop.f32.mrf.mxu0
      %v930 = vadd.f32 0.0, %v929
      %931 = vmatmul.f32.gmra.mxu0 %v462
      %v932 = vpop.f32.mrf.mxu0
      %v933 = vadd.f32 0.0, %v932
      %934 = vmatmul.f32.gmra.mxu0 %v465
      %v935 = vpop.f32.mrf.mxu0
      %v936 = vadd.f32 0.0, %v935
      %937 = vmatmul.f32.gmra.mxu0 %v468
      %v938 = vpop.f32.mrf.mxu0
      %v939 = vadd.f32 0.0, %v938
      %940 = vdwg.mxu0
      %v941 = vadd.f32 %v708, %v933
      %v942 = vadd.f32 %v707, %v936
      %v943 = vadd.f32 %v706, %v939
      %v944 = vadd.f32 %v759, %v780
      %v945 = vadd.f32 %v758, %v783
      %v946 = vadd.f32 %v757, %v786
      %v947 = vadd.f32 %v756, %v789
      %v948 = vadd.f32 %v755, %v792
      %v949 = vadd.f32 %v754, %v795
      %v950 = vadd.f32 %v753, %v798
      %v951 = vadd.f32 %v752, %v801
      %v952 = vadd.f32 %v751, %v804
      %v953 = vadd.f32 %v750, %v807
      %v954 = vadd.f32 %v749, %v810
      %v955 = vadd.f32 %v748, %v813
      %v956 = vadd.f32 %v747, %v816
      %v957 = vadd.f32 %v746, %v819
      %v958 = vadd.f32 %v745, %v822
      %v959 = vadd.f32 %v744, %v825
      %v960 = vadd.f32 %v743, %v828
      %v961 = vadd.f32 %v742, %v831
      %v962 = vadd.f32 %v741, %v834
      %v963 = vadd.f32 %v740, %v837
      %v964 = vadd.f32 %v739, %v840
      %v965 = vadd.f32 %v738, %v843
      %v966 = vadd.f32 %v737, %v846
      %v967 = vadd.f32 %v736, %v849
      %v968 = vadd.f32 %v735, %v852
      %v969 = vadd.f32 %v734, %v855
      %v970 = vadd.f32 %v733, %v858
      %v971 = vadd.f32 %v732, %v861
      %v972 = vadd.f32 %v731, %v864
      %v973 = vadd.f32 %v730, %v867
      %v974 = vadd.f32 %v729, %v870
      %v975 = vadd.f32 %v728, %v873
      %v976 = vadd.f32 %v727, %v876
      %v977 = vadd.f32 %v726, %v879
      %v978 = vadd.f32 %v725, %v882
      %v979 = vadd.f32 %v724, %v885
      %v980 = vadd.f32 %v723, %v888
      %v981 = vadd.f32 %v722, %v891
      %v982 = vadd.f32 %v721, %v894
      %v983 = vadd.f32 %v720, %v897
      %v984 = vadd.f32 %v719, %v900
      %v985 = vadd.f32 %v718, %v903
      %v986 = vadd.f32 %v717, %v906
      %v987 = vadd.f32 %v716, %v909
      %v988 = vadd.f32 %v715, %v912
      %v989 = vadd.f32 %v714, %v915
      %v990 = vadd.f32 %v713, %v918
      %v991 = vadd.f32 %v712, %v921
      %v992 = vadd.f32 %v711, %v924
      %v993 = vadd.f32 %v710, %v927
      %v994 = vadd.f32 %v709, %v930
      %s995 = scalar_lea.vmem %s2, 16
      %v996 = vld [vmem:[%s995] sm:$0xff]
      %997 = vmatpush.msra.mxu0 0.0
      %998 = vmatpush.msra.mxu0 0.0
      %999 = vmatpush.msra.mxu0 0.0
      %1000 = vmatpush.msra.mxu0 0.0
      %1001 = vmatpush.msra.mxu0 0.0
      %1002 = vmatpush.msra.mxu0 0.0
      %1003 = vmatpush.msra.mxu0 0.0
      %1004 = vmatpush.msra.mxu0 0.0
      %1005 = vmatpush.msra.mxu0 0.0
      %1006 = vmatpush.msra.mxu0 0.0
      %1007 = vmatpush.msra.mxu0 0.0
      %1008 = vmatpush.msra.mxu0 0.0
      %1009 = vmatpush.msra.mxu0 0.0
      %1010 = vmatpush.msra.mxu0 0.0
      %1011 = vmatpush.msra.mxu0 0.0
      %1012 = vmatpush.msra.mxu0 %v996
      %1013 = vmatmul.f32.gmra.mxu0 %v309
      %v1014 = vpop.f32.mrf.mxu0
      %v1015 = vadd.f32 0.0, %v1014
      %1016 = vmatmul.f32.gmra.mxu0 %v312
      %v1017 = vpop.f32.mrf.mxu0
      %v1018 = vadd.f32 0.0, %v1017
      %1019 = vmatmul.f32.gmra.mxu0 %v315
      %v1020 = vpop.f32.mrf.mxu0
      %v1021 = vadd.f32 0.0, %v1020
      %1022 = vmatmul.f32.gmra.mxu0 %v318
      %v1023 = vpop.f32.mrf.mxu0
      %v1024 = vadd.f32 0.0, %v1023
      %1025 = vmatmul.f32.gmra.mxu0 %v321
      %v1026 = vpop.f32.mrf.mxu0
      %v1027 = vadd.f32 0.0, %v1026
      %1028 = vmatmul.f32.gmra.mxu0 %v324
      %v1029 = vpop.f32.mrf.mxu0
      %v1030 = vadd.f32 0.0, %v1029
      %1031 = vmatmul.f32.gmra.mxu0 %v327
      %v1032 = vpop.f32.mrf.mxu0
      %v1033 = vadd.f32 0.0, %v1032
      %1034 = vmatmul.f32.gmra.mxu0 %v330
      %v1035 = vpop.f32.mrf.mxu0
      %v1036 = vadd.f32 0.0, %v1035
      %1037 = vmatmul.f32.gmra.mxu0 %v333
      %v1038 = vpop.f32.mrf.mxu0
      %v1039 = vadd.f32 0.0, %v1038
      %1040 = vmatmul.f32.gmra.mxu0 %v336
      %v1041 = vpop.f32.mrf.mxu0
      %v1042 = vadd.f32 0.0, %v1041
      %1043 = vmatmul.f32.gmra.mxu0 %v339
      %v1044 = vpop.f32.mrf.mxu0
      %v1045 = vadd.f32 0.0, %v1044
      %1046 = vmatmul.f32.gmra.mxu0 %v342
      %v1047 = vpop.f32.mrf.mxu0
      %v1048 = vadd.f32 0.0, %v1047
      %1049 = vmatmul.f32.gmra.mxu0 %v345
      %v1050 = vpop.f32.mrf.mxu0
      %v1051 = vadd.f32 0.0, %v1050
      %1052 = vmatmul.f32.gmra.mxu0 %v348
      %v1053 = vpop.f32.mrf.mxu0
      %v1054 = vadd.f32 0.0, %v1053
      %1055 = vmatmul.f32.gmra.mxu0 %v351
      %v1056 = vpop.f32.mrf.mxu0
      %v1057 = vadd.f32 0.0, %v1056
      %1058 = vmatmul.f32.gmra.mxu0 %v354
      %v1059 = vpop.f32.mrf.mxu0
      %v1060 = vadd.f32 0.0, %v1059
      %1061 = vmatmul.f32.gmra.mxu0 %v357
      %v1062 = vpop.f32.mrf.mxu0
      %v1063 = vadd.f32 0.0, %v1062
      %1064 = vmatmul.f32.gmra.mxu0 %v360
      %v1065 = vpop.f32.mrf.mxu0
      %v1066 = vadd.f32 0.0, %v1065
      %1067 = vmatmul.f32.gmra.mxu0 %v363
      %v1068 = vpop.f32.mrf.mxu0
      %v1069 = vadd.f32 0.0, %v1068
      %1070 = vmatmul.f32.gmra.mxu0 %v366
      %v1071 = vpop.f32.mrf.mxu0
      %v1072 = vadd.f32 0.0, %v1071
      %1073 = vmatmul.f32.gmra.mxu0 %v369
      %v1074 = vpop.f32.mrf.mxu0
      %v1075 = vadd.f32 0.0, %v1074
      %1076 = vmatmul.f32.gmra.mxu0 %v372
      %v1077 = vpop.f32.mrf.mxu0
      %v1078 = vadd.f32 0.0, %v1077
      %1079 = vmatmul.f32.gmra.mxu0 %v375
      %v1080 = vpop.f32.mrf.mxu0
      %v1081 = vadd.f32 0.0, %v1080
      %1082 = vmatmul.f32.gmra.mxu0 %v378
      %v1083 = vpop.f32.mrf.mxu0
      %v1084 = vadd.f32 0.0, %v1083
      %1085 = vmatmul.f32.gmra.mxu0 %v381
      %v1086 = vpop.f32.mrf.mxu0
      %v1087 = vadd.f32 0.0, %v1086
      %1088 = vmatmul.f32.gmra.mxu0 %v384
      %v1089 = vpop.f32.mrf.mxu0
      %v1090 = vadd.f32 0.0, %v1089
      %1091 = vmatmul.f32.gmra.mxu0 %v387
      %v1092 = vpop.f32.mrf.mxu0
      %v1093 = vadd.f32 0.0, %v1092
      %1094 = vmatmul.f32.gmra.mxu0 %v390
      %v1095 = vpop.f32.mrf.mxu0
      %v1096 = vadd.f32 0.0, %v1095
      %1097 = vmatmul.f32.gmra.mxu0 %v393
      %v1098 = vpop.f32.mrf.mxu0
      %v1099 = vadd.f32 0.0, %v1098
      %1100 = vmatmul.f32.gmra.mxu0 %v396
      %v1101 = vpop.f32.mrf.mxu0
      %v1102 = vadd.f32 0.0, %v1101
      %1103 = vmatmul.f32.gmra.mxu0 %v399
      %v1104 = vpop.f32.mrf.mxu0
      %v1105 = vadd.f32 0.0, %v1104
      %1106 = vmatmul.f32.gmra.mxu0 %v402
      %v1107 = vpop.f32.mrf.mxu0
      %v1108 = vadd.f32 0.0, %v1107
      %1109 = vmatmul.f32.gmra.mxu0 %v405
      %v1110 = vpop.f32.mrf.mxu0
      %v1111 = vadd.f32 0.0, %v1110
      %1112 = vmatmul.f32.gmra.mxu0 %v408
      %v1113 = vpop.f32.mrf.mxu0
      %v1114 = vadd.f32 0.0, %v1113
      %1115 = vmatmul.f32.gmra.mxu0 %v411
      %v1116 = vpop.f32.mrf.mxu0
      %v1117 = vadd.f32 0.0, %v1116
      %1118 = vmatmul.f32.gmra.mxu0 %v414
      %v1119 = vpop.f32.mrf.mxu0
      %v1120 = vadd.f32 0.0, %v1119
      %1121 = vmatmul.f32.gmra.mxu0 %v417
      %v1122 = vpop.f32.mrf.mxu0
      %v1123 = vadd.f32 0.0, %v1122
      %1124 = vmatmul.f32.gmra.mxu0 %v420
      %v1125 = vpop.f32.mrf.mxu0
      %v1126 = vadd.f32 0.0, %v1125
      %1127 = vmatmul.f32.gmra.mxu0 %v423
      %v1128 = vpop.f32.mrf.mxu0
      %v1129 = vadd.f32 0.0, %v1128
      %1130 = vmatmul.f32.gmra.mxu0 %v426
      %v1131 = vpop.f32.mrf.mxu0
      %v1132 = vadd.f32 0.0, %v1131
      %1133 = vmatmul.f32.gmra.mxu0 %v429
      %v1134 = vpop.f32.mrf.mxu0
      %v1135 = vadd.f32 0.0, %v1134
      %1136 = vmatmul.f32.gmra.mxu0 %v432
      %v1137 = vpop.f32.mrf.mxu0
      %v1138 = vadd.f32 0.0, %v1137
      %1139 = vmatmul.f32.gmra.mxu0 %v435
      %v1140 = vpop.f32.mrf.mxu0
      %v1141 = vadd.f32 0.0, %v1140
      %1142 = vmatmul.f32.gmra.mxu0 %v438
      %v1143 = vpop.f32.mrf.mxu0
      %v1144 = vadd.f32 0.0, %v1143
      %1145 = vmatmul.f32.gmra.mxu0 %v441
      %v1146 = vpop.f32.mrf.mxu0
      %v1147 = vadd.f32 0.0, %v1146
      %1148 = vmatmul.f32.gmra.mxu0 %v444
      %v1149 = vpop.f32.mrf.mxu0
      %v1150 = vadd.f32 0.0, %v1149
      %1151 = vmatmul.f32.gmra.mxu0 %v447
      %v1152 = vpop.f32.mrf.mxu0
      %v1153 = vadd.f32 0.0, %v1152
      %1154 = vmatmul.f32.gmra.mxu0 %v450
      %v1155 = vpop.f32.mrf.mxu0
      %v1156 = vadd.f32 0.0, %v1155
      %1157 = vmatmul.f32.gmra.mxu0 %v453
      %v1158 = vpop.f32.mrf.mxu0
      %v1159 = vadd.f32 0.0, %v1158
      %1160 = vmatmul.f32.gmra.mxu0 %v456
      %v1161 = vpop.f32.mrf.mxu0
      %v1162 = vadd.f32 0.0, %v1161
      %1163 = vmatmul.f32.gmra.mxu0 %v459
      %v1164 = vpop.f32.mrf.mxu0
      %v1165 = vadd.f32 0.0, %v1164
      %1166 = vmatmul.f32.gmra.mxu0 %v462
      %v1167 = vpop.f32.mrf.mxu0
      %v1168 = vadd.f32 0.0, %v1167
      %1169 = vmatmul.f32.gmra.mxu0 %v465
      %v1170 = vpop.f32.mrf.mxu0
      %v1171 = vadd.f32 0.0, %v1170
      %1172 = vmatmul.f32.gmra.mxu0 %v468
      %v1173 = vpop.f32.mrf.mxu0
      %v1174 = vadd.f32 0.0, %v1173
      %1175 = vdwg.mxu0
      %v1176 = vrot.slane %v1015, 1
      %v1177 = vrot.slane %v1018, 1
      %v1178 = vrot.slane %v1021, 1
      %v1179 = vrot.slane %v1024, 1
      %v1180 = vrot.slane %v1027, 1
      %v1181 = vrot.slane %v1030, 1
      %v1182 = vrot.slane %v1033, 1
      %v1183 = vrot.slane %v1036, 1
      %v1184 = vrot.slane %v1039, 1
      %v1185 = vrot.slane %v1042, 1
      %v1186 = vrot.slane %v1045, 1
      %v1187 = vrot.slane %v1048, 1
      %v1188 = vrot.slane %v1051, 1
      %v1189 = vrot.slane %v1054, 1
      %v1190 = vrot.slane %v1057, 1
      %v1191 = vrot.slane %v1060, 1
      %v1192 = vrot.slane %v1063, 1
      %v1193 = vrot.slane %v1066, 1
      %v1194 = vrot.slane %v1069, 1
      %v1195 = vrot.slane %v1072, 1
      %v1196 = vrot.slane %v1075, 1
      %v1197 = vrot.slane %v1078, 1
      %v1198 = vrot.slane %v1081, 1
      %v1199 = vrot.slane %v1084, 1
      %v1200 = vrot.slane %v1087, 1
      %v1201 = vrot.slane %v1090, 1
      %v1202 = vrot.slane %v1093, 1
      %v1203 = vrot.slane %v1096, 1
      %v1204 = vrot.slane %v1099, 1
      %v1205 = vrot.slane %v1102, 1
      %v1206 = vrot.slane %v1105, 1
      %v1207 = vrot.slane %v1108, 1
      %v1208 = vrot.slane %v1111, 1
      %v1209 = vrot.slane %v1114, 1
      %v1210 = vrot.slane %v1117, 1
      %v1211 = vrot.slane %v1120, 1
      %v1212 = vrot.slane %v1123, 1
      %v1213 = vrot.slane %v1126, 1
      %v1214 = vrot.slane %v1129, 1
      %v1215 = vrot.slane %v1132, 1
      %v1216 = vrot.slane %v1135, 1
      %v1217 = vrot.slane %v1138, 1
      %v1218 = vrot.slane %v1141, 1
      %v1219 = vrot.slane %v1144, 1
      %v1220 = vrot.slane %v1147, 1
      %v1221 = vrot.slane %v1150, 1
      %v1222 = vrot.slane %v1153, 1
      %v1223 = vrot.slane %v1156, 1
      %v1224 = vrot.slane %v1159, 1
      %v1225 = vrot.slane %v1162, 1
      %v1226 = vrot.slane %v1165, 1
      %v1227 = vrot.slane %v1168, 1
      %v1228 = vrot.slane %v1171, 1
      %v1229 = vrot.slane %v1174, 1
      %vm1230 = vcmp.lt.s32.totalorder %v704, 7
      %v1231 = vsel %vm1230, %v1228, %v1229
      %v1232 = vsel %vm1230, %v1227, %v1228
      %v1233 = vsel %vm1230, %v1226, %v1227
      %v1234 = vsel %vm1230, %v1225, %v1226
      %v1235 = vsel %vm1230, %v1224, %v1225
      %v1236 = vsel %vm1230, %v1223, %v1224
      %v1237 = vsel %vm1230, %v1222, %v1223
      %v1238 = vsel %vm1230, %v1221, %v1222
      %v1239 = vsel %vm1230, %v1220, %v1221
      %v1240 = vsel %vm1230, %v1219, %v1220
      %v1241 = vsel %vm1230, %v1218, %v1219
      %v1242 = vsel %vm1230, %v1217, %v1218
      %v1243 = vsel %vm1230, %v1216, %v1217
      %v1244 = vsel %vm1230, %v1215, %v1216
      %v1245 = vsel %vm1230, %v1214, %v1215
      %v1246 = vsel %vm1230, %v1213, %v1214
      %v1247 = vsel %vm1230, %v1212, %v1213
      %v1248 = vsel %vm1230, %v1211, %v1212
      %v1249 = vsel %vm1230, %v1210, %v1211
      %v1250 = vsel %vm1230, %v1209, %v1210
      %v1251 = vsel %vm1230, %v1208, %v1209
      %v1252 = vsel %vm1230, %v1207, %v1208
      %v1253 = vsel %vm1230, %v1206, %v1207
      %v1254 = vsel %vm1230, %v1205, %v1206
      %v1255 = vsel %vm1230, %v1204, %v1205
      %v1256 = vsel %vm1230, %v1203, %v1204
      %v1257 = vsel %vm1230, %v1202, %v1203
      %v1258 = vsel %vm1230, %v1201, %v1202
      %v1259 = vsel %vm1230, %v1200, %v1201
      %v1260 = vsel %vm1230, %v1199, %v1200
      %v1261 = vsel %vm1230, %v1198, %v1199
      %v1262 = vsel %vm1230, %v1197, %v1198
      %v1263 = vsel %vm1230, %v1196, %v1197
      %v1264 = vsel %vm1230, %v1195, %v1196
      %v1265 = vsel %vm1230, %v1194, %v1195
      %v1266 = vsel %vm1230, %v1193, %v1194
      %v1267 = vsel %vm1230, %v1192, %v1193
      %v1268 = vsel %vm1230, %v1191, %v1192
      %v1269 = vsel %vm1230, %v1190, %v1191
      %v1270 = vsel %vm1230, %v1189, %v1190
      %v1271 = vsel %vm1230, %v1188, %v1189
      %v1272 = vsel %vm1230, %v1187, %v1188
      %v1273 = vsel %vm1230, %v1186, %v1187
      %v1274 = vsel %vm1230, %v1185, %v1186
      %v1275 = vsel %vm1230, %v1184, %v1185
      %v1276 = vsel %vm1230, %v1183, %v1184
      %v1277 = vsel %vm1230, %v1182, %v1183
      %v1278 = vsel %vm1230, %v1181, %v1182
      %v1279 = vsel %vm1230, %v1180, %v1181
      %v1280 = vsel %vm1230, %v1179, %v1180
      %v1281 = vsel %vm1230, %v1178, %v1179
      %v1282 = vsel %vm1230, %v1177, %v1178
      %v1283 = vsel %vm1230, %v1176, %v1177
      %v1284 = vsel %vm1230, %v1229, %v1176
      %v1285 = vadd.f32 %v941, %v1232
      %v1286 = vadd.f32 %v942, %v1231
      %v1287 = vadd.f32 %v943, %v1284
      %v1288 = vadd.f32 %v944, %v1283
      %v1289 = vadd.f32 %v945, %v1282
      %v1290 = vadd.f32 %v946, %v1281
      %v1291 = vadd.f32 %v947, %v1280
      %v1292 = vadd.f32 %v948, %v1279
      %v1293 = vadd.f32 %v949, %v1278
      %v1294 = vadd.f32 %v950, %v1277
      %v1295 = vadd.f32 %v951, %v1276
      %v1296 = vadd.f32 %v952, %v1275
      %v1297 = vadd.f32 %v953, %v1274
      %v1298 = vadd.f32 %v954, %v1273
      %v1299 = vadd.f32 %v955, %v1272
      %v1300 = vadd.f32 %v956, %v1271
      %v1301 = vadd.f32 %v957, %v1270
      %v1302 = vadd.f32 %v958, %v1269
      %v1303 = vadd.f32 %v959, %v1268
      %v1304 = vadd.f32 %v960, %v1267
      %v1305 = vadd.f32 %v961, %v1266
      %v1306 = vadd.f32 %v962, %v1265
      %v1307 = vadd.f32 %v963, %v1264
      %v1308 = vadd.f32 %v964, %v1263
      %v1309 = vadd.f32 %v965, %v1262
      %v1310 = vadd.f32 %v966, %v1261
      %v1311 = vadd.f32 %v967, %v1260
      %v1312 = vadd.f32 %v968, %v1259
      %v1313 = vadd.f32 %v969, %v1258
      %v1314 = vadd.f32 %v970, %v1257
      %v1315 = vadd.f32 %v971, %v1256
      %v1316 = vadd.f32 %v972, %v1255
      %v1317 = vadd.f32 %v973, %v1254
      %v1318 = vadd.f32 %v974, %v1253
      %v1319 = vadd.f32 %v975, %v1252
      %v1320 = vadd.f32 %v976, %v1251
      %v1321 = vadd.f32 %v977, %v1250
      %v1322 = vadd.f32 %v978, %v1249
      %v1323 = vadd.f32 %v979, %v1248
      %v1324 = vadd.f32 %v980, %v1247
      %v1325 = vadd.f32 %v981, %v1246
      %v1326 = vadd.f32 %v982, %v1245
      %v1327 = vadd.f32 %v983, %v1244
      %v1328 = vadd.f32 %v984, %v1243
      %v1329 = vadd.f32 %v985, %v1242
      %v1330 = vadd.f32 %v986, %v1241
      %v1331 = vadd.f32 %v987, %v1240
      %v1332 = vadd.f32 %v988, %v1239
      %v1333 = vadd.f32 %v989, %v1238
      %v1334 = vadd.f32 %v990, %v1237
      %v1335 = vadd.f32 %v991, %v1236
      %v1336 = vadd.f32 %v992, %v1235
      %v1337 = vadd.f32 %v993, %v1234
      %v1338 = vadd.f32 %v994, %v1233
      %s1339 = scalar_lea.vmem %s2, 24
      %v1340 = vld [vmem:[%s1339] sm:$0xff]
      %1341 = vmatpush.msra.mxu0 0.0
      %1342 = vmatpush.msra.mxu0 0.0
      %1343 = vmatpush.msra.mxu0 0.0
      %1344 = vmatpush.msra.mxu0 0.0
      %1345 = vmatpush.msra.mxu0 0.0
      %1346 = vmatpush.msra.mxu0 0.0
      %1347 = vmatpush.msra.mxu0 0.0
      %1348 = vmatpush.msra.mxu0 0.0
      %1349 = vmatpush.msra.mxu0 0.0
      %1350 = vmatpush.msra.mxu0 0.0
      %1351 = vmatpush.msra.mxu0 0.0
      %1352 = vmatpush.msra.mxu0 0.0
      %1353 = vmatpush.msra.mxu0 0.0
      %1354 = vmatpush.msra.mxu0 0.0
      %1355 = vmatpush.msra.mxu0 0.0
      %1356 = vmatpush.msra.mxu0 %v1340
      %1357 = vmatmul.f32.gmra.mxu0 %v309
      %v1358 = vpop.f32.mrf.mxu0
      %v1359 = vadd.f32 0.0, %v1358
      %1360 = vmatmul.f32.gmra.mxu0 %v312
      %v1361 = vpop.f32.mrf.mxu0
      %v1362 = vadd.f32 0.0, %v1361
      %1363 = vmatmul.f32.gmra.mxu0 %v315
      %v1364 = vpop.f32.mrf.mxu0
      %v1365 = vadd.f32 0.0, %v1364
      %1366 = vmatmul.f32.gmra.mxu0 %v318
      %v1367 = vpop.f32.mrf.mxu0
      %v1368 = vadd.f32 0.0, %v1367
      %1369 = vmatmul.f32.gmra.mxu0 %v321
      %v1370 = vpop.f32.mrf.mxu0
      %v1371 = vadd.f32 0.0, %v1370
      %1372 = vmatmul.f32.gmra.mxu0 %v324
      %v1373 = vpop.f32.mrf.mxu0
      %v1374 = vadd.f32 0.0, %v1373
      %1375 = vmatmul.f32.gmra.mxu0 %v327
      %v1376 = vpop.f32.mrf.mxu0
      %v1377 = vadd.f32 0.0, %v1376
      %1378 = vmatmul.f32.gmra.mxu0 %v330
      %v1379 = vpop.f32.mrf.mxu0
      %v1380 = vadd.f32 0.0, %v1379
      %1381 = vmatmul.f32.gmra.mxu0 %v333
      %v1382 = vpop.f32.mrf.mxu0
      %v1383 = vadd.f32 0.0, %v1382
      %1384 = vmatmul.f32.gmra.mxu0 %v336
      %v1385 = vpop.f32.mrf.mxu0
      %v1386 = vadd.f32 0.0, %v1385
      %1387 = vmatmul.f32.gmra.mxu0 %v339
      %v1388 = vpop.f32.mrf.mxu0
      %v1389 = vadd.f32 0.0, %v1388
      %1390 = vmatmul.f32.gmra.mxu0 %v342
      %v1391 = vpop.f32.mrf.mxu0
      %v1392 = vadd.f32 0.0, %v1391
      %1393 = vmatmul.f32.gmra.mxu0 %v345
      %v1394 = vpop.f32.mrf.mxu0
      %v1395 = vadd.f32 0.0, %v1394
      %1396 = vmatmul.f32.gmra.mxu0 %v348
      %v1397 = vpop.f32.mrf.mxu0
      %v1398 = vadd.f32 0.0, %v1397
      %1399 = vmatmul.f32.gmra.mxu0 %v351
      %v1400 = vpop.f32.mrf.mxu0
      %v1401 = vadd.f32 0.0, %v1400
      %1402 = vmatmul.f32.gmra.mxu0 %v354
      %v1403 = vpop.f32.mrf.mxu0
      %v1404 = vadd.f32 0.0, %v1403
      %1405 = vmatmul.f32.gmra.mxu0 %v357
      %v1406 = vpop.f32.mrf.mxu0
      %v1407 = vadd.f32 0.0, %v1406
      %1408 = vmatmul.f32.gmra.mxu0 %v360
      %v1409 = vpop.f32.mrf.mxu0
      %v1410 = vadd.f32 0.0, %v1409
      %1411 = vmatmul.f32.gmra.mxu0 %v363
      %v1412 = vpop.f32.mrf.mxu0
      %v1413 = vadd.f32 0.0, %v1412
      %1414 = vmatmul.f32.gmra.mxu0 %v366
      %v1415 = vpop.f32.mrf.mxu0
      %v1416 = vadd.f32 0.0, %v1415
      %1417 = vmatmul.f32.gmra.mxu0 %v369
      %v1418 = vpop.f32.mrf.mxu0
      %v1419 = vadd.f32 0.0, %v1418
      %1420 = vmatmul.f32.gmra.mxu0 %v372
      %v1421 = vpop.f32.mrf.mxu0
      %v1422 = vadd.f32 0.0, %v1421
      %1423 = vmatmul.f32.gmra.mxu0 %v375
      %v1424 = vpop.f32.mrf.mxu0
      %v1425 = vadd.f32 0.0, %v1424
      %1426 = vmatmul.f32.gmra.mxu0 %v378
      %v1427 = vpop.f32.mrf.mxu0
      %v1428 = vadd.f32 0.0, %v1427
      %1429 = vmatmul.f32.gmra.mxu0 %v381
      %v1430 = vpop.f32.mrf.mxu0
      %v1431 = vadd.f32 0.0, %v1430
      %1432 = vmatmul.f32.gmra.mxu0 %v384
      %v1433 = vpop.f32.mrf.mxu0
      %v1434 = vadd.f32 0.0, %v1433
      %1435 = vmatmul.f32.gmra.mxu0 %v387
      %v1436 = vpop.f32.mrf.mxu0
      %v1437 = vadd.f32 0.0, %v1436
      %1438 = vmatmul.f32.gmra.mxu0 %v390
      %v1439 = vpop.f32.mrf.mxu0
      %v1440 = vadd.f32 0.0, %v1439
      %1441 = vmatmul.f32.gmra.mxu0 %v393
      %v1442 = vpop.f32.mrf.mxu0
      %v1443 = vadd.f32 0.0, %v1442
      %1444 = vmatmul.f32.gmra.mxu0 %v396
      %v1445 = vpop.f32.mrf.mxu0
      %v1446 = vadd.f32 0.0, %v1445
      %1447 = vmatmul.f32.gmra.mxu0 %v399
      %v1448 = vpop.f32.mrf.mxu0
      %v1449 = vadd.f32 0.0, %v1448
      %1450 = vmatmul.f32.gmra.mxu0 %v402
      %v1451 = vpop.f32.mrf.mxu0
      %v1452 = vadd.f32 0.0, %v1451
      %1453 = vmatmul.f32.gmra.mxu0 %v405
      %v1454 = vpop.f32.mrf.mxu0
      %v1455 = vadd.f32 0.0, %v1454
      %1456 = vmatmul.f32.gmra.mxu0 %v408
      %v1457 = vpop.f32.mrf.mxu0
      %v1458 = vadd.f32 0.0, %v1457
      %1459 = vmatmul.f32.gmra.mxu0 %v411
      %v1460 = vpop.f32.mrf.mxu0
      %v1461 = vadd.f32 0.0, %v1460
      %1462 = vmatmul.f32.gmra.mxu0 %v414
      %v1463 = vpop.f32.mrf.mxu0
      %v1464 = vadd.f32 0.0, %v1463
      %1465 = vmatmul.f32.gmra.mxu0 %v417
      %v1466 = vpop.f32.mrf.mxu0
      %v1467 = vadd.f32 0.0, %v1466
      %1468 = vmatmul.f32.gmra.mxu0 %v420
      %v1469 = vpop.f32.mrf.mxu0
      %v1470 = vadd.f32 0.0, %v1469
      %1471 = vmatmul.f32.gmra.mxu0 %v423
      %v1472 = vpop.f32.mrf.mxu0
      %v1473 = vadd.f32 0.0, %v1472
      %1474 = vmatmul.f32.gmra.mxu0 %v426
      %v1475 = vpop.f32.mrf.mxu0
      %v1476 = vadd.f32 0.0, %v1475
      %1477 = vmatmul.f32.gmra.mxu0 %v429
      %v1478 = vpop.f32.mrf.mxu0
      %v1479 = vadd.f32 0.0, %v1478
      %1480 = vmatmul.f32.gmra.mxu0 %v432
      %v1481 = vpop.f32.mrf.mxu0
      %v1482 = vadd.f32 0.0, %v1481
      %1483 = vmatmul.f32.gmra.mxu0 %v435
      %v1484 = vpop.f32.mrf.mxu0
      %v1485 = vadd.f32 0.0, %v1484
      %1486 = vmatmul.f32.gmra.mxu0 %v438
      %v1487 = vpop.f32.mrf.mxu0
      %v1488 = vadd.f32 0.0, %v1487
      %1489 = vmatmul.f32.gmra.mxu0 %v441
      %v1490 = vpop.f32.mrf.mxu0
      %v1491 = vadd.f32 0.0, %v1490
      %1492 = vmatmul.f32.gmra.mxu0 %v444
      %v1493 = vpop.f32.mrf.mxu0
      %v1494 = vadd.f32 0.0, %v1493
      %1495 = vmatmul.f32.gmra.mxu0 %v447
      %v1496 = vpop.f32.mrf.mxu0
      %v1497 = vadd.f32 0.0, %v1496
      %1498 = vmatmul.f32.gmra.mxu0 %v450
      %v1499 = vpop.f32.mrf.mxu0
      %v1500 = vadd.f32 0.0, %v1499
      %1501 = vmatmul.f32.gmra.mxu0 %v453
      %v1502 = vpop.f32.mrf.mxu0
      %v1503 = vadd.f32 0.0, %v1502
      %1504 = vmatmul.f32.gmra.mxu0 %v456
      %v1505 = vpop.f32.mrf.mxu0
      %v1506 = vadd.f32 0.0, %v1505
      %1507 = vmatmul.f32.gmra.mxu0 %v459
      %v1508 = vpop.f32.mrf.mxu0
      %v1509 = vadd.f32 0.0, %v1508
      %1510 = vmatmul.f32.gmra.mxu0 %v462
      %v1511 = vpop.f32.mrf.mxu0
      %v1512 = vadd.f32 0.0, %v1511
      %1513 = vmatmul.f32.gmra.mxu0 %v465
      %v1514 = vpop.f32.mrf.mxu0
      %v1515 = vadd.f32 0.0, %v1514
      %1516 = vmatmul.f32.gmra.mxu0 %v468
      %v1517 = vpop.f32.mrf.mxu0
      %v1518 = vadd.f32 0.0, %v1517
      %1519 = vdwg.mxu0
      %v1520 = vrot.slane %v1359, 7
      %v1521 = vrot.slane %v1362, 7
      %v1522 = vrot.slane %v1365, 7
      %v1523 = vrot.slane %v1368, 7
      %v1524 = vrot.slane %v1371, 7
      %v1525 = vrot.slane %v1374, 7
      %v1526 = vrot.slane %v1377, 7
      %v1527 = vrot.slane %v1380, 7
      %v1528 = vrot.slane %v1383, 7
      %v1529 = vrot.slane %v1386, 7
      %v1530 = vrot.slane %v1389, 7
      %v1531 = vrot.slane %v1392, 7
      %v1532 = vrot.slane %v1395, 7
      %v1533 = vrot.slane %v1398, 7
      %v1534 = vrot.slane %v1401, 7
      %v1535 = vrot.slane %v1404, 7
      %v1536 = vrot.slane %v1407, 7
      %v1537 = vrot.slane %v1410, 7
      %v1538 = vrot.slane %v1413, 7
      %v1539 = vrot.slane %v1416, 7
      %v1540 = vrot.slane %v1419, 7
      %v1541 = vrot.slane %v1422, 7
      %v1542 = vrot.slane %v1425, 7
      %v1543 = vrot.slane %v1428, 7
      %v1544 = vrot.slane %v1431, 7
      %v1545 = vrot.slane %v1434, 7
      %v1546 = vrot.slane %v1437, 7
      %v1547 = vrot.slane %v1440, 7
      %v1548 = vrot.slane %v1443, 7
      %v1549 = vrot.slane %v1446, 7
      %v1550 = vrot.slane %v1449, 7
      %v1551 = vrot.slane %v1452, 7
      %v1552 = vrot.slane %v1455, 7
      %v1553 = vrot.slane %v1458, 7
      %v1554 = vrot.slane %v1461, 7
      %v1555 = vrot.slane %v1464, 7
      %v1556 = vrot.slane %v1467, 7
      %v1557 = vrot.slane %v1470, 7
      %v1558 = vrot.slane %v1473, 7
      %v1559 = vrot.slane %v1476, 7
      %v1560 = vrot.slane %v1479, 7
      %v1561 = vrot.slane %v1482, 7
      %v1562 = vrot.slane %v1485, 7
      %v1563 = vrot.slane %v1488, 7
      %v1564 = vrot.slane %v1491, 7
      %v1565 = vrot.slane %v1494, 7
      %v1566 = vrot.slane %v1497, 7
      %v1567 = vrot.slane %v1500, 7
      %v1568 = vrot.slane %v1503, 7
      %v1569 = vrot.slane %v1506, 7
      %v1570 = vrot.slane %v1509, 7
      %v1571 = vrot.slane %v1512, 7
      %v1572 = vrot.slane %v1515, 7
      %v1573 = vrot.slane %v1518, 7
      %v1574 = vsel %vm705, %v1572, %v1573
      %v1575 = vsel %vm705, %v1571, %v1572
      %v1576 = vsel %vm705, %v1570, %v1571
      %v1577 = vsel %vm705, %v1569, %v1570
      %v1578 = vsel %vm705, %v1568, %v1569
      %v1579 = vsel %vm705, %v1567, %v1568
      %v1580 = vsel %vm705, %v1566, %v1567
      %v1581 = vsel %vm705, %v1565, %v1566
      %v1582 = vsel %vm705, %v1564, %v1565
      %v1583 = vsel %vm705, %v1563, %v1564
      %v1584 = vsel %vm705, %v1562, %v1563
      %v1585 = vsel %vm705, %v1561, %v1562
      %v1586 = vsel %vm705, %v1560, %v1561
      %v1587 = vsel %vm705, %v1559, %v1560
      %v1588 = vsel %vm705, %v1558, %v1559
      %v1589 = vsel %vm705, %v1557, %v1558
      %v1590 = vsel %vm705, %v1556, %v1557
      %v1591 = vsel %vm705, %v1555, %v1556
      %v1592 = vsel %vm705, %v1554, %v1555
      %v1593 = vsel %vm705, %v1553, %v1554
      %v1594 = vsel %vm705, %v1552, %v1553
      %v1595 = vsel %vm705, %v1551, %v1552
      %v1596 = vsel %vm705, %v1550, %v1551
      %v1597 = vsel %vm705, %v1549, %v1550
      %v1598 = vsel %vm705, %v1548, %v1549
      %v1599 = vsel %vm705, %v1547, %v1548
      %v1600 = vsel %vm705, %v1546, %v1547
      %v1601 = vsel %vm705, %v1545, %v1546
      %v1602 = vsel %vm705, %v1544, %v1545
      %v1603 = vsel %vm705, %v1543, %v1544
      %v1604 = vsel %vm705, %v1542, %v1543
      %v1605 = vsel %vm705, %v1541, %v1542
      %v1606 = vsel %vm705, %v1540, %v1541
      %v1607 = vsel %vm705, %v1539, %v1540
      %v1608 = vsel %vm705, %v1538, %v1539
      %v1609 = vsel %vm705, %v1537, %v1538
      %v1610 = vsel %vm705, %v1536, %v1537
      %v1611 = vsel %vm705, %v1535, %v1536
      %v1612 = vsel %vm705, %v1534, %v1535
      %v1613 = vsel %vm705, %v1533, %v1534
      %v1614 = vsel %vm705, %v1532, %v1533
      %v1615 = vsel %vm705, %v1531, %v1532
      %v1616 = vsel %vm705, %v1530, %v1531
      %v1617 = vsel %vm705, %v1529, %v1530
      %v1618 = vsel %vm705, %v1528, %v1529
      %v1619 = vsel %vm705, %v1527, %v1528
      %v1620 = vsel %vm705, %v1526, %v1527
      %v1621 = vsel %vm705, %v1525, %v1526
      %v1622 = vsel %vm705, %v1524, %v1525
      %v1623 = vsel %vm705, %v1523, %v1524
      %v1624 = vsel %vm705, %v1522, %v1523
      %v1625 = vsel %vm705, %v1521, %v1522
      %v1626 = vsel %vm705, %v1520, %v1521
      %v1627 = vsel %vm705, %v1573, %v1520
      %v1628 = vadd.f32 %v1285, %v1627
      %v1629 = vadd.f32 %v1286, %v1626
      %v1630 = vadd.f32 %v1287, %v1625
      %v1631 = vadd.f32 %v1288, %v1624
      %v1632 = vadd.f32 %v1289, %v1623
      %v1633 = vadd.f32 %v1290, %v1622
      %v1634 = vadd.f32 %v1291, %v1621
      %v1635 = vadd.f32 %v1292, %v1620
      %v1636 = vadd.f32 %v1293, %v1619
      %v1637 = vadd.f32 %v1294, %v1618
      %v1638 = vadd.f32 %v1295, %v1617
      %v1639 = vadd.f32 %v1296, %v1616
      %v1640 = vadd.f32 %v1297, %v1615
      %v1641 = vadd.f32 %v1298, %v1614
      %v1642 = vadd.f32 %v1299, %v1613
      %v1643 = vadd.f32 %v1300, %v1612
      %v1644 = vadd.f32 %v1301, %v1611
      %v1645 = vadd.f32 %v1302, %v1610
      %v1646 = vadd.f32 %v1303, %v1609
      %v1647 = vadd.f32 %v1304, %v1608
      %v1648 = vadd.f32 %v1305, %v1607
      %v1649 = vadd.f32 %v1306, %v1606
      %v1650 = vadd.f32 %v1307, %v1605
      %v1651 = vadd.f32 %v1308, %v1604
      %v1652 = vadd.f32 %v1309, %v1603
      %v1653 = vadd.f32 %v1310, %v1602
      %v1654 = vadd.f32 %v1311, %v1601
      %v1655 = vadd.f32 %v1312, %v1600
      %v1656 = vadd.f32 %v1313, %v1599
      %v1657 = vadd.f32 %v1314, %v1598
      %v1658 = vadd.f32 %v1315, %v1597
      %v1659 = vadd.f32 %v1316, %v1596
      %v1660 = vadd.f32 %v1317, %v1595
      %v1661 = vadd.f32 %v1318, %v1594
      %v1662 = vadd.f32 %v1319, %v1593
      %v1663 = vadd.f32 %v1320, %v1592
      %v1664 = vadd.f32 %v1321, %v1591
      %v1665 = vadd.f32 %v1322, %v1590
      %v1666 = vadd.f32 %v1323, %v1589
      %v1667 = vadd.f32 %v1324, %v1588
      %v1668 = vadd.f32 %v1325, %v1587
      %v1669 = vadd.f32 %v1326, %v1586
      %v1670 = vadd.f32 %v1327, %v1585
      %v1671 = vadd.f32 %v1328, %v1584
      %v1672 = vadd.f32 %v1329, %v1583
      %v1673 = vadd.f32 %v1330, %v1582
      %v1674 = vadd.f32 %v1331, %v1581
      %v1675 = vadd.f32 %v1332, %v1580
      %v1676 = vadd.f32 %v1333, %v1579
      %v1677 = vadd.f32 %v1334, %v1578
      %v1678 = vadd.f32 %v1335, %v1577
      %v1679 = vadd.f32 %v1336, %v1576
      %v1680 = vadd.f32 %v1337, %v1575
      %v1681 = vadd.f32 %v1338, %v1574
      %s1682 = scalar_lea.vmem %s2, 32
      %v1683 = vld [vmem:[%s1682] sm:$0xff]
      %1684 = vmatpush.msra.mxu0 0.0
      %1685 = vmatpush.msra.mxu0 0.0
      %1686 = vmatpush.msra.mxu0 0.0
      %1687 = vmatpush.msra.mxu0 0.0
      %1688 = vmatpush.msra.mxu0 0.0
      %1689 = vmatpush.msra.mxu0 0.0
      %1690 = vmatpush.msra.mxu0 0.0
      %1691 = vmatpush.msra.mxu0 0.0
      %1692 = vmatpush.msra.mxu0 0.0
      %1693 = vmatpush.msra.mxu0 0.0
      %1694 = vmatpush.msra.mxu0 0.0
      %1695 = vmatpush.msra.mxu0 0.0
      %1696 = vmatpush.msra.mxu0 0.0
      %1697 = vmatpush.msra.mxu0 0.0
      %1698 = vmatpush.msra.mxu0 0.0
      %1699 = vmatpush.msra.mxu0 %v1683
      %1700 = vmatmul.f32.gmra.mxu0 %v309
      %v1701 = vpop.f32.mrf.mxu0
      %v1702 = vadd.f32 0.0, %v1701
      %1703 = vmatmul.f32.gmra.mxu0 %v312
      %v1704 = vpop.f32.mrf.mxu0
      %v1705 = vadd.f32 0.0, %v1704
      %1706 = vmatmul.f32.gmra.mxu0 %v315
      %v1707 = vpop.f32.mrf.mxu0
      %v1708 = vadd.f32 0.0, %v1707
      %1709 = vmatmul.f32.gmra.mxu0 %v318
      %v1710 = vpop.f32.mrf.mxu0
      %v1711 = vadd.f32 0.0, %v1710
      %1712 = vmatmul.f32.gmra.mxu0 %v321
      %v1713 = vpop.f32.mrf.mxu0
      %v1714 = vadd.f32 0.0, %v1713
      %1715 = vmatmul.f32.gmra.mxu0 %v324
      %v1716 = vpop.f32.mrf.mxu0
      %v1717 = vadd.f32 0.0, %v1716
      %1718 = vmatmul.f32.gmra.mxu0 %v327
      %v1719 = vpop.f32.mrf.mxu0
      %v1720 = vadd.f32 0.0, %v1719
      %1721 = vmatmul.f32.gmra.mxu0 %v330
      %v1722 = vpop.f32.mrf.mxu0
      %v1723 = vadd.f32 0.0, %v1722
      %1724 = vmatmul.f32.gmra.mxu0 %v333
      %v1725 = vpop.f32.mrf.mxu0
      %v1726 = vadd.f32 0.0, %v1725
      %1727 = vmatmul.f32.gmra.mxu0 %v336
      %v1728 = vpop.f32.mrf.mxu0
      %v1729 = vadd.f32 0.0, %v1728
      %1730 = vmatmul.f32.gmra.mxu0 %v339
      %v1731 = vpop.f32.mrf.mxu0
      %v1732 = vadd.f32 0.0, %v1731
      %1733 = vmatmul.f32.gmra.mxu0 %v342
      %v1734 = vpop.f32.mrf.mxu0
      %v1735 = vadd.f32 0.0, %v1734
      %1736 = vmatmul.f32.gmra.mxu0 %v345
      %v1737 = vpop.f32.mrf.mxu0
      %v1738 = vadd.f32 0.0, %v1737
      %1739 = vmatmul.f32.gmra.mxu0 %v348
      %v1740 = vpop.f32.mrf.mxu0
      %v1741 = vadd.f32 0.0, %v1740
      %1742 = vmatmul.f32.gmra.mxu0 %v351
      %v1743 = vpop.f32.mrf.mxu0
      %v1744 = vadd.f32 0.0, %v1743
      %1745 = vmatmul.f32.gmra.mxu0 %v354
      %v1746 = vpop.f32.mrf.mxu0
      %v1747 = vadd.f32 0.0, %v1746
      %1748 = vmatmul.f32.gmra.mxu0 %v357
      %v1749 = vpop.f32.mrf.mxu0
      %v1750 = vadd.f32 0.0, %v1749
      %1751 = vmatmul.f32.gmra.mxu0 %v360
      %v1752 = vpop.f32.mrf.mxu0
      %v1753 = vadd.f32 0.0, %v1752
      %1754 = vmatmul.f32.gmra.mxu0 %v363
      %v1755 = vpop.f32.mrf.mxu0
      %v1756 = vadd.f32 0.0, %v1755
      %1757 = vmatmul.f32.gmra.mxu0 %v366
      %v1758 = vpop.f32.mrf.mxu0
      %v1759 = vadd.f32 0.0, %v1758
      %1760 = vmatmul.f32.gmra.mxu0 %v369
      %v1761 = vpop.f32.mrf.mxu0
      %v1762 = vadd.f32 0.0, %v1761
      %1763 = vmatmul.f32.gmra.mxu0 %v372
      %v1764 = vpop.f32.mrf.mxu0
      %v1765 = vadd.f32 0.0, %v1764
      %1766 = vmatmul.f32.gmra.mxu0 %v375
      %v1767 = vpop.f32.mrf.mxu0
      %v1768 = vadd.f32 0.0, %v1767
      %1769 = vmatmul.f32.gmra.mxu0 %v378
      %v1770 = vpop.f32.mrf.mxu0
      %v1771 = vadd.f32 0.0, %v1770
      %1772 = vmatmul.f32.gmra.mxu0 %v381
      %v1773 = vpop.f32.mrf.mxu0
      %v1774 = vadd.f32 0.0, %v1773
      %1775 = vmatmul.f32.gmra.mxu0 %v384
      %v1776 = vpop.f32.mrf.mxu0
      %v1777 = vadd.f32 0.0, %v1776
      %1778 = vmatmul.f32.gmra.mxu0 %v387
      %v1779 = vpop.f32.mrf.mxu0
      %v1780 = vadd.f32 0.0, %v1779
      %1781 = vmatmul.f32.gmra.mxu0 %v390
      %v1782 = vpop.f32.mrf.mxu0
      %v1783 = vadd.f32 0.0, %v1782
      %1784 = vmatmul.f32.gmra.mxu0 %v393
      %v1785 = vpop.f32.mrf.mxu0
      %v1786 = vadd.f32 0.0, %v1785
      %1787 = vmatmul.f32.gmra.mxu0 %v396
      %v1788 = vpop.f32.mrf.mxu0
      %v1789 = vadd.f32 0.0, %v1788
      %1790 = vmatmul.f32.gmra.mxu0 %v399
      %v1791 = vpop.f32.mrf.mxu0
      %v1792 = vadd.f32 0.0, %v1791
      %1793 = vmatmul.f32.gmra.mxu0 %v402
      %v1794 = vpop.f32.mrf.mxu0
      %v1795 = vadd.f32 0.0, %v1794
      %1796 = vmatmul.f32.gmra.mxu0 %v405
      %v1797 = vpop.f32.mrf.mxu0
      %v1798 = vadd.f32 0.0, %v1797
      %1799 = vmatmul.f32.gmra.mxu0 %v408
      %v1800 = vpop.f32.mrf.mxu0
      %v1801 = vadd.f32 0.0, %v1800
      %1802 = vmatmul.f32.gmra.mxu0 %v411
      %v1803 = vpop.f32.mrf.mxu0
      %v1804 = vadd.f32 0.0, %v1803
      %1805 = vmatmul.f32.gmra.mxu0 %v414
      %v1806 = vpop.f32.mrf.mxu0
      %v1807 = vadd.f32 0.0, %v1806
      %1808 = vmatmul.f32.gmra.mxu0 %v417
      %v1809 = vpop.f32.mrf.mxu0
      %v1810 = vadd.f32 0.0, %v1809
      %1811 = vmatmul.f32.gmra.mxu0 %v420
      %v1812 = vpop.f32.mrf.mxu0
      %v1813 = vadd.f32 0.0, %v1812
      %1814 = vmatmul.f32.gmra.mxu0 %v423
      %v1815 = vpop.f32.mrf.mxu0
      %v1816 = vadd.f32 0.0, %v1815
      %1817 = vmatmul.f32.gmra.mxu0 %v426
      %v1818 = vpop.f32.mrf.mxu0
      %v1819 = vadd.f32 0.0, %v1818
      %1820 = vmatmul.f32.gmra.mxu0 %v429
      %v1821 = vpop.f32.mrf.mxu0
      %v1822 = vadd.f32 0.0, %v1821
      %1823 = vmatmul.f32.gmra.mxu0 %v432
      %v1824 = vpop.f32.mrf.mxu0
      %v1825 = vadd.f32 0.0, %v1824
      %1826 = vmatmul.f32.gmra.mxu0 %v435
      %v1827 = vpop.f32.mrf.mxu0
      %v1828 = vadd.f32 0.0, %v1827
      %1829 = vmatmul.f32.gmra.mxu0 %v438
      %v1830 = vpop.f32.mrf.mxu0
      %v1831 = vadd.f32 0.0, %v1830
      %1832 = vmatmul.f32.gmra.mxu0 %v441
      %v1833 = vpop.f32.mrf.mxu0
      %v1834 = vadd.f32 0.0, %v1833
      %1835 = vmatmul.f32.gmra.mxu0 %v444
      %v1836 = vpop.f32.mrf.mxu0
      %v1837 = vadd.f32 0.0, %v1836
      %1838 = vmatmul.f32.gmra.mxu0 %v447
      %v1839 = vpop.f32.mrf.mxu0
      %v1840 = vadd.f32 0.0, %v1839
      %1841 = vmatmul.f32.gmra.mxu0 %v450
      %v1842 = vpop.f32.mrf.mxu0
      %v1843 = vadd.f32 0.0, %v1842
      %1844 = vmatmul.f32.gmra.mxu0 %v453
      %v1845 = vpop.f32.mrf.mxu0
      %v1846 = vadd.f32 0.0, %v1845
      %1847 = vmatmul.f32.gmra.mxu0 %v456
      %v1848 = vpop.f32.mrf.mxu0
      %v1849 = vadd.f32 0.0, %v1848
      %1850 = vmatmul.f32.gmra.mxu0 %v459
      %v1851 = vpop.f32.mrf.mxu0
      %v1852 = vadd.f32 0.0, %v1851
      %1853 = vmatmul.f32.gmra.mxu0 %v462
      %v1854 = vpop.f32.mrf.mxu0
      %v1855 = vadd.f32 0.0, %v1854
      %1856 = vmatmul.f32.gmra.mxu0 %v465
      %v1857 = vpop.f32.mrf.mxu0
      %v1858 = vadd.f32 0.0, %v1857
      %1859 = vmatmul.f32.gmra.mxu0 %v468
      %v1860 = vpop.f32.mrf.mxu0
      %v1861 = vadd.f32 0.0, %v1860
      %1862 = vdwg.mxu0
      %v1863 = vadd.f32 %v1628, %v1702
      %v1864 = vadd.f32 %v1629, %v1705
      %v1865 = vadd.f32 %v1630, %v1708
      %v1866 = vadd.f32 %v1631, %v1711
      %v1867 = vadd.f32 %v1632, %v1714
      %v1868 = vadd.f32 %v1633, %v1717
      %v1869 = vadd.f32 %v1634, %v1720
      %v1870 = vadd.f32 %v1635, %v1723
      %v1871 = vadd.f32 %v1636, %v1726
      %v1872 = vadd.f32 %v1637, %v1729
      %v1873 = vadd.f32 %v1638, %v1732
      %v1874 = vadd.f32 %v1639, %v1735
      %v1875 = vadd.f32 %v1640, %v1738
      %v1876 = vadd.f32 %v1641, %v1741
      %v1877 = vadd.f32 %v1642, %v1744
      %v1878 = vadd.f32 %v1643, %v1747
      %v1879 = vadd.f32 %v1644, %v1750
      %v1880 = vadd.f32 %v1645, %v1753
      %v1881 = vadd.f32 %v1646, %v1756
      %v1882 = vadd.f32 %v1647, %v1759
      %v1883 = vadd.f32 %v1648, %v1762
      %v1884 = vadd.f32 %v1649, %v1765
      %v1885 = vadd.f32 %v1650, %v1768
      %v1886 = vadd.f32 %v1651, %v1771
      %v1887 = vadd.f32 %v1652, %v1774
      %v1888 = vadd.f32 %v1653, %v1777
      %v1889 = vadd.f32 %v1654, %v1780
      %v1890 = vadd.f32 %v1655, %v1783
      %v1891 = vadd.f32 %v1656, %v1786
      %v1892 = vadd.f32 %v1657, %v1789
      %v1893 = vadd.f32 %v1658, %v1792
      %v1894 = vadd.f32 %v1659, %v1795
      %v1895 = vadd.f32 %v1660, %v1798
      %v1896 = vadd.f32 %v1661, %v1801
      %v1897 = vadd.f32 %v1662, %v1804
      %v1898 = vadd.f32 %v1663, %v1807
      %v1899 = vadd.f32 %v1664, %v1810
      %v1900 = vadd.f32 %v1665, %v1813
      %v1901 = vadd.f32 %v1666, %v1816
      %v1902 = vadd.f32 %v1667, %v1819
      %v1903 = vadd.f32 %v1668, %v1822
      %v1904 = vadd.f32 %v1669, %v1825
      %v1905 = vadd.f32 %v1670, %v1828
      %v1906 = vadd.f32 %v1671, %v1831
      %v1907 = vadd.f32 %v1672, %v1834
      %v1908 = vadd.f32 %v1673, %v1837
      %v1909 = vadd.f32 %v1674, %v1840
      %v1910 = vadd.f32 %v1675, %v1843
      %v1911 = vadd.f32 %v1676, %v1846
      %v1912 = vadd.f32 %v1677, %v1849
      %v1913 = vadd.f32 %v1678, %v1852
      %v1914 = vadd.f32 %v1679, %v1855
      %v1915 = vadd.f32 %v1680, %v1858
      %v1916 = vadd.f32 %v1681, %v1861
      %s1917 = scalar_lea.vmem %s2, 40
      %v1918 = vld [vmem:[%s1917] sm:$0xff]
      %1919 = vmatpush.msra.mxu0 0.0
      %1920 = vmatpush.msra.mxu0 0.0
      %1921 = vmatpush.msra.mxu0 0.0
      %1922 = vmatpush.msra.mxu0 0.0
      %1923 = vmatpush.msra.mxu0 0.0
      %1924 = vmatpush.msra.mxu0 0.0
      %1925 = vmatpush.msra.mxu0 0.0
      %1926 = vmatpush.msra.mxu0 0.0
      %1927 = vmatpush.msra.mxu0 0.0
      %1928 = vmatpush.msra.mxu0 0.0
      %1929 = vmatpush.msra.mxu0 0.0
      %1930 = vmatpush.msra.mxu0 0.0
      %1931 = vmatpush.msra.mxu0 0.0
      %1932 = vmatpush.msra.mxu0 0.0
      %1933 = vmatpush.msra.mxu0 0.0
      %1934 = vmatpush.msra.mxu0 %v1918
      %1935 = vmatmul.f32.gmra.mxu0 %v309
      %v1936 = vpop.f32.mrf.mxu0
      %v1937 = vadd.f32 0.0, %v1936
      %1938 = vmatmul.f32.gmra.mxu0 %v312
      %v1939 = vpop.f32.mrf.mxu0
      %v1940 = vadd.f32 0.0, %v1939
      %1941 = vmatmul.f32.gmra.mxu0 %v315
      %v1942 = vpop.f32.mrf.mxu0
      %v1943 = vadd.f32 0.0, %v1942
      %1944 = vmatmul.f32.gmra.mxu0 %v318
      %v1945 = vpop.f32.mrf.mxu0
      %v1946 = vadd.f32 0.0, %v1945
      %1947 = vmatmul.f32.gmra.mxu0 %v321
      %v1948 = vpop.f32.mrf.mxu0
      %v1949 = vadd.f32 0.0, %v1948
      %1950 = vmatmul.f32.gmra.mxu0 %v324
      %v1951 = vpop.f32.mrf.mxu0
      %v1952 = vadd.f32 0.0, %v1951
      %1953 = vmatmul.f32.gmra.mxu0 %v327
      %v1954 = vpop.f32.mrf.mxu0
      %v1955 = vadd.f32 0.0, %v1954
      %1956 = vmatmul.f32.gmra.mxu0 %v330
      %v1957 = vpop.f32.mrf.mxu0
      %v1958 = vadd.f32 0.0, %v1957
      %1959 = vmatmul.f32.gmra.mxu0 %v333
      %v1960 = vpop.f32.mrf.mxu0
      %v1961 = vadd.f32 0.0, %v1960
      %1962 = vmatmul.f32.gmra.mxu0 %v336
      %v1963 = vpop.f32.mrf.mxu0
      %v1964 = vadd.f32 0.0, %v1963
      %1965 = vmatmul.f32.gmra.mxu0 %v339
      %v1966 = vpop.f32.mrf.mxu0
      %v1967 = vadd.f32 0.0, %v1966
      %1968 = vmatmul.f32.gmra.mxu0 %v342
      %v1969 = vpop.f32.mrf.mxu0
      %v1970 = vadd.f32 0.0, %v1969
      %1971 = vmatmul.f32.gmra.mxu0 %v345
      %v1972 = vpop.f32.mrf.mxu0
      %v1973 = vadd.f32 0.0, %v1972
      %1974 = vmatmul.f32.gmra.mxu0 %v348
      %v1975 = vpop.f32.mrf.mxu0
      %v1976 = vadd.f32 0.0, %v1975
      %1977 = vmatmul.f32.gmra.mxu0 %v351
      %v1978 = vpop.f32.mrf.mxu0
      %v1979 = vadd.f32 0.0, %v1978
      %1980 = vmatmul.f32.gmra.mxu0 %v354
      %v1981 = vpop.f32.mrf.mxu0
      %v1982 = vadd.f32 0.0, %v1981
      %1983 = vmatmul.f32.gmra.mxu0 %v357
      %v1984 = vpop.f32.mrf.mxu0
      %v1985 = vadd.f32 0.0, %v1984
      %1986 = vmatmul.f32.gmra.mxu0 %v360
      %v1987 = vpop.f32.mrf.mxu0
      %v1988 = vadd.f32 0.0, %v1987
      %1989 = vmatmul.f32.gmra.mxu0 %v363
      %v1990 = vpop.f32.mrf.mxu0
      %v1991 = vadd.f32 0.0, %v1990
      %1992 = vmatmul.f32.gmra.mxu0 %v366
      %v1993 = vpop.f32.mrf.mxu0
      %v1994 = vadd.f32 0.0, %v1993
      %1995 = vmatmul.f32.gmra.mxu0 %v369
      %v1996 = vpop.f32.mrf.mxu0
      %v1997 = vadd.f32 0.0, %v1996
      %1998 = vmatmul.f32.gmra.mxu0 %v372
      %v1999 = vpop.f32.mrf.mxu0
      %v2000 = vadd.f32 0.0, %v1999
      %2001 = vmatmul.f32.gmra.mxu0 %v375
      %v2002 = vpop.f32.mrf.mxu0
      %v2003 = vadd.f32 0.0, %v2002
      %2004 = vmatmul.f32.gmra.mxu0 %v378
      %v2005 = vpop.f32.mrf.mxu0
      %v2006 = vadd.f32 0.0, %v2005
      %2007 = vmatmul.f32.gmra.mxu0 %v381
      %v2008 = vpop.f32.mrf.mxu0
      %v2009 = vadd.f32 0.0, %v2008
      %2010 = vmatmul.f32.gmra.mxu0 %v384
      %v2011 = vpop.f32.mrf.mxu0
      %v2012 = vadd.f32 0.0, %v2011
      %2013 = vmatmul.f32.gmra.mxu0 %v387
      %v2014 = vpop.f32.mrf.mxu0
      %v2015 = vadd.f32 0.0, %v2014
      %2016 = vmatmul.f32.gmra.mxu0 %v390
      %v2017 = vpop.f32.mrf.mxu0
      %v2018 = vadd.f32 0.0, %v2017
      %2019 = vmatmul.f32.gmra.mxu0 %v393
      %v2020 = vpop.f32.mrf.mxu0
      %v2021 = vadd.f32 0.0, %v2020
      %2022 = vmatmul.f32.gmra.mxu0 %v396
      %v2023 = vpop.f32.mrf.mxu0
      %v2024 = vadd.f32 0.0, %v2023
      %2025 = vmatmul.f32.gmra.mxu0 %v399
      %v2026 = vpop.f32.mrf.mxu0
      %v2027 = vadd.f32 0.0, %v2026
      %2028 = vmatmul.f32.gmra.mxu0 %v402
      %v2029 = vpop.f32.mrf.mxu0
      %v2030 = vadd.f32 0.0, %v2029
      %2031 = vmatmul.f32.gmra.mxu0 %v405
      %v2032 = vpop.f32.mrf.mxu0
      %v2033 = vadd.f32 0.0, %v2032
      %2034 = vmatmul.f32.gmra.mxu0 %v408
      %v2035 = vpop.f32.mrf.mxu0
      %v2036 = vadd.f32 0.0, %v2035
      %2037 = vmatmul.f32.gmra.mxu0 %v411
      %v2038 = vpop.f32.mrf.mxu0
      %v2039 = vadd.f32 0.0, %v2038
      %2040 = vmatmul.f32.gmra.mxu0 %v414
      %v2041 = vpop.f32.mrf.mxu0
      %v2042 = vadd.f32 0.0, %v2041
      %2043 = vmatmul.f32.gmra.mxu0 %v417
      %v2044 = vpop.f32.mrf.mxu0
      %v2045 = vadd.f32 0.0, %v2044
      %2046 = vmatmul.f32.gmra.mxu0 %v420
      %v2047 = vpop.f32.mrf.mxu0
      %v2048 = vadd.f32 0.0, %v2047
      %2049 = vmatmul.f32.gmra.mxu0 %v423
      %v2050 = vpop.f32.mrf.mxu0
      %v2051 = vadd.f32 0.0, %v2050
      %2052 = vmatmul.f32.gmra.mxu0 %v426
      %v2053 = vpop.f32.mrf.mxu0
      %v2054 = vadd.f32 0.0, %v2053
      %2055 = vmatmul.f32.gmra.mxu0 %v429
      %v2056 = vpop.f32.mrf.mxu0
      %v2057 = vadd.f32 0.0, %v2056
      %2058 = vmatmul.f32.gmra.mxu0 %v432
      %v2059 = vpop.f32.mrf.mxu0
      %v2060 = vadd.f32 0.0, %v2059
      %2061 = vmatmul.f32.gmra.mxu0 %v435
      %v2062 = vpop.f32.mrf.mxu0
      %v2063 = vadd.f32 0.0, %v2062
      %2064 = vmatmul.f32.gmra.mxu0 %v438
      %v2065 = vpop.f32.mrf.mxu0
      %v2066 = vadd.f32 0.0, %v2065
      %2067 = vmatmul.f32.gmra.mxu0 %v441
      %v2068 = vpop.f32.mrf.mxu0
      %v2069 = vadd.f32 0.0, %v2068
      %2070 = vmatmul.f32.gmra.mxu0 %v444
      %v2071 = vpop.f32.mrf.mxu0
      %v2072 = vadd.f32 0.0, %v2071
      %2073 = vmatmul.f32.gmra.mxu0 %v447
      %v2074 = vpop.f32.mrf.mxu0
      %v2075 = vadd.f32 0.0, %v2074
      %2076 = vmatmul.f32.gmra.mxu0 %v450
      %v2077 = vpop.f32.mrf.mxu0
      %v2078 = vadd.f32 0.0, %v2077
      %2079 = vmatmul.f32.gmra.mxu0 %v453
      %v2080 = vpop.f32.mrf.mxu0
      %v2081 = vadd.f32 0.0, %v2080
      %2082 = vmatmul.f32.gmra.mxu0 %v456
      %v2083 = vpop.f32.mrf.mxu0
      %v2084 = vadd.f32 0.0, %v2083
      %2085 = vmatmul.f32.gmra.mxu0 %v459
      %v2086 = vpop.f32.mrf.mxu0
      %v2087 = vadd.f32 0.0, %v2086
      %2088 = vmatmul.f32.gmra.mxu0 %v462
      %v2089 = vpop.f32.mrf.mxu0
      %v2090 = vadd.f32 0.0, %v2089
      %2091 = vmatmul.f32.gmra.mxu0 %v465
      %v2092 = vpop.f32.mrf.mxu0
      %v2093 = vadd.f32 0.0, %v2092
      %2094 = vmatmul.f32.gmra.mxu0 %v468
      %v2095 = vpop.f32.mrf.mxu0
      %v2096 = vadd.f32 0.0, %v2095
      %2097 = vdwg.mxu0
      %v2098 = vrot.slane %v1937, 1
      %v2099 = vrot.slane %v1940, 1
      %v2100 = vrot.slane %v1943, 1
      %v2101 = vrot.slane %v1946, 1
      %v2102 = vrot.slane %v1949, 1
      %v2103 = vrot.slane %v1952, 1
      %v2104 = vrot.slane %v1955, 1
      %v2105 = vrot.slane %v1958, 1
      %v2106 = vrot.slane %v1961, 1
      %v2107 = vrot.slane %v1964, 1
      %v2108 = vrot.slane %v1967, 1
      %v2109 = vrot.slane %v1970, 1
      %v2110 = vrot.slane %v1973, 1
      %v2111 = vrot.slane %v1976, 1
      %v2112 = vrot.slane %v1979, 1
      %v2113 = vrot.slane %v1982, 1
      %v2114 = vrot.slane %v1985, 1
      %v2115 = vrot.slane %v1988, 1
      %v2116 = vrot.slane %v1991, 1
      %v2117 = vrot.slane %v1994, 1
      %v2118 = vrot.slane %v1997, 1
      %v2119 = vrot.slane %v2000, 1
      %v2120 = vrot.slane %v2003, 1
      %v2121 = vrot.slane %v2006, 1
      %v2122 = vrot.slane %v2009, 1
      %v2123 = vrot.slane %v2012, 1
      %v2124 = vrot.slane %v2015, 1
      %v2125 = vrot.slane %v2018, 1
      %v2126 = vrot.slane %v2021, 1
      %v2127 = vrot.slane %v2024, 1
      %v2128 = vrot.slane %v2027, 1
      %v2129 = vrot.slane %v2030, 1
      %v2130 = vrot.slane %v2033, 1
      %v2131 = vrot.slane %v2036, 1
      %v2132 = vrot.slane %v2039, 1
      %v2133 = vrot.slane %v2042, 1
      %v2134 = vrot.slane %v2045, 1
      %v2135 = vrot.slane %v2048, 1
      %v2136 = vrot.slane %v2051, 1
      %v2137 = vrot.slane %v2054, 1
      %v2138 = vrot.slane %v2057, 1
      %v2139 = vrot.slane %v2060, 1
      %v2140 = vrot.slane %v2063, 1
      %v2141 = vrot.slane %v2066, 1
      %v2142 = vrot.slane %v2069, 1
      %v2143 = vrot.slane %v2072, 1
      %v2144 = vrot.slane %v2075, 1
      %v2145 = vrot.slane %v2078, 1
      %v2146 = vrot.slane %v2081, 1
      %v2147 = vrot.slane %v2084, 1
      %v2148 = vrot.slane %v2087, 1
      %v2149 = vrot.slane %v2090, 1
      %v2150 = vrot.slane %v2093, 1
      %v2151 = vrot.slane %v2096, 1
      %v2152 = vsel %vm1230, %v2150, %v2151
      %v2153 = vsel %vm1230, %v2149, %v2150
      %v2154 = vsel %vm1230, %v2148, %v2149
      %v2155 = vsel %vm1230, %v2147, %v2148
      %v2156 = vsel %vm1230, %v2146, %v2147
      %v2157 = vsel %vm1230, %v2145, %v2146
      %v2158 = vsel %vm1230, %v2144, %v2145
      %v2159 = vsel %vm1230, %v2143, %v2144
      %v2160 = vsel %vm1230, %v2142, %v2143
      %v2161 = vsel %vm1230, %v2141, %v2142
      %v2162 = vsel %vm1230, %v2140, %v2141
      %v2163 = vsel %vm1230, %v2139, %v2140
      %v2164 = vsel %vm1230, %v2138, %v2139
      %v2165 = vsel %vm1230, %v2137, %v2138
      %v2166 = vsel %vm1230, %v2136, %v2137
      %v2167 = vsel %vm1230, %v2135, %v2136
      %v2168 = vsel %vm1230, %v2134, %v2135
      %v2169 = vsel %vm1230, %v2133, %v2134
      %v2170 = vsel %vm1230, %v2132, %v2133
      %v2171 = vsel %vm1230, %v2131, %v2132
      %v2172 = vsel %vm1230, %v2130, %v2131
      %v2173 = vsel %vm1230, %v2129, %v2130
      %v2174 = vsel %vm1230, %v2128, %v2129
      %v2175 = vsel %vm1230, %v2127, %v2128
      %v2176 = vsel %vm1230, %v2126, %v2127
      %v2177 = vsel %vm1230, %v2125, %v2126
      %v2178 = vsel %vm1230, %v2124, %v2125
      %v2179 = vsel %vm1230, %v2123, %v2124
      %v2180 = vsel %vm1230, %v2122, %v2123
      %v2181 = vsel %vm1230, %v2121, %v2122
      %v2182 = vsel %vm1230, %v2120, %v2121
      %v2183 = vsel %vm1230, %v2119, %v2120
      %v2184 = vsel %vm1230, %v2118, %v2119
      %v2185 = vsel %vm1230, %v2117, %v2118
      %v2186 = vsel %vm1230, %v2116, %v2117
      %v2187 = vsel %vm1230, %v2115, %v2116
      %v2188 = vsel %vm1230, %v2114, %v2115
      %v2189 = vsel %vm1230, %v2113, %v2114
      %v2190 = vsel %vm1230, %v2112, %v2113
      %v2191 = vsel %vm1230, %v2111, %v2112
      %v2192 = vsel %vm1230, %v2110, %v2111
      %v2193 = vsel %vm1230, %v2109, %v2110
      %v2194 = vsel %vm1230, %v2108, %v2109
      %v2195 = vsel %vm1230, %v2107, %v2108
      %v2196 = vsel %vm1230, %v2106, %v2107
      %v2197 = vsel %vm1230, %v2105, %v2106
      %v2198 = vsel %vm1230, %v2104, %v2105
      %v2199 = vsel %vm1230, %v2103, %v2104
      %v2200 = vsel %vm1230, %v2102, %v2103
      %v2201 = vsel %vm1230, %v2101, %v2102
      %v2202 = vsel %vm1230, %v2100, %v2101
      %v2203 = vsel %vm1230, %v2099, %v2100
      %v2204 = vsel %vm1230, %v2098, %v2099
      %v2205 = vsel %vm1230, %v2151, %v2098
      %v2206 = vadd.f32 %v1863, %v2204
      %v2207 = vadd.f32 %v1864, %v2203
      %v2208 = vadd.f32 %v1865, %v2202
      %v2209 = vadd.f32 %v1866, %v2201
      %v2210 = vadd.f32 %v1867, %v2200
      %v2211 = vadd.f32 %v1868, %v2199
      %v2212 = vadd.f32 %v1869, %v2198
      %v2213 = vadd.f32 %v1870, %v2197
      %v2214 = vadd.f32 %v1871, %v2196
      %v2215 = vadd.f32 %v1872, %v2195
      %v2216 = vadd.f32 %v1873, %v2194
      %v2217 = vadd.f32 %v1874, %v2193
      %v2218 = vadd.f32 %v1875, %v2192
      %v2219 = vadd.f32 %v1876, %v2191
      %v2220 = vadd.f32 %v1877, %v2190
      %v2221 = vadd.f32 %v1878, %v2189
      %v2222 = vadd.f32 %v1879, %v2188
      %v2223 = vadd.f32 %v1880, %v2187
      %v2224 = vadd.f32 %v1881, %v2186
      %v2225 = vadd.f32 %v1882, %v2185
      %v2226 = vadd.f32 %v1883, %v2184
      %v2227 = vadd.f32 %v1884, %v2183
      %v2228 = vadd.f32 %v1885, %v2182
      %v2229 = vadd.f32 %v1886, %v2181
      %v2230 = vadd.f32 %v1887, %v2180
      %v2231 = vadd.f32 %v1888, %v2179
      %v2232 = vadd.f32 %v1889, %v2178
      %v2233 = vadd.f32 %v1890, %v2177
      %v2234 = vadd.f32 %v1891, %v2176
      %v2235 = vadd.f32 %v1892, %v2175
      %v2236 = vadd.f32 %v1893, %v2174
      %v2237 = vadd.f32 %v1894, %v2173
      %v2238 = vadd.f32 %v1895, %v2172
      %v2239 = vadd.f32 %v1896, %v2171
      %v2240 = vadd.f32 %v1897, %v2170
      %v2241 = vadd.f32 %v1898, %v2169
      %v2242 = vadd.f32 %v1899, %v2168
      %v2243 = vadd.f32 %v1900, %v2167
      %v2244 = vadd.f32 %v1901, %v2166
      %v2245 = vadd.f32 %v1902, %v2165
      %v2246 = vadd.f32 %v1903, %v2164
      %v2247 = vadd.f32 %v1904, %v2163
      %v2248 = vadd.f32 %v1905, %v2162
      %v2249 = vadd.f32 %v1906, %v2161
      %v2250 = vadd.f32 %v1907, %v2160
      %v2251 = vadd.f32 %v1908, %v2159
      %v2252 = vadd.f32 %v1909, %v2158
      %v2253 = vadd.f32 %v1910, %v2157
      %v2254 = vadd.f32 %v1911, %v2156
      %v2255 = vadd.f32 %v1912, %v2155
      %v2256 = vadd.f32 %v1913, %v2154
      %v2257 = vadd.f32 %v1914, %v2153
      %v2258 = vadd.f32 %v1915, %v2152
      %v2259 = vadd.f32 %v1916, %v2205
      %s2260 = scalar_lea.vmem %s2, 48
      %v2261 = vld [vmem:[%s2260] sm:$0xff]
      %2262 = vmatpush.msra.mxu0 0.0
      %2263 = vmatpush.msra.mxu0 0.0
      %2264 = vmatpush.msra.mxu0 0.0
      %2265 = vmatpush.msra.mxu0 0.0
      %2266 = vmatpush.msra.mxu0 0.0
      %2267 = vmatpush.msra.mxu0 0.0
      %2268 = vmatpush.msra.mxu0 0.0
      %2269 = vmatpush.msra.mxu0 0.0
      %2270 = vmatpush.msra.mxu0 0.0
      %2271 = vmatpush.msra.mxu0 0.0
      %2272 = vmatpush.msra.mxu0 0.0
      %2273 = vmatpush.msra.mxu0 0.0
      %2274 = vmatpush.msra.mxu0 0.0
      %2275 = vmatpush.msra.mxu0 0.0
      %2276 = vmatpush.msra.mxu0 0.0
      %2277 = vmatpush.msra.mxu0 %v2261
      %2278 = vmatmul.f32.gmra.mxu0 %v309
      %v2279 = vpop.f32.mrf.mxu0
      %v2280 = vadd.f32 0.0, %v2279
      %2281 = vmatmul.f32.gmra.mxu0 %v312
      %v2282 = vpop.f32.mrf.mxu0
      %v2283 = vadd.f32 0.0, %v2282
      %2284 = vmatmul.f32.gmra.mxu0 %v315
      %v2285 = vpop.f32.mrf.mxu0
      %v2286 = vadd.f32 0.0, %v2285
      %2287 = vmatmul.f32.gmra.mxu0 %v318
      %v2288 = vpop.f32.mrf.mxu0
      %v2289 = vadd.f32 0.0, %v2288
      %2290 = vmatmul.f32.gmra.mxu0 %v321
      %v2291 = vpop.f32.mrf.mxu0
      %v2292 = vadd.f32 0.0, %v2291
      %2293 = vmatmul.f32.gmra.mxu0 %v324
      %v2294 = vpop.f32.mrf.mxu0
      %v2295 = vadd.f32 0.0, %v2294
      %2296 = vmatmul.f32.gmra.mxu0 %v327
      %v2297 = vpop.f32.mrf.mxu0
      %v2298 = vadd.f32 0.0, %v2297
      %2299 = vmatmul.f32.gmra.mxu0 %v330
      %v2300 = vpop.f32.mrf.mxu0
      %v2301 = vadd.f32 0.0, %v2300
      %2302 = vmatmul.f32.gmra.mxu0 %v333
      %v2303 = vpop.f32.mrf.mxu0
      %v2304 = vadd.f32 0.0, %v2303
      %2305 = vmatmul.f32.gmra.mxu0 %v336
      %v2306 = vpop.f32.mrf.mxu0
      %v2307 = vadd.f32 0.0, %v2306
      %2308 = vmatmul.f32.gmra.mxu0 %v339
      %v2309 = vpop.f32.mrf.mxu0
      %v2310 = vadd.f32 0.0, %v2309
      %2311 = vmatmul.f32.gmra.mxu0 %v342
      %v2312 = vpop.f32.mrf.mxu0
      %v2313 = vadd.f32 0.0, %v2312
      %2314 = vmatmul.f32.gmra.mxu0 %v345
      %v2315 = vpop.f32.mrf.mxu0
      %v2316 = vadd.f32 0.0, %v2315
      %2317 = vmatmul.f32.gmra.mxu0 %v348
      %v2318 = vpop.f32.mrf.mxu0
      %v2319 = vadd.f32 0.0, %v2318
      %2320 = vmatmul.f32.gmra.mxu0 %v351
      %v2321 = vpop.f32.mrf.mxu0
      %v2322 = vadd.f32 0.0, %v2321
      %2323 = vmatmul.f32.gmra.mxu0 %v354
      %v2324 = vpop.f32.mrf.mxu0
      %v2325 = vadd.f32 0.0, %v2324
      %2326 = vmatmul.f32.gmra.mxu0 %v357
      %v2327 = vpop.f32.mrf.mxu0
      %v2328 = vadd.f32 0.0, %v2327
      %2329 = vmatmul.f32.gmra.mxu0 %v360
      %v2330 = vpop.f32.mrf.mxu0
      %v2331 = vadd.f32 0.0, %v2330
      %2332 = vmatmul.f32.gmra.mxu0 %v363
      %v2333 = vpop.f32.mrf.mxu0
      %v2334 = vadd.f32 0.0, %v2333
      %2335 = vmatmul.f32.gmra.mxu0 %v366
      %v2336 = vpop.f32.mrf.mxu0
      %v2337 = vadd.f32 0.0, %v2336
      %2338 = vmatmul.f32.gmra.mxu0 %v369
      %v2339 = vpop.f32.mrf.mxu0
      %v2340 = vadd.f32 0.0, %v2339
      %2341 = vmatmul.f32.gmra.mxu0 %v372
      %v2342 = vpop.f32.mrf.mxu0
      %v2343 = vadd.f32 0.0, %v2342
      %2344 = vmatmul.f32.gmra.mxu0 %v375
      %v2345 = vpop.f32.mrf.mxu0
      %v2346 = vadd.f32 0.0, %v2345
      %2347 = vmatmul.f32.gmra.mxu0 %v378
      %v2348 = vpop.f32.mrf.mxu0
      %v2349 = vadd.f32 0.0, %v2348
      %2350 = vmatmul.f32.gmra.mxu0 %v381
      %v2351 = vpop.f32.mrf.mxu0
      %v2352 = vadd.f32 0.0, %v2351
      %2353 = vmatmul.f32.gmra.mxu0 %v384
      %v2354 = vpop.f32.mrf.mxu0
      %v2355 = vadd.f32 0.0, %v2354
      %2356 = vmatmul.f32.gmra.mxu0 %v387
      %v2357 = vpop.f32.mrf.mxu0
      %v2358 = vadd.f32 0.0, %v2357
      %2359 = vmatmul.f32.gmra.mxu0 %v390
      %v2360 = vpop.f32.mrf.mxu0
      %v2361 = vadd.f32 0.0, %v2360
      %2362 = vmatmul.f32.gmra.mxu0 %v393
      %v2363 = vpop.f32.mrf.mxu0
      %v2364 = vadd.f32 0.0, %v2363
      %2365 = vmatmul.f32.gmra.mxu0 %v396
      %v2366 = vpop.f32.mrf.mxu0
      %v2367 = vadd.f32 0.0, %v2366
      %2368 = vmatmul.f32.gmra.mxu0 %v399
      %v2369 = vpop.f32.mrf.mxu0
      %v2370 = vadd.f32 0.0, %v2369
      %2371 = vmatmul.f32.gmra.mxu0 %v402
      %v2372 = vpop.f32.mrf.mxu0
      %v2373 = vadd.f32 0.0, %v2372
      %2374 = vmatmul.f32.gmra.mxu0 %v405
      %v2375 = vpop.f32.mrf.mxu0
      %v2376 = vadd.f32 0.0, %v2375
      %2377 = vmatmul.f32.gmra.mxu0 %v408
      %v2378 = vpop.f32.mrf.mxu0
      %v2379 = vadd.f32 0.0, %v2378
      %2380 = vmatmul.f32.gmra.mxu0 %v411
      %v2381 = vpop.f32.mrf.mxu0
      %v2382 = vadd.f32 0.0, %v2381
      %2383 = vmatmul.f32.gmra.mxu0 %v414
      %v2384 = vpop.f32.mrf.mxu0
      %v2385 = vadd.f32 0.0, %v2384
      %2386 = vmatmul.f32.gmra.mxu0 %v417
      %v2387 = vpop.f32.mrf.mxu0
      %v2388 = vadd.f32 0.0, %v2387
      %2389 = vmatmul.f32.gmra.mxu0 %v420
      %v2390 = vpop.f32.mrf.mxu0
      %v2391 = vadd.f32 0.0, %v2390
      %2392 = vmatmul.f32.gmra.mxu0 %v423
      %v2393 = vpop.f32.mrf.mxu0
      %v2394 = vadd.f32 0.0, %v2393
      %2395 = vmatmul.f32.gmra.mxu0 %v426
      %v2396 = vpop.f32.mrf.mxu0
      %v2397 = vadd.f32 0.0, %v2396
      %2398 = vmatmul.f32.gmra.mxu0 %v429
      %v2399 = vpop.f32.mrf.mxu0
      %v2400 = vadd.f32 0.0, %v2399
      %2401 = vmatmul.f32.gmra.mxu0 %v432
      %v2402 = vpop.f32.mrf.mxu0
      %v2403 = vadd.f32 0.0, %v2402
      %2404 = vmatmul.f32.gmra.mxu0 %v435
      %v2405 = vpop.f32.mrf.mxu0
      %v2406 = vadd.f32 0.0, %v2405
      %2407 = vmatmul.f32.gmra.mxu0 %v438
      %v2408 = vpop.f32.mrf.mxu0
      %v2409 = vadd.f32 0.0, %v2408
      %2410 = vmatmul.f32.gmra.mxu0 %v441
      %v2411 = vpop.f32.mrf.mxu0
      %v2412 = vadd.f32 0.0, %v2411
      %2413 = vmatmul.f32.gmra.mxu0 %v444
      %v2414 = vpop.f32.mrf.mxu0
      %v2415 = vadd.f32 0.0, %v2414
      %2416 = vmatmul.f32.gmra.mxu0 %v447
      %v2417 = vpop.f32.mrf.mxu0
      %v2418 = vadd.f32 0.0, %v2417
      %2419 = vmatmul.f32.gmra.mxu0 %v450
      %v2420 = vpop.f32.mrf.mxu0
      %v2421 = vadd.f32 0.0, %v2420
      %2422 = vmatmul.f32.gmra.mxu0 %v453
      %v2423 = vpop.f32.mrf.mxu0
      %v2424 = vadd.f32 0.0, %v2423
      %2425 = vmatmul.f32.gmra.mxu0 %v456
      %v2426 = vpop.f32.mrf.mxu0
      %v2427 = vadd.f32 0.0, %v2426
      %2428 = vmatmul.f32.gmra.mxu0 %v459
      %v2429 = vpop.f32.mrf.mxu0
      %v2430 = vadd.f32 0.0, %v2429
      %2431 = vmatmul.f32.gmra.mxu0 %v462
      %v2432 = vpop.f32.mrf.mxu0
      %v2433 = vadd.f32 0.0, %v2432
      %2434 = vmatmul.f32.gmra.mxu0 %v465
      %v2435 = vpop.f32.mrf.mxu0
      %v2436 = vadd.f32 0.0, %v2435
      %2437 = vmatmul.f32.gmra.mxu0 %v468
      %v2438 = vpop.f32.mrf.mxu0
      %v2439 = vadd.f32 0.0, %v2438
      %2440 = vdwg.mxu0
      %v2441 = vrot.slane %v2280, 7
      %v2442 = vrot.slane %v2283, 7
      %v2443 = vrot.slane %v2286, 7
      %v2444 = vrot.slane %v2289, 7
      %v2445 = vrot.slane %v2292, 7
      %v2446 = vrot.slane %v2295, 7
      %v2447 = vrot.slane %v2298, 7
      %v2448 = vrot.slane %v2301, 7
      %v2449 = vrot.slane %v2304, 7
      %v2450 = vrot.slane %v2307, 7
      %v2451 = vrot.slane %v2310, 7
      %v2452 = vrot.slane %v2313, 7
      %v2453 = vrot.slane %v2316, 7
      %v2454 = vrot.slane %v2319, 7
      %v2455 = vrot.slane %v2322, 7
      %v2456 = vrot.slane %v2325, 7
      %v2457 = vrot.slane %v2328, 7
      %v2458 = vrot.slane %v2331, 7
      %v2459 = vrot.slane %v2334, 7
      %v2460 = vrot.slane %v2337, 7
      %v2461 = vrot.slane %v2340, 7
      %v2462 = vrot.slane %v2343, 7
      %v2463 = vrot.slane %v2346, 7
      %v2464 = vrot.slane %v2349, 7
      %v2465 = vrot.slane %v2352, 7
      %v2466 = vrot.slane %v2355, 7
      %v2467 = vrot.slane %v2358, 7
      %v2468 = vrot.slane %v2361, 7
      %v2469 = vrot.slane %v2364, 7
      %v2470 = vrot.slane %v2367, 7
      %v2471 = vrot.slane %v2370, 7
      %v2472 = vrot.slane %v2373, 7
      %v2473 = vrot.slane %v2376, 7
      %v2474 = vrot.slane %v2379, 7
      %v2475 = vrot.slane %v2382, 7
      %v2476 = vrot.slane %v2385, 7
      %v2477 = vrot.slane %v2388, 7
      %v2478 = vrot.slane %v2391, 7
      %v2479 = vrot.slane %v2394, 7
      %v2480 = vrot.slane %v2397, 7
      %v2481 = vrot.slane %v2400, 7
      %v2482 = vrot.slane %v2403, 7
      %v2483 = vrot.slane %v2406, 7
      %v2484 = vrot.slane %v2409, 7
      %v2485 = vrot.slane %v2412, 7
      %v2486 = vrot.slane %v2415, 7
      %v2487 = vrot.slane %v2418, 7
      %v2488 = vrot.slane %v2421, 7
      %v2489 = vrot.slane %v2424, 7
      %v2490 = vrot.slane %v2427, 7
      %v2491 = vrot.slane %v2430, 7
      %v2492 = vrot.slane %v2433, 7
      %v2493 = vrot.slane %v2436, 7
      %v2494 = vrot.slane %v2439, 7
      %v2495 = vsel %vm705, %v2493, %v2494
      %v2496 = vsel %vm705, %v2492, %v2493
      %v2497 = vsel %vm705, %v2491, %v2492
      %v2498 = vsel %vm705, %v2490, %v2491
      %v2499 = vsel %vm705, %v2489, %v2490
      %v2500 = vsel %vm705, %v2488, %v2489
      %v2501 = vsel %vm705, %v2487, %v2488
      %v2502 = vsel %vm705, %v2486, %v2487
      %v2503 = vsel %vm705, %v2485, %v2486
      %v2504 = vsel %vm705, %v2484, %v2485
      %v2505 = vsel %vm705, %v2483, %v2484
      %v2506 = vsel %vm705, %v2482, %v2483
      %v2507 = vsel %vm705, %v2481, %v2482
      %v2508 = vsel %vm705, %v2480, %v2481
      %v2509 = vsel %vm705, %v2479, %v2480
      %v2510 = vsel %vm705, %v2478, %v2479
      %v2511 = vsel %vm705, %v2477, %v2478
      %v2512 = vsel %vm705, %v2476, %v2477
      %v2513 = vsel %vm705, %v2475, %v2476
      %v2514 = vsel %vm705, %v2474, %v2475
      %v2515 = vsel %vm705, %v2473, %v2474
      %v2516 = vsel %vm705, %v2472, %v2473
      %v2517 = vsel %vm705, %v2471, %v2472
      %v2518 = vsel %vm705, %v2470, %v2471
      %v2519 = vsel %vm705, %v2469, %v2470
      %v2520 = vsel %vm705, %v2468, %v2469
      %v2521 = vsel %vm705, %v2467, %v2468
      %v2522 = vsel %vm705, %v2466, %v2467
      %v2523 = vsel %vm705, %v2465, %v2466
      %v2524 = vsel %vm705, %v2464, %v2465
      %v2525 = vsel %vm705, %v2463, %v2464
      %v2526 = vsel %vm705, %v2462, %v2463
      %v2527 = vsel %vm705, %v2461, %v2462
      %v2528 = vsel %vm705, %v2460, %v2461
      %v2529 = vsel %vm705, %v2459, %v2460
      %v2530 = vsel %vm705, %v2458, %v2459
      %v2531 = vsel %vm705, %v2457, %v2458
      %v2532 = vsel %vm705, %v2456, %v2457
      %v2533 = vsel %vm705, %v2455, %v2456
      %v2534 = vsel %vm705, %v2454, %v2455
      %v2535 = vsel %vm705, %v2453, %v2454
      %v2536 = vsel %vm705, %v2452, %v2453
      %v2537 = vsel %vm705, %v2451, %v2452
      %v2538 = vsel %vm705, %v2450, %v2451
      %v2539 = vsel %vm705, %v2449, %v2450
      %v2540 = vsel %vm705, %v2448, %v2449
      %v2541 = vsel %vm705, %v2447, %v2448
      %v2542 = vsel %vm705, %v2446, %v2447
      %v2543 = vsel %vm705, %v2445, %v2446
      %v2544 = vsel %vm705, %v2444, %v2445
      %v2545 = vsel %vm705, %v2443, %v2444
      %v2546 = vsel %vm705, %v2442, %v2443
      %v2547 = vsel %vm705, %v2441, %v2442
      %v2548 = vsel %vm705, %v2494, %v2441
      %v2549 = vadd.f32 %v2206, %v2545
      %v2550 = vadd.f32 %v2207, %v2544
      %v2551 = vadd.f32 %v2208, %v2543
      %v2552 = vadd.f32 %v2209, %v2542
      %v2553 = vadd.f32 %v2210, %v2541
      %v2554 = vadd.f32 %v2211, %v2540
      %v2555 = vadd.f32 %v2212, %v2539
      %v2556 = vadd.f32 %v2213, %v2538
      %v2557 = vadd.f32 %v2214, %v2537
      %v2558 = vadd.f32 %v2215, %v2536
      %v2559 = vadd.f32 %v2216, %v2535
      %v2560 = vadd.f32 %v2217, %v2534
      %v2561 = vadd.f32 %v2218, %v2533
      %v2562 = vadd.f32 %v2219, %v2532
      %v2563 = vadd.f32 %v2220, %v2531
      %v2564 = vadd.f32 %v2221, %v2530
      %v2565 = vadd.f32 %v2222, %v2529
      %v2566 = vadd.f32 %v2223, %v2528
      %v2567 = vadd.f32 %v2224, %v2527
      %v2568 = vadd.f32 %v2225, %v2526
      %v2569 = vadd.f32 %v2226, %v2525
      %v2570 = vadd.f32 %v2227, %v2524
      %v2571 = vadd.f32 %v2228, %v2523
      %v2572 = vadd.f32 %v2229, %v2522
      %v2573 = vadd.f32 %v2230, %v2521
      %v2574 = vadd.f32 %v2231, %v2520
      %v2575 = vadd.f32 %v2232, %v2519
      %v2576 = vadd.f32 %v2233, %v2518
      %v2577 = vadd.f32 %v2234, %v2517
      %v2578 = vadd.f32 %v2235, %v2516
      %v2579 = vadd.f32 %v2236, %v2515
      %v2580 = vadd.f32 %v2237, %v2514
      %v2581 = vadd.f32 %v2238, %v2513
      %v2582 = vadd.f32 %v2239, %v2512
      %v2583 = vadd.f32 %v2240, %v2511
      %v2584 = vadd.f32 %v2241, %v2510
      %v2585 = vadd.f32 %v2242, %v2509
      %v2586 = vadd.f32 %v2243, %v2508
      %v2587 = vadd.f32 %v2244, %v2507
      %v2588 = vadd.f32 %v2245, %v2506
      %v2589 = vadd.f32 %v2246, %v2505
      %v2590 = vadd.f32 %v2247, %v2504
      %v2591 = vadd.f32 %v2248, %v2503
      %v2592 = vadd.f32 %v2249, %v2502
      %v2593 = vadd.f32 %v2250, %v2501
      %v2594 = vadd.f32 %v2251, %v2500
      %v2595 = vadd.f32 %v2252, %v2499
      %v2596 = vadd.f32 %v2253, %v2498
      %v2597 = vadd.f32 %v2254, %v2497
      %v2598 = vadd.f32 %v2255, %v2496
      %v2599 = vadd.f32 %v2256, %v2495
      %v2600 = vadd.f32 %v2257, %v2548
      %v2601 = vadd.f32 %v2258, %v2547
      %v2602 = vadd.f32 %v2259, %v2546
      %s2603 = scalar_lea.vmem %s2, 56
      %v2604 = vld [vmem:[%s2603] sm:$0xff]
      %2605 = vmatpush.msra.mxu0 0.0
      %2606 = vmatpush.msra.mxu0 0.0
      %2607 = vmatpush.msra.mxu0 0.0
      %2608 = vmatpush.msra.mxu0 0.0
      %2609 = vmatpush.msra.mxu0 0.0
      %2610 = vmatpush.msra.mxu0 0.0
      %2611 = vmatpush.msra.mxu0 0.0
      %2612 = vmatpush.msra.mxu0 0.0
      %2613 = vmatpush.msra.mxu0 0.0
      %2614 = vmatpush.msra.mxu0 0.0
      %2615 = vmatpush.msra.mxu0 0.0
      %2616 = vmatpush.msra.mxu0 0.0
      %2617 = vmatpush.msra.mxu0 0.0
      %2618 = vmatpush.msra.mxu0 0.0
      %2619 = vmatpush.msra.mxu0 0.0
      %2620 = vmatpush.msra.mxu0 %v2604
      %2621 = vmatmul.f32.gmra.mxu0 %v309
      %v2622 = vpop.f32.mrf.mxu0
      %v2623 = vadd.f32 0.0, %v2622
      %2624 = vmatmul.f32.gmra.mxu0 %v312
      %v2625 = vpop.f32.mrf.mxu0
      %v2626 = vadd.f32 0.0, %v2625
      %2627 = vmatmul.f32.gmra.mxu0 %v315
      %v2628 = vpop.f32.mrf.mxu0
      %v2629 = vadd.f32 0.0, %v2628
      %2630 = vmatmul.f32.gmra.mxu0 %v318
      %v2631 = vpop.f32.mrf.mxu0
      %v2632 = vadd.f32 0.0, %v2631
      %2633 = vmatmul.f32.gmra.mxu0 %v321
      %v2634 = vpop.f32.mrf.mxu0
      %v2635 = vadd.f32 0.0, %v2634
      %2636 = vmatmul.f32.gmra.mxu0 %v324
      %v2637 = vpop.f32.mrf.mxu0
      %v2638 = vadd.f32 0.0, %v2637
      %2639 = vmatmul.f32.gmra.mxu0 %v327
      %v2640 = vpop.f32.mrf.mxu0
      %v2641 = vadd.f32 0.0, %v2640
      %2642 = vmatmul.f32.gmra.mxu0 %v330
      %v2643 = vpop.f32.mrf.mxu0
      %v2644 = vadd.f32 0.0, %v2643
      %2645 = vmatmul.f32.gmra.mxu0 %v333
      %v2646 = vpop.f32.mrf.mxu0
      %v2647 = vadd.f32 0.0, %v2646
      %2648 = vmatmul.f32.gmra.mxu0 %v336
      %v2649 = vpop.f32.mrf.mxu0
      %v2650 = vadd.f32 0.0, %v2649
      %2651 = vmatmul.f32.gmra.mxu0 %v339
      %v2652 = vpop.f32.mrf.mxu0
      %v2653 = vadd.f32 0.0, %v2652
      %2654 = vmatmul.f32.gmra.mxu0 %v342
      %v2655 = vpop.f32.mrf.mxu0
      %v2656 = vadd.f32 0.0, %v2655
      %2657 = vmatmul.f32.gmra.mxu0 %v345
      %v2658 = vpop.f32.mrf.mxu0
      %v2659 = vadd.f32 0.0, %v2658
      %2660 = vmatmul.f32.gmra.mxu0 %v348
      %v2661 = vpop.f32.mrf.mxu0
      %v2662 = vadd.f32 0.0, %v2661
      %2663 = vmatmul.f32.gmra.mxu0 %v351
      %v2664 = vpop.f32.mrf.mxu0
      %v2665 = vadd.f32 0.0, %v2664
      %2666 = vmatmul.f32.gmra.mxu0 %v354
      %v2667 = vpop.f32.mrf.mxu0
      %v2668 = vadd.f32 0.0, %v2667
      %2669 = vmatmul.f32.gmra.mxu0 %v357
      %v2670 = vpop.f32.mrf.mxu0
      %v2671 = vadd.f32 0.0, %v2670
      %2672 = vmatmul.f32.gmra.mxu0 %v360
      %v2673 = vpop.f32.mrf.mxu0
      %v2674 = vadd.f32 0.0, %v2673
      %2675 = vmatmul.f32.gmra.mxu0 %v363
      %v2676 = vpop.f32.mrf.mxu0
      %v2677 = vadd.f32 0.0, %v2676
      %2678 = vmatmul.f32.gmra.mxu0 %v366
      %v2679 = vpop.f32.mrf.mxu0
      %v2680 = vadd.f32 0.0, %v2679
      %2681 = vmatmul.f32.gmra.mxu0 %v369
      %v2682 = vpop.f32.mrf.mxu0
      %v2683 = vadd.f32 0.0, %v2682
      %2684 = vmatmul.f32.gmra.mxu0 %v372
      %v2685 = vpop.f32.mrf.mxu0
      %v2686 = vadd.f32 0.0, %v2685
      %2687 = vmatmul.f32.gmra.mxu0 %v375
      %v2688 = vpop.f32.mrf.mxu0
      %v2689 = vadd.f32 0.0, %v2688
      %2690 = vmatmul.f32.gmra.mxu0 %v378
      %v2691 = vpop.f32.mrf.mxu0
      %v2692 = vadd.f32 0.0, %v2691
      %2693 = vmatmul.f32.gmra.mxu0 %v381
      %v2694 = vpop.f32.mrf.mxu0
      %v2695 = vadd.f32 0.0, %v2694
      %2696 = vmatmul.f32.gmra.mxu0 %v384
      %v2697 = vpop.f32.mrf.mxu0
      %v2698 = vadd.f32 0.0, %v2697
      %2699 = vmatmul.f32.gmra.mxu0 %v387
      %v2700 = vpop.f32.mrf.mxu0
      %v2701 = vadd.f32 0.0, %v2700
      %2702 = vmatmul.f32.gmra.mxu0 %v390
      %v2703 = vpop.f32.mrf.mxu0
      %v2704 = vadd.f32 0.0, %v2703
      %2705 = vmatmul.f32.gmra.mxu0 %v393
      %v2706 = vpop.f32.mrf.mxu0
      %v2707 = vadd.f32 0.0, %v2706
      %2708 = vmatmul.f32.gmra.mxu0 %v396
      %v2709 = vpop.f32.mrf.mxu0
      %v2710 = vadd.f32 0.0, %v2709
      %2711 = vmatmul.f32.gmra.mxu0 %v399
      %v2712 = vpop.f32.mrf.mxu0
      %v2713 = vadd.f32 0.0, %v2712
      %2714 = vmatmul.f32.gmra.mxu0 %v402
      %v2715 = vpop.f32.mrf.mxu0
      %v2716 = vadd.f32 0.0, %v2715
      %2717 = vmatmul.f32.gmra.mxu0 %v405
      %v2718 = vpop.f32.mrf.mxu0
      %v2719 = vadd.f32 0.0, %v2718
      %2720 = vmatmul.f32.gmra.mxu0 %v408
      %v2721 = vpop.f32.mrf.mxu0
      %v2722 = vadd.f32 0.0, %v2721
      %2723 = vmatmul.f32.gmra.mxu0 %v411
      %v2724 = vpop.f32.mrf.mxu0
      %v2725 = vadd.f32 0.0, %v2724
      %2726 = vmatmul.f32.gmra.mxu0 %v414
      %v2727 = vpop.f32.mrf.mxu0
      %v2728 = vadd.f32 0.0, %v2727
      %2729 = vmatmul.f32.gmra.mxu0 %v417
      %v2730 = vpop.f32.mrf.mxu0
      %v2731 = vadd.f32 0.0, %v2730
      %2732 = vmatmul.f32.gmra.mxu0 %v420
      %v2733 = vpop.f32.mrf.mxu0
      %v2734 = vadd.f32 0.0, %v2733
      %2735 = vmatmul.f32.gmra.mxu0 %v423
      %v2736 = vpop.f32.mrf.mxu0
      %v2737 = vadd.f32 0.0, %v2736
      %2738 = vmatmul.f32.gmra.mxu0 %v426
      %v2739 = vpop.f32.mrf.mxu0
      %v2740 = vadd.f32 0.0, %v2739
      %2741 = vmatmul.f32.gmra.mxu0 %v429
      %v2742 = vpop.f32.mrf.mxu0
      %v2743 = vadd.f32 0.0, %v2742
      %2744 = vmatmul.f32.gmra.mxu0 %v432
      %v2745 = vpop.f32.mrf.mxu0
      %v2746 = vadd.f32 0.0, %v2745
      %2747 = vmatmul.f32.gmra.mxu0 %v435
      %v2748 = vpop.f32.mrf.mxu0
      %v2749 = vadd.f32 0.0, %v2748
      %2750 = vmatmul.f32.gmra.mxu0 %v438
      %v2751 = vpop.f32.mrf.mxu0
      %v2752 = vadd.f32 0.0, %v2751
      %2753 = vmatmul.f32.gmra.mxu0 %v441
      %v2754 = vpop.f32.mrf.mxu0
      %v2755 = vadd.f32 0.0, %v2754
      %2756 = vmatmul.f32.gmra.mxu0 %v444
      %v2757 = vpop.f32.mrf.mxu0
      %v2758 = vadd.f32 0.0, %v2757
      %2759 = vmatmul.f32.gmra.mxu0 %v447
      %v2760 = vpop.f32.mrf.mxu0
      %v2761 = vadd.f32 0.0, %v2760
      %2762 = vmatmul.f32.gmra.mxu0 %v450
      %v2763 = vpop.f32.mrf.mxu0
      %v2764 = vadd.f32 0.0, %v2763
      %2765 = vmatmul.f32.gmra.mxu0 %v453
      %v2766 = vpop.f32.mrf.mxu0
      %v2767 = vadd.f32 0.0, %v2766
      %2768 = vmatmul.f32.gmra.mxu0 %v456
      %v2769 = vpop.f32.mrf.mxu0
      %v2770 = vadd.f32 0.0, %v2769
      %2771 = vmatmul.f32.gmra.mxu0 %v459
      %v2772 = vpop.f32.mrf.mxu0
      %v2773 = vadd.f32 0.0, %v2772
      %2774 = vmatmul.f32.gmra.mxu0 %v462
      %v2775 = vpop.f32.mrf.mxu0
      %v2776 = vadd.f32 0.0, %v2775
      %2777 = vmatmul.f32.gmra.mxu0 %v465
      %v2778 = vpop.f32.mrf.mxu0
      %v2779 = vadd.f32 0.0, %v2778
      %2780 = vmatmul.f32.gmra.mxu0 %v468
      %v2781 = vpop.f32.mrf.mxu0
      %v2782 = vadd.f32 0.0, %v2781
      %2783 = vdwg.mxu0
      %v2784 = vadd.f32 %v2549, %v2632
      %v2785 = vadd.f32 %v2550, %v2635
      %v2786 = vadd.f32 %v2551, %v2638
      %v2787 = vadd.f32 %v2552, %v2641
      %v2788 = vadd.f32 %v2553, %v2644
      %v2789 = vadd.f32 %v2554, %v2647
      %v2790 = vadd.f32 %v2555, %v2650
      %v2791 = vadd.f32 %v2556, %v2653
      %v2792 = vadd.f32 %v2557, %v2656
      %v2793 = vadd.f32 %v2558, %v2659
      %v2794 = vadd.f32 %v2559, %v2662
      %v2795 = vadd.f32 %v2560, %v2665
      %v2796 = vadd.f32 %v2561, %v2668
      %v2797 = vadd.f32 %v2562, %v2671
      %v2798 = vadd.f32 %v2563, %v2674
      %v2799 = vadd.f32 %v2564, %v2677
      %v2800 = vadd.f32 %v2565, %v2680
      %v2801 = vadd.f32 %v2566, %v2683
      %v2802 = vadd.f32 %v2567, %v2686
      %v2803 = vadd.f32 %v2568, %v2689
      %v2804 = vadd.f32 %v2569, %v2692
      %v2805 = vadd.f32 %v2570, %v2695
      %v2806 = vadd.f32 %v2571, %v2698
      %v2807 = vadd.f32 %v2572, %v2701
      %v2808 = vadd.f32 %v2573, %v2704
      %v2809 = vadd.f32 %v2574, %v2707
      %v2810 = vadd.f32 %v2575, %v2710
      %v2811 = vadd.f32 %v2576, %v2713
      %v2812 = vadd.f32 %v2577, %v2716
      %v2813 = vadd.f32 %v2578, %v2719
      %v2814 = vadd.f32 %v2579, %v2722
      %v2815 = vadd.f32 %v2580, %v2725
      %v2816 = vadd.f32 %v2581, %v2728
      %v2817 = vadd.f32 %v2582, %v2731
      %v2818 = vadd.f32 %v2583, %v2734
      %v2819 = vadd.f32 %v2584, %v2737
      %v2820 = vadd.f32 %v2585, %v2740
      %v2821 = vadd.f32 %v2586, %v2743
      %v2822 = vadd.f32 %v2587, %v2746
      %v2823 = vadd.f32 %v2588, %v2749
      %v2824 = vadd.f32 %v2589, %v2752
      %v2825 = vadd.f32 %v2590, %v2755
      %v2826 = vadd.f32 %v2591, %v2758
      %v2827 = vadd.f32 %v2592, %v2761
      %v2828 = vadd.f32 %v2593, %v2764
      %v2829 = vadd.f32 %v2594, %v2767
      %v2830 = vadd.f32 %v2595, %v2770
      %v2831 = vadd.f32 %v2596, %v2773
      %v2832 = vadd.f32 %v2597, %v2776
      %v2833 = vadd.f32 %v2598, %v2779
      %v2834 = vadd.f32 %v2599, %v2782
      %v2835 = vadd.f32 %v2600, %v2623
      %v2836 = vadd.f32 %v2601, %v2626
      %v2837 = vadd.f32 %v2602, %v2629
      %s2838 = scalar_lea.vmem %s2, 64
      %v2839 = vld [vmem:[%s2838] sm:$0xff]
      %2840 = vmatpush.msra.mxu0 0.0
      %2841 = vmatpush.msra.mxu0 0.0
      %2842 = vmatpush.msra.mxu0 0.0
      %2843 = vmatpush.msra.mxu0 0.0
      %2844 = vmatpush.msra.mxu0 0.0
      %2845 = vmatpush.msra.mxu0 0.0
      %2846 = vmatpush.msra.mxu0 0.0
      %2847 = vmatpush.msra.mxu0 0.0
      %2848 = vmatpush.msra.mxu0 0.0
      %2849 = vmatpush.msra.mxu0 0.0
      %2850 = vmatpush.msra.mxu0 0.0
      %2851 = vmatpush.msra.mxu0 0.0
      %2852 = vmatpush.msra.mxu0 0.0
      %2853 = vmatpush.msra.mxu0 0.0
      %2854 = vmatpush.msra.mxu0 0.0
      %2855 = vmatpush.msra.mxu0 %v2839
      %2856 = vmatmul.f32.gmra.mxu0 %v309
      %v2857 = vpop.f32.mrf.mxu0
      %v2858 = vadd.f32 0.0, %v2857
      %2859 = vmatmul.f32.gmra.mxu0 %v312
      %v2860 = vpop.f32.mrf.mxu0
      %v2861 = vadd.f32 0.0, %v2860
      %2862 = vmatmul.f32.gmra.mxu0 %v315
      %v2863 = vpop.f32.mrf.mxu0
      %v2864 = vadd.f32 0.0, %v2863
      %2865 = vmatmul.f32.gmra.mxu0 %v318
      %v2866 = vpop.f32.mrf.mxu0
      %v2867 = vadd.f32 0.0, %v2866
      %2868 = vmatmul.f32.gmra.mxu0 %v321
      %v2869 = vpop.f32.mrf.mxu0
      %v2870 = vadd.f32 0.0, %v2869
      %2871 = vmatmul.f32.gmra.mxu0 %v324
      %v2872 = vpop.f32.mrf.mxu0
      %v2873 = vadd.f32 0.0, %v2872
      %2874 = vmatmul.f32.gmra.mxu0 %v327
      %v2875 = vpop.f32.mrf.mxu0
      %v2876 = vadd.f32 0.0, %v2875
      %2877 = vmatmul.f32.gmra.mxu0 %v330
      %v2878 = vpop.f32.mrf.mxu0
      %v2879 = vadd.f32 0.0, %v2878
      %2880 = vmatmul.f32.gmra.mxu0 %v333
      %v2881 = vpop.f32.mrf.mxu0
      %v2882 = vadd.f32 0.0, %v2881
      %2883 = vmatmul.f32.gmra.mxu0 %v336
      %v2884 = vpop.f32.mrf.mxu0
      %v2885 = vadd.f32 0.0, %v2884
      %2886 = vmatmul.f32.gmra.mxu0 %v339
      %v2887 = vpop.f32.mrf.mxu0
      %v2888 = vadd.f32 0.0, %v2887
      %2889 = vmatmul.f32.gmra.mxu0 %v342
      %v2890 = vpop.f32.mrf.mxu0
      %v2891 = vadd.f32 0.0, %v2890
      %2892 = vmatmul.f32.gmra.mxu0 %v345
      %v2893 = vpop.f32.mrf.mxu0
      %v2894 = vadd.f32 0.0, %v2893
      %2895 = vmatmul.f32.gmra.mxu0 %v348
      %v2896 = vpop.f32.mrf.mxu0
      %v2897 = vadd.f32 0.0, %v2896
      %2898 = vmatmul.f32.gmra.mxu0 %v351
      %v2899 = vpop.f32.mrf.mxu0
      %v2900 = vadd.f32 0.0, %v2899
      %2901 = vmatmul.f32.gmra.mxu0 %v354
      %v2902 = vpop.f32.mrf.mxu0
      %v2903 = vadd.f32 0.0, %v2902
      %2904 = vmatmul.f32.gmra.mxu0 %v357
      %v2905 = vpop.f32.mrf.mxu0
      %v2906 = vadd.f32 0.0, %v2905
      %2907 = vmatmul.f32.gmra.mxu0 %v360
      %v2908 = vpop.f32.mrf.mxu0
      %v2909 = vadd.f32 0.0, %v2908
      %2910 = vmatmul.f32.gmra.mxu0 %v363
      %v2911 = vpop.f32.mrf.mxu0
      %v2912 = vadd.f32 0.0, %v2911
      %2913 = vmatmul.f32.gmra.mxu0 %v366
      %v2914 = vpop.f32.mrf.mxu0
      %v2915 = vadd.f32 0.0, %v2914
      %2916 = vmatmul.f32.gmra.mxu0 %v369
      %v2917 = vpop.f32.mrf.mxu0
      %v2918 = vadd.f32 0.0, %v2917
      %2919 = vmatmul.f32.gmra.mxu0 %v372
      %v2920 = vpop.f32.mrf.mxu0
      %v2921 = vadd.f32 0.0, %v2920
      %2922 = vmatmul.f32.gmra.mxu0 %v375
      %v2923 = vpop.f32.mrf.mxu0
      %v2924 = vadd.f32 0.0, %v2923
      %2925 = vmatmul.f32.gmra.mxu0 %v378
      %v2926 = vpop.f32.mrf.mxu0
      %v2927 = vadd.f32 0.0, %v2926
      %2928 = vmatmul.f32.gmra.mxu0 %v381
      %v2929 = vpop.f32.mrf.mxu0
      %v2930 = vadd.f32 0.0, %v2929
      %2931 = vmatmul.f32.gmra.mxu0 %v384
      %v2932 = vpop.f32.mrf.mxu0
      %v2933 = vadd.f32 0.0, %v2932
      %2934 = vmatmul.f32.gmra.mxu0 %v387
      %v2935 = vpop.f32.mrf.mxu0
      %v2936 = vadd.f32 0.0, %v2935
      %2937 = vmatmul.f32.gmra.mxu0 %v390
      %v2938 = vpop.f32.mrf.mxu0
      %v2939 = vadd.f32 0.0, %v2938
      %2940 = vmatmul.f32.gmra.mxu0 %v393
      %v2941 = vpop.f32.mrf.mxu0
      %v2942 = vadd.f32 0.0, %v2941
      %2943 = vmatmul.f32.gmra.mxu0 %v396
      %v2944 = vpop.f32.mrf.mxu0
      %v2945 = vadd.f32 0.0, %v2944
      %2946 = vmatmul.f32.gmra.mxu0 %v399
      %v2947 = vpop.f32.mrf.mxu0
      %v2948 = vadd.f32 0.0, %v2947
      %2949 = vmatmul.f32.gmra.mxu0 %v402
      %v2950 = vpop.f32.mrf.mxu0
      %v2951 = vadd.f32 0.0, %v2950
      %2952 = vmatmul.f32.gmra.mxu0 %v405
      %v2953 = vpop.f32.mrf.mxu0
      %v2954 = vadd.f32 0.0, %v2953
      %2955 = vmatmul.f32.gmra.mxu0 %v408
      %v2956 = vpop.f32.mrf.mxu0
      %v2957 = vadd.f32 0.0, %v2956
      %2958 = vmatmul.f32.gmra.mxu0 %v411
      %v2959 = vpop.f32.mrf.mxu0
      %v2960 = vadd.f32 0.0, %v2959
      %2961 = vmatmul.f32.gmra.mxu0 %v414
      %v2962 = vpop.f32.mrf.mxu0
      %v2963 = vadd.f32 0.0, %v2962
      %2964 = vmatmul.f32.gmra.mxu0 %v417
      %v2965 = vpop.f32.mrf.mxu0
      %v2966 = vadd.f32 0.0, %v2965
      %2967 = vmatmul.f32.gmra.mxu0 %v420
      %v2968 = vpop.f32.mrf.mxu0
      %v2969 = vadd.f32 0.0, %v2968
      %2970 = vmatmul.f32.gmra.mxu0 %v423
      %v2971 = vpop.f32.mrf.mxu0
      %v2972 = vadd.f32 0.0, %v2971
      %2973 = vmatmul.f32.gmra.mxu0 %v426
      %v2974 = vpop.f32.mrf.mxu0
      %v2975 = vadd.f32 0.0, %v2974
      %2976 = vmatmul.f32.gmra.mxu0 %v429
      %v2977 = vpop.f32.mrf.mxu0
      %v2978 = vadd.f32 0.0, %v2977
      %2979 = vmatmul.f32.gmra.mxu0 %v432
      %v2980 = vpop.f32.mrf.mxu0
      %v2981 = vadd.f32 0.0, %v2980
      %2982 = vmatmul.f32.gmra.mxu0 %v435
      %v2983 = vpop.f32.mrf.mxu0
      %v2984 = vadd.f32 0.0, %v2983
      %2985 = vmatmul.f32.gmra.mxu0 %v438
      %v2986 = vpop.f32.mrf.mxu0
      %v2987 = vadd.f32 0.0, %v2986
      %2988 = vmatmul.f32.gmra.mxu0 %v441
      %v2989 = vpop.f32.mrf.mxu0
      %v2990 = vadd.f32 0.0, %v2989
      %2991 = vmatmul.f32.gmra.mxu0 %v444
      %v2992 = vpop.f32.mrf.mxu0
      %v2993 = vadd.f32 0.0, %v2992
      %2994 = vmatmul.f32.gmra.mxu0 %v447
      %v2995 = vpop.f32.mrf.mxu0
      %v2996 = vadd.f32 0.0, %v2995
      %2997 = vmatmul.f32.gmra.mxu0 %v450
      %v2998 = vpop.f32.mrf.mxu0
      %v2999 = vadd.f32 0.0, %v2998
      %3000 = vmatmul.f32.gmra.mxu0 %v453
      %v3001 = vpop.f32.mrf.mxu0
      %v3002 = vadd.f32 0.0, %v3001
      %3003 = vmatmul.f32.gmra.mxu0 %v456
      %v3004 = vpop.f32.mrf.mxu0
      %v3005 = vadd.f32 0.0, %v3004
      %3006 = vmatmul.f32.gmra.mxu0 %v459
      %v3007 = vpop.f32.mrf.mxu0
      %v3008 = vadd.f32 0.0, %v3007
      %3009 = vmatmul.f32.gmra.mxu0 %v462
      %v3010 = vpop.f32.mrf.mxu0
      %v3011 = vadd.f32 0.0, %v3010
      %3012 = vmatmul.f32.gmra.mxu0 %v465
      %v3013 = vpop.f32.mrf.mxu0
      %v3014 = vadd.f32 0.0, %v3013
      %3015 = vmatmul.f32.gmra.mxu0 %v468
      %v3016 = vpop.f32.mrf.mxu0
      %v3017 = vadd.f32 0.0, %v3016
      %3018 = vdwg.mxu0
      %v3019 = vrot.slane %v2858, 1
      %v3020 = vrot.slane %v2861, 1
      %v3021 = vrot.slane %v2864, 1
      %v3022 = vrot.slane %v2867, 1
      %v3023 = vrot.slane %v2870, 1
      %v3024 = vrot.slane %v2873, 1
      %v3025 = vrot.slane %v2876, 1
      %v3026 = vrot.slane %v2879, 1
      %v3027 = vrot.slane %v2882, 1
      %v3028 = vrot.slane %v2885, 1
      %v3029 = vrot.slane %v2888, 1
      %v3030 = vrot.slane %v2891, 1
      %v3031 = vrot.slane %v2894, 1
      %v3032 = vrot.slane %v2897, 1
      %v3033 = vrot.slane %v2900, 1
      %v3034 = vrot.slane %v2903, 1
      %v3035 = vrot.slane %v2906, 1
      %v3036 = vrot.slane %v2909, 1
      %v3037 = vrot.slane %v2912, 1
      %v3038 = vrot.slane %v2915, 1
      %v3039 = vrot.slane %v2918, 1
      %v3040 = vrot.slane %v2921, 1
      %v3041 = vrot.slane %v2924, 1
      %v3042 = vrot.slane %v2927, 1
      %v3043 = vrot.slane %v2930, 1
      %v3044 = vrot.slane %v2933, 1
      %v3045 = vrot.slane %v2936, 1
      %v3046 = vrot.slane %v2939, 1
      %v3047 = vrot.slane %v2942, 1
      %v3048 = vrot.slane %v2945, 1
      %v3049 = vrot.slane %v2948, 1
      %v3050 = vrot.slane %v2951, 1
      %v3051 = vrot.slane %v2954, 1
      %v3052 = vrot.slane %v2957, 1
      %v3053 = vrot.slane %v2960, 1
      %v3054 = vrot.slane %v2963, 1
      %v3055 = vrot.slane %v2966, 1
      %v3056 = vrot.slane %v2969, 1
      %v3057 = vrot.slane %v2972, 1
      %v3058 = vrot.slane %v2975, 1
      %v3059 = vrot.slane %v2978, 1
      %v3060 = vrot.slane %v2981, 1
      %v3061 = vrot.slane %v2984, 1
      %v3062 = vrot.slane %v2987, 1
      %v3063 = vrot.slane %v2990, 1
      %v3064 = vrot.slane %v2993, 1
      %v3065 = vrot.slane %v2996, 1
      %v3066 = vrot.slane %v2999, 1
      %v3067 = vrot.slane %v3002, 1
      %v3068 = vrot.slane %v3005, 1
      %v3069 = vrot.slane %v3008, 1
      %v3070 = vrot.slane %v3011, 1
      %v3071 = vrot.slane %v3014, 1
      %v3072 = vrot.slane %v3017, 1
      %v3073 = vsel %vm1230, %v3071, %v3072
      %v3074 = vsel %vm1230, %v3070, %v3071
      %v3075 = vsel %vm1230, %v3069, %v3070
      %v3076 = vsel %vm1230, %v3068, %v3069
      %v3077 = vsel %vm1230, %v3067, %v3068
      %v3078 = vsel %vm1230, %v3066, %v3067
      %v3079 = vsel %vm1230, %v3065, %v3066
      %v3080 = vsel %vm1230, %v3064, %v3065
      %v3081 = vsel %vm1230, %v3063, %v3064
      %v3082 = vsel %vm1230, %v3062, %v3063
      %v3083 = vsel %vm1230, %v3061, %v3062
      %v3084 = vsel %vm1230, %v3060, %v3061
      %v3085 = vsel %vm1230, %v3059, %v3060
      %v3086 = vsel %vm1230, %v3058, %v3059
      %v3087 = vsel %vm1230, %v3057, %v3058
      %v3088 = vsel %vm1230, %v3056, %v3057
      %v3089 = vsel %vm1230, %v3055, %v3056
      %v3090 = vsel %vm1230, %v3054, %v3055
      %v3091 = vsel %vm1230, %v3053, %v3054
      %v3092 = vsel %vm1230, %v3052, %v3053
      %v3093 = vsel %vm1230, %v3051, %v3052
      %v3094 = vsel %vm1230, %v3050, %v3051
      %v3095 = vsel %vm1230, %v3049, %v3050
      %v3096 = vsel %vm1230, %v3048, %v3049
      %v3097 = vsel %vm1230, %v3047, %v3048
      %v3098 = vsel %vm1230, %v3046, %v3047
      %v3099 = vsel %vm1230, %v3045, %v3046
      %v3100 = vsel %vm1230, %v3044, %v3045
      %v3101 = vsel %vm1230, %v3043, %v3044
      %v3102 = vsel %vm1230, %v3042, %v3043
      %v3103 = vsel %vm1230, %v3041, %v3042
      %v3104 = vsel %vm1230, %v3040, %v3041
      %v3105 = vsel %vm1230, %v3039, %v3040
      %v3106 = vsel %vm1230, %v3038, %v3039
      %v3107 = vsel %vm1230, %v3037, %v3038
      %v3108 = vsel %vm1230, %v3036, %v3037
      %v3109 = vsel %vm1230, %v3035, %v3036
      %v3110 = vsel %vm1230, %v3034, %v3035
      %v3111 = vsel %vm1230, %v3033, %v3034
      %v3112 = vsel %vm1230, %v3032, %v3033
      %v3113 = vsel %vm1230, %v3031, %v3032
      %v3114 = vsel %vm1230, %v3030, %v3031
      %v3115 = vsel %vm1230, %v3029, %v3030
      %v3116 = vsel %vm1230, %v3028, %v3029
      %v3117 = vsel %vm1230, %v3027, %v3028
      %v3118 = vsel %vm1230, %v3026, %v3027
      %v3119 = vsel %vm1230, %v3025, %v3026
      %v3120 = vsel %vm1230, %v3024, %v3025
      %v3121 = vsel %vm1230, %v3023, %v3024
      %v3122 = vsel %vm1230, %v3022, %v3023
      %v3123 = vsel %vm1230, %v3021, %v3022
      %v3124 = vsel %vm1230, %v3020, %v3021
      %v3125 = vsel %vm1230, %v3019, %v3020
      %v3126 = vsel %vm1230, %v3072, %v3019
      %v3127 = vadd.f32 %v2784, %v3122
      %v3128 = vadd.f32 %v2785, %v3121
      %v3129 = vadd.f32 %v2786, %v3120
      %v3130 = vadd.f32 %v2787, %v3119
      %v3131 = vadd.f32 %v2788, %v3118
      %v3132 = vadd.f32 %v2789, %v3117
      %v3133 = vadd.f32 %v2790, %v3116
      %v3134 = vadd.f32 %v2791, %v3115
      %v3135 = vadd.f32 %v2792, %v3114
      %v3136 = vadd.f32 %v2793, %v3113
      %v3137 = vadd.f32 %v2794, %v3112
      %v3138 = vadd.f32 %v2795, %v3111
      %v3139 = vadd.f32 %v2796, %v3110
      %v3140 = vadd.f32 %v2797, %v3109
      %v3141 = vadd.f32 %v2798, %v3108
      %v3142 = vadd.f32 %v2799, %v3107
      %v3143 = vadd.f32 %v2800, %v3106
      %v3144 = vadd.f32 %v2801, %v3105
      %v3145 = vadd.f32 %v2802, %v3104
      %v3146 = vadd.f32 %v2803, %v3103
      %v3147 = vadd.f32 %v2804, %v3102
      %v3148 = vadd.f32 %v2805, %v3101
      %v3149 = vadd.f32 %v2806, %v3100
      %v3150 = vadd.f32 %v2807, %v3099
      %v3151 = vadd.f32 %v2808, %v3098
      %v3152 = vadd.f32 %v2809, %v3097
      %v3153 = vadd.f32 %v2810, %v3096
      %v3154 = vadd.f32 %v2811, %v3095
      %v3155 = vadd.f32 %v2812, %v3094
      %v3156 = vadd.f32 %v2813, %v3093
      %v3157 = vadd.f32 %v2814, %v3092
      %v3158 = vadd.f32 %v2815, %v3091
      %v3159 = vadd.f32 %v2816, %v3090
      %v3160 = vadd.f32 %v2817, %v3089
      %v3161 = vadd.f32 %v2818, %v3088
      %v3162 = vadd.f32 %v2819, %v3087
      %v3163 = vadd.f32 %v2820, %v3086
      %v3164 = vadd.f32 %v2821, %v3085
      %v3165 = vadd.f32 %v2822, %v3084
      %v3166 = vadd.f32 %v2823, %v3083
      %v3167 = vadd.f32 %v2824, %v3082
      %v3168 = vadd.f32 %v2825, %v3081
      %v3169 = vadd.f32 %v2826, %v3080
      %v3170 = vadd.f32 %v2827, %v3079
      %v3171 = vadd.f32 %v2828, %v3078
      %v3172 = vadd.f32 %v2829, %v3077
      %v3173 = vadd.f32 %v2830, %v3076
      %v3174 = vadd.f32 %v2831, %v3075
      %v3175 = vadd.f32 %v2832, %v3074
      %v3176 = vadd.f32 %v2833, %v3073
      %v3177 = vadd.f32 %v2834, %v3126
      %v3178 = vadd.f32 %v2835, %v3125
      %v3179 = vadd.f32 %v2836, %v3124
      %v3180 = vadd.f32 %v2837, %v3123
      %v3181 = vld [vmem:[%s3] sm:$0x1]
      %v3183 = vperm.slane %v3181, 0
      %v3185 = vadd.f32 %v3127, %v3183
      %v3186 = vadd.f32 %v3128, %v3183
      %v3187 = vadd.f32 %v3129, %v3183
      %v3188 = vadd.f32 %v3130, %v3183
      %v3189 = vadd.f32 %v3131, %v3183
      %v3190 = vadd.f32 %v3132, %v3183
      %v3191 = vadd.f32 %v3133, %v3183
      %v3192 = vadd.f32 %v3134, %v3183
      %v3193 = vadd.f32 %v3135, %v3183
      %v3194 = vadd.f32 %v3136, %v3183
      %v3195 = vadd.f32 %v3137, %v3183
      %v3196 = vadd.f32 %v3138, %v3183
      %v3197 = vadd.f32 %v3139, %v3183
      %v3198 = vadd.f32 %v3140, %v3183
      %v3199 = vadd.f32 %v3141, %v3183
      %v3200 = vadd.f32 %v3142, %v3183
      %v3201 = vadd.f32 %v3143, %v3183
      %v3202 = vadd.f32 %v3144, %v3183
      %v3203 = vadd.f32 %v3145, %v3183
      %v3204 = vadd.f32 %v3146, %v3183
      %v3205 = vadd.f32 %v3147, %v3183
      %v3206 = vadd.f32 %v3148, %v3183
      %v3207 = vadd.f32 %v3149, %v3183
      %v3208 = vadd.f32 %v3150, %v3183
      %v3209 = vadd.f32 %v3151, %v3183
      %v3210 = vadd.f32 %v3152, %v3183
      %v3211 = vadd.f32 %v3153, %v3183
      %v3212 = vadd.f32 %v3154, %v3183
      %v3213 = vadd.f32 %v3155, %v3183
      %v3214 = vadd.f32 %v3156, %v3183
      %v3215 = vadd.f32 %v3157, %v3183
      %v3216 = vadd.f32 %v3158, %v3183
      %v3217 = vadd.f32 %v3159, %v3183
      %v3218 = vadd.f32 %v3160, %v3183
      %v3219 = vadd.f32 %v3161, %v3183
      %v3220 = vadd.f32 %v3162, %v3183
      %v3221 = vadd.f32 %v3163, %v3183
      %v3222 = vadd.f32 %v3164, %v3183
      %v3223 = vadd.f32 %v3165, %v3183
      %v3224 = vadd.f32 %v3166, %v3183
      %v3225 = vadd.f32 %v3167, %v3183
      %v3226 = vadd.f32 %v3168, %v3183
      %v3227 = vadd.f32 %v3169, %v3183
      %v3228 = vadd.f32 %v3170, %v3183
      %v3229 = vadd.f32 %v3171, %v3183
      %v3230 = vadd.f32 %v3172, %v3183
      %v3231 = vadd.f32 %v3173, %v3183
      %v3232 = vadd.f32 %v3174, %v3183
      %v3233 = vadd.f32 %v3175, %v3183
      %v3234 = vadd.f32 %v3176, %v3183
      %v3235 = vadd.f32 %v3177, %v3183
      %v3236 = vadd.f32 %v3178, %v3183
      %v3237 = vadd.f32 %v3179, %v3183
      %v3238 = vadd.f32 %v3180, %v3183
      %v3239 = vsub.f32 0.0, %v3185
      %v3240 = vsub.f32 0.0, %v3186
      %v3241 = vsub.f32 0.0, %v3187
      %v3242 = vsub.f32 0.0, %v3188
      %v3243 = vsub.f32 0.0, %v3189
      %v3244 = vsub.f32 0.0, %v3190
      %v3245 = vsub.f32 0.0, %v3191
      %v3246 = vsub.f32 0.0, %v3192
      %v3247 = vsub.f32 0.0, %v3193
      %v3248 = vsub.f32 0.0, %v3194
      %v3249 = vsub.f32 0.0, %v3195
      %v3250 = vsub.f32 0.0, %v3196
      %v3251 = vsub.f32 0.0, %v3197
      %v3252 = vsub.f32 0.0, %v3198
      %v3253 = vsub.f32 0.0, %v3199
      %v3254 = vsub.f32 0.0, %v3200
      %v3255 = vsub.f32 0.0, %v3201
      %v3256 = vsub.f32 0.0, %v3202
      %v3257 = vsub.f32 0.0, %v3203
      %v3258 = vsub.f32 0.0, %v3204
      %v3259 = vsub.f32 0.0, %v3205
      %v3260 = vsub.f32 0.0, %v3206
      %v3261 = vsub.f32 0.0, %v3207
      %v3262 = vsub.f32 0.0, %v3208
      %v3263 = vsub.f32 0.0, %v3209
      %v3264 = vsub.f32 0.0, %v3210
      %v3265 = vsub.f32 0.0, %v3211
      %v3266 = vsub.f32 0.0, %v3212
      %v3267 = vsub.f32 0.0, %v3213
      %v3268 = vsub.f32 0.0, %v3214
      %v3269 = vsub.f32 0.0, %v3215
      %v3270 = vsub.f32 0.0, %v3216
      %v3271 = vsub.f32 0.0, %v3217
      %v3272 = vsub.f32 0.0, %v3218
      %v3273 = vsub.f32 0.0, %v3219
      %v3274 = vsub.f32 0.0, %v3220
      %v3275 = vsub.f32 0.0, %v3221
      %v3276 = vsub.f32 0.0, %v3222
      %v3277 = vsub.f32 0.0, %v3223
      %v3278 = vsub.f32 0.0, %v3224
      %v3279 = vsub.f32 0.0, %v3225
      %v3280 = vsub.f32 0.0, %v3226
      %v3281 = vsub.f32 0.0, %v3227
      %v3282 = vsub.f32 0.0, %v3228
      %v3283 = vsub.f32 0.0, %v3229
      %v3284 = vsub.f32 0.0, %v3230
      %v3285 = vsub.f32 0.0, %v3231
      %v3286 = vsub.f32 0.0, %v3232
      %v3287 = vsub.f32 0.0, %v3233
      %v3288 = vsub.f32 0.0, %v3234
      %v3289 = vsub.f32 0.0, %v3235
      %v3290 = vsub.f32 0.0, %v3236
      %v3291 = vsub.f32 0.0, %v3237
      %v3292 = vsub.f32 0.0, %v3238
      %v3293 = vmul.f32 %v3239, 1.442695
      %v3294 = vpow.pop %v3293
      %v3295 = vmul.f32 %v3240, 1.442695
      %v3296 = vpow.pop %v3295
      %v3297 = vmul.f32 %v3241, 1.442695
      %v3298 = vpow.pop %v3297
      %v3299 = vmul.f32 %v3242, 1.442695
      %v3300 = vpow.pop %v3299
      %v3301 = vmul.f32 %v3243, 1.442695
      %v3302 = vpow.pop %v3301
      %v3303 = vmul.f32 %v3244, 1.442695
      %v3304 = vpow.pop %v3303
      %v3305 = vmul.f32 %v3245, 1.442695
      %v3306 = vpow.pop %v3305
      %v3307 = vmul.f32 %v3246, 1.442695
      %v3308 = vpow.pop %v3307
      %v3309 = vmul.f32 %v3247, 1.442695
      %v3310 = vpow.pop %v3309
      %v3311 = vmul.f32 %v3248, 1.442695
      %v3312 = vpow.pop %v3311
      %v3313 = vmul.f32 %v3249, 1.442695
      %v3314 = vpow.pop %v3313
      %v3315 = vmul.f32 %v3250, 1.442695
      %v3316 = vpow.pop %v3315
      %v3317 = vmul.f32 %v3251, 1.442695
      %v3318 = vpow.pop %v3317
      %v3319 = vmul.f32 %v3252, 1.442695
      %v3320 = vpow.pop %v3319
      %v3321 = vmul.f32 %v3253, 1.442695
      %v3322 = vpow.pop %v3321
      %v3323 = vmul.f32 %v3254, 1.442695
      %v3324 = vpow.pop %v3323
      %v3325 = vmul.f32 %v3255, 1.442695
      %v3326 = vpow.pop %v3325
      %v3327 = vmul.f32 %v3256, 1.442695
      %v3328 = vpow.pop %v3327
      %v3329 = vmul.f32 %v3257, 1.442695
      %v3330 = vpow.pop %v3329
      %v3331 = vmul.f32 %v3258, 1.442695
      %v3332 = vpow.pop %v3331
      %v3333 = vmul.f32 %v3259, 1.442695
      %v3334 = vpow.pop %v3333
      %v3335 = vmul.f32 %v3260, 1.442695
      %v3336 = vpow.pop %v3335
      %v3337 = vmul.f32 %v3261, 1.442695
      %v3338 = vpow.pop %v3337
      %v3339 = vmul.f32 %v3262, 1.442695
      %v3340 = vpow.pop %v3339
      %v3341 = vmul.f32 %v3263, 1.442695
      %v3342 = vpow.pop %v3341
      %v3343 = vmul.f32 %v3264, 1.442695
      %v3344 = vpow.pop %v3343
      %v3345 = vmul.f32 %v3265, 1.442695
      %v3346 = vpow.pop %v3345
      %v3347 = vmul.f32 %v3266, 1.442695
      %v3348 = vpow.pop %v3347
      %v3349 = vmul.f32 %v3267, 1.442695
      %v3350 = vpow.pop %v3349
      %v3351 = vmul.f32 %v3268, 1.442695
      %v3352 = vpow.pop %v3351
      %v3353 = vmul.f32 %v3269, 1.442695
      %v3354 = vpow.pop %v3353
      %v3355 = vmul.f32 %v3270, 1.442695
      %v3356 = vpow.pop %v3355
      %v3357 = vmul.f32 %v3271, 1.442695
      %v3358 = vpow.pop %v3357
      %v3359 = vmul.f32 %v3272, 1.442695
      %v3360 = vpow.pop %v3359
      %v3361 = vmul.f32 %v3273, 1.442695
      %v3362 = vpow.pop %v3361
      %v3363 = vmul.f32 %v3274, 1.442695
      %v3364 = vpow.pop %v3363
      %v3365 = vmul.f32 %v3275, 1.442695
      %v3366 = vpow.pop %v3365
      %v3367 = vmul.f32 %v3276, 1.442695
      %v3368 = vpow.pop %v3367
      %v3369 = vmul.f32 %v3277, 1.442695
      %v3370 = vpow.pop %v3369
      %v3371 = vmul.f32 %v3278, 1.442695
      %v3372 = vpow.pop %v3371
      %v3373 = vmul.f32 %v3279, 1.442695
      %v3374 = vpow.pop %v3373
      %v3375 = vmul.f32 %v3280, 1.442695
      %v3376 = vpow.pop %v3375
      %v3377 = vmul.f32 %v3281, 1.442695
      %v3378 = vpow.pop %v3377
      %v3379 = vmul.f32 %v3282, 1.442695
      %v3380 = vpow.pop %v3379
      %v3381 = vmul.f32 %v3283, 1.442695
      %v3382 = vpow.pop %v3381
      %v3383 = vmul.f32 %v3284, 1.442695
      %v3384 = vpow.pop %v3383
      %v3385 = vmul.f32 %v3285, 1.442695
      %v3386 = vpow.pop %v3385
      %v3387 = vmul.f32 %v3286, 1.442695
      %v3388 = vpow.pop %v3387
      %v3389 = vmul.f32 %v3287, 1.442695
      %v3390 = vpow.pop %v3389
      %v3391 = vmul.f32 %v3288, 1.442695
      %v3392 = vpow.pop %v3391
      %v3393 = vmul.f32 %v3289, 1.442695
      %v3394 = vpow.pop %v3393
      %v3395 = vmul.f32 %v3290, 1.442695
      %v3396 = vpow.pop %v3395
      %v3397 = vmul.f32 %v3291, 1.442695
      %v3398 = vpow.pop %v3397
      %v3399 = vmul.f32 %v3292, 1.442695
      %v3400 = vpow.pop %v3399
      %v3401 = vadd.f32 %v3294, 1.0
      %v3402 = vadd.f32 %v3296, 1.0
      %v3403 = vadd.f32 %v3298, 1.0
      %v3404 = vadd.f32 %v3300, 1.0
      %v3405 = vadd.f32 %v3302, 1.0
      %v3406 = vadd.f32 %v3304, 1.0
      %v3407 = vadd.f32 %v3306, 1.0
      %v3408 = vadd.f32 %v3308, 1.0
      %v3409 = vadd.f32 %v3310, 1.0
      %v3410 = vadd.f32 %v3312, 1.0
      %v3411 = vadd.f32 %v3314, 1.0
      %v3412 = vadd.f32 %v3316, 1.0
      %v3413 = vadd.f32 %v3318, 1.0
      %v3414 = vadd.f32 %v3320, 1.0
      %v3415 = vadd.f32 %v3322, 1.0
      %v3416 = vadd.f32 %v3324, 1.0
      %v3417 = vadd.f32 %v3326, 1.0
      %v3418 = vadd.f32 %v3328, 1.0
      %v3419 = vadd.f32 %v3330, 1.0
      %v3420 = vadd.f32 %v3332, 1.0
      %v3421 = vadd.f32 %v3334, 1.0
      %v3422 = vadd.f32 %v3336, 1.0
      %v3423 = vadd.f32 %v3338, 1.0
      %v3424 = vadd.f32 %v3340, 1.0
      %v3425 = vadd.f32 %v3342, 1.0
      %v3426 = vadd.f32 %v3344, 1.0
      %v3427 = vadd.f32 %v3346, 1.0
      %v3428 = vadd.f32 %v3348, 1.0
      %v3429 = vadd.f32 %v3350, 1.0
      %v3430 = vadd.f32 %v3352, 1.0
      %v3431 = vadd.f32 %v3354, 1.0
      %v3432 = vadd.f32 %v3356, 1.0
      %v3433 = vadd.f32 %v3358, 1.0
      %v3434 = vadd.f32 %v3360, 1.0
      %v3435 = vadd.f32 %v3362, 1.0
      %v3436 = vadd.f32 %v3364, 1.0
      %v3437 = vadd.f32 %v3366, 1.0
      %v3438 = vadd.f32 %v3368, 1.0
      %v3439 = vadd.f32 %v3370, 1.0
      %v3440 = vadd.f32 %v3372, 1.0
      %v3441 = vadd.f32 %v3374, 1.0
      %v3442 = vadd.f32 %v3376, 1.0
      %v3443 = vadd.f32 %v3378, 1.0
      %v3444 = vadd.f32 %v3380, 1.0
      %v3445 = vadd.f32 %v3382, 1.0
      %v3446 = vadd.f32 %v3384, 1.0
      %v3447 = vadd.f32 %v3386, 1.0
      %v3448 = vadd.f32 %v3388, 1.0
      %v3449 = vadd.f32 %v3390, 1.0
      %v3450 = vadd.f32 %v3392, 1.0
      %v3451 = vadd.f32 %v3394, 1.0
      %v3452 = vadd.f32 %v3396, 1.0
      %v3453 = vadd.f32 %v3398, 1.0
      %v3454 = vadd.f32 %v3400, 1.0
      %v3455 = vrcp.pop %v3401
      %v3456 = vrcp.pop %v3402
      %v3457 = vrcp.pop %v3403
      %v3458 = vrcp.pop %v3404
      %v3459 = vrcp.pop %v3405
      %v3460 = vrcp.pop %v3406
      %v3461 = vrcp.pop %v3407
      %v3462 = vrcp.pop %v3408
      %v3463 = vrcp.pop %v3409
      %v3464 = vrcp.pop %v3410
      %v3465 = vrcp.pop %v3411
      %v3466 = vrcp.pop %v3412
      %v3467 = vrcp.pop %v3413
      %v3468 = vrcp.pop %v3414
      %v3469 = vrcp.pop %v3415
      %v3470 = vrcp.pop %v3416
      %v3471 = vrcp.pop %v3417
      %v3472 = vrcp.pop %v3418
      %v3473 = vrcp.pop %v3419
      %v3474 = vrcp.pop %v3420
      %v3475 = vrcp.pop %v3421
      %v3476 = vrcp.pop %v3422
      %v3477 = vrcp.pop %v3423
      %v3478 = vrcp.pop %v3424
      %v3479 = vrcp.pop %v3425
      %v3480 = vrcp.pop %v3426
      %v3481 = vrcp.pop %v3427
      %v3482 = vrcp.pop %v3428
      %v3483 = vrcp.pop %v3429
      %v3484 = vrcp.pop %v3430
      %v3485 = vrcp.pop %v3431
      %v3486 = vrcp.pop %v3432
      %v3487 = vrcp.pop %v3433
      %v3488 = vrcp.pop %v3434
      %v3489 = vrcp.pop %v3435
      %v3490 = vrcp.pop %v3436
      %v3491 = vrcp.pop %v3437
      %v3492 = vrcp.pop %v3438
      %v3493 = vrcp.pop %v3439
      %v3494 = vrcp.pop %v3440
      %v3495 = vrcp.pop %v3441
      %v3496 = vrcp.pop %v3442
      %v3497 = vrcp.pop %v3443
      %v3498 = vrcp.pop %v3444
      %v3499 = vrcp.pop %v3445
      %v3500 = vrcp.pop %v3446
      %v3501 = vrcp.pop %v3447
      %v3502 = vrcp.pop %v3448
      %v3503 = vrcp.pop %v3449
      %v3504 = vrcp.pop %v3450
      %v3505 = vrcp.pop %v3451
      %v3506 = vrcp.pop %v3452
      %v3507 = vrcp.pop %v3453
      %v3508 = vrcp.pop %v3454
      %v3509 = vmul.f32 %v3185, %v3455
      %v3510 = vmul.f32 %v3186, %v3456
      %v3511 = vmul.f32 %v3187, %v3457
      %v3512 = vmul.f32 %v3188, %v3458
      %v3513 = vmul.f32 %v3189, %v3459
      %v3514 = vmul.f32 %v3190, %v3460
      %v3515 = vmul.f32 %v3191, %v3461
      %v3516 = vmul.f32 %v3192, %v3462
      %v3517 = vmul.f32 %v3193, %v3463
      %v3518 = vmul.f32 %v3194, %v3464
      %v3519 = vmul.f32 %v3195, %v3465
      %v3520 = vmul.f32 %v3196, %v3466
      %v3521 = vmul.f32 %v3197, %v3467
      %v3522 = vmul.f32 %v3198, %v3468
      %v3523 = vmul.f32 %v3199, %v3469
      %v3524 = vmul.f32 %v3200, %v3470
      %v3525 = vmul.f32 %v3201, %v3471
      %v3526 = vmul.f32 %v3202, %v3472
      %v3527 = vmul.f32 %v3203, %v3473
      %v3528 = vmul.f32 %v3204, %v3474
      %v3529 = vmul.f32 %v3205, %v3475
      %v3530 = vmul.f32 %v3206, %v3476
      %v3531 = vmul.f32 %v3207, %v3477
      %v3532 = vmul.f32 %v3208, %v3478
      %v3533 = vmul.f32 %v3209, %v3479
      %v3534 = vmul.f32 %v3210, %v3480
      %v3535 = vmul.f32 %v3211, %v3481
      %v3536 = vmul.f32 %v3212, %v3482
      %v3537 = vmul.f32 %v3213, %v3483
      %v3538 = vmul.f32 %v3214, %v3484
      %v3539 = vmul.f32 %v3215, %v3485
      %v3540 = vmul.f32 %v3216, %v3486
      %v3541 = vmul.f32 %v3217, %v3487
      %v3542 = vmul.f32 %v3218, %v3488
      %v3543 = vmul.f32 %v3219, %v3489
      %v3544 = vmul.f32 %v3220, %v3490
      %v3545 = vmul.f32 %v3221, %v3491
      %v3546 = vmul.f32 %v3222, %v3492
      %v3547 = vmul.f32 %v3223, %v3493
      %v3548 = vmul.f32 %v3224, %v3494
      %v3549 = vmul.f32 %v3225, %v3495
      %v3550 = vmul.f32 %v3226, %v3496
      %v3551 = vmul.f32 %v3227, %v3497
      %v3552 = vmul.f32 %v3228, %v3498
      %v3553 = vmul.f32 %v3229, %v3499
      %v3554 = vmul.f32 %v3230, %v3500
      %v3555 = vmul.f32 %v3231, %v3501
      %v3556 = vmul.f32 %v3232, %v3502
      %v3557 = vmul.f32 %v3233, %v3503
      %v3558 = vmul.f32 %v3234, %v3504
      %v3559 = vmul.f32 %v3235, %v3505
      %v3560 = vmul.f32 %v3236, %v3506
      %v3561 = vmul.f32 %v3237, %v3507
      %v3562 = vmul.f32 %v3238, %v3508
      %v3563 = vld [vmem:[%s1] sm:$0xff]
      %v3564 = vld [vmem:[%s1 + $0x8] sm:$0xff]
      %v3565 = vld [vmem:[%s1 + $0x10] sm:$0xff]
      %v3566 = vld [vmem:[%s1 + $0x18] sm:$0xff]
      %v3567 = vld [vmem:[%s1 + $0x20] sm:$0xff]
      %v3568 = vld [vmem:[%s1 + $0x28] sm:$0xff]
      %v3569 = vld [vmem:[%s1 + $0x30] sm:$0xff]
      %v3570 = vld [vmem:[%s1 + $0x38] sm:$0xff]
      %v3571 = vld [vmem:[%s1 + $0x40] sm:$0xff]
      %v3572 = vld [vmem:[%s1 + $0x48] sm:$0xff]
      %v3573 = vld [vmem:[%s1 + $0x50] sm:$0xff]
      %v3574 = vld [vmem:[%s1 + $0x58] sm:$0xff]
      %v3575 = vld [vmem:[%s1 + $0x60] sm:$0xff]
      %v3576 = vld [vmem:[%s1 + $0x68] sm:$0xff]
      %v3577 = vld [vmem:[%s1 + $0x70] sm:$0xff]
      %v3578 = vld [vmem:[%s1 + $0x78] sm:$0xff]
      %v3579 = vld [vmem:[%s1 + $0x80] sm:$0xff]
      %v3580 = vld [vmem:[%s1 + $0x88] sm:$0xff]
      %v3581 = vld [vmem:[%s1 + $0x90] sm:$0xff]
      %v3582 = vld [vmem:[%s1 + $0x98] sm:$0xff]
      %v3583 = vld [vmem:[%s1 + $0xa0] sm:$0xff]
      %v3584 = vld [vmem:[%s1 + $0xa8] sm:$0xff]
      %v3585 = vld [vmem:[%s1 + $0xb0] sm:$0xff]
      %v3586 = vld [vmem:[%s1 + $0xb8] sm:$0xff]
      %v3587 = vld [vmem:[%s1 + $0xc0] sm:$0xff]
      %v3588 = vld [vmem:[%s1 + $0xc8] sm:$0xff]
      %v3589 = vld [vmem:[%s1 + $0xd0] sm:$0xff]
      %v3590 = vld [vmem:[%s1 + $0xd8] sm:$0xff]
      %v3591 = vld [vmem:[%s1 + $0xe0] sm:$0xff]
      %v3592 = vld [vmem:[%s1 + $0xe8] sm:$0xff]
      %v3593 = vld [vmem:[%s1 + $0xf0] sm:$0xff]
      %v3594 = vld [vmem:[%s1 + $0xf8] sm:$0xff]
      %v3595 = vld [vmem:[%s1 + $0x100] sm:$0xff]
      %v3596 = vld [vmem:[%s1 + $0x108] sm:$0xff]
      %v3597 = vld [vmem:[%s1 + $0x110] sm:$0xff]
      %v3598 = vld [vmem:[%s1 + $0x118] sm:$0xff]
      %v3599 = vld [vmem:[%s1 + $0x120] sm:$0xff]
      %v3600 = vld [vmem:[%s1 + $0x128] sm:$0xff]
      %v3601 = vld [vmem:[%s1 + $0x130] sm:$0xff]
      %v3602 = vld [vmem:[%s1 + $0x138] sm:$0xff]
      %v3603 = vld [vmem:[%s1 + $0x140] sm:$0xff]
      %v3604 = vld [vmem:[%s1 + $0x148] sm:$0xff]
      %v3605 = vld [vmem:[%s1 + $0x150] sm:$0xff]
      %v3606 = vld [vmem:[%s1 + $0x158] sm:$0xff]
      %v3607 = vld [vmem:[%s1 + $0x160] sm:$0xff]
      %v3608 = vld [vmem:[%s1 + $0x168] sm:$0xff]
      %v3609 = vld [vmem:[%s1 + $0x170] sm:$0xff]
      %v3610 = vld [vmem:[%s1 + $0x178] sm:$0xff]
      %v3611 = vld [vmem:[%s1 + $0x180] sm:$0xff]
      %v3612 = vld [vmem:[%s1 + $0x188] sm:$0xff]
      %v3613 = vld [vmem:[%s1 + $0x190] sm:$0xff]
      %v3614 = vld [vmem:[%s1 + $0x198] sm:$0xff]
      %v3615 = vld [vmem:[%s1 + $0x1a0] sm:$0xff]
      %v3616 = vld [vmem:[%s1 + $0x1a8] sm:$0xff]
      %3618 = vset.pattern.permute.xlu0 0
      %3619 = vperm.xlu0 %3618, %v3563
      %v3620 = vpop.permute.xlu0 %3619
      %3623 = vset.pattern.permute.xlu0 0
      %3624 = vperm.xlu0 %3623, %v3564
      %v3625 = vpop.permute.xlu0 %3624
      %3628 = vset.pattern.permute.xlu0 0
      %3629 = vperm.xlu0 %3628, %v3565
      %v3630 = vpop.permute.xlu0 %3629
      %3633 = vset.pattern.permute.xlu0 0
      %3634 = vperm.xlu0 %3633, %v3566
      %v3635 = vpop.permute.xlu0 %3634
      %3638 = vset.pattern.permute.xlu0 0
      %3639 = vperm.xlu0 %3638, %v3567
      %v3640 = vpop.permute.xlu0 %3639
      %3643 = vset.pattern.permute.xlu0 0
      %3644 = vperm.xlu0 %3643, %v3568
      %v3645 = vpop.permute.xlu0 %3644
      %3648 = vset.pattern.permute.xlu0 0
      %3649 = vperm.xlu0 %3648, %v3569
      %v3650 = vpop.permute.xlu0 %3649
      %3653 = vset.pattern.permute.xlu0 0
      %3654 = vperm.xlu0 %3653, %v3570
      %v3655 = vpop.permute.xlu0 %3654
      %3658 = vset.pattern.permute.xlu0 0
      %3659 = vperm.xlu0 %3658, %v3571
      %v3660 = vpop.permute.xlu0 %3659
      %3663 = vset.pattern.permute.xlu0 0
      %3664 = vperm.xlu0 %3663, %v3572
      %v3665 = vpop.permute.xlu0 %3664
      %3668 = vset.pattern.permute.xlu0 0
      %3669 = vperm.xlu0 %3668, %v3573
      %v3670 = vpop.permute.xlu0 %3669
      %3673 = vset.pattern.permute.xlu0 0
      %3674 = vperm.xlu0 %3673, %v3574
      %v3675 = vpop.permute.xlu0 %3674
      %3678 = vset.pattern.permute.xlu0 0
      %3679 = vperm.xlu0 %3678, %v3575
      %v3680 = vpop.permute.xlu0 %3679
      %3683 = vset.pattern.permute.xlu0 0
      %3684 = vperm.xlu0 %3683, %v3576
      %v3685 = vpop.permute.xlu0 %3684
      %3688 = vset.pattern.permute.xlu0 0
      %3689 = vperm.xlu0 %3688, %v3577
      %v3690 = vpop.permute.xlu0 %3689
      %3693 = vset.pattern.permute.xlu0 0
      %3694 = vperm.xlu0 %3693, %v3578
      %v3695 = vpop.permute.xlu0 %3694
      %3698 = vset.pattern.permute.xlu0 0
      %3699 = vperm.xlu0 %3698, %v3579
      %v3700 = vpop.permute.xlu0 %3699
      %3703 = vset.pattern.permute.xlu0 0
      %3704 = vperm.xlu0 %3703, %v3580
      %v3705 = vpop.permute.xlu0 %3704
      %3708 = vset.pattern.permute.xlu0 0
      %3709 = vperm.xlu0 %3708, %v3581
      %v3710 = vpop.permute.xlu0 %3709
      %3713 = vset.pattern.permute.xlu0 0
      %3714 = vperm.xlu0 %3713, %v3582
      %v3715 = vpop.permute.xlu0 %3714
      %3718 = vset.pattern.permute.xlu0 0
      %3719 = vperm.xlu0 %3718, %v3583
      %v3720 = vpop.permute.xlu0 %3719
      %3723 = vset.pattern.permute.xlu0 0
      %3724 = vperm.xlu0 %3723, %v3584
      %v3725 = vpop.permute.xlu0 %3724
      %3728 = vset.pattern.permute.xlu0 0
      %3729 = vperm.xlu0 %3728, %v3585
      %v3730 = vpop.permute.xlu0 %3729
      %3733 = vset.pattern.permute.xlu0 0
      %3734 = vperm.xlu0 %3733, %v3586
      %v3735 = vpop.permute.xlu0 %3734
      %3738 = vset.pattern.permute.xlu0 0
      %3739 = vperm.xlu0 %3738, %v3587
      %v3740 = vpop.permute.xlu0 %3739
      %3743 = vset.pattern.permute.xlu0 0
      %3744 = vperm.xlu0 %3743, %v3588
      %v3745 = vpop.permute.xlu0 %3744
      %3748 = vset.pattern.permute.xlu0 0
      %3749 = vperm.xlu0 %3748, %v3589
      %v3750 = vpop.permute.xlu0 %3749
      %3753 = vset.pattern.permute.xlu0 0
      %3754 = vperm.xlu0 %3753, %v3590
      %v3755 = vpop.permute.xlu0 %3754
      %3758 = vset.pattern.permute.xlu0 0
      %3759 = vperm.xlu0 %3758, %v3591
      %v3760 = vpop.permute.xlu0 %3759
      %3763 = vset.pattern.permute.xlu0 0
      %3764 = vperm.xlu0 %3763, %v3592
      %v3765 = vpop.permute.xlu0 %3764
      %3768 = vset.pattern.permute.xlu0 0
      %3769 = vperm.xlu0 %3768, %v3593
      %v3770 = vpop.permute.xlu0 %3769
      %3773 = vset.pattern.permute.xlu0 0
      %3774 = vperm.xlu0 %3773, %v3594
      %v3775 = vpop.permute.xlu0 %3774
      %3778 = vset.pattern.permute.xlu0 0
      %3779 = vperm.xlu0 %3778, %v3595
      %v3780 = vpop.permute.xlu0 %3779
      %3783 = vset.pattern.permute.xlu0 0
      %3784 = vperm.xlu0 %3783, %v3596
      %v3785 = vpop.permute.xlu0 %3784
      %3788 = vset.pattern.permute.xlu0 0
      %3789 = vperm.xlu0 %3788, %v3597
      %v3790 = vpop.permute.xlu0 %3789
      %3793 = vset.pattern.permute.xlu0 0
      %3794 = vperm.xlu0 %3793, %v3598
      %v3795 = vpop.permute.xlu0 %3794
      %3798 = vset.pattern.permute.xlu0 0
      %3799 = vperm.xlu0 %3798, %v3599
      %v3800 = vpop.permute.xlu0 %3799
      %3803 = vset.pattern.permute.xlu0 0
      %3804 = vperm.xlu0 %3803, %v3600
      %v3805 = vpop.permute.xlu0 %3804
      %3808 = vset.pattern.permute.xlu0 0
      %3809 = vperm.xlu0 %3808, %v3601
      %v3810 = vpop.permute.xlu0 %3809
      %3813 = vset.pattern.permute.xlu0 0
      %3814 = vperm.xlu0 %3813, %v3602
      %v3815 = vpop.permute.xlu0 %3814
      %3818 = vset.pattern.permute.xlu0 0
      %3819 = vperm.xlu0 %3818, %v3603
      %v3820 = vpop.permute.xlu0 %3819
      %3823 = vset.pattern.permute.xlu0 0
      %3824 = vperm.xlu0 %3823, %v3604
      %v3825 = vpop.permute.xlu0 %3824
      %3828 = vset.pattern.permute.xlu0 0
      %3829 = vperm.xlu0 %3828, %v3605
      %v3830 = vpop.permute.xlu0 %3829
      %3833 = vset.pattern.permute.xlu0 0
      %3834 = vperm.xlu0 %3833, %v3606
      %v3835 = vpop.permute.xlu0 %3834
      %3838 = vset.pattern.permute.xlu0 0
      %3839 = vperm.xlu0 %3838, %v3607
      %v3840 = vpop.permute.xlu0 %3839
      %3843 = vset.pattern.permute.xlu0 0
      %3844 = vperm.xlu0 %3843, %v3608
      %v3845 = vpop.permute.xlu0 %3844
      %3848 = vset.pattern.permute.xlu0 0
      %3849 = vperm.xlu0 %3848, %v3609
      %v3850 = vpop.permute.xlu0 %3849
      %3853 = vset.pattern.permute.xlu0 0
      %3854 = vperm.xlu0 %3853, %v3610
      %v3855 = vpop.permute.xlu0 %3854
      %3858 = vset.pattern.permute.xlu0 0
      %3859 = vperm.xlu0 %3858, %v3611
      %v3860 = vpop.permute.xlu0 %3859
      %3863 = vset.pattern.permute.xlu0 0
      %3864 = vperm.xlu0 %3863, %v3612
      %v3865 = vpop.permute.xlu0 %3864
      %3868 = vset.pattern.permute.xlu0 0
      %3869 = vperm.xlu0 %3868, %v3613
      %v3870 = vpop.permute.xlu0 %3869
      %3873 = vset.pattern.permute.xlu0 0
      %3874 = vperm.xlu0 %3873, %v3614
      %v3875 = vpop.permute.xlu0 %3874
      %3878 = vset.pattern.permute.xlu0 0
      %3879 = vperm.xlu0 %3878, %v3615
      %v3880 = vpop.permute.xlu0 %3879
      %3883 = vset.pattern.permute.xlu0 0
      %3884 = vperm.xlu0 %3883, %v3616
      %v3885 = vpop.permute.xlu0 %3884
      %v3887 = vmul.f32 %v3509, %v3620
      %v3888 = vmul.f32 %v3510, %v3625
      %v3889 = vmul.f32 %v3511, %v3630
      %v3890 = vmul.f32 %v3512, %v3635
      %v3891 = vmul.f32 %v3513, %v3640
      %v3892 = vmul.f32 %v3514, %v3645
      %v3893 = vmul.f32 %v3515, %v3650
      %v3894 = vmul.f32 %v3516, %v3655
      %v3895 = vmul.f32 %v3517, %v3660
      %v3896 = vmul.f32 %v3518, %v3665
      %v3897 = vmul.f32 %v3519, %v3670
      %v3898 = vmul.f32 %v3520, %v3675
      %v3899 = vmul.f32 %v3521, %v3680
      %v3900 = vmul.f32 %v3522, %v3685
      %v3901 = vmul.f32 %v3523, %v3690
      %v3902 = vmul.f32 %v3524, %v3695
      %v3903 = vmul.f32 %v3525, %v3700
      %v3904 = vmul.f32 %v3526, %v3705
      %v3905 = vmul.f32 %v3527, %v3710
      %v3906 = vmul.f32 %v3528, %v3715
      %v3907 = vmul.f32 %v3529, %v3720
      %v3908 = vmul.f32 %v3530, %v3725
      %v3909 = vmul.f32 %v3531, %v3730
      %v3910 = vmul.f32 %v3532, %v3735
      %v3911 = vmul.f32 %v3533, %v3740
      %v3912 = vmul.f32 %v3534, %v3745
      %v3913 = vmul.f32 %v3535, %v3750
      %v3914 = vmul.f32 %v3536, %v3755
      %v3915 = vmul.f32 %v3537, %v3760
      %v3916 = vmul.f32 %v3538, %v3765
      %v3917 = vmul.f32 %v3539, %v3770
      %v3918 = vmul.f32 %v3540, %v3775
      %v3919 = vmul.f32 %v3541, %v3780
      %v3920 = vmul.f32 %v3542, %v3785
      %v3921 = vmul.f32 %v3543, %v3790
      %v3922 = vmul.f32 %v3544, %v3795
      %v3923 = vmul.f32 %v3545, %v3800
      %v3924 = vmul.f32 %v3546, %v3805
      %v3925 = vmul.f32 %v3547, %v3810
      %v3926 = vmul.f32 %v3548, %v3815
      %v3927 = vmul.f32 %v3549, %v3820
      %v3928 = vmul.f32 %v3550, %v3825
      %v3929 = vmul.f32 %v3551, %v3830
      %v3930 = vmul.f32 %v3552, %v3835
      %v3931 = vmul.f32 %v3553, %v3840
      %v3932 = vmul.f32 %v3554, %v3845
      %v3933 = vmul.f32 %v3555, %v3850
      %v3934 = vmul.f32 %v3556, %v3855
      %v3935 = vmul.f32 %v3557, %v3860
      %v3936 = vmul.f32 %v3558, %v3865
      %v3937 = vmul.f32 %v3559, %v3870
      %v3938 = vmul.f32 %v3560, %v3875
      %v3939 = vmul.f32 %v3561, %v3880
      %v3940 = vmul.f32 %v3562, %v3885
      %v3941 = vld [vmem:[%s4] sm:$0xf]
      %vm3942 = vcmask 31744
      %v3944 = vsel %vm3942, %v3887, 0
      %v3947 = vsel %vm3942, %v3888, 0
      %v3950 = vsel %vm3942, %v3889, 0
      %v3953 = vsel %vm3942, %v3890, 0
      %v3956 = vsel %vm3942, %v3891, 0
      %v3959 = vsel %vm3942, %v3892, 0
      %v3962 = vsel %vm3942, %v3893, 0
      %v3965 = vsel %vm3942, %v3894, 0
      %v3968 = vsel %vm3942, %v3895, 0
      %v3971 = vsel %vm3942, %v3896, 0
      %v3974 = vsel %vm3942, %v3897, 0
      %v3977 = vsel %vm3942, %v3898, 0
      %v3980 = vsel %vm3942, %v3899, 0
      %v3983 = vsel %vm3942, %v3900, 0
      %v3986 = vsel %vm3942, %v3901, 0
      %v3989 = vsel %vm3942, %v3902, 0
      %v3992 = vsel %vm3942, %v3903, 0
      %v3995 = vsel %vm3942, %v3904, 0
      %v3998 = vsel %vm3942, %v3905, 0
      %v4001 = vsel %vm3942, %v3906, 0
      %v4004 = vsel %vm3942, %v3907, 0
      %v4007 = vsel %vm3942, %v3908, 0
      %v4010 = vsel %vm3942, %v3909, 0
      %v4013 = vsel %vm3942, %v3910, 0
      %v4016 = vsel %vm3942, %v3911, 0
      %v4019 = vsel %vm3942, %v3912, 0
      %v4022 = vsel %vm3942, %v3913, 0
      %v4025 = vsel %vm3942, %v3914, 0
      %v4028 = vsel %vm3942, %v3915, 0
      %v4031 = vsel %vm3942, %v3916, 0
      %v4034 = vsel %vm3942, %v3917, 0
      %v4037 = vsel %vm3942, %v3918, 0
      %v4040 = vsel %vm3942, %v3919, 0
      %v4043 = vsel %vm3942, %v3920, 0
      %v4046 = vsel %vm3942, %v3921, 0
      %v4049 = vsel %vm3942, %v3922, 0
      %v4052 = vsel %vm3942, %v3923, 0
      %v4055 = vsel %vm3942, %v3924, 0
      %v4058 = vsel %vm3942, %v3925, 0
      %v4061 = vsel %vm3942, %v3926, 0
      %v4064 = vsel %vm3942, %v3927, 0
      %v4067 = vsel %vm3942, %v3928, 0
      %v4070 = vsel %vm3942, %v3929, 0
      %v4073 = vsel %vm3942, %v3930, 0
      %v4076 = vsel %vm3942, %v3931, 0
      %v4079 = vsel %vm3942, %v3932, 0
      %v4082 = vsel %vm3942, %v3933, 0
      %v4085 = vsel %vm3942, %v3934, 0
      %v4088 = vsel %vm3942, %v3935, 0
      %v4091 = vsel %vm3942, %v3936, 0
      %v4094 = vsel %vm3942, %v3937, 0
      %v4097 = vsel %vm3942, %v3938, 0
      %v4100 = vsel %vm3942, %v3939, 0
      %v4103 = vsel %vm3942, %v3940, 0
      %vm4105 = vcmask 1043456
      %v4107 = vsel %vm4105, %v3941, 0
      %4109 = vmatpush.msra.mxu0 0.0
      %4110 = vmatpush.msra.mxu0 0.0
      %4111 = vmatpush.msra.mxu0 0.0
      %4112 = vmatpush.msra.mxu0 0.0
      %4113 = vmatpush.msra.mxu0 0.0
      %4114 = vmatpush.msra.mxu0 0.0
      %4115 = vmatpush.msra.mxu0 0.0
      %4116 = vmatpush.msra.mxu0 0.0
      %4117 = vmatpush.msra.mxu0 0.0
      %4118 = vmatpush.msra.mxu0 0.0
      %4119 = vmatpush.msra.mxu0 0.0
      %4120 = vmatpush.msra.mxu0 0.0
      %4121 = vmatpush.msra.mxu0 0.0
      %4122 = vmatpush.msra.mxu0 0.0
      %4123 = vmatpush.msra.mxu0 0.0
      %4124 = vmatpush.msra.mxu0 %v4107
      %4125 = vmatmul.f32.gmra.mxu0 %v3944
      %v4126 = vpop.f32.mrf.mxu0
      %v4127 = vadd.f32 0.0, %v4126
      %4128 = vmatmul.f32.gmra.mxu0 %v3947
      %v4129 = vpop.f32.mrf.mxu0
      %v4130 = vadd.f32 0.0, %v4129
      %4131 = vmatmul.f32.gmra.mxu0 %v3950
      %v4132 = vpop.f32.mrf.mxu0
      %v4133 = vadd.f32 0.0, %v4132
      %4134 = vmatmul.f32.gmra.mxu0 %v3953
      %v4135 = vpop.f32.mrf.mxu0
      %v4136 = vadd.f32 0.0, %v4135
      %4137 = vmatmul.f32.gmra.mxu0 %v3956
      %v4138 = vpop.f32.mrf.mxu0
      %v4139 = vadd.f32 0.0, %v4138
      %4140 = vmatmul.f32.gmra.mxu0 %v3959
      %v4141 = vpop.f32.mrf.mxu0
      %v4142 = vadd.f32 0.0, %v4141
      %4143 = vmatmul.f32.gmra.mxu0 %v3962
      %v4144 = vpop.f32.mrf.mxu0
      %v4145 = vadd.f32 0.0, %v4144
      %4146 = vmatmul.f32.gmra.mxu0 %v3965
      %v4147 = vpop.f32.mrf.mxu0
      %v4148 = vadd.f32 0.0, %v4147
      %4149 = vmatmul.f32.gmra.mxu0 %v3968
      %v4150 = vpop.f32.mrf.mxu0
      %v4151 = vadd.f32 0.0, %v4150
      %4152 = vmatmul.f32.gmra.mxu0 %v3971
      %v4153 = vpop.f32.mrf.mxu0
      %v4154 = vadd.f32 0.0, %v4153
      %4155 = vmatmul.f32.gmra.mxu0 %v3974
      %v4156 = vpop.f32.mrf.mxu0
      %v4157 = vadd.f32 0.0, %v4156
      %4158 = vmatmul.f32.gmra.mxu0 %v3977
      %v4159 = vpop.f32.mrf.mxu0
      %v4160 = vadd.f32 0.0, %v4159
      %4161 = vmatmul.f32.gmra.mxu0 %v3980
      %v4162 = vpop.f32.mrf.mxu0
      %v4163 = vadd.f32 0.0, %v4162
      %4164 = vmatmul.f32.gmra.mxu0 %v3983
      %v4165 = vpop.f32.mrf.mxu0
      %v4166 = vadd.f32 0.0, %v4165
      %4167 = vmatmul.f32.gmra.mxu0 %v3986
      %v4168 = vpop.f32.mrf.mxu0
      %v4169 = vadd.f32 0.0, %v4168
      %4170 = vmatmul.f32.gmra.mxu0 %v3989
      %v4171 = vpop.f32.mrf.mxu0
      %v4172 = vadd.f32 0.0, %v4171
      %4173 = vmatmul.f32.gmra.mxu0 %v3992
      %v4174 = vpop.f32.mrf.mxu0
      %v4175 = vadd.f32 0.0, %v4174
      %4176 = vmatmul.f32.gmra.mxu0 %v3995
      %v4177 = vpop.f32.mrf.mxu0
      %v4178 = vadd.f32 0.0, %v4177
      %4179 = vmatmul.f32.gmra.mxu0 %v3998
      %v4180 = vpop.f32.mrf.mxu0
      %v4181 = vadd.f32 0.0, %v4180
      %4182 = vmatmul.f32.gmra.mxu0 %v4001
      %v4183 = vpop.f32.mrf.mxu0
      %v4184 = vadd.f32 0.0, %v4183
      %4185 = vmatmul.f32.gmra.mxu0 %v4004
      %v4186 = vpop.f32.mrf.mxu0
      %v4187 = vadd.f32 0.0, %v4186
      %4188 = vmatmul.f32.gmra.mxu0 %v4007
      %v4189 = vpop.f32.mrf.mxu0
      %v4190 = vadd.f32 0.0, %v4189
      %4191 = vmatmul.f32.gmra.mxu0 %v4010
      %v4192 = vpop.f32.mrf.mxu0
      %v4193 = vadd.f32 0.0, %v4192
      %4194 = vmatmul.f32.gmra.mxu0 %v4013
      %v4195 = vpop.f32.mrf.mxu0
      %v4196 = vadd.f32 0.0, %v4195
      %4197 = vmatmul.f32.gmra.mxu0 %v4016
      %v4198 = vpop.f32.mrf.mxu0
      %v4199 = vadd.f32 0.0, %v4198
      %4200 = vmatmul.f32.gmra.mxu0 %v4019
      %v4201 = vpop.f32.mrf.mxu0
      %v4202 = vadd.f32 0.0, %v4201
      %4203 = vmatmul.f32.gmra.mxu0 %v4022
      %v4204 = vpop.f32.mrf.mxu0
      %v4205 = vadd.f32 0.0, %v4204
      %4206 = vmatmul.f32.gmra.mxu0 %v4025
      %v4207 = vpop.f32.mrf.mxu0
      %v4208 = vadd.f32 0.0, %v4207
      %4209 = vmatmul.f32.gmra.mxu0 %v4028
      %v4210 = vpop.f32.mrf.mxu0
      %v4211 = vadd.f32 0.0, %v4210
      %4212 = vmatmul.f32.gmra.mxu0 %v4031
      %v4213 = vpop.f32.mrf.mxu0
      %v4214 = vadd.f32 0.0, %v4213
      %4215 = vmatmul.f32.gmra.mxu0 %v4034
      %v4216 = vpop.f32.mrf.mxu0
      %v4217 = vadd.f32 0.0, %v4216
      %4218 = vmatmul.f32.gmra.mxu0 %v4037
      %v4219 = vpop.f32.mrf.mxu0
      %v4220 = vadd.f32 0.0, %v4219
      %4221 = vmatmul.f32.gmra.mxu0 %v4040
      %v4222 = vpop.f32.mrf.mxu0
      %v4223 = vadd.f32 0.0, %v4222
      %4224 = vmatmul.f32.gmra.mxu0 %v4043
      %v4225 = vpop.f32.mrf.mxu0
      %v4226 = vadd.f32 0.0, %v4225
      %4227 = vmatmul.f32.gmra.mxu0 %v4046
      %v4228 = vpop.f32.mrf.mxu0
      %v4229 = vadd.f32 0.0, %v4228
      %4230 = vmatmul.f32.gmra.mxu0 %v4049
      %v4231 = vpop.f32.mrf.mxu0
      %v4232 = vadd.f32 0.0, %v4231
      %4233 = vmatmul.f32.gmra.mxu0 %v4052
      %v4234 = vpop.f32.mrf.mxu0
      %v4235 = vadd.f32 0.0, %v4234
      %4236 = vmatmul.f32.gmra.mxu0 %v4055
      %v4237 = vpop.f32.mrf.mxu0
      %v4238 = vadd.f32 0.0, %v4237
      %4239 = vmatmul.f32.gmra.mxu0 %v4058
      %v4240 = vpop.f32.mrf.mxu0
      %v4241 = vadd.f32 0.0, %v4240
      %4242 = vmatmul.f32.gmra.mxu0 %v4061
      %v4243 = vpop.f32.mrf.mxu0
      %v4244 = vadd.f32 0.0, %v4243
      %4245 = vmatmul.f32.gmra.mxu0 %v4064
      %v4246 = vpop.f32.mrf.mxu0
      %v4247 = vadd.f32 0.0, %v4246
      %4248 = vmatmul.f32.gmra.mxu0 %v4067
      %v4249 = vpop.f32.mrf.mxu0
      %v4250 = vadd.f32 0.0, %v4249
      %4251 = vmatmul.f32.gmra.mxu0 %v4070
      %v4252 = vpop.f32.mrf.mxu0
      %v4253 = vadd.f32 0.0, %v4252
      %4254 = vmatmul.f32.gmra.mxu0 %v4073
      %v4255 = vpop.f32.mrf.mxu0
      %v4256 = vadd.f32 0.0, %v4255
      %4257 = vmatmul.f32.gmra.mxu0 %v4076
      %v4258 = vpop.f32.mrf.mxu0
      %v4259 = vadd.f32 0.0, %v4258
      %4260 = vmatmul.f32.gmra.mxu0 %v4079
      %v4261 = vpop.f32.mrf.mxu0
      %v4262 = vadd.f32 0.0, %v4261
      %4263 = vmatmul.f32.gmra.mxu0 %v4082
      %v4264 = vpop.f32.mrf.mxu0
      %v4265 = vadd.f32 0.0, %v4264
      %4266 = vmatmul.f32.gmra.mxu0 %v4085
      %v4267 = vpop.f32.mrf.mxu0
      %v4268 = vadd.f32 0.0, %v4267
      %4269 = vmatmul.f32.gmra.mxu0 %v4088
      %v4270 = vpop.f32.mrf.mxu0
      %v4271 = vadd.f32 0.0, %v4270
      %4272 = vmatmul.f32.gmra.mxu0 %v4091
      %v4273 = vpop.f32.mrf.mxu0
      %v4274 = vadd.f32 0.0, %v4273
      %4275 = vmatmul.f32.gmra.mxu0 %v4094
      %v4276 = vpop.f32.mrf.mxu0
      %v4277 = vadd.f32 0.0, %v4276
      %4278 = vmatmul.f32.gmra.mxu0 %v4097
      %v4279 = vpop.f32.mrf.mxu0
      %v4280 = vadd.f32 0.0, %v4279
      %4281 = vmatmul.f32.gmra.mxu0 %v4100
      %v4282 = vpop.f32.mrf.mxu0
      %v4283 = vadd.f32 0.0, %v4282
      %4284 = vmatmul.f32.gmra.mxu0 %v4103
      %v4285 = vpop.f32.mrf.mxu0
      %v4286 = vadd.f32 0.0, %v4285
      %4287 = vdwg.mxu0
      %v4288 = vrot.slane %v4127, 7
      %v4289 = vrot.slane %v4130, 7
      %v4290 = vrot.slane %v4133, 7
      %v4291 = vrot.slane %v4136, 7
      %v4292 = vrot.slane %v4139, 7
      %v4293 = vrot.slane %v4142, 7
      %v4294 = vrot.slane %v4145, 7
      %v4295 = vrot.slane %v4148, 7
      %v4296 = vrot.slane %v4151, 7
      %v4297 = vrot.slane %v4154, 7
      %v4298 = vrot.slane %v4157, 7
      %v4299 = vrot.slane %v4160, 7
      %v4300 = vrot.slane %v4163, 7
      %v4301 = vrot.slane %v4166, 7
      %v4302 = vrot.slane %v4169, 7
      %v4303 = vrot.slane %v4172, 7
      %v4304 = vrot.slane %v4175, 7
      %v4305 = vrot.slane %v4178, 7
      %v4306 = vrot.slane %v4181, 7
      %v4307 = vrot.slane %v4184, 7
      %v4308 = vrot.slane %v4187, 7
      %v4309 = vrot.slane %v4190, 7
      %v4310 = vrot.slane %v4193, 7
      %v4311 = vrot.slane %v4196, 7
      %v4312 = vrot.slane %v4199, 7
      %v4313 = vrot.slane %v4202, 7
      %v4314 = vrot.slane %v4205, 7
      %v4315 = vrot.slane %v4208, 7
      %v4316 = vrot.slane %v4211, 7
      %v4317 = vrot.slane %v4214, 7
      %v4318 = vrot.slane %v4217, 7
      %v4319 = vrot.slane %v4220, 7
      %v4320 = vrot.slane %v4223, 7
      %v4321 = vrot.slane %v4226, 7
      %v4322 = vrot.slane %v4229, 7
      %v4323 = vrot.slane %v4232, 7
      %v4324 = vrot.slane %v4235, 7
      %v4325 = vrot.slane %v4238, 7
      %v4326 = vrot.slane %v4241, 7
      %v4327 = vrot.slane %v4244, 7
      %v4328 = vrot.slane %v4247, 7
      %v4329 = vrot.slane %v4250, 7
      %v4330 = vrot.slane %v4253, 7
      %v4331 = vrot.slane %v4256, 7
      %v4332 = vrot.slane %v4259, 7
      %v4333 = vrot.slane %v4262, 7
      %v4334 = vrot.slane %v4265, 7
      %v4335 = vrot.slane %v4268, 7
      %v4336 = vrot.slane %v4271, 7
      %v4337 = vrot.slane %v4274, 7
      %v4338 = vrot.slane %v4277, 7
      %v4339 = vrot.slane %v4280, 7
      %v4340 = vrot.slane %v4283, 7
      %v4341 = vrot.slane %v4286, 7
      %v4342 = vsel %vm705, %v4340, %v4341
      %v4343 = vsel %vm705, %v4339, %v4340
      %v4344 = vsel %vm705, %v4338, %v4339
      %v4345 = vsel %vm705, %v4337, %v4338
      %v4346 = vsel %vm705, %v4336, %v4337
      %v4347 = vsel %vm705, %v4335, %v4336
      %v4348 = vsel %vm705, %v4334, %v4335
      %v4349 = vsel %vm705, %v4333, %v4334
      %v4350 = vsel %vm705, %v4332, %v4333
      %v4351 = vsel %vm705, %v4331, %v4332
      %v4352 = vsel %vm705, %v4330, %v4331
      %v4353 = vsel %vm705, %v4329, %v4330
      %v4354 = vsel %vm705, %v4328, %v4329
      %v4355 = vsel %vm705, %v4327, %v4328
      %v4356 = vsel %vm705, %v4326, %v4327
      %v4357 = vsel %vm705, %v4325, %v4326
      %v4358 = vsel %vm705, %v4324, %v4325
      %v4359 = vsel %vm705, %v4323, %v4324
      %v4360 = vsel %vm705, %v4322, %v4323
      %v4361 = vsel %vm705, %v4321, %v4322
      %v4362 = vsel %vm705, %v4320, %v4321
      %v4363 = vsel %vm705, %v4319, %v4320
      %v4364 = vsel %vm705, %v4318, %v4319
      %v4365 = vsel %vm705, %v4317, %v4318
      %v4366 = vsel %vm705, %v4316, %v4317
      %v4367 = vsel %vm705, %v4315, %v4316
      %v4368 = vsel %vm705, %v4314, %v4315
      %v4369 = vsel %vm705, %v4313, %v4314
      %v4370 = vsel %vm705, %v4312, %v4313
      %v4371 = vsel %vm705, %v4311, %v4312
      %v4372 = vsel %vm705, %v4310, %v4311
      %v4373 = vsel %vm705, %v4309, %v4310
      %v4374 = vsel %vm705, %v4308, %v4309
      %v4375 = vsel %vm705, %v4307, %v4308
      %v4376 = vsel %vm705, %v4306, %v4307
      %v4377 = vsel %vm705, %v4305, %v4306
      %v4378 = vsel %vm705, %v4304, %v4305
      %v4379 = vsel %vm705, %v4303, %v4304
      %v4380 = vsel %vm705, %v4302, %v4303
      %v4381 = vsel %vm705, %v4301, %v4302
      %v4382 = vsel %vm705, %v4300, %v4301
      %v4383 = vsel %vm705, %v4299, %v4300
      %v4384 = vsel %vm705, %v4298, %v4299
      %v4385 = vsel %vm705, %v4297, %v4298
      %v4386 = vsel %vm705, %v4296, %v4297
      %v4387 = vsel %vm705, %v4295, %v4296
      %v4388 = vsel %vm705, %v4294, %v4295
      %v4389 = vsel %vm705, %v4293, %v4294
      %v4390 = vsel %vm705, %v4292, %v4293
      %v4391 = vsel %vm705, %v4291, %v4292
      %v4392 = vsel %vm705, %v4290, %v4291
      %v4393 = vsel %vm705, %v4289, %v4290
      %v4394 = vsel %vm705, %v4288, %v4289
      %v4395 = vsel %vm705, %v4341, %v4288
      %s4396 = scalar_lea.vmem %s4, 4
      %v4397 = vld [vmem:[%s4396] sm:$0xf]
      %v4399 = vsel %vm4105, %v4397, 0
      %4401 = vmatpush.msra.mxu0 0.0
      %4402 = vmatpush.msra.mxu0 0.0
      %4403 = vmatpush.msra.mxu0 0.0
      %4404 = vmatpush.msra.mxu0 0.0
      %4405 = vmatpush.msra.mxu0 0.0
      %4406 = vmatpush.msra.mxu0 0.0
      %4407 = vmatpush.msra.mxu0 0.0
      %4408 = vmatpush.msra.mxu0 0.0
      %4409 = vmatpush.msra.mxu0 0.0
      %4410 = vmatpush.msra.mxu0 0.0
      %4411 = vmatpush.msra.mxu0 0.0
      %4412 = vmatpush.msra.mxu0 0.0
      %4413 = vmatpush.msra.mxu0 0.0
      %4414 = vmatpush.msra.mxu0 0.0
      %4415 = vmatpush.msra.mxu0 0.0
      %4416 = vmatpush.msra.mxu0 %v4399
      %4417 = vmatmul.f32.gmra.mxu0 %v3944
      %v4418 = vpop.f32.mrf.mxu0
      %v4419 = vadd.f32 0.0, %v4418
      %4420 = vmatmul.f32.gmra.mxu0 %v3947
      %v4421 = vpop.f32.mrf.mxu0
      %v4422 = vadd.f32 0.0, %v4421
      %4423 = vmatmul.f32.gmra.mxu0 %v3950
      %v4424 = vpop.f32.mrf.mxu0
      %v4425 = vadd.f32 0.0, %v4424
      %4426 = vmatmul.f32.gmra.mxu0 %v3953
      %v4427 = vpop.f32.mrf.mxu0
      %v4428 = vadd.f32 0.0, %v4427
      %4429 = vmatmul.f32.gmra.mxu0 %v3956
      %v4430 = vpop.f32.mrf.mxu0
      %v4431 = vadd.f32 0.0, %v4430
      %4432 = vmatmul.f32.gmra.mxu0 %v3959
      %v4433 = vpop.f32.mrf.mxu0
      %v4434 = vadd.f32 0.0, %v4433
      %4435 = vmatmul.f32.gmra.mxu0 %v3962
      %v4436 = vpop.f32.mrf.mxu0
      %v4437 = vadd.f32 0.0, %v4436
      %4438 = vmatmul.f32.gmra.mxu0 %v3965
      %v4439 = vpop.f32.mrf.mxu0
      %v4440 = vadd.f32 0.0, %v4439
      %4441 = vmatmul.f32.gmra.mxu0 %v3968
      %v4442 = vpop.f32.mrf.mxu0
      %v4443 = vadd.f32 0.0, %v4442
      %4444 = vmatmul.f32.gmra.mxu0 %v3971
      %v4445 = vpop.f32.mrf.mxu0
      %v4446 = vadd.f32 0.0, %v4445
      %4447 = vmatmul.f32.gmra.mxu0 %v3974
      %v4448 = vpop.f32.mrf.mxu0
      %v4449 = vadd.f32 0.0, %v4448
      %4450 = vmatmul.f32.gmra.mxu0 %v3977
      %v4451 = vpop.f32.mrf.mxu0
      %v4452 = vadd.f32 0.0, %v4451
      %4453 = vmatmul.f32.gmra.mxu0 %v3980
      %v4454 = vpop.f32.mrf.mxu0
      %v4455 = vadd.f32 0.0, %v4454
      %4456 = vmatmul.f32.gmra.mxu0 %v3983
      %v4457 = vpop.f32.mrf.mxu0
      %v4458 = vadd.f32 0.0, %v4457
      %4459 = vmatmul.f32.gmra.mxu0 %v3986
      %v4460 = vpop.f32.mrf.mxu0
      %v4461 = vadd.f32 0.0, %v4460
      %4462 = vmatmul.f32.gmra.mxu0 %v3989
      %v4463 = vpop.f32.mrf.mxu0
      %v4464 = vadd.f32 0.0, %v4463
      %4465 = vmatmul.f32.gmra.mxu0 %v3992
      %v4466 = vpop.f32.mrf.mxu0
      %v4467 = vadd.f32 0.0, %v4466
      %4468 = vmatmul.f32.gmra.mxu0 %v3995
      %v4469 = vpop.f32.mrf.mxu0
      %v4470 = vadd.f32 0.0, %v4469
      %4471 = vmatmul.f32.gmra.mxu0 %v3998
      %v4472 = vpop.f32.mrf.mxu0
      %v4473 = vadd.f32 0.0, %v4472
      %4474 = vmatmul.f32.gmra.mxu0 %v4001
      %v4475 = vpop.f32.mrf.mxu0
      %v4476 = vadd.f32 0.0, %v4475
      %4477 = vmatmul.f32.gmra.mxu0 %v4004
      %v4478 = vpop.f32.mrf.mxu0
      %v4479 = vadd.f32 0.0, %v4478
      %4480 = vmatmul.f32.gmra.mxu0 %v4007
      %v4481 = vpop.f32.mrf.mxu0
      %v4482 = vadd.f32 0.0, %v4481
      %4483 = vmatmul.f32.gmra.mxu0 %v4010
      %v4484 = vpop.f32.mrf.mxu0
      %v4485 = vadd.f32 0.0, %v4484
      %4486 = vmatmul.f32.gmra.mxu0 %v4013
      %v4487 = vpop.f32.mrf.mxu0
      %v4488 = vadd.f32 0.0, %v4487
      %4489 = vmatmul.f32.gmra.mxu0 %v4016
      %v4490 = vpop.f32.mrf.mxu0
      %v4491 = vadd.f32 0.0, %v4490
      %4492 = vmatmul.f32.gmra.mxu0 %v4019
      %v4493 = vpop.f32.mrf.mxu0
      %v4494 = vadd.f32 0.0, %v4493
      %4495 = vmatmul.f32.gmra.mxu0 %v4022
      %v4496 = vpop.f32.mrf.mxu0
      %v4497 = vadd.f32 0.0, %v4496
      %4498 = vmatmul.f32.gmra.mxu0 %v4025
      %v4499 = vpop.f32.mrf.mxu0
      %v4500 = vadd.f32 0.0, %v4499
      %4501 = vmatmul.f32.gmra.mxu0 %v4028
      %v4502 = vpop.f32.mrf.mxu0
      %v4503 = vadd.f32 0.0, %v4502
      %4504 = vmatmul.f32.gmra.mxu0 %v4031
      %v4505 = vpop.f32.mrf.mxu0
      %v4506 = vadd.f32 0.0, %v4505
      %4507 = vmatmul.f32.gmra.mxu0 %v4034
      %v4508 = vpop.f32.mrf.mxu0
      %v4509 = vadd.f32 0.0, %v4508
      %4510 = vmatmul.f32.gmra.mxu0 %v4037
      %v4511 = vpop.f32.mrf.mxu0
      %v4512 = vadd.f32 0.0, %v4511
      %4513 = vmatmul.f32.gmra.mxu0 %v4040
      %v4514 = vpop.f32.mrf.mxu0
      %v4515 = vadd.f32 0.0, %v4514
      %4516 = vmatmul.f32.gmra.mxu0 %v4043
      %v4517 = vpop.f32.mrf.mxu0
      %v4518 = vadd.f32 0.0, %v4517
      %4519 = vmatmul.f32.gmra.mxu0 %v4046
      %v4520 = vpop.f32.mrf.mxu0
      %v4521 = vadd.f32 0.0, %v4520
      %4522 = vmatmul.f32.gmra.mxu0 %v4049
      %v4523 = vpop.f32.mrf.mxu0
      %v4524 = vadd.f32 0.0, %v4523
      %4525 = vmatmul.f32.gmra.mxu0 %v4052
      %v4526 = vpop.f32.mrf.mxu0
      %v4527 = vadd.f32 0.0, %v4526
      %4528 = vmatmul.f32.gmra.mxu0 %v4055
      %v4529 = vpop.f32.mrf.mxu0
      %v4530 = vadd.f32 0.0, %v4529
      %4531 = vmatmul.f32.gmra.mxu0 %v4058
      %v4532 = vpop.f32.mrf.mxu0
      %v4533 = vadd.f32 0.0, %v4532
      %4534 = vmatmul.f32.gmra.mxu0 %v4061
      %v4535 = vpop.f32.mrf.mxu0
      %v4536 = vadd.f32 0.0, %v4535
      %4537 = vmatmul.f32.gmra.mxu0 %v4064
      %v4538 = vpop.f32.mrf.mxu0
      %v4539 = vadd.f32 0.0, %v4538
      %4540 = vmatmul.f32.gmra.mxu0 %v4067
      %v4541 = vpop.f32.mrf.mxu0
      %v4542 = vadd.f32 0.0, %v4541
      %4543 = vmatmul.f32.gmra.mxu0 %v4070
      %v4544 = vpop.f32.mrf.mxu0
      %v4545 = vadd.f32 0.0, %v4544
      %4546 = vmatmul.f32.gmra.mxu0 %v4073
      %v4547 = vpop.f32.mrf.mxu0
      %v4548 = vadd.f32 0.0, %v4547
      %4549 = vmatmul.f32.gmra.mxu0 %v4076
      %v4550 = vpop.f32.mrf.mxu0
      %v4551 = vadd.f32 0.0, %v4550
      %4552 = vmatmul.f32.gmra.mxu0 %v4079
      %v4553 = vpop.f32.mrf.mxu0
      %v4554 = vadd.f32 0.0, %v4553
      %4555 = vmatmul.f32.gmra.mxu0 %v4082
      %v4556 = vpop.f32.mrf.mxu0
      %v4557 = vadd.f32 0.0, %v4556
      %4558 = vmatmul.f32.gmra.mxu0 %v4085
      %v4559 = vpop.f32.mrf.mxu0
      %v4560 = vadd.f32 0.0, %v4559
      %4561 = vmatmul.f32.gmra.mxu0 %v4088
      %v4562 = vpop.f32.mrf.mxu0
      %v4563 = vadd.f32 0.0, %v4562
      %4564 = vmatmul.f32.gmra.mxu0 %v4091
      %v4565 = vpop.f32.mrf.mxu0
      %v4566 = vadd.f32 0.0, %v4565
      %4567 = vmatmul.f32.gmra.mxu0 %v4094
      %v4568 = vpop.f32.mrf.mxu0
      %v4569 = vadd.f32 0.0, %v4568
      %4570 = vmatmul.f32.gmra.mxu0 %v4097
      %v4571 = vpop.f32.mrf.mxu0
      %v4572 = vadd.f32 0.0, %v4571
      %4573 = vmatmul.f32.gmra.mxu0 %v4100
      %v4574 = vpop.f32.mrf.mxu0
      %v4575 = vadd.f32 0.0, %v4574
      %4576 = vmatmul.f32.gmra.mxu0 %v4103
      %v4577 = vpop.f32.mrf.mxu0
      %v4578 = vadd.f32 0.0, %v4577
      %4579 = vdwg.mxu0
      %v4580 = vadd.f32 %v4344, %v4572
      %v4581 = vadd.f32 %v4343, %v4575
      %v4582 = vadd.f32 %v4342, %v4578
      %v4583 = vadd.f32 %v4395, %v4419
      %v4584 = vadd.f32 %v4394, %v4422
      %v4585 = vadd.f32 %v4393, %v4425
      %v4586 = vadd.f32 %v4392, %v4428
      %v4587 = vadd.f32 %v4391, %v4431
      %v4588 = vadd.f32 %v4390, %v4434
      %v4589 = vadd.f32 %v4389, %v4437
      %v4590 = vadd.f32 %v4388, %v4440
      %v4591 = vadd.f32 %v4387, %v4443
      %v4592 = vadd.f32 %v4386, %v4446
      %v4593 = vadd.f32 %v4385, %v4449
      %v4594 = vadd.f32 %v4384, %v4452
      %v4595 = vadd.f32 %v4383, %v4455
      %v4596 = vadd.f32 %v4382, %v4458
      %v4597 = vadd.f32 %v4381, %v4461
      %v4598 = vadd.f32 %v4380, %v4464
      %v4599 = vadd.f32 %v4379, %v4467
      %v4600 = vadd.f32 %v4378, %v4470
      %v4601 = vadd.f32 %v4377, %v4473
      %v4602 = vadd.f32 %v4376, %v4476
      %v4603 = vadd.f32 %v4375, %v4479
      %v4604 = vadd.f32 %v4374, %v4482
      %v4605 = vadd.f32 %v4373, %v4485
      %v4606 = vadd.f32 %v4372, %v4488
      %v4607 = vadd.f32 %v4371, %v4491
      %v4608 = vadd.f32 %v4370, %v4494
      %v4609 = vadd.f32 %v4369, %v4497
      %v4610 = vadd.f32 %v4368, %v4500
      %v4611 = vadd.f32 %v4367, %v4503
      %v4612 = vadd.f32 %v4366, %v4506
      %v4613 = vadd.f32 %v4365, %v4509
      %v4614 = vadd.f32 %v4364, %v4512
      %v4615 = vadd.f32 %v4363, %v4515
      %v4616 = vadd.f32 %v4362, %v4518
      %v4617 = vadd.f32 %v4361, %v4521
      %v4618 = vadd.f32 %v4360, %v4524
      %v4619 = vadd.f32 %v4359, %v4527
      %v4620 = vadd.f32 %v4358, %v4530
      %v4621 = vadd.f32 %v4357, %v4533
      %v4622 = vadd.f32 %v4356, %v4536
      %v4623 = vadd.f32 %v4355, %v4539
      %v4624 = vadd.f32 %v4354, %v4542
      %v4625 = vadd.f32 %v4353, %v4545
      %v4626 = vadd.f32 %v4352, %v4548
      %v4627 = vadd.f32 %v4351, %v4551
      %v4628 = vadd.f32 %v4350, %v4554
      %v4629 = vadd.f32 %v4349, %v4557
      %v4630 = vadd.f32 %v4348, %v4560
      %v4631 = vadd.f32 %v4347, %v4563
      %v4632 = vadd.f32 %v4346, %v4566
      %v4633 = vadd.f32 %v4345, %v4569
      %s4634 = scalar_lea.vmem %s4, 8
      %v4635 = vld [vmem:[%s4634] sm:$0xf]
      %v4637 = vsel %vm4105, %v4635, 0
      %4639 = vmatpush.msra.mxu0 0.0
      %4640 = vmatpush.msra.mxu0 0.0
      %4641 = vmatpush.msra.mxu0 0.0
      %4642 = vmatpush.msra.mxu0 0.0
      %4643 = vmatpush.msra.mxu0 0.0
      %4644 = vmatpush.msra.mxu0 0.0
      %4645 = vmatpush.msra.mxu0 0.0
      %4646 = vmatpush.msra.mxu0 0.0
      %4647 = vmatpush.msra.mxu0 0.0
      %4648 = vmatpush.msra.mxu0 0.0
      %4649 = vmatpush.msra.mxu0 0.0
      %4650 = vmatpush.msra.mxu0 0.0
      %4651 = vmatpush.msra.mxu0 0.0
      %4652 = vmatpush.msra.mxu0 0.0
      %4653 = vmatpush.msra.mxu0 0.0
      %4654 = vmatpush.msra.mxu0 %v4637
      %4655 = vmatmul.f32.gmra.mxu0 %v3944
      %v4656 = vpop.f32.mrf.mxu0
      %v4657 = vadd.f32 0.0, %v4656
      %4658 = vmatmul.f32.gmra.mxu0 %v3947
      %v4659 = vpop.f32.mrf.mxu0
      %v4660 = vadd.f32 0.0, %v4659
      %4661 = vmatmul.f32.gmra.mxu0 %v3950
      %v4662 = vpop.f32.mrf.mxu0
      %v4663 = vadd.f32 0.0, %v4662
      %4664 = vmatmul.f32.gmra.mxu0 %v3953
      %v4665 = vpop.f32.mrf.mxu0
      %v4666 = vadd.f32 0.0, %v4665
      %4667 = vmatmul.f32.gmra.mxu0 %v3956
      %v4668 = vpop.f32.mrf.mxu0
      %v4669 = vadd.f32 0.0, %v4668
      %4670 = vmatmul.f32.gmra.mxu0 %v3959
      %v4671 = vpop.f32.mrf.mxu0
      %v4672 = vadd.f32 0.0, %v4671
      %4673 = vmatmul.f32.gmra.mxu0 %v3962
      %v4674 = vpop.f32.mrf.mxu0
      %v4675 = vadd.f32 0.0, %v4674
      %4676 = vmatmul.f32.gmra.mxu0 %v3965
      %v4677 = vpop.f32.mrf.mxu0
      %v4678 = vadd.f32 0.0, %v4677
      %4679 = vmatmul.f32.gmra.mxu0 %v3968
      %v4680 = vpop.f32.mrf.mxu0
      %v4681 = vadd.f32 0.0, %v4680
      %4682 = vmatmul.f32.gmra.mxu0 %v3971
      %v4683 = vpop.f32.mrf.mxu0
      %v4684 = vadd.f32 0.0, %v4683
      %4685 = vmatmul.f32.gmra.mxu0 %v3974
      %v4686 = vpop.f32.mrf.mxu0
      %v4687 = vadd.f32 0.0, %v4686
      %4688 = vmatmul.f32.gmra.mxu0 %v3977
      %v4689 = vpop.f32.mrf.mxu0
      %v4690 = vadd.f32 0.0, %v4689
      %4691 = vmatmul.f32.gmra.mxu0 %v3980
      %v4692 = vpop.f32.mrf.mxu0
      %v4693 = vadd.f32 0.0, %v4692
      %4694 = vmatmul.f32.gmra.mxu0 %v3983
      %v4695 = vpop.f32.mrf.mxu0
      %v4696 = vadd.f32 0.0, %v4695
      %4697 = vmatmul.f32.gmra.mxu0 %v3986
      %v4698 = vpop.f32.mrf.mxu0
      %v4699 = vadd.f32 0.0, %v4698
      %4700 = vmatmul.f32.gmra.mxu0 %v3989
      %v4701 = vpop.f32.mrf.mxu0
      %v4702 = vadd.f32 0.0, %v4701
      %4703 = vmatmul.f32.gmra.mxu0 %v3992
      %v4704 = vpop.f32.mrf.mxu0
      %v4705 = vadd.f32 0.0, %v4704
      %4706 = vmatmul.f32.gmra.mxu0 %v3995
      %v4707 = vpop.f32.mrf.mxu0
      %v4708 = vadd.f32 0.0, %v4707
      %4709 = vmatmul.f32.gmra.mxu0 %v3998
      %v4710 = vpop.f32.mrf.mxu0
      %v4711 = vadd.f32 0.0, %v4710
      %4712 = vmatmul.f32.gmra.mxu0 %v4001
      %v4713 = vpop.f32.mrf.mxu0
      %v4714 = vadd.f32 0.0, %v4713
      %4715 = vmatmul.f32.gmra.mxu0 %v4004
      %v4716 = vpop.f32.mrf.mxu0
      %v4717 = vadd.f32 0.0, %v4716
      %4718 = vmatmul.f32.gmra.mxu0 %v4007
      %v4719 = vpop.f32.mrf.mxu0
      %v4720 = vadd.f32 0.0, %v4719
      %4721 = vmatmul.f32.gmra.mxu0 %v4010
      %v4722 = vpop.f32.mrf.mxu0
      %v4723 = vadd.f32 0.0, %v4722
      %4724 = vmatmul.f32.gmra.mxu0 %v4013
      %v4725 = vpop.f32.mrf.mxu0
      %v4726 = vadd.f32 0.0, %v4725
      %4727 = vmatmul.f32.gmra.mxu0 %v4016
      %v4728 = vpop.f32.mrf.mxu0
      %v4729 = vadd.f32 0.0, %v4728
      %4730 = vmatmul.f32.gmra.mxu0 %v4019
      %v4731 = vpop.f32.mrf.mxu0
      %v4732 = vadd.f32 0.0, %v4731
      %4733 = vmatmul.f32.gmra.mxu0 %v4022
      %v4734 = vpop.f32.mrf.mxu0
      %v4735 = vadd.f32 0.0, %v4734
      %4736 = vmatmul.f32.gmra.mxu0 %v4025
      %v4737 = vpop.f32.mrf.mxu0
      %v4738 = vadd.f32 0.0, %v4737
      %4739 = vmatmul.f32.gmra.mxu0 %v4028
      %v4740 = vpop.f32.mrf.mxu0
      %v4741 = vadd.f32 0.0, %v4740
      %4742 = vmatmul.f32.gmra.mxu0 %v4031
      %v4743 = vpop.f32.mrf.mxu0
      %v4744 = vadd.f32 0.0, %v4743
      %4745 = vmatmul.f32.gmra.mxu0 %v4034
      %v4746 = vpop.f32.mrf.mxu0
      %v4747 = vadd.f32 0.0, %v4746
      %4748 = vmatmul.f32.gmra.mxu0 %v4037
      %v4749 = vpop.f32.mrf.mxu0
      %v4750 = vadd.f32 0.0, %v4749
      %4751 = vmatmul.f32.gmra.mxu0 %v4040
      %v4752 = vpop.f32.mrf.mxu0
      %v4753 = vadd.f32 0.0, %v4752
      %4754 = vmatmul.f32.gmra.mxu0 %v4043
      %v4755 = vpop.f32.mrf.mxu0
      %v4756 = vadd.f32 0.0, %v4755
      %4757 = vmatmul.f32.gmra.mxu0 %v4046
      %v4758 = vpop.f32.mrf.mxu0
      %v4759 = vadd.f32 0.0, %v4758
      %4760 = vmatmul.f32.gmra.mxu0 %v4049
      %v4761 = vpop.f32.mrf.mxu0
      %v4762 = vadd.f32 0.0, %v4761
      %4763 = vmatmul.f32.gmra.mxu0 %v4052
      %v4764 = vpop.f32.mrf.mxu0
      %v4765 = vadd.f32 0.0, %v4764
      %4766 = vmatmul.f32.gmra.mxu0 %v4055
      %v4767 = vpop.f32.mrf.mxu0
      %v4768 = vadd.f32 0.0, %v4767
      %4769 = vmatmul.f32.gmra.mxu0 %v4058
      %v4770 = vpop.f32.mrf.mxu0
      %v4771 = vadd.f32 0.0, %v4770
      %4772 = vmatmul.f32.gmra.mxu0 %v4061
      %v4773 = vpop.f32.mrf.mxu0
      %v4774 = vadd.f32 0.0, %v4773
      %4775 = vmatmul.f32.gmra.mxu0 %v4064
      %v4776 = vpop.f32.mrf.mxu0
      %v4777 = vadd.f32 0.0, %v4776
      %4778 = vmatmul.f32.gmra.mxu0 %v4067
      %v4779 = vpop.f32.mrf.mxu0
      %v4780 = vadd.f32 0.0, %v4779
      %4781 = vmatmul.f32.gmra.mxu0 %v4070
      %v4782 = vpop.f32.mrf.mxu0
      %v4783 = vadd.f32 0.0, %v4782
      %4784 = vmatmul.f32.gmra.mxu0 %v4073
      %v4785 = vpop.f32.mrf.mxu0
      %v4786 = vadd.f32 0.0, %v4785
      %4787 = vmatmul.f32.gmra.mxu0 %v4076
      %v4788 = vpop.f32.mrf.mxu0
      %v4789 = vadd.f32 0.0, %v4788
      %4790 = vmatmul.f32.gmra.mxu0 %v4079
      %v4791 = vpop.f32.mrf.mxu0
      %v4792 = vadd.f32 0.0, %v4791
      %4793 = vmatmul.f32.gmra.mxu0 %v4082
      %v4794 = vpop.f32.mrf.mxu0
      %v4795 = vadd.f32 0.0, %v4794
      %4796 = vmatmul.f32.gmra.mxu0 %v4085
      %v4797 = vpop.f32.mrf.mxu0
      %v4798 = vadd.f32 0.0, %v4797
      %4799 = vmatmul.f32.gmra.mxu0 %v4088
      %v4800 = vpop.f32.mrf.mxu0
      %v4801 = vadd.f32 0.0, %v4800
      %4802 = vmatmul.f32.gmra.mxu0 %v4091
      %v4803 = vpop.f32.mrf.mxu0
      %v4804 = vadd.f32 0.0, %v4803
      %4805 = vmatmul.f32.gmra.mxu0 %v4094
      %v4806 = vpop.f32.mrf.mxu0
      %v4807 = vadd.f32 0.0, %v4806
      %4808 = vmatmul.f32.gmra.mxu0 %v4097
      %v4809 = vpop.f32.mrf.mxu0
      %v4810 = vadd.f32 0.0, %v4809
      %4811 = vmatmul.f32.gmra.mxu0 %v4100
      %v4812 = vpop.f32.mrf.mxu0
      %v4813 = vadd.f32 0.0, %v4812
      %4814 = vmatmul.f32.gmra.mxu0 %v4103
      %v4815 = vpop.f32.mrf.mxu0
      %v4816 = vadd.f32 0.0, %v4815
      %4817 = vdwg.mxu0
      %v4818 = vrot.slane %v4657, 1
      %v4819 = vrot.slane %v4660, 1
      %v4820 = vrot.slane %v4663, 1
      %v4821 = vrot.slane %v4666, 1
      %v4822 = vrot.slane %v4669, 1
      %v4823 = vrot.slane %v4672, 1
      %v4824 = vrot.slane %v4675, 1
      %v4825 = vrot.slane %v4678, 1
      %v4826 = vrot.slane %v4681, 1
      %v4827 = vrot.slane %v4684, 1
      %v4828 = vrot.slane %v4687, 1
      %v4829 = vrot.slane %v4690, 1
      %v4830 = vrot.slane %v4693, 1
      %v4831 = vrot.slane %v4696, 1
      %v4832 = vrot.slane %v4699, 1
      %v4833 = vrot.slane %v4702, 1
      %v4834 = vrot.slane %v4705, 1
      %v4835 = vrot.slane %v4708, 1
      %v4836 = vrot.slane %v4711, 1
      %v4837 = vrot.slane %v4714, 1
      %v4838 = vrot.slane %v4717, 1
      %v4839 = vrot.slane %v4720, 1
      %v4840 = vrot.slane %v4723, 1
      %v4841 = vrot.slane %v4726, 1
      %v4842 = vrot.slane %v4729, 1
      %v4843 = vrot.slane %v4732, 1
      %v4844 = vrot.slane %v4735, 1
      %v4845 = vrot.slane %v4738, 1
      %v4846 = vrot.slane %v4741, 1
      %v4847 = vrot.slane %v4744, 1
      %v4848 = vrot.slane %v4747, 1
      %v4849 = vrot.slane %v4750, 1
      %v4850 = vrot.slane %v4753, 1
      %v4851 = vrot.slane %v4756, 1
      %v4852 = vrot.slane %v4759, 1
      %v4853 = vrot.slane %v4762, 1
      %v4854 = vrot.slane %v4765, 1
      %v4855 = vrot.slane %v4768, 1
      %v4856 = vrot.slane %v4771, 1
      %v4857 = vrot.slane %v4774, 1
      %v4858 = vrot.slane %v4777, 1
      %v4859 = vrot.slane %v4780, 1
      %v4860 = vrot.slane %v4783, 1
      %v4861 = vrot.slane %v4786, 1
      %v4862 = vrot.slane %v4789, 1
      %v4863 = vrot.slane %v4792, 1
      %v4864 = vrot.slane %v4795, 1
      %v4865 = vrot.slane %v4798, 1
      %v4866 = vrot.slane %v4801, 1
      %v4867 = vrot.slane %v4804, 1
      %v4868 = vrot.slane %v4807, 1
      %v4869 = vrot.slane %v4810, 1
      %v4870 = vrot.slane %v4813, 1
      %v4871 = vrot.slane %v4816, 1
      %v4872 = vsel %vm1230, %v4870, %v4871
      %v4873 = vsel %vm1230, %v4869, %v4870
      %v4874 = vsel %vm1230, %v4868, %v4869
      %v4875 = vsel %vm1230, %v4867, %v4868
      %v4876 = vsel %vm1230, %v4866, %v4867
      %v4877 = vsel %vm1230, %v4865, %v4866
      %v4878 = vsel %vm1230, %v4864, %v4865
      %v4879 = vsel %vm1230, %v4863, %v4864
      %v4880 = vsel %vm1230, %v4862, %v4863
      %v4881 = vsel %vm1230, %v4861, %v4862
      %v4882 = vsel %vm1230, %v4860, %v4861
      %v4883 = vsel %vm1230, %v4859, %v4860
      %v4884 = vsel %vm1230, %v4858, %v4859
      %v4885 = vsel %vm1230, %v4857, %v4858
      %v4886 = vsel %vm1230, %v4856, %v4857
      %v4887 = vsel %vm1230, %v4855, %v4856
      %v4888 = vsel %vm1230, %v4854, %v4855
      %v4889 = vsel %vm1230, %v4853, %v4854
      %v4890 = vsel %vm1230, %v4852, %v4853
      %v4891 = vsel %vm1230, %v4851, %v4852
      %v4892 = vsel %vm1230, %v4850, %v4851
      %v4893 = vsel %vm1230, %v4849, %v4850
      %v4894 = vsel %vm1230, %v4848, %v4849
      %v4895 = vsel %vm1230, %v4847, %v4848
      %v4896 = vsel %vm1230, %v4846, %v4847
      %v4897 = vsel %vm1230, %v4845, %v4846
      %v4898 = vsel %vm1230, %v4844, %v4845
      %v4899 = vsel %vm1230, %v4843, %v4844
      %v4900 = vsel %vm1230, %v4842, %v4843
      %v4901 = vsel %vm1230, %v4841, %v4842
      %v4902 = vsel %vm1230, %v4840, %v4841
      %v4903 = vsel %vm1230, %v4839, %v4840
      %v4904 = vsel %vm1230, %v4838, %v4839
      %v4905 = vsel %vm1230, %v4837, %v4838
      %v4906 = vsel %vm1230, %v4836, %v4837
      %v4907 = vsel %vm1230, %v4835, %v4836
      %v4908 = vsel %vm1230, %v4834, %v4835
      %v4909 = vsel %vm1230, %v4833, %v4834
      %v4910 = vsel %vm1230, %v4832, %v4833
      %v4911 = vsel %vm1230, %v4831, %v4832
      %v4912 = vsel %vm1230, %v4830, %v4831
      %v4913 = vsel %vm1230, %v4829, %v4830
      %v4914 = vsel %vm1230, %v4828, %v4829
      %v4915 = vsel %vm1230, %v4827, %v4828
      %v4916 = vsel %vm1230, %v4826, %v4827
      %v4917 = vsel %vm1230, %v4825, %v4826
      %v4918 = vsel %vm1230, %v4824, %v4825
      %v4919 = vsel %vm1230, %v4823, %v4824
      %v4920 = vsel %vm1230, %v4822, %v4823
      %v4921 = vsel %vm1230, %v4821, %v4822
      %v4922 = vsel %vm1230, %v4820, %v4821
      %v4923 = vsel %vm1230, %v4819, %v4820
      %v4924 = vsel %vm1230, %v4818, %v4819
      %v4925 = vsel %vm1230, %v4871, %v4818
      %v4926 = vadd.f32 %v4580, %v4873
      %v4927 = vadd.f32 %v4581, %v4872
      %v4928 = vadd.f32 %v4582, %v4925
      %v4929 = vadd.f32 %v4583, %v4924
      %v4930 = vadd.f32 %v4584, %v4923
      %v4931 = vadd.f32 %v4585, %v4922
      %v4932 = vadd.f32 %v4586, %v4921
      %v4933 = vadd.f32 %v4587, %v4920
      %v4934 = vadd.f32 %v4588, %v4919
      %v4935 = vadd.f32 %v4589, %v4918
      %v4936 = vadd.f32 %v4590, %v4917
      %v4937 = vadd.f32 %v4591, %v4916
      %v4938 = vadd.f32 %v4592, %v4915
      %v4939 = vadd.f32 %v4593, %v4914
      %v4940 = vadd.f32 %v4594, %v4913
      %v4941 = vadd.f32 %v4595, %v4912
      %v4942 = vadd.f32 %v4596, %v4911
      %v4943 = vadd.f32 %v4597, %v4910
      %v4944 = vadd.f32 %v4598, %v4909
      %v4945 = vadd.f32 %v4599, %v4908
      %v4946 = vadd.f32 %v4600, %v4907
      %v4947 = vadd.f32 %v4601, %v4906
      %v4948 = vadd.f32 %v4602, %v4905
      %v4949 = vadd.f32 %v4603, %v4904
      %v4950 = vadd.f32 %v4604, %v4903
      %v4951 = vadd.f32 %v4605, %v4902
      %v4952 = vadd.f32 %v4606, %v4901
      %v4953 = vadd.f32 %v4607, %v4900
      %v4954 = vadd.f32 %v4608, %v4899
      %v4955 = vadd.f32 %v4609, %v4898
      %v4956 = vadd.f32 %v4610, %v4897
      %v4957 = vadd.f32 %v4611, %v4896
      %v4958 = vadd.f32 %v4612, %v4895
      %v4959 = vadd.f32 %v4613, %v4894
      %v4960 = vadd.f32 %v4614, %v4893
      %v4961 = vadd.f32 %v4615, %v4892
      %v4962 = vadd.f32 %v4616, %v4891
      %v4963 = vadd.f32 %v4617, %v4890
      %v4964 = vadd.f32 %v4618, %v4889
      %v4965 = vadd.f32 %v4619, %v4888
      %v4966 = vadd.f32 %v4620, %v4887
      %v4967 = vadd.f32 %v4621, %v4886
      %v4968 = vadd.f32 %v4622, %v4885
      %v4969 = vadd.f32 %v4623, %v4884
      %v4970 = vadd.f32 %v4624, %v4883
      %v4971 = vadd.f32 %v4625, %v4882
      %v4972 = vadd.f32 %v4626, %v4881
      %v4973 = vadd.f32 %v4627, %v4880
      %v4974 = vadd.f32 %v4628, %v4879
      %v4975 = vadd.f32 %v4629, %v4878
      %v4976 = vadd.f32 %v4630, %v4877
      %v4977 = vadd.f32 %v4631, %v4876
      %v4978 = vadd.f32 %v4632, %v4875
      %v4979 = vadd.f32 %v4633, %v4874
      %s4980 = scalar_lea.vmem %s4, 12
      %v4981 = vld [vmem:[%s4980] sm:$0xf]
      %v4983 = vsel %vm4105, %v4981, 0
      %4985 = vmatpush.msra.mxu0 0.0
      %4986 = vmatpush.msra.mxu0 0.0
      %4987 = vmatpush.msra.mxu0 0.0
      %4988 = vmatpush.msra.mxu0 0.0
      %4989 = vmatpush.msra.mxu0 0.0
      %4990 = vmatpush.msra.mxu0 0.0
      %4991 = vmatpush.msra.mxu0 0.0
      %4992 = vmatpush.msra.mxu0 0.0
      %4993 = vmatpush.msra.mxu0 0.0
      %4994 = vmatpush.msra.mxu0 0.0
      %4995 = vmatpush.msra.mxu0 0.0
      %4996 = vmatpush.msra.mxu0 0.0
      %4997 = vmatpush.msra.mxu0 0.0
      %4998 = vmatpush.msra.mxu0 0.0
      %4999 = vmatpush.msra.mxu0 0.0
      %5000 = vmatpush.msra.mxu0 %v4983
      %5001 = vmatmul.f32.gmra.mxu0 %v3944
      %v5002 = vpop.f32.mrf.mxu0
      %v5003 = vadd.f32 0.0, %v5002
      %5004 = vmatmul.f32.gmra.mxu0 %v3947
      %v5005 = vpop.f32.mrf.mxu0
      %v5006 = vadd.f32 0.0, %v5005
      %5007 = vmatmul.f32.gmra.mxu0 %v3950
      %v5008 = vpop.f32.mrf.mxu0
      %v5009 = vadd.f32 0.0, %v5008
      %5010 = vmatmul.f32.gmra.mxu0 %v3953
      %v5011 = vpop.f32.mrf.mxu0
      %v5012 = vadd.f32 0.0, %v5011
      %5013 = vmatmul.f32.gmra.mxu0 %v3956
      %v5014 = vpop.f32.mrf.mxu0
      %v5015 = vadd.f32 0.0, %v5014
      %5016 = vmatmul.f32.gmra.mxu0 %v3959
      %v5017 = vpop.f32.mrf.mxu0
      %v5018 = vadd.f32 0.0, %v5017
      %5019 = vmatmul.f32.gmra.mxu0 %v3962
      %v5020 = vpop.f32.mrf.mxu0
      %v5021 = vadd.f32 0.0, %v5020
      %5022 = vmatmul.f32.gmra.mxu0 %v3965
      %v5023 = vpop.f32.mrf.mxu0
      %v5024 = vadd.f32 0.0, %v5023
      %5025 = vmatmul.f32.gmra.mxu0 %v3968
      %v5026 = vpop.f32.mrf.mxu0
      %v5027 = vadd.f32 0.0, %v5026
      %5028 = vmatmul.f32.gmra.mxu0 %v3971
      %v5029 = vpop.f32.mrf.mxu0
      %v5030 = vadd.f32 0.0, %v5029
      %5031 = vmatmul.f32.gmra.mxu0 %v3974
      %v5032 = vpop.f32.mrf.mxu0
      %v5033 = vadd.f32 0.0, %v5032
      %5034 = vmatmul.f32.gmra.mxu0 %v3977
      %v5035 = vpop.f32.mrf.mxu0
      %v5036 = vadd.f32 0.0, %v5035
      %5037 = vmatmul.f32.gmra.mxu0 %v3980
      %v5038 = vpop.f32.mrf.mxu0
      %v5039 = vadd.f32 0.0, %v5038
      %5040 = vmatmul.f32.gmra.mxu0 %v3983
      %v5041 = vpop.f32.mrf.mxu0
      %v5042 = vadd.f32 0.0, %v5041
      %5043 = vmatmul.f32.gmra.mxu0 %v3986
      %v5044 = vpop.f32.mrf.mxu0
      %v5045 = vadd.f32 0.0, %v5044
      %5046 = vmatmul.f32.gmra.mxu0 %v3989
      %v5047 = vpop.f32.mrf.mxu0
      %v5048 = vadd.f32 0.0, %v5047
      %5049 = vmatmul.f32.gmra.mxu0 %v3992
      %v5050 = vpop.f32.mrf.mxu0
      %v5051 = vadd.f32 0.0, %v5050
      %5052 = vmatmul.f32.gmra.mxu0 %v3995
      %v5053 = vpop.f32.mrf.mxu0
      %v5054 = vadd.f32 0.0, %v5053
      %5055 = vmatmul.f32.gmra.mxu0 %v3998
      %v5056 = vpop.f32.mrf.mxu0
      %v5057 = vadd.f32 0.0, %v5056
      %5058 = vmatmul.f32.gmra.mxu0 %v4001
      %v5059 = vpop.f32.mrf.mxu0
      %v5060 = vadd.f32 0.0, %v5059
      %5061 = vmatmul.f32.gmra.mxu0 %v4004
      %v5062 = vpop.f32.mrf.mxu0
      %v5063 = vadd.f32 0.0, %v5062
      %5064 = vmatmul.f32.gmra.mxu0 %v4007
      %v5065 = vpop.f32.mrf.mxu0
      %v5066 = vadd.f32 0.0, %v5065
      %5067 = vmatmul.f32.gmra.mxu0 %v4010
      %v5068 = vpop.f32.mrf.mxu0
      %v5069 = vadd.f32 0.0, %v5068
      %5070 = vmatmul.f32.gmra.mxu0 %v4013
      %v5071 = vpop.f32.mrf.mxu0
      %v5072 = vadd.f32 0.0, %v5071
      %5073 = vmatmul.f32.gmra.mxu0 %v4016
      %v5074 = vpop.f32.mrf.mxu0
      %v5075 = vadd.f32 0.0, %v5074
      %5076 = vmatmul.f32.gmra.mxu0 %v4019
      %v5077 = vpop.f32.mrf.mxu0
      %v5078 = vadd.f32 0.0, %v5077
      %5079 = vmatmul.f32.gmra.mxu0 %v4022
      %v5080 = vpop.f32.mrf.mxu0
      %v5081 = vadd.f32 0.0, %v5080
      %5082 = vmatmul.f32.gmra.mxu0 %v4025
      %v5083 = vpop.f32.mrf.mxu0
      %v5084 = vadd.f32 0.0, %v5083
      %5085 = vmatmul.f32.gmra.mxu0 %v4028
      %v5086 = vpop.f32.mrf.mxu0
      %v5087 = vadd.f32 0.0, %v5086
      %5088 = vmatmul.f32.gmra.mxu0 %v4031
      %v5089 = vpop.f32.mrf.mxu0
      %v5090 = vadd.f32 0.0, %v5089
      %5091 = vmatmul.f32.gmra.mxu0 %v4034
      %v5092 = vpop.f32.mrf.mxu0
      %v5093 = vadd.f32 0.0, %v5092
      %5094 = vmatmul.f32.gmra.mxu0 %v4037
      %v5095 = vpop.f32.mrf.mxu0
      %v5096 = vadd.f32 0.0, %v5095
      %5097 = vmatmul.f32.gmra.mxu0 %v4040
      %v5098 = vpop.f32.mrf.mxu0
      %v5099 = vadd.f32 0.0, %v5098
      %5100 = vmatmul.f32.gmra.mxu0 %v4043
      %v5101 = vpop.f32.mrf.mxu0
      %v5102 = vadd.f32 0.0, %v5101
      %5103 = vmatmul.f32.gmra.mxu0 %v4046
      %v5104 = vpop.f32.mrf.mxu0
      %v5105 = vadd.f32 0.0, %v5104
      %5106 = vmatmul.f32.gmra.mxu0 %v4049
      %v5107 = vpop.f32.mrf.mxu0
      %v5108 = vadd.f32 0.0, %v5107
      %5109 = vmatmul.f32.gmra.mxu0 %v4052
      %v5110 = vpop.f32.mrf.mxu0
      %v5111 = vadd.f32 0.0, %v5110
      %5112 = vmatmul.f32.gmra.mxu0 %v4055
      %v5113 = vpop.f32.mrf.mxu0
      %v5114 = vadd.f32 0.0, %v5113
      %5115 = vmatmul.f32.gmra.mxu0 %v4058
      %v5116 = vpop.f32.mrf.mxu0
      %v5117 = vadd.f32 0.0, %v5116
      %5118 = vmatmul.f32.gmra.mxu0 %v4061
      %v5119 = vpop.f32.mrf.mxu0
      %v5120 = vadd.f32 0.0, %v5119
      %5121 = vmatmul.f32.gmra.mxu0 %v4064
      %v5122 = vpop.f32.mrf.mxu0
      %v5123 = vadd.f32 0.0, %v5122
      %5124 = vmatmul.f32.gmra.mxu0 %v4067
      %v5125 = vpop.f32.mrf.mxu0
      %v5126 = vadd.f32 0.0, %v5125
      %5127 = vmatmul.f32.gmra.mxu0 %v4070
      %v5128 = vpop.f32.mrf.mxu0
      %v5129 = vadd.f32 0.0, %v5128
      %5130 = vmatmul.f32.gmra.mxu0 %v4073
      %v5131 = vpop.f32.mrf.mxu0
      %v5132 = vadd.f32 0.0, %v5131
      %5133 = vmatmul.f32.gmra.mxu0 %v4076
      %v5134 = vpop.f32.mrf.mxu0
      %v5135 = vadd.f32 0.0, %v5134
      %5136 = vmatmul.f32.gmra.mxu0 %v4079
      %v5137 = vpop.f32.mrf.mxu0
      %v5138 = vadd.f32 0.0, %v5137
      %5139 = vmatmul.f32.gmra.mxu0 %v4082
      %v5140 = vpop.f32.mrf.mxu0
      %v5141 = vadd.f32 0.0, %v5140
      %5142 = vmatmul.f32.gmra.mxu0 %v4085
      %v5143 = vpop.f32.mrf.mxu0
      %v5144 = vadd.f32 0.0, %v5143
      %5145 = vmatmul.f32.gmra.mxu0 %v4088
      %v5146 = vpop.f32.mrf.mxu0
      %v5147 = vadd.f32 0.0, %v5146
      %5148 = vmatmul.f32.gmra.mxu0 %v4091
      %v5149 = vpop.f32.mrf.mxu0
      %v5150 = vadd.f32 0.0, %v5149
      %5151 = vmatmul.f32.gmra.mxu0 %v4094
      %v5152 = vpop.f32.mrf.mxu0
      %v5153 = vadd.f32 0.0, %v5152
      %5154 = vmatmul.f32.gmra.mxu0 %v4097
      %v5155 = vpop.f32.mrf.mxu0
      %v5156 = vadd.f32 0.0, %v5155
      %5157 = vmatmul.f32.gmra.mxu0 %v4100
      %v5158 = vpop.f32.mrf.mxu0
      %v5159 = vadd.f32 0.0, %v5158
      %5160 = vmatmul.f32.gmra.mxu0 %v4103
      %v5161 = vpop.f32.mrf.mxu0
      %v5162 = vadd.f32 0.0, %v5161
      %5163 = vdwg.mxu0
      %v5164 = vrot.slane %v5003, 7
      %v5165 = vrot.slane %v5006, 7
      %v5166 = vrot.slane %v5009, 7
      %v5167 = vrot.slane %v5012, 7
      %v5168 = vrot.slane %v5015, 7
      %v5169 = vrot.slane %v5018, 7
      %v5170 = vrot.slane %v5021, 7
      %v5171 = vrot.slane %v5024, 7
      %v5172 = vrot.slane %v5027, 7
      %v5173 = vrot.slane %v5030, 7
      %v5174 = vrot.slane %v5033, 7
      %v5175 = vrot.slane %v5036, 7
      %v5176 = vrot.slane %v5039, 7
      %v5177 = vrot.slane %v5042, 7
      %v5178 = vrot.slane %v5045, 7
      %v5179 = vrot.slane %v5048, 7
      %v5180 = vrot.slane %v5051, 7
      %v5181 = vrot.slane %v5054, 7
      %v5182 = vrot.slane %v5057, 7
      %v5183 = vrot.slane %v5060, 7
      %v5184 = vrot.slane %v5063, 7
      %v5185 = vrot.slane %v5066, 7
      %v5186 = vrot.slane %v5069, 7
      %v5187 = vrot.slane %v5072, 7
      %v5188 = vrot.slane %v5075, 7
      %v5189 = vrot.slane %v5078, 7
      %v5190 = vrot.slane %v5081, 7
      %v5191 = vrot.slane %v5084, 7
      %v5192 = vrot.slane %v5087, 7
      %v5193 = vrot.slane %v5090, 7
      %v5194 = vrot.slane %v5093, 7
      %v5195 = vrot.slane %v5096, 7
      %v5196 = vrot.slane %v5099, 7
      %v5197 = vrot.slane %v5102, 7
      %v5198 = vrot.slane %v5105, 7
      %v5199 = vrot.slane %v5108, 7
      %v5200 = vrot.slane %v5111, 7
      %v5201 = vrot.slane %v5114, 7
      %v5202 = vrot.slane %v5117, 7
      %v5203 = vrot.slane %v5120, 7
      %v5204 = vrot.slane %v5123, 7
      %v5205 = vrot.slane %v5126, 7
      %v5206 = vrot.slane %v5129, 7
      %v5207 = vrot.slane %v5132, 7
      %v5208 = vrot.slane %v5135, 7
      %v5209 = vrot.slane %v5138, 7
      %v5210 = vrot.slane %v5141, 7
      %v5211 = vrot.slane %v5144, 7
      %v5212 = vrot.slane %v5147, 7
      %v5213 = vrot.slane %v5150, 7
      %v5214 = vrot.slane %v5153, 7
      %v5215 = vrot.slane %v5156, 7
      %v5216 = vrot.slane %v5159, 7
      %v5217 = vrot.slane %v5162, 7
      %v5218 = vsel %vm705, %v5216, %v5217
      %v5219 = vsel %vm705, %v5215, %v5216
      %v5220 = vsel %vm705, %v5214, %v5215
      %v5221 = vsel %vm705, %v5213, %v5214
      %v5222 = vsel %vm705, %v5212, %v5213
      %v5223 = vsel %vm705, %v5211, %v5212
      %v5224 = vsel %vm705, %v5210, %v5211
      %v5225 = vsel %vm705, %v5209, %v5210
      %v5226 = vsel %vm705, %v5208, %v5209
      %v5227 = vsel %vm705, %v5207, %v5208
      %v5228 = vsel %vm705, %v5206, %v5207
      %v5229 = vsel %vm705, %v5205, %v5206
      %v5230 = vsel %vm705, %v5204, %v5205
      %v5231 = vsel %vm705, %v5203, %v5204
      %v5232 = vsel %vm705, %v5202, %v5203
      %v5233 = vsel %vm705, %v5201, %v5202
      %v5234 = vsel %vm705, %v5200, %v5201
      %v5235 = vsel %vm705, %v5199, %v5200
      %v5236 = vsel %vm705, %v5198, %v5199
      %v5237 = vsel %vm705, %v5197, %v5198
      %v5238 = vsel %vm705, %v5196, %v5197
      %v5239 = vsel %vm705, %v5195, %v5196
      %v5240 = vsel %vm705, %v5194, %v5195
      %v5241 = vsel %vm705, %v5193, %v5194
      %v5242 = vsel %vm705, %v5192, %v5193
      %v5243 = vsel %vm705, %v5191, %v5192
      %v5244 = vsel %vm705, %v5190, %v5191
      %v5245 = vsel %vm705, %v5189, %v5190
      %v5246 = vsel %vm705, %v5188, %v5189
      %v5247 = vsel %vm705, %v5187, %v5188
      %v5248 = vsel %vm705, %v5186, %v5187
      %v5249 = vsel %vm705, %v5185, %v5186
      %v5250 = vsel %vm705, %v5184, %v5185
      %v5251 = vsel %vm705, %v5183, %v5184
      %v5252 = vsel %vm705, %v5182, %v5183
      %v5253 = vsel %vm705, %v5181, %v5182
      %v5254 = vsel %vm705, %v5180, %v5181
      %v5255 = vsel %vm705, %v5179, %v5180
      %v5256 = vsel %vm705, %v5178, %v5179
      %v5257 = vsel %vm705, %v5177, %v5178
      %v5258 = vsel %vm705, %v5176, %v5177
      %v5259 = vsel %vm705, %v5175, %v5176
      %v5260 = vsel %vm705, %v5174, %v5175
      %v5261 = vsel %vm705, %v5173, %v5174
      %v5262 = vsel %vm705, %v5172, %v5173
      %v5263 = vsel %vm705, %v5171, %v5172
      %v5264 = vsel %vm705, %v5170, %v5171
      %v5265 = vsel %vm705, %v5169, %v5170
      %v5266 = vsel %vm705, %v5168, %v5169
      %v5267 = vsel %vm705, %v5167, %v5168
      %v5268 = vsel %vm705, %v5166, %v5167
      %v5269 = vsel %vm705, %v5165, %v5166
      %v5270 = vsel %vm705, %v5164, %v5165
      %v5271 = vsel %vm705, %v5217, %v5164
      %v5272 = vadd.f32 %v4926, %v5271
      %v5273 = vadd.f32 %v4927, %v5270
      %v5274 = vadd.f32 %v4928, %v5269
      %v5275 = vadd.f32 %v4929, %v5268
      %v5276 = vadd.f32 %v4930, %v5267
      %v5277 = vadd.f32 %v4931, %v5266
      %v5278 = vadd.f32 %v4932, %v5265
      %v5279 = vadd.f32 %v4933, %v5264
      %v5280 = vadd.f32 %v4934, %v5263
      %v5281 = vadd.f32 %v4935, %v5262
      %v5282 = vadd.f32 %v4936, %v5261
      %v5283 = vadd.f32 %v4937, %v5260
      %v5284 = vadd.f32 %v4938, %v5259
      %v5285 = vadd.f32 %v4939, %v5258
      %v5286 = vadd.f32 %v4940, %v5257
      %v5287 = vadd.f32 %v4941, %v5256
      %v5288 = vadd.f32 %v4942, %v5255
      %v5289 = vadd.f32 %v4943, %v5254
      %v5290 = vadd.f32 %v4944, %v5253
      %v5291 = vadd.f32 %v4945, %v5252
      %v5292 = vadd.f32 %v4946, %v5251
      %v5293 = vadd.f32 %v4947, %v5250
      %v5294 = vadd.f32 %v4948, %v5249
      %v5295 = vadd.f32 %v4949, %v5248
      %v5296 = vadd.f32 %v4950, %v5247
      %v5297 = vadd.f32 %v4951, %v5246
      %v5298 = vadd.f32 %v4952, %v5245
      %v5299 = vadd.f32 %v4953, %v5244
      %v5300 = vadd.f32 %v4954, %v5243
      %v5301 = vadd.f32 %v4955, %v5242
      %v5302 = vadd.f32 %v4956, %v5241
      %v5303 = vadd.f32 %v4957, %v5240
      %v5304 = vadd.f32 %v4958, %v5239
      %v5305 = vadd.f32 %v4959, %v5238
      %v5306 = vadd.f32 %v4960, %v5237
      %v5307 = vadd.f32 %v4961, %v5236
      %v5308 = vadd.f32 %v4962, %v5235
      %v5309 = vadd.f32 %v4963, %v5234
      %v5310 = vadd.f32 %v4964, %v5233
      %v5311 = vadd.f32 %v4965, %v5232
      %v5312 = vadd.f32 %v4966, %v5231
      %v5313 = vadd.f32 %v4967, %v5230
      %v5314 = vadd.f32 %v4968, %v5229
      %v5315 = vadd.f32 %v4969, %v5228
      %v5316 = vadd.f32 %v4970, %v5227
      %v5317 = vadd.f32 %v4971, %v5226
      %v5318 = vadd.f32 %v4972, %v5225
      %v5319 = vadd.f32 %v4973, %v5224
      %v5320 = vadd.f32 %v4974, %v5223
      %v5321 = vadd.f32 %v4975, %v5222
      %v5322 = vadd.f32 %v4976, %v5221
      %v5323 = vadd.f32 %v4977, %v5220
      %v5324 = vadd.f32 %v4978, %v5219
      %v5325 = vadd.f32 %v4979, %v5218
      %s5326 = scalar_lea.vmem %s4, 16
      %v5327 = vld [vmem:[%s5326] sm:$0xf]
      %v5329 = vsel %vm4105, %v5327, 0
      %5331 = vmatpush.msra.mxu0 0.0
      %5332 = vmatpush.msra.mxu0 0.0
      %5333 = vmatpush.msra.mxu0 0.0
      %5334 = vmatpush.msra.mxu0 0.0
      %5335 = vmatpush.msra.mxu0 0.0
      %5336 = vmatpush.msra.mxu0 0.0
      %5337 = vmatpush.msra.mxu0 0.0
      %5338 = vmatpush.msra.mxu0 0.0
      %5339 = vmatpush.msra.mxu0 0.0
      %5340 = vmatpush.msra.mxu0 0.0
      %5341 = vmatpush.msra.mxu0 0.0
      %5342 = vmatpush.msra.mxu0 0.0
      %5343 = vmatpush.msra.mxu0 0.0
      %5344 = vmatpush.msra.mxu0 0.0
      %5345 = vmatpush.msra.mxu0 0.0
      %5346 = vmatpush.msra.mxu0 %v5329
      %5347 = vmatmul.f32.gmra.mxu0 %v3944
      %v5348 = vpop.f32.mrf.mxu0
      %v5349 = vadd.f32 0.0, %v5348
      %5350 = vmatmul.f32.gmra.mxu0 %v3947
      %v5351 = vpop.f32.mrf.mxu0
      %v5352 = vadd.f32 0.0, %v5351
      %5353 = vmatmul.f32.gmra.mxu0 %v3950
      %v5354 = vpop.f32.mrf.mxu0
      %v5355 = vadd.f32 0.0, %v5354
      %5356 = vmatmul.f32.gmra.mxu0 %v3953
      %v5357 = vpop.f32.mrf.mxu0
      %v5358 = vadd.f32 0.0, %v5357
      %5359 = vmatmul.f32.gmra.mxu0 %v3956
      %v5360 = vpop.f32.mrf.mxu0
      %v5361 = vadd.f32 0.0, %v5360
      %5362 = vmatmul.f32.gmra.mxu0 %v3959
      %v5363 = vpop.f32.mrf.mxu0
      %v5364 = vadd.f32 0.0, %v5363
      %5365 = vmatmul.f32.gmra.mxu0 %v3962
      %v5366 = vpop.f32.mrf.mxu0
      %v5367 = vadd.f32 0.0, %v5366
      %5368 = vmatmul.f32.gmra.mxu0 %v3965
      %v5369 = vpop.f32.mrf.mxu0
      %v5370 = vadd.f32 0.0, %v5369
      %5371 = vmatmul.f32.gmra.mxu0 %v3968
      %v5372 = vpop.f32.mrf.mxu0
      %v5373 = vadd.f32 0.0, %v5372
      %5374 = vmatmul.f32.gmra.mxu0 %v3971
      %v5375 = vpop.f32.mrf.mxu0
      %v5376 = vadd.f32 0.0, %v5375
      %5377 = vmatmul.f32.gmra.mxu0 %v3974
      %v5378 = vpop.f32.mrf.mxu0
      %v5379 = vadd.f32 0.0, %v5378
      %5380 = vmatmul.f32.gmra.mxu0 %v3977
      %v5381 = vpop.f32.mrf.mxu0
      %v5382 = vadd.f32 0.0, %v5381
      %5383 = vmatmul.f32.gmra.mxu0 %v3980
      %v5384 = vpop.f32.mrf.mxu0
      %v5385 = vadd.f32 0.0, %v5384
      %5386 = vmatmul.f32.gmra.mxu0 %v3983
      %v5387 = vpop.f32.mrf.mxu0
      %v5388 = vadd.f32 0.0, %v5387
      %5389 = vmatmul.f32.gmra.mxu0 %v3986
      %v5390 = vpop.f32.mrf.mxu0
      %v5391 = vadd.f32 0.0, %v5390
      %5392 = vmatmul.f32.gmra.mxu0 %v3989
      %v5393 = vpop.f32.mrf.mxu0
      %v5394 = vadd.f32 0.0, %v5393
      %5395 = vmatmul.f32.gmra.mxu0 %v3992
      %v5396 = vpop.f32.mrf.mxu0
      %v5397 = vadd.f32 0.0, %v5396
      %5398 = vmatmul.f32.gmra.mxu0 %v3995
      %v5399 = vpop.f32.mrf.mxu0
      %v5400 = vadd.f32 0.0, %v5399
      %5401 = vmatmul.f32.gmra.mxu0 %v3998
      %v5402 = vpop.f32.mrf.mxu0
      %v5403 = vadd.f32 0.0, %v5402
      %5404 = vmatmul.f32.gmra.mxu0 %v4001
      %v5405 = vpop.f32.mrf.mxu0
      %v5406 = vadd.f32 0.0, %v5405
      %5407 = vmatmul.f32.gmra.mxu0 %v4004
      %v5408 = vpop.f32.mrf.mxu0
      %v5409 = vadd.f32 0.0, %v5408
      %5410 = vmatmul.f32.gmra.mxu0 %v4007
      %v5411 = vpop.f32.mrf.mxu0
      %v5412 = vadd.f32 0.0, %v5411
      %5413 = vmatmul.f32.gmra.mxu0 %v4010
      %v5414 = vpop.f32.mrf.mxu0
      %v5415 = vadd.f32 0.0, %v5414
      %5416 = vmatmul.f32.gmra.mxu0 %v4013
      %v5417 = vpop.f32.mrf.mxu0
      %v5418 = vadd.f32 0.0, %v5417
      %5419 = vmatmul.f32.gmra.mxu0 %v4016
      %v5420 = vpop.f32.mrf.mxu0
      %v5421 = vadd.f32 0.0, %v5420
      %5422 = vmatmul.f32.gmra.mxu0 %v4019
      %v5423 = vpop.f32.mrf.mxu0
      %v5424 = vadd.f32 0.0, %v5423
      %5425 = vmatmul.f32.gmra.mxu0 %v4022
      %v5426 = vpop.f32.mrf.mxu0
      %v5427 = vadd.f32 0.0, %v5426
      %5428 = vmatmul.f32.gmra.mxu0 %v4025
      %v5429 = vpop.f32.mrf.mxu0
      %v5430 = vadd.f32 0.0, %v5429
      %5431 = vmatmul.f32.gmra.mxu0 %v4028
      %v5432 = vpop.f32.mrf.mxu0
      %v5433 = vadd.f32 0.0, %v5432
      %5434 = vmatmul.f32.gmra.mxu0 %v4031
      %v5435 = vpop.f32.mrf.mxu0
      %v5436 = vadd.f32 0.0, %v5435
      %5437 = vmatmul.f32.gmra.mxu0 %v4034
      %v5438 = vpop.f32.mrf.mxu0
      %v5439 = vadd.f32 0.0, %v5438
      %5440 = vmatmul.f32.gmra.mxu0 %v4037
      %v5441 = vpop.f32.mrf.mxu0
      %v5442 = vadd.f32 0.0, %v5441
      %5443 = vmatmul.f32.gmra.mxu0 %v4040
      %v5444 = vpop.f32.mrf.mxu0
      %v5445 = vadd.f32 0.0, %v5444
      %5446 = vmatmul.f32.gmra.mxu0 %v4043
      %v5447 = vpop.f32.mrf.mxu0
      %v5448 = vadd.f32 0.0, %v5447
      %5449 = vmatmul.f32.gmra.mxu0 %v4046
      %v5450 = vpop.f32.mrf.mxu0
      %v5451 = vadd.f32 0.0, %v5450
      %5452 = vmatmul.f32.gmra.mxu0 %v4049
      %v5453 = vpop.f32.mrf.mxu0
      %v5454 = vadd.f32 0.0, %v5453
      %5455 = vmatmul.f32.gmra.mxu0 %v4052
      %v5456 = vpop.f32.mrf.mxu0
      %v5457 = vadd.f32 0.0, %v5456
      %5458 = vmatmul.f32.gmra.mxu0 %v4055
      %v5459 = vpop.f32.mrf.mxu0
      %v5460 = vadd.f32 0.0, %v5459
      %5461 = vmatmul.f32.gmra.mxu0 %v4058
      %v5462 = vpop.f32.mrf.mxu0
      %v5463 = vadd.f32 0.0, %v5462
      %5464 = vmatmul.f32.gmra.mxu0 %v4061
      %v5465 = vpop.f32.mrf.mxu0
      %v5466 = vadd.f32 0.0, %v5465
      %5467 = vmatmul.f32.gmra.mxu0 %v4064
      %v5468 = vpop.f32.mrf.mxu0
      %v5469 = vadd.f32 0.0, %v5468
      %5470 = vmatmul.f32.gmra.mxu0 %v4067
      %v5471 = vpop.f32.mrf.mxu0
      %v5472 = vadd.f32 0.0, %v5471
      %5473 = vmatmul.f32.gmra.mxu0 %v4070
      %v5474 = vpop.f32.mrf.mxu0
      %v5475 = vadd.f32 0.0, %v5474
      %5476 = vmatmul.f32.gmra.mxu0 %v4073
      %v5477 = vpop.f32.mrf.mxu0
      %v5478 = vadd.f32 0.0, %v5477
      %5479 = vmatmul.f32.gmra.mxu0 %v4076
      %v5480 = vpop.f32.mrf.mxu0
      %v5481 = vadd.f32 0.0, %v5480
      %5482 = vmatmul.f32.gmra.mxu0 %v4079
      %v5483 = vpop.f32.mrf.mxu0
      %v5484 = vadd.f32 0.0, %v5483
      %5485 = vmatmul.f32.gmra.mxu0 %v4082
      %v5486 = vpop.f32.mrf.mxu0
      %v5487 = vadd.f32 0.0, %v5486
      %5488 = vmatmul.f32.gmra.mxu0 %v4085
      %v5489 = vpop.f32.mrf.mxu0
      %v5490 = vadd.f32 0.0, %v5489
      %5491 = vmatmul.f32.gmra.mxu0 %v4088
      %v5492 = vpop.f32.mrf.mxu0
      %v5493 = vadd.f32 0.0, %v5492
      %5494 = vmatmul.f32.gmra.mxu0 %v4091
      %v5495 = vpop.f32.mrf.mxu0
      %v5496 = vadd.f32 0.0, %v5495
      %5497 = vmatmul.f32.gmra.mxu0 %v4094
      %v5498 = vpop.f32.mrf.mxu0
      %v5499 = vadd.f32 0.0, %v5498
      %5500 = vmatmul.f32.gmra.mxu0 %v4097
      %v5501 = vpop.f32.mrf.mxu0
      %v5502 = vadd.f32 0.0, %v5501
      %5503 = vmatmul.f32.gmra.mxu0 %v4100
      %v5504 = vpop.f32.mrf.mxu0
      %v5505 = vadd.f32 0.0, %v5504
      %5506 = vmatmul.f32.gmra.mxu0 %v4103
      %v5507 = vpop.f32.mrf.mxu0
      %v5508 = vadd.f32 0.0, %v5507
      %5509 = vdwg.mxu0
      %v5510 = vadd.f32 %v5272, %v5349
      %v5511 = vadd.f32 %v5273, %v5352
      %v5512 = vadd.f32 %v5274, %v5355
      %v5513 = vadd.f32 %v5275, %v5358
      %v5514 = vadd.f32 %v5276, %v5361
      %v5515 = vadd.f32 %v5277, %v5364
      %v5516 = vadd.f32 %v5278, %v5367
      %v5517 = vadd.f32 %v5279, %v5370
      %v5518 = vadd.f32 %v5280, %v5373
      %v5519 = vadd.f32 %v5281, %v5376
      %v5520 = vadd.f32 %v5282, %v5379
      %v5521 = vadd.f32 %v5283, %v5382
      %v5522 = vadd.f32 %v5284, %v5385
      %v5523 = vadd.f32 %v5285, %v5388
      %v5524 = vadd.f32 %v5286, %v5391
      %v5525 = vadd.f32 %v5287, %v5394
      %v5526 = vadd.f32 %v5288, %v5397
      %v5527 = vadd.f32 %v5289, %v5400
      %v5528 = vadd.f32 %v5290, %v5403
      %v5529 = vadd.f32 %v5291, %v5406
      %v5530 = vadd.f32 %v5292, %v5409
      %v5531 = vadd.f32 %v5293, %v5412
      %v5532 = vadd.f32 %v5294, %v5415
      %v5533 = vadd.f32 %v5295, %v5418
      %v5534 = vadd.f32 %v5296, %v5421
      %v5535 = vadd.f32 %v5297, %v5424
      %v5536 = vadd.f32 %v5298, %v5427
      %v5537 = vadd.f32 %v5299, %v5430
      %v5538 = vadd.f32 %v5300, %v5433
      %v5539 = vadd.f32 %v5301, %v5436
      %v5540 = vadd.f32 %v5302, %v5439
      %v5541 = vadd.f32 %v5303, %v5442
      %v5542 = vadd.f32 %v5304, %v5445
      %v5543 = vadd.f32 %v5305, %v5448
      %v5544 = vadd.f32 %v5306, %v5451
      %v5545 = vadd.f32 %v5307, %v5454
      %v5546 = vadd.f32 %v5308, %v5457
      %v5547 = vadd.f32 %v5309, %v5460
      %v5548 = vadd.f32 %v5310, %v5463
      %v5549 = vadd.f32 %v5311, %v5466
      %v5550 = vadd.f32 %v5312, %v5469
      %v5551 = vadd.f32 %v5313, %v5472
      %v5552 = vadd.f32 %v5314, %v5475
      %v5553 = vadd.f32 %v5315, %v5478
      %v5554 = vadd.f32 %v5316, %v5481
      %v5555 = vadd.f32 %v5317, %v5484
      %v5556 = vadd.f32 %v5318, %v5487
      %v5557 = vadd.f32 %v5319, %v5490
      %v5558 = vadd.f32 %v5320, %v5493
      %v5559 = vadd.f32 %v5321, %v5496
      %v5560 = vadd.f32 %v5322, %v5499
      %v5561 = vadd.f32 %v5323, %v5502
      %v5562 = vadd.f32 %v5324, %v5505
      %v5563 = vadd.f32 %v5325, %v5508
      %s5564 = scalar_lea.vmem %s4, 20
      %v5565 = vld [vmem:[%s5564] sm:$0xf]
      %v5567 = vsel %vm4105, %v5565, 0
      %5569 = vmatpush.msra.mxu0 0.0
      %5570 = vmatpush.msra.mxu0 0.0
      %5571 = vmatpush.msra.mxu0 0.0
      %5572 = vmatpush.msra.mxu0 0.0
      %5573 = vmatpush.msra.mxu0 0.0
      %5574 = vmatpush.msra.mxu0 0.0
      %5575 = vmatpush.msra.mxu0 0.0
      %5576 = vmatpush.msra.mxu0 0.0
      %5577 = vmatpush.msra.mxu0 0.0
      %5578 = vmatpush.msra.mxu0 0.0
      %5579 = vmatpush.msra.mxu0 0.0
      %5580 = vmatpush.msra.mxu0 0.0
      %5581 = vmatpush.msra.mxu0 0.0
      %5582 = vmatpush.msra.mxu0 0.0
      %5583 = vmatpush.msra.mxu0 0.0
      %5584 = vmatpush.msra.mxu0 %v5567
      %5585 = vmatmul.f32.gmra.mxu0 %v3944
      %v5586 = vpop.f32.mrf.mxu0
      %v5587 = vadd.f32 0.0, %v5586
      %5588 = vmatmul.f32.gmra.mxu0 %v3947
      %v5589 = vpop.f32.mrf.mxu0
      %v5590 = vadd.f32 0.0, %v5589
      %5591 = vmatmul.f32.gmra.mxu0 %v3950
      %v5592 = vpop.f32.mrf.mxu0
      %v5593 = vadd.f32 0.0, %v5592
      %5594 = vmatmul.f32.gmra.mxu0 %v3953
      %v5595 = vpop.f32.mrf.mxu0
      %v5596 = vadd.f32 0.0, %v5595
      %5597 = vmatmul.f32.gmra.mxu0 %v3956
      %v5598 = vpop.f32.mrf.mxu0
      %v5599 = vadd.f32 0.0, %v5598
      %5600 = vmatmul.f32.gmra.mxu0 %v3959
      %v5601 = vpop.f32.mrf.mxu0
      %v5602 = vadd.f32 0.0, %v5601
      %5603 = vmatmul.f32.gmra.mxu0 %v3962
      %v5604 = vpop.f32.mrf.mxu0
      %v5605 = vadd.f32 0.0, %v5604
      %5606 = vmatmul.f32.gmra.mxu0 %v3965
      %v5607 = vpop.f32.mrf.mxu0
      %v5608 = vadd.f32 0.0, %v5607
      %5609 = vmatmul.f32.gmra.mxu0 %v3968
      %v5610 = vpop.f32.mrf.mxu0
      %v5611 = vadd.f32 0.0, %v5610
      %5612 = vmatmul.f32.gmra.mxu0 %v3971
      %v5613 = vpop.f32.mrf.mxu0
      %v5614 = vadd.f32 0.0, %v5613
      %5615 = vmatmul.f32.gmra.mxu0 %v3974
      %v5616 = vpop.f32.mrf.mxu0
      %v5617 = vadd.f32 0.0, %v5616
      %5618 = vmatmul.f32.gmra.mxu0 %v3977
      %v5619 = vpop.f32.mrf.mxu0
      %v5620 = vadd.f32 0.0, %v5619
      %5621 = vmatmul.f32.gmra.mxu0 %v3980
      %v5622 = vpop.f32.mrf.mxu0
      %v5623 = vadd.f32 0.0, %v5622
      %5624 = vmatmul.f32.gmra.mxu0 %v3983
      %v5625 = vpop.f32.mrf.mxu0
      %v5626 = vadd.f32 0.0, %v5625
      %5627 = vmatmul.f32.gmra.mxu0 %v3986
      %v5628 = vpop.f32.mrf.mxu0
      %v5629 = vadd.f32 0.0, %v5628
      %5630 = vmatmul.f32.gmra.mxu0 %v3989
      %v5631 = vpop.f32.mrf.mxu0
      %v5632 = vadd.f32 0.0, %v5631
      %5633 = vmatmul.f32.gmra.mxu0 %v3992
      %v5634 = vpop.f32.mrf.mxu0
      %v5635 = vadd.f32 0.0, %v5634
      %5636 = vmatmul.f32.gmra.mxu0 %v3995
      %v5637 = vpop.f32.mrf.mxu0
      %v5638 = vadd.f32 0.0, %v5637
      %5639 = vmatmul.f32.gmra.mxu0 %v3998
      %v5640 = vpop.f32.mrf.mxu0
      %v5641 = vadd.f32 0.0, %v5640
      %5642 = vmatmul.f32.gmra.mxu0 %v4001
      %v5643 = vpop.f32.mrf.mxu0
      %v5644 = vadd.f32 0.0, %v5643
      %5645 = vmatmul.f32.gmra.mxu0 %v4004
      %v5646 = vpop.f32.mrf.mxu0
      %v5647 = vadd.f32 0.0, %v5646
      %5648 = vmatmul.f32.gmra.mxu0 %v4007
      %v5649 = vpop.f32.mrf.mxu0
      %v5650 = vadd.f32 0.0, %v5649
      %5651 = vmatmul.f32.gmra.mxu0 %v4010
      %v5652 = vpop.f32.mrf.mxu0
      %v5653 = vadd.f32 0.0, %v5652
      %5654 = vmatmul.f32.gmra.mxu0 %v4013
      %v5655 = vpop.f32.mrf.mxu0
      %v5656 = vadd.f32 0.0, %v5655
      %5657 = vmatmul.f32.gmra.mxu0 %v4016
      %v5658 = vpop.f32.mrf.mxu0
      %v5659 = vadd.f32 0.0, %v5658
      %5660 = vmatmul.f32.gmra.mxu0 %v4019
      %v5661 = vpop.f32.mrf.mxu0
      %v5662 = vadd.f32 0.0, %v5661
      %5663 = vmatmul.f32.gmra.mxu0 %v4022
      %v5664 = vpop.f32.mrf.mxu0
      %v5665 = vadd.f32 0.0, %v5664
      %5666 = vmatmul.f32.gmra.mxu0 %v4025
      %v5667 = vpop.f32.mrf.mxu0
      %v5668 = vadd.f32 0.0, %v5667
      %5669 = vmatmul.f32.gmra.mxu0 %v4028
      %v5670 = vpop.f32.mrf.mxu0
      %v5671 = vadd.f32 0.0, %v5670
      %5672 = vmatmul.f32.gmra.mxu0 %v4031
      %v5673 = vpop.f32.mrf.mxu0
      %v5674 = vadd.f32 0.0, %v5673
      %5675 = vmatmul.f32.gmra.mxu0 %v4034
      %v5676 = vpop.f32.mrf.mxu0
      %v5677 = vadd.f32 0.0, %v5676
      %5678 = vmatmul.f32.gmra.mxu0 %v4037
      %v5679 = vpop.f32.mrf.mxu0
      %v5680 = vadd.f32 0.0, %v5679
      %5681 = vmatmul.f32.gmra.mxu0 %v4040
      %v5682 = vpop.f32.mrf.mxu0
      %v5683 = vadd.f32 0.0, %v5682
      %5684 = vmatmul.f32.gmra.mxu0 %v4043
      %v5685 = vpop.f32.mrf.mxu0
      %v5686 = vadd.f32 0.0, %v5685
      %5687 = vmatmul.f32.gmra.mxu0 %v4046
      %v5688 = vpop.f32.mrf.mxu0
      %v5689 = vadd.f32 0.0, %v5688
      %5690 = vmatmul.f32.gmra.mxu0 %v4049
      %v5691 = vpop.f32.mrf.mxu0
      %v5692 = vadd.f32 0.0, %v5691
      %5693 = vmatmul.f32.gmra.mxu0 %v4052
      %v5694 = vpop.f32.mrf.mxu0
      %v5695 = vadd.f32 0.0, %v5694
      %5696 = vmatmul.f32.gmra.mxu0 %v4055
      %v5697 = vpop.f32.mrf.mxu0
      %v5698 = vadd.f32 0.0, %v5697
      %5699 = vmatmul.f32.gmra.mxu0 %v4058
      %v5700 = vpop.f32.mrf.mxu0
      %v5701 = vadd.f32 0.0, %v5700
      %5702 = vmatmul.f32.gmra.mxu0 %v4061
      %v5703 = vpop.f32.mrf.mxu0
      %v5704 = vadd.f32 0.0, %v5703
      %5705 = vmatmul.f32.gmra.mxu0 %v4064
      %v5706 = vpop.f32.mrf.mxu0
      %v5707 = vadd.f32 0.0, %v5706
      %5708 = vmatmul.f32.gmra.mxu0 %v4067
      %v5709 = vpop.f32.mrf.mxu0
      %v5710 = vadd.f32 0.0, %v5709
      %5711 = vmatmul.f32.gmra.mxu0 %v4070
      %v5712 = vpop.f32.mrf.mxu0
      %v5713 = vadd.f32 0.0, %v5712
      %5714 = vmatmul.f32.gmra.mxu0 %v4073
      %v5715 = vpop.f32.mrf.mxu0
      %v5716 = vadd.f32 0.0, %v5715
      %5717 = vmatmul.f32.gmra.mxu0 %v4076
      %v5718 = vpop.f32.mrf.mxu0
      %v5719 = vadd.f32 0.0, %v5718
      %5720 = vmatmul.f32.gmra.mxu0 %v4079
      %v5721 = vpop.f32.mrf.mxu0
      %v5722 = vadd.f32 0.0, %v5721
      %5723 = vmatmul.f32.gmra.mxu0 %v4082
      %v5724 = vpop.f32.mrf.mxu0
      %v5725 = vadd.f32 0.0, %v5724
      %5726 = vmatmul.f32.gmra.mxu0 %v4085
      %v5727 = vpop.f32.mrf.mxu0
      %v5728 = vadd.f32 0.0, %v5727
      %5729 = vmatmul.f32.gmra.mxu0 %v4088
      %v5730 = vpop.f32.mrf.mxu0
      %v5731 = vadd.f32 0.0, %v5730
      %5732 = vmatmul.f32.gmra.mxu0 %v4091
      %v5733 = vpop.f32.mrf.mxu0
      %v5734 = vadd.f32 0.0, %v5733
      %5735 = vmatmul.f32.gmra.mxu0 %v4094
      %v5736 = vpop.f32.mrf.mxu0
      %v5737 = vadd.f32 0.0, %v5736
      %5738 = vmatmul.f32.gmra.mxu0 %v4097
      %v5739 = vpop.f32.mrf.mxu0
      %v5740 = vadd.f32 0.0, %v5739
      %5741 = vmatmul.f32.gmra.mxu0 %v4100
      %v5742 = vpop.f32.mrf.mxu0
      %v5743 = vadd.f32 0.0, %v5742
      %5744 = vmatmul.f32.gmra.mxu0 %v4103
      %v5745 = vpop.f32.mrf.mxu0
      %v5746 = vadd.f32 0.0, %v5745
      %5747 = vdwg.mxu0
      %v5748 = vrot.slane %v5587, 1
      %v5749 = vrot.slane %v5590, 1
      %v5750 = vrot.slane %v5593, 1
      %v5751 = vrot.slane %v5596, 1
      %v5752 = vrot.slane %v5599, 1
      %v5753 = vrot.slane %v5602, 1
      %v5754 = vrot.slane %v5605, 1
      %v5755 = vrot.slane %v5608, 1
      %v5756 = vrot.slane %v5611, 1
      %v5757 = vrot.slane %v5614, 1
      %v5758 = vrot.slane %v5617, 1
      %v5759 = vrot.slane %v5620, 1
      %v5760 = vrot.slane %v5623, 1
      %v5761 = vrot.slane %v5626, 1
      %v5762 = vrot.slane %v5629, 1
      %v5763 = vrot.slane %v5632, 1
      %v5764 = vrot.slane %v5635, 1
      %v5765 = vrot.slane %v5638, 1
      %v5766 = vrot.slane %v5641, 1
      %v5767 = vrot.slane %v5644, 1
      %v5768 = vrot.slane %v5647, 1
      %v5769 = vrot.slane %v5650, 1
      %v5770 = vrot.slane %v5653, 1
      %v5771 = vrot.slane %v5656, 1
      %v5772 = vrot.slane %v5659, 1
      %v5773 = vrot.slane %v5662, 1
      %v5774 = vrot.slane %v5665, 1
      %v5775 = vrot.slane %v5668, 1
      %v5776 = vrot.slane %v5671, 1
      %v5777 = vrot.slane %v5674, 1
      %v5778 = vrot.slane %v5677, 1
      %v5779 = vrot.slane %v5680, 1
      %v5780 = vrot.slane %v5683, 1
      %v5781 = vrot.slane %v5686, 1
      %v5782 = vrot.slane %v5689, 1
      %v5783 = vrot.slane %v5692, 1
      %v5784 = vrot.slane %v5695, 1
      %v5785 = vrot.slane %v5698, 1
      %v5786 = vrot.slane %v5701, 1
      %v5787 = vrot.slane %v5704, 1
      %v5788 = vrot.slane %v5707, 1
      %v5789 = vrot.slane %v5710, 1
      %v5790 = vrot.slane %v5713, 1
      %v5791 = vrot.slane %v5716, 1
      %v5792 = vrot.slane %v5719, 1
      %v5793 = vrot.slane %v5722, 1
      %v5794 = vrot.slane %v5725, 1
      %v5795 = vrot.slane %v5728, 1
      %v5796 = vrot.slane %v5731, 1
      %v5797 = vrot.slane %v5734, 1
      %v5798 = vrot.slane %v5737, 1
      %v5799 = vrot.slane %v5740, 1
      %v5800 = vrot.slane %v5743, 1
      %v5801 = vrot.slane %v5746, 1
      %v5802 = vsel %vm1230, %v5800, %v5801
      %v5803 = vsel %vm1230, %v5799, %v5800
      %v5804 = vsel %vm1230, %v5798, %v5799
      %v5805 = vsel %vm1230, %v5797, %v5798
      %v5806 = vsel %vm1230, %v5796, %v5797
      %v5807 = vsel %vm1230, %v5795, %v5796
      %v5808 = vsel %vm1230, %v5794, %v5795
      %v5809 = vsel %vm1230, %v5793, %v5794
      %v5810 = vsel %vm1230, %v5792, %v5793
      %v5811 = vsel %vm1230, %v5791, %v5792
      %v5812 = vsel %vm1230, %v5790, %v5791
      %v5813 = vsel %vm1230, %v5789, %v5790
      %v5814 = vsel %vm1230, %v5788, %v5789
      %v5815 = vsel %vm1230, %v5787, %v5788
      %v5816 = vsel %vm1230, %v5786, %v5787
      %v5817 = vsel %vm1230, %v5785, %v5786
      %v5818 = vsel %vm1230, %v5784, %v5785
      %v5819 = vsel %vm1230, %v5783, %v5784
      %v5820 = vsel %vm1230, %v5782, %v5783
      %v5821 = vsel %vm1230, %v5781, %v5782
      %v5822 = vsel %vm1230, %v5780, %v5781
      %v5823 = vsel %vm1230, %v5779, %v5780
      %v5824 = vsel %vm1230, %v5778, %v5779
      %v5825 = vsel %vm1230, %v5777, %v5778
      %v5826 = vsel %vm1230, %v5776, %v5777
      %v5827 = vsel %vm1230, %v5775, %v5776
      %v5828 = vsel %vm1230, %v5774, %v5775
      %v5829 = vsel %vm1230, %v5773, %v5774
      %v5830 = vsel %vm1230, %v5772, %v5773
      %v5831 = vsel %vm1230, %v5771, %v5772
      %v5832 = vsel %vm1230, %v5770, %v5771
      %v5833 = vsel %vm1230, %v5769, %v5770
      %v5834 = vsel %vm1230, %v5768, %v5769
      %v5835 = vsel %vm1230, %v5767, %v5768
      %v5836 = vsel %vm1230, %v5766, %v5767
      %v5837 = vsel %vm1230, %v5765, %v5766
      %v5838 = vsel %vm1230, %v5764, %v5765
      %v5839 = vsel %vm1230, %v5763, %v5764
      %v5840 = vsel %vm1230, %v5762, %v5763
      %v5841 = vsel %vm1230, %v5761, %v5762
      %v5842 = vsel %vm1230, %v5760, %v5761
      %v5843 = vsel %vm1230, %v5759, %v5760
      %v5844 = vsel %vm1230, %v5758, %v5759
      %v5845 = vsel %vm1230, %v5757, %v5758
      %v5846 = vsel %vm1230, %v5756, %v5757
      %v5847 = vsel %vm1230, %v5755, %v5756
      %v5848 = vsel %vm1230, %v5754, %v5755
      %v5849 = vsel %vm1230, %v5753, %v5754
      %v5850 = vsel %vm1230, %v5752, %v5753
      %v5851 = vsel %vm1230, %v5751, %v5752
      %v5852 = vsel %vm1230, %v5750, %v5751
      %v5853 = vsel %vm1230, %v5749, %v5750
      %v5854 = vsel %vm1230, %v5748, %v5749
      %v5855 = vsel %vm1230, %v5801, %v5748
      %v5856 = vadd.f32 %v5510, %v5854
      %v5857 = vadd.f32 %v5511, %v5853
      %v5858 = vadd.f32 %v5512, %v5852
      %v5859 = vadd.f32 %v5513, %v5851
      %v5860 = vadd.f32 %v5514, %v5850
      %v5861 = vadd.f32 %v5515, %v5849
      %v5862 = vadd.f32 %v5516, %v5848
      %v5863 = vadd.f32 %v5517, %v5847
      %v5864 = vadd.f32 %v5518, %v5846
      %v5865 = vadd.f32 %v5519, %v5845
      %v5866 = vadd.f32 %v5520, %v5844
      %v5867 = vadd.f32 %v5521, %v5843
      %v5868 = vadd.f32 %v5522, %v5842
      %v5869 = vadd.f32 %v5523, %v5841
      %v5870 = vadd.f32 %v5524, %v5840
      %v5871 = vadd.f32 %v5525, %v5839
      %v5872 = vadd.f32 %v5526, %v5838
      %v5873 = vadd.f32 %v5527, %v5837
      %v5874 = vadd.f32 %v5528, %v5836
      %v5875 = vadd.f32 %v5529, %v5835
      %v5876 = vadd.f32 %v5530, %v5834
      %v5877 = vadd.f32 %v5531, %v5833
      %v5878 = vadd.f32 %v5532, %v5832
      %v5879 = vadd.f32 %v5533, %v5831
      %v5880 = vadd.f32 %v5534, %v5830
      %v5881 = vadd.f32 %v5535, %v5829
      %v5882 = vadd.f32 %v5536, %v5828
      %v5883 = vadd.f32 %v5537, %v5827
      %v5884 = vadd.f32 %v5538, %v5826
      %v5885 = vadd.f32 %v5539, %v5825
      %v5886 = vadd.f32 %v5540, %v5824
      %v5887 = vadd.f32 %v5541, %v5823
      %v5888 = vadd.f32 %v5542, %v5822
      %v5889 = vadd.f32 %v5543, %v5821
      %v5890 = vadd.f32 %v5544, %v5820
      %v5891 = vadd.f32 %v5545, %v5819
      %v5892 = vadd.f32 %v5546, %v5818
      %v5893 = vadd.f32 %v5547, %v5817
      %v5894 = vadd.f32 %v5548, %v5816
      %v5895 = vadd.f32 %v5549, %v5815
      %v5896 = vadd.f32 %v5550, %v5814
      %v5897 = vadd.f32 %v5551, %v5813
      %v5898 = vadd.f32 %v5552, %v5812
      %v5899 = vadd.f32 %v5553, %v5811
      %v5900 = vadd.f32 %v5554, %v5810
      %v5901 = vadd.f32 %v5555, %v5809
      %v5902 = vadd.f32 %v5556, %v5808
      %v5903 = vadd.f32 %v5557, %v5807
      %v5904 = vadd.f32 %v5558, %v5806
      %v5905 = vadd.f32 %v5559, %v5805
      %v5906 = vadd.f32 %v5560, %v5804
      %v5907 = vadd.f32 %v5561, %v5803
      %v5908 = vadd.f32 %v5562, %v5802
      %v5909 = vadd.f32 %v5563, %v5855
      %s5910 = scalar_lea.vmem %s4, 24
      %v5911 = vld [vmem:[%s5910] sm:$0xf]
      %v5913 = vsel %vm4105, %v5911, 0
      %5915 = vmatpush.msra.mxu0 0.0
      %5916 = vmatpush.msra.mxu0 0.0
      %5917 = vmatpush.msra.mxu0 0.0
      %5918 = vmatpush.msra.mxu0 0.0
      %5919 = vmatpush.msra.mxu0 0.0
      %5920 = vmatpush.msra.mxu0 0.0
      %5921 = vmatpush.msra.mxu0 0.0
      %5922 = vmatpush.msra.mxu0 0.0
      %5923 = vmatpush.msra.mxu0 0.0
      %5924 = vmatpush.msra.mxu0 0.0
      %5925 = vmatpush.msra.mxu0 0.0
      %5926 = vmatpush.msra.mxu0 0.0
      %5927 = vmatpush.msra.mxu0 0.0
      %5928 = vmatpush.msra.mxu0 0.0
      %5929 = vmatpush.msra.mxu0 0.0
      %5930 = vmatpush.msra.mxu0 %v5913
      %5931 = vmatmul.f32.gmra.mxu0 %v3944
      %v5932 = vpop.f32.mrf.mxu0
      %v5933 = vadd.f32 0.0, %v5932
      %5934 = vmatmul.f32.gmra.mxu0 %v3947
      %v5935 = vpop.f32.mrf.mxu0
      %v5936 = vadd.f32 0.0, %v5935
      %5937 = vmatmul.f32.gmra.mxu0 %v3950
      %v5938 = vpop.f32.mrf.mxu0
      %v5939 = vadd.f32 0.0, %v5938
      %5940 = vmatmul.f32.gmra.mxu0 %v3953
      %v5941 = vpop.f32.mrf.mxu0
      %v5942 = vadd.f32 0.0, %v5941
      %5943 = vmatmul.f32.gmra.mxu0 %v3956
      %v5944 = vpop.f32.mrf.mxu0
      %v5945 = vadd.f32 0.0, %v5944
      %5946 = vmatmul.f32.gmra.mxu0 %v3959
      %v5947 = vpop.f32.mrf.mxu0
      %v5948 = vadd.f32 0.0, %v5947
      %5949 = vmatmul.f32.gmra.mxu0 %v3962
      %v5950 = vpop.f32.mrf.mxu0
      %v5951 = vadd.f32 0.0, %v5950
      %5952 = vmatmul.f32.gmra.mxu0 %v3965
      %v5953 = vpop.f32.mrf.mxu0
      %v5954 = vadd.f32 0.0, %v5953
      %5955 = vmatmul.f32.gmra.mxu0 %v3968
      %v5956 = vpop.f32.mrf.mxu0
      %v5957 = vadd.f32 0.0, %v5956
      %5958 = vmatmul.f32.gmra.mxu0 %v3971
      %v5959 = vpop.f32.mrf.mxu0
      %v5960 = vadd.f32 0.0, %v5959
      %5961 = vmatmul.f32.gmra.mxu0 %v3974
      %v5962 = vpop.f32.mrf.mxu0
      %v5963 = vadd.f32 0.0, %v5962
      %5964 = vmatmul.f32.gmra.mxu0 %v3977
      %v5965 = vpop.f32.mrf.mxu0
      %v5966 = vadd.f32 0.0, %v5965
      %5967 = vmatmul.f32.gmra.mxu0 %v3980
      %v5968 = vpop.f32.mrf.mxu0
      %v5969 = vadd.f32 0.0, %v5968
      %5970 = vmatmul.f32.gmra.mxu0 %v3983
      %v5971 = vpop.f32.mrf.mxu0
      %v5972 = vadd.f32 0.0, %v5971
      %5973 = vmatmul.f32.gmra.mxu0 %v3986
      %v5974 = vpop.f32.mrf.mxu0
      %v5975 = vadd.f32 0.0, %v5974
      %5976 = vmatmul.f32.gmra.mxu0 %v3989
      %v5977 = vpop.f32.mrf.mxu0
      %v5978 = vadd.f32 0.0, %v5977
      %5979 = vmatmul.f32.gmra.mxu0 %v3992
      %v5980 = vpop.f32.mrf.mxu0
      %v5981 = vadd.f32 0.0, %v5980
      %5982 = vmatmul.f32.gmra.mxu0 %v3995
      %v5983 = vpop.f32.mrf.mxu0
      %v5984 = vadd.f32 0.0, %v5983
      %5985 = vmatmul.f32.gmra.mxu0 %v3998
      %v5986 = vpop.f32.mrf.mxu0
      %v5987 = vadd.f32 0.0, %v5986
      %5988 = vmatmul.f32.gmra.mxu0 %v4001
      %v5989 = vpop.f32.mrf.mxu0
      %v5990 = vadd.f32 0.0, %v5989
      %5991 = vmatmul.f32.gmra.mxu0 %v4004
      %v5992 = vpop.f32.mrf.mxu0
      %v5993 = vadd.f32 0.0, %v5992
      %5994 = vmatmul.f32.gmra.mxu0 %v4007
      %v5995 = vpop.f32.mrf.mxu0
      %v5996 = vadd.f32 0.0, %v5995
      %5997 = vmatmul.f32.gmra.mxu0 %v4010
      %v5998 = vpop.f32.mrf.mxu0
      %v5999 = vadd.f32 0.0, %v5998
      %6000 = vmatmul.f32.gmra.mxu0 %v4013
      %v6001 = vpop.f32.mrf.mxu0
      %v6002 = vadd.f32 0.0, %v6001
      %6003 = vmatmul.f32.gmra.mxu0 %v4016
      %v6004 = vpop.f32.mrf.mxu0
      %v6005 = vadd.f32 0.0, %v6004
      %6006 = vmatmul.f32.gmra.mxu0 %v4019
      %v6007 = vpop.f32.mrf.mxu0
      %v6008 = vadd.f32 0.0, %v6007
      %6009 = vmatmul.f32.gmra.mxu0 %v4022
      %v6010 = vpop.f32.mrf.mxu0
      %v6011 = vadd.f32 0.0, %v6010
      %6012 = vmatmul.f32.gmra.mxu0 %v4025
      %v6013 = vpop.f32.mrf.mxu0
      %v6014 = vadd.f32 0.0, %v6013
      %6015 = vmatmul.f32.gmra.mxu0 %v4028
      %v6016 = vpop.f32.mrf.mxu0
      %v6017 = vadd.f32 0.0, %v6016
      %6018 = vmatmul.f32.gmra.mxu0 %v4031
      %v6019 = vpop.f32.mrf.mxu0
      %v6020 = vadd.f32 0.0, %v6019
      %6021 = vmatmul.f32.gmra.mxu0 %v4034
      %v6022 = vpop.f32.mrf.mxu0
      %v6023 = vadd.f32 0.0, %v6022
      %6024 = vmatmul.f32.gmra.mxu0 %v4037
      %v6025 = vpop.f32.mrf.mxu0
      %v6026 = vadd.f32 0.0, %v6025
      %6027 = vmatmul.f32.gmra.mxu0 %v4040
      %v6028 = vpop.f32.mrf.mxu0
      %v6029 = vadd.f32 0.0, %v6028
      %6030 = vmatmul.f32.gmra.mxu0 %v4043
      %v6031 = vpop.f32.mrf.mxu0
      %v6032 = vadd.f32 0.0, %v6031
      %6033 = vmatmul.f32.gmra.mxu0 %v4046
      %v6034 = vpop.f32.mrf.mxu0
      %v6035 = vadd.f32 0.0, %v6034
      %6036 = vmatmul.f32.gmra.mxu0 %v4049
      %v6037 = vpop.f32.mrf.mxu0
      %v6038 = vadd.f32 0.0, %v6037
      %6039 = vmatmul.f32.gmra.mxu0 %v4052
      %v6040 = vpop.f32.mrf.mxu0
      %v6041 = vadd.f32 0.0, %v6040
      %6042 = vmatmul.f32.gmra.mxu0 %v4055
      %v6043 = vpop.f32.mrf.mxu0
      %v6044 = vadd.f32 0.0, %v6043
      %6045 = vmatmul.f32.gmra.mxu0 %v4058
      %v6046 = vpop.f32.mrf.mxu0
      %v6047 = vadd.f32 0.0, %v6046
      %6048 = vmatmul.f32.gmra.mxu0 %v4061
      %v6049 = vpop.f32.mrf.mxu0
      %v6050 = vadd.f32 0.0, %v6049
      %6051 = vmatmul.f32.gmra.mxu0 %v4064
      %v6052 = vpop.f32.mrf.mxu0
      %v6053 = vadd.f32 0.0, %v6052
      %6054 = vmatmul.f32.gmra.mxu0 %v4067
      %v6055 = vpop.f32.mrf.mxu0
      %v6056 = vadd.f32 0.0, %v6055
      %6057 = vmatmul.f32.gmra.mxu0 %v4070
      %v6058 = vpop.f32.mrf.mxu0
      %v6059 = vadd.f32 0.0, %v6058
      %6060 = vmatmul.f32.gmra.mxu0 %v4073
      %v6061 = vpop.f32.mrf.mxu0
      %v6062 = vadd.f32 0.0, %v6061
      %6063 = vmatmul.f32.gmra.mxu0 %v4076
      %v6064 = vpop.f32.mrf.mxu0
      %v6065 = vadd.f32 0.0, %v6064
      %6066 = vmatmul.f32.gmra.mxu0 %v4079
      %v6067 = vpop.f32.mrf.mxu0
      %v6068 = vadd.f32 0.0, %v6067
      %6069 = vmatmul.f32.gmra.mxu0 %v4082
      %v6070 = vpop.f32.mrf.mxu0
      %v6071 = vadd.f32 0.0, %v6070
      %6072 = vmatmul.f32.gmra.mxu0 %v4085
      %v6073 = vpop.f32.mrf.mxu0
      %v6074 = vadd.f32 0.0, %v6073
      %6075 = vmatmul.f32.gmra.mxu0 %v4088
      %v6076 = vpop.f32.mrf.mxu0
      %v6077 = vadd.f32 0.0, %v6076
      %6078 = vmatmul.f32.gmra.mxu0 %v4091
      %v6079 = vpop.f32.mrf.mxu0
      %v6080 = vadd.f32 0.0, %v6079
      %6081 = vmatmul.f32.gmra.mxu0 %v4094
      %v6082 = vpop.f32.mrf.mxu0
      %v6083 = vadd.f32 0.0, %v6082
      %6084 = vmatmul.f32.gmra.mxu0 %v4097
      %v6085 = vpop.f32.mrf.mxu0
      %v6086 = vadd.f32 0.0, %v6085
      %6087 = vmatmul.f32.gmra.mxu0 %v4100
      %v6088 = vpop.f32.mrf.mxu0
      %v6089 = vadd.f32 0.0, %v6088
      %6090 = vmatmul.f32.gmra.mxu0 %v4103
      %v6091 = vpop.f32.mrf.mxu0
      %v6092 = vadd.f32 0.0, %v6091
      %6093 = vdwg.mxu0
      %v6094 = vrot.slane %v5933, 7
      %v6095 = vrot.slane %v5936, 7
      %v6096 = vrot.slane %v5939, 7
      %v6097 = vrot.slane %v5942, 7
      %v6098 = vrot.slane %v5945, 7
      %v6099 = vrot.slane %v5948, 7
      %v6100 = vrot.slane %v5951, 7
      %v6101 = vrot.slane %v5954, 7
      %v6102 = vrot.slane %v5957, 7
      %v6103 = vrot.slane %v5960, 7
      %v6104 = vrot.slane %v5963, 7
      %v6105 = vrot.slane %v5966, 7
      %v6106 = vrot.slane %v5969, 7
      %v6107 = vrot.slane %v5972, 7
      %v6108 = vrot.slane %v5975, 7
      %v6109 = vrot.slane %v5978, 7
      %v6110 = vrot.slane %v5981, 7
      %v6111 = vrot.slane %v5984, 7
      %v6112 = vrot.slane %v5987, 7
      %v6113 = vrot.slane %v5990, 7
      %v6114 = vrot.slane %v5993, 7
      %v6115 = vrot.slane %v5996, 7
      %v6116 = vrot.slane %v5999, 7
      %v6117 = vrot.slane %v6002, 7
      %v6118 = vrot.slane %v6005, 7
      %v6119 = vrot.slane %v6008, 7
      %v6120 = vrot.slane %v6011, 7
      %v6121 = vrot.slane %v6014, 7
      %v6122 = vrot.slane %v6017, 7
      %v6123 = vrot.slane %v6020, 7
      %v6124 = vrot.slane %v6023, 7
      %v6125 = vrot.slane %v6026, 7
      %v6126 = vrot.slane %v6029, 7
      %v6127 = vrot.slane %v6032, 7
      %v6128 = vrot.slane %v6035, 7
      %v6129 = vrot.slane %v6038, 7
      %v6130 = vrot.slane %v6041, 7
      %v6131 = vrot.slane %v6044, 7
      %v6132 = vrot.slane %v6047, 7
      %v6133 = vrot.slane %v6050, 7
      %v6134 = vrot.slane %v6053, 7
      %v6135 = vrot.slane %v6056, 7
      %v6136 = vrot.slane %v6059, 7
      %v6137 = vrot.slane %v6062, 7
      %v6138 = vrot.slane %v6065, 7
      %v6139 = vrot.slane %v6068, 7
      %v6140 = vrot.slane %v6071, 7
      %v6141 = vrot.slane %v6074, 7
      %v6142 = vrot.slane %v6077, 7
      %v6143 = vrot.slane %v6080, 7
      %v6144 = vrot.slane %v6083, 7
      %v6145 = vrot.slane %v6086, 7
      %v6146 = vrot.slane %v6089, 7
      %v6147 = vrot.slane %v6092, 7
      %v6148 = vsel %vm705, %v6146, %v6147
      %v6149 = vsel %vm705, %v6145, %v6146
      %v6150 = vsel %vm705, %v6144, %v6145
      %v6151 = vsel %vm705, %v6143, %v6144
      %v6152 = vsel %vm705, %v6142, %v6143
      %v6153 = vsel %vm705, %v6141, %v6142
      %v6154 = vsel %vm705, %v6140, %v6141
      %v6155 = vsel %vm705, %v6139, %v6140
      %v6156 = vsel %vm705, %v6138, %v6139
      %v6157 = vsel %vm705, %v6137, %v6138
      %v6158 = vsel %vm705, %v6136, %v6137
      %v6159 = vsel %vm705, %v6135, %v6136
      %v6160 = vsel %vm705, %v6134, %v6135
      %v6161 = vsel %vm705, %v6133, %v6134
      %v6162 = vsel %vm705, %v6132, %v6133
      %v6163 = vsel %vm705, %v6131, %v6132
      %v6164 = vsel %vm705, %v6130, %v6131
      %v6165 = vsel %vm705, %v6129, %v6130
      %v6166 = vsel %vm705, %v6128, %v6129
      %v6167 = vsel %vm705, %v6127, %v6128
      %v6168 = vsel %vm705, %v6126, %v6127
      %v6169 = vsel %vm705, %v6125, %v6126
      %v6170 = vsel %vm705, %v6124, %v6125
      %v6171 = vsel %vm705, %v6123, %v6124
      %v6172 = vsel %vm705, %v6122, %v6123
      %v6173 = vsel %vm705, %v6121, %v6122
      %v6174 = vsel %vm705, %v6120, %v6121
      %v6175 = vsel %vm705, %v6119, %v6120
      %v6176 = vsel %vm705, %v6118, %v6119
      %v6177 = vsel %vm705, %v6117, %v6118
      %v6178 = vsel %vm705, %v6116, %v6117
      %v6179 = vsel %vm705, %v6115, %v6116
      %v6180 = vsel %vm705, %v6114, %v6115
      %v6181 = vsel %vm705, %v6113, %v6114
      %v6182 = vsel %vm705, %v6112, %v6113
      %v6183 = vsel %vm705, %v6111, %v6112
      %v6184 = vsel %vm705, %v6110, %v6111
      %v6185 = vsel %vm705, %v6109, %v6110
      %v6186 = vsel %vm705, %v6108, %v6109
      %v6187 = vsel %vm705, %v6107, %v6108
      %v6188 = vsel %vm705, %v6106, %v6107
      %v6189 = vsel %vm705, %v6105, %v6106
      %v6190 = vsel %vm705, %v6104, %v6105
      %v6191 = vsel %vm705, %v6103, %v6104
      %v6192 = vsel %vm705, %v6102, %v6103
      %v6193 = vsel %vm705, %v6101, %v6102
      %v6194 = vsel %vm705, %v6100, %v6101
      %v6195 = vsel %vm705, %v6099, %v6100
      %v6196 = vsel %vm705, %v6098, %v6099
      %v6197 = vsel %vm705, %v6097, %v6098
      %v6198 = vsel %vm705, %v6096, %v6097
      %v6199 = vsel %vm705, %v6095, %v6096
      %v6200 = vsel %vm705, %v6094, %v6095
      %v6201 = vsel %vm705, %v6147, %v6094
      %v6202 = vadd.f32 %v5856, %v6198
      %v6203 = vadd.f32 %v5857, %v6197
      %v6204 = vadd.f32 %v5858, %v6196
      %v6205 = vadd.f32 %v5859, %v6195
      %v6206 = vadd.f32 %v5860, %v6194
      %v6207 = vadd.f32 %v5861, %v6193
      %v6208 = vadd.f32 %v5862, %v6192
      %v6209 = vadd.f32 %v5863, %v6191
      %v6210 = vadd.f32 %v5864, %v6190
      %v6211 = vadd.f32 %v5865, %v6189
      %v6212 = vadd.f32 %v5866, %v6188
      %v6213 = vadd.f32 %v5867, %v6187
      %v6214 = vadd.f32 %v5868, %v6186
      %v6215 = vadd.f32 %v5869, %v6185
      %v6216 = vadd.f32 %v5870, %v6184
      %v6217 = vadd.f32 %v5871, %v6183
      %v6218 = vadd.f32 %v5872, %v6182
      %v6219 = vadd.f32 %v5873, %v6181
      %v6220 = vadd.f32 %v5874, %v6180
      %v6221 = vadd.f32 %v5875, %v6179
      %v6222 = vadd.f32 %v5876, %v6178
      %v6223 = vadd.f32 %v5877, %v6177
      %v6224 = vadd.f32 %v5878, %v6176
      %v6225 = vadd.f32 %v5879, %v6175
      %v6226 = vadd.f32 %v5880, %v6174
      %v6227 = vadd.f32 %v5881, %v6173
      %v6228 = vadd.f32 %v5882, %v6172
      %v6229 = vadd.f32 %v5883, %v6171
      %v6230 = vadd.f32 %v5884, %v6170
      %v6231 = vadd.f32 %v5885, %v6169
      %v6232 = vadd.f32 %v5886, %v6168
      %v6233 = vadd.f32 %v5887, %v6167
      %v6234 = vadd.f32 %v5888, %v6166
      %v6235 = vadd.f32 %v5889, %v6165
      %v6236 = vadd.f32 %v5890, %v6164
      %v6237 = vadd.f32 %v5891, %v6163
      %v6238 = vadd.f32 %v5892, %v6162
      %v6239 = vadd.f32 %v5893, %v6161
      %v6240 = vadd.f32 %v5894, %v6160
      %v6241 = vadd.f32 %v5895, %v6159
      %v6242 = vadd.f32 %v5896, %v6158
      %v6243 = vadd.f32 %v5897, %v6157
      %v6244 = vadd.f32 %v5898, %v6156
      %v6245 = vadd.f32 %v5899, %v6155
      %v6246 = vadd.f32 %v5900, %v6154
      %v6247 = vadd.f32 %v5901, %v6153
      %v6248 = vadd.f32 %v5902, %v6152
      %v6249 = vadd.f32 %v5903, %v6151
      %v6250 = vadd.f32 %v5904, %v6150
      %v6251 = vadd.f32 %v5905, %v6149
      %v6252 = vadd.f32 %v5906, %v6148
      %v6253 = vadd.f32 %v5907, %v6201
      %v6254 = vadd.f32 %v5908, %v6200
      %v6255 = vadd.f32 %v5909, %v6199
      %s6256 = scalar_lea.vmem %s4, 28
      %v6257 = vld [vmem:[%s6256] sm:$0xf]
      %v6259 = vsel %vm4105, %v6257, 0
      %6261 = vmatpush.msra.mxu0 0.0
      %6262 = vmatpush.msra.mxu0 0.0
      %6263 = vmatpush.msra.mxu0 0.0
      %6264 = vmatpush.msra.mxu0 0.0
      %6265 = vmatpush.msra.mxu0 0.0
      %6266 = vmatpush.msra.mxu0 0.0
      %6267 = vmatpush.msra.mxu0 0.0
      %6268 = vmatpush.msra.mxu0 0.0
      %6269 = vmatpush.msra.mxu0 0.0
      %6270 = vmatpush.msra.mxu0 0.0
      %6271 = vmatpush.msra.mxu0 0.0
      %6272 = vmatpush.msra.mxu0 0.0
      %6273 = vmatpush.msra.mxu0 0.0
      %6274 = vmatpush.msra.mxu0 0.0
      %6275 = vmatpush.msra.mxu0 0.0
      %6276 = vmatpush.msra.mxu0 %v6259
      %6277 = vmatmul.f32.gmra.mxu0 %v3944
      %v6278 = vpop.f32.mrf.mxu0
      %v6279 = vadd.f32 0.0, %v6278
      %6280 = vmatmul.f32.gmra.mxu0 %v3947
      %v6281 = vpop.f32.mrf.mxu0
      %v6282 = vadd.f32 0.0, %v6281
      %6283 = vmatmul.f32.gmra.mxu0 %v3950
      %v6284 = vpop.f32.mrf.mxu0
      %v6285 = vadd.f32 0.0, %v6284
      %6286 = vmatmul.f32.gmra.mxu0 %v3953
      %v6287 = vpop.f32.mrf.mxu0
      %v6288 = vadd.f32 0.0, %v6287
      %6289 = vmatmul.f32.gmra.mxu0 %v3956
      %v6290 = vpop.f32.mrf.mxu0
      %v6291 = vadd.f32 0.0, %v6290
      %6292 = vmatmul.f32.gmra.mxu0 %v3959
      %v6293 = vpop.f32.mrf.mxu0
      %v6294 = vadd.f32 0.0, %v6293
      %6295 = vmatmul.f32.gmra.mxu0 %v3962
      %v6296 = vpop.f32.mrf.mxu0
      %v6297 = vadd.f32 0.0, %v6296
      %6298 = vmatmul.f32.gmra.mxu0 %v3965
      %v6299 = vpop.f32.mrf.mxu0
      %v6300 = vadd.f32 0.0, %v6299
      %6301 = vmatmul.f32.gmra.mxu0 %v3968
      %v6302 = vpop.f32.mrf.mxu0
      %v6303 = vadd.f32 0.0, %v6302
      %6304 = vmatmul.f32.gmra.mxu0 %v3971
      %v6305 = vpop.f32.mrf.mxu0
      %v6306 = vadd.f32 0.0, %v6305
      %6307 = vmatmul.f32.gmra.mxu0 %v3974
      %v6308 = vpop.f32.mrf.mxu0
      %v6309 = vadd.f32 0.0, %v6308
      %6310 = vmatmul.f32.gmra.mxu0 %v3977
      %v6311 = vpop.f32.mrf.mxu0
      %v6312 = vadd.f32 0.0, %v6311
      %6313 = vmatmul.f32.gmra.mxu0 %v3980
      %v6314 = vpop.f32.mrf.mxu0
      %v6315 = vadd.f32 0.0, %v6314
      %6316 = vmatmul.f32.gmra.mxu0 %v3983
      %v6317 = vpop.f32.mrf.mxu0
      %v6318 = vadd.f32 0.0, %v6317
      %6319 = vmatmul.f32.gmra.mxu0 %v3986
      %v6320 = vpop.f32.mrf.mxu0
      %v6321 = vadd.f32 0.0, %v6320
      %6322 = vmatmul.f32.gmra.mxu0 %v3989
      %v6323 = vpop.f32.mrf.mxu0
      %v6324 = vadd.f32 0.0, %v6323
      %6325 = vmatmul.f32.gmra.mxu0 %v3992
      %v6326 = vpop.f32.mrf.mxu0
      %v6327 = vadd.f32 0.0, %v6326
      %6328 = vmatmul.f32.gmra.mxu0 %v3995
      %v6329 = vpop.f32.mrf.mxu0
      %v6330 = vadd.f32 0.0, %v6329
      %6331 = vmatmul.f32.gmra.mxu0 %v3998
      %v6332 = vpop.f32.mrf.mxu0
      %v6333 = vadd.f32 0.0, %v6332
      %6334 = vmatmul.f32.gmra.mxu0 %v4001
      %v6335 = vpop.f32.mrf.mxu0
      %v6336 = vadd.f32 0.0, %v6335
      %6337 = vmatmul.f32.gmra.mxu0 %v4004
      %v6338 = vpop.f32.mrf.mxu0
      %v6339 = vadd.f32 0.0, %v6338
      %6340 = vmatmul.f32.gmra.mxu0 %v4007
      %v6341 = vpop.f32.mrf.mxu0
      %v6342 = vadd.f32 0.0, %v6341
      %6343 = vmatmul.f32.gmra.mxu0 %v4010
      %v6344 = vpop.f32.mrf.mxu0
      %v6345 = vadd.f32 0.0, %v6344
      %6346 = vmatmul.f32.gmra.mxu0 %v4013
      %v6347 = vpop.f32.mrf.mxu0
      %v6348 = vadd.f32 0.0, %v6347
      %6349 = vmatmul.f32.gmra.mxu0 %v4016
      %v6350 = vpop.f32.mrf.mxu0
      %v6351 = vadd.f32 0.0, %v6350
      %6352 = vmatmul.f32.gmra.mxu0 %v4019
      %v6353 = vpop.f32.mrf.mxu0
      %v6354 = vadd.f32 0.0, %v6353
      %6355 = vmatmul.f32.gmra.mxu0 %v4022
      %v6356 = vpop.f32.mrf.mxu0
      %v6357 = vadd.f32 0.0, %v6356
      %6358 = vmatmul.f32.gmra.mxu0 %v4025
      %v6359 = vpop.f32.mrf.mxu0
      %v6360 = vadd.f32 0.0, %v6359
      %6361 = vmatmul.f32.gmra.mxu0 %v4028
      %v6362 = vpop.f32.mrf.mxu0
      %v6363 = vadd.f32 0.0, %v6362
      %6364 = vmatmul.f32.gmra.mxu0 %v4031
      %v6365 = vpop.f32.mrf.mxu0
      %v6366 = vadd.f32 0.0, %v6365
      %6367 = vmatmul.f32.gmra.mxu0 %v4034
      %v6368 = vpop.f32.mrf.mxu0
      %v6369 = vadd.f32 0.0, %v6368
      %6370 = vmatmul.f32.gmra.mxu0 %v4037
      %v6371 = vpop.f32.mrf.mxu0
      %v6372 = vadd.f32 0.0, %v6371
      %6373 = vmatmul.f32.gmra.mxu0 %v4040
      %v6374 = vpop.f32.mrf.mxu0
      %v6375 = vadd.f32 0.0, %v6374
      %6376 = vmatmul.f32.gmra.mxu0 %v4043
      %v6377 = vpop.f32.mrf.mxu0
      %v6378 = vadd.f32 0.0, %v6377
      %6379 = vmatmul.f32.gmra.mxu0 %v4046
      %v6380 = vpop.f32.mrf.mxu0
      %v6381 = vadd.f32 0.0, %v6380
      %6382 = vmatmul.f32.gmra.mxu0 %v4049
      %v6383 = vpop.f32.mrf.mxu0
      %v6384 = vadd.f32 0.0, %v6383
      %6385 = vmatmul.f32.gmra.mxu0 %v4052
      %v6386 = vpop.f32.mrf.mxu0
      %v6387 = vadd.f32 0.0, %v6386
      %6388 = vmatmul.f32.gmra.mxu0 %v4055
      %v6389 = vpop.f32.mrf.mxu0
      %v6390 = vadd.f32 0.0, %v6389
      %6391 = vmatmul.f32.gmra.mxu0 %v4058
      %v6392 = vpop.f32.mrf.mxu0
      %v6393 = vadd.f32 0.0, %v6392
      %6394 = vmatmul.f32.gmra.mxu0 %v4061
      %v6395 = vpop.f32.mrf.mxu0
      %v6396 = vadd.f32 0.0, %v6395
      %6397 = vmatmul.f32.gmra.mxu0 %v4064
      %v6398 = vpop.f32.mrf.mxu0
      %v6399 = vadd.f32 0.0, %v6398
      %6400 = vmatmul.f32.gmra.mxu0 %v4067
      %v6401 = vpop.f32.mrf.mxu0
      %v6402 = vadd.f32 0.0, %v6401
      %6403 = vmatmul.f32.gmra.mxu0 %v4070
      %v6404 = vpop.f32.mrf.mxu0
      %v6405 = vadd.f32 0.0, %v6404
      %6406 = vmatmul.f32.gmra.mxu0 %v4073
      %v6407 = vpop.f32.mrf.mxu0
      %v6408 = vadd.f32 0.0, %v6407
      %6409 = vmatmul.f32.gmra.mxu0 %v4076
      %v6410 = vpop.f32.mrf.mxu0
      %v6411 = vadd.f32 0.0, %v6410
      %6412 = vmatmul.f32.gmra.mxu0 %v4079
      %v6413 = vpop.f32.mrf.mxu0
      %v6414 = vadd.f32 0.0, %v6413
      %6415 = vmatmul.f32.gmra.mxu0 %v4082
      %v6416 = vpop.f32.mrf.mxu0
      %v6417 = vadd.f32 0.0, %v6416
      %6418 = vmatmul.f32.gmra.mxu0 %v4085
      %v6419 = vpop.f32.mrf.mxu0
      %v6420 = vadd.f32 0.0, %v6419
      %6421 = vmatmul.f32.gmra.mxu0 %v4088
      %v6422 = vpop.f32.mrf.mxu0
      %v6423 = vadd.f32 0.0, %v6422
      %6424 = vmatmul.f32.gmra.mxu0 %v4091
      %v6425 = vpop.f32.mrf.mxu0
      %v6426 = vadd.f32 0.0, %v6425
      %6427 = vmatmul.f32.gmra.mxu0 %v4094
      %v6428 = vpop.f32.mrf.mxu0
      %v6429 = vadd.f32 0.0, %v6428
      %6430 = vmatmul.f32.gmra.mxu0 %v4097
      %v6431 = vpop.f32.mrf.mxu0
      %v6432 = vadd.f32 0.0, %v6431
      %6433 = vmatmul.f32.gmra.mxu0 %v4100
      %v6434 = vpop.f32.mrf.mxu0
      %v6435 = vadd.f32 0.0, %v6434
      %6436 = vmatmul.f32.gmra.mxu0 %v4103
      %v6437 = vpop.f32.mrf.mxu0
      %v6438 = vadd.f32 0.0, %v6437
      %6439 = vdwg.mxu0
      %v6440 = vadd.f32 %v6202, %v6288
      %v6441 = vadd.f32 %v6203, %v6291
      %v6442 = vadd.f32 %v6204, %v6294
      %v6443 = vadd.f32 %v6205, %v6297
      %v6444 = vadd.f32 %v6206, %v6300
      %v6445 = vadd.f32 %v6207, %v6303
      %v6446 = vadd.f32 %v6208, %v6306
      %v6447 = vadd.f32 %v6209, %v6309
      %v6448 = vadd.f32 %v6210, %v6312
      %v6449 = vadd.f32 %v6211, %v6315
      %v6450 = vadd.f32 %v6212, %v6318
      %v6451 = vadd.f32 %v6213, %v6321
      %v6452 = vadd.f32 %v6214, %v6324
      %v6453 = vadd.f32 %v6215, %v6327
      %v6454 = vadd.f32 %v6216, %v6330
      %v6455 = vadd.f32 %v6217, %v6333
      %v6456 = vadd.f32 %v6218, %v6336
      %v6457 = vadd.f32 %v6219, %v6339
      %v6458 = vadd.f32 %v6220, %v6342
      %v6459 = vadd.f32 %v6221, %v6345
      %v6460 = vadd.f32 %v6222, %v6348
      %v6461 = vadd.f32 %v6223, %v6351
      %v6462 = vadd.f32 %v6224, %v6354
      %v6463 = vadd.f32 %v6225, %v6357
      %v6464 = vadd.f32 %v6226, %v6360
      %v6465 = vadd.f32 %v6227, %v6363
      %v6466 = vadd.f32 %v6228, %v6366
      %v6467 = vadd.f32 %v6229, %v6369
      %v6468 = vadd.f32 %v6230, %v6372
      %v6469 = vadd.f32 %v6231, %v6375
      %v6470 = vadd.f32 %v6232, %v6378
      %v6471 = vadd.f32 %v6233, %v6381
      %v6472 = vadd.f32 %v6234, %v6384
      %v6473 = vadd.f32 %v6235, %v6387
      %v6474 = vadd.f32 %v6236, %v6390
      %v6475 = vadd.f32 %v6237, %v6393
      %v6476 = vadd.f32 %v6238, %v6396
      %v6477 = vadd.f32 %v6239, %v6399
      %v6478 = vadd.f32 %v6240, %v6402
      %v6479 = vadd.f32 %v6241, %v6405
      %v6480 = vadd.f32 %v6242, %v6408
      %v6481 = vadd.f32 %v6243, %v6411
      %v6482 = vadd.f32 %v6244, %v6414
      %v6483 = vadd.f32 %v6245, %v6417
      %v6484 = vadd.f32 %v6246, %v6420
      %v6485 = vadd.f32 %v6247, %v6423
      %v6486 = vadd.f32 %v6248, %v6426
      %v6487 = vadd.f32 %v6249, %v6429
      %v6488 = vadd.f32 %v6250, %v6432
      %v6489 = vadd.f32 %v6251, %v6435
      %v6490 = vadd.f32 %v6252, %v6438
      %v6491 = vadd.f32 %v6253, %v6279
      %v6492 = vadd.f32 %v6254, %v6282
      %v6493 = vadd.f32 %v6255, %v6285
      %s6494 = scalar_lea.vmem %s4, 32
      %v6495 = vld [vmem:[%s6494] sm:$0xf]
      %v6497 = vsel %vm4105, %v6495, 0
      %6499 = vmatpush.msra.mxu0 0.0
      %6500 = vmatpush.msra.mxu0 0.0
      %6501 = vmatpush.msra.mxu0 0.0
      %6502 = vmatpush.msra.mxu0 0.0
      %6503 = vmatpush.msra.mxu0 0.0
      %6504 = vmatpush.msra.mxu0 0.0
      %6505 = vmatpush.msra.mxu0 0.0
      %6506 = vmatpush.msra.mxu0 0.0
      %6507 = vmatpush.msra.mxu0 0.0
      %6508 = vmatpush.msra.mxu0 0.0
      %6509 = vmatpush.msra.mxu0 0.0
      %6510 = vmatpush.msra.mxu0 0.0
      %6511 = vmatpush.msra.mxu0 0.0
      %6512 = vmatpush.msra.mxu0 0.0
      %6513 = vmatpush.msra.mxu0 0.0
      %6514 = vmatpush.msra.mxu0 %v6497
      %6515 = vmatmul.f32.gmra.mxu0 %v3944
      %v6516 = vpop.f32.mrf.mxu0
      %v6517 = vadd.f32 0.0, %v6516
      %6518 = vmatmul.f32.gmra.mxu0 %v3947
      %v6519 = vpop.f32.mrf.mxu0
      %v6520 = vadd.f32 0.0, %v6519
      %6521 = vmatmul.f32.gmra.mxu0 %v3950
      %v6522 = vpop.f32.mrf.mxu0
      %v6523 = vadd.f32 0.0, %v6522
      %6524 = vmatmul.f32.gmra.mxu0 %v3953
      %v6525 = vpop.f32.mrf.mxu0
      %v6526 = vadd.f32 0.0, %v6525
      %6527 = vmatmul.f32.gmra.mxu0 %v3956
      %v6528 = vpop.f32.mrf.mxu0
      %v6529 = vadd.f32 0.0, %v6528
      %6530 = vmatmul.f32.gmra.mxu0 %v3959
      %v6531 = vpop.f32.mrf.mxu0
      %v6532 = vadd.f32 0.0, %v6531
      %6533 = vmatmul.f32.gmra.mxu0 %v3962
      %v6534 = vpop.f32.mrf.mxu0
      %v6535 = vadd.f32 0.0, %v6534
      %6536 = vmatmul.f32.gmra.mxu0 %v3965
      %v6537 = vpop.f32.mrf.mxu0
      %v6538 = vadd.f32 0.0, %v6537
      %6539 = vmatmul.f32.gmra.mxu0 %v3968
      %v6540 = vpop.f32.mrf.mxu0
      %v6541 = vadd.f32 0.0, %v6540
      %6542 = vmatmul.f32.gmra.mxu0 %v3971
      %v6543 = vpop.f32.mrf.mxu0
      %v6544 = vadd.f32 0.0, %v6543
      %6545 = vmatmul.f32.gmra.mxu0 %v3974
      %v6546 = vpop.f32.mrf.mxu0
      %v6547 = vadd.f32 0.0, %v6546
      %6548 = vmatmul.f32.gmra.mxu0 %v3977
      %v6549 = vpop.f32.mrf.mxu0
      %v6550 = vadd.f32 0.0, %v6549
      %6551 = vmatmul.f32.gmra.mxu0 %v3980
      %v6552 = vpop.f32.mrf.mxu0
      %v6553 = vadd.f32 0.0, %v6552
      %6554 = vmatmul.f32.gmra.mxu0 %v3983
      %v6555 = vpop.f32.mrf.mxu0
      %v6556 = vadd.f32 0.0, %v6555
      %6557 = vmatmul.f32.gmra.mxu0 %v3986
      %v6558 = vpop.f32.mrf.mxu0
      %v6559 = vadd.f32 0.0, %v6558
      %6560 = vmatmul.f32.gmra.mxu0 %v3989
      %v6561 = vpop.f32.mrf.mxu0
      %v6562 = vadd.f32 0.0, %v6561
      %6563 = vmatmul.f32.gmra.mxu0 %v3992
      %v6564 = vpop.f32.mrf.mxu0
      %v6565 = vadd.f32 0.0, %v6564
      %6566 = vmatmul.f32.gmra.mxu0 %v3995
      %v6567 = vpop.f32.mrf.mxu0
      %v6568 = vadd.f32 0.0, %v6567
      %6569 = vmatmul.f32.gmra.mxu0 %v3998
      %v6570 = vpop.f32.mrf.mxu0
      %v6571 = vadd.f32 0.0, %v6570
      %6572 = vmatmul.f32.gmra.mxu0 %v4001
      %v6573 = vpop.f32.mrf.mxu0
      %v6574 = vadd.f32 0.0, %v6573
      %6575 = vmatmul.f32.gmra.mxu0 %v4004
      %v6576 = vpop.f32.mrf.mxu0
      %v6577 = vadd.f32 0.0, %v6576
      %6578 = vmatmul.f32.gmra.mxu0 %v4007
      %v6579 = vpop.f32.mrf.mxu0
      %v6580 = vadd.f32 0.0, %v6579
      %6581 = vmatmul.f32.gmra.mxu0 %v4010
      %v6582 = vpop.f32.mrf.mxu0
      %v6583 = vadd.f32 0.0, %v6582
      %6584 = vmatmul.f32.gmra.mxu0 %v4013
      %v6585 = vpop.f32.mrf.mxu0
      %v6586 = vadd.f32 0.0, %v6585
      %6587 = vmatmul.f32.gmra.mxu0 %v4016
      %v6588 = vpop.f32.mrf.mxu0
      %v6589 = vadd.f32 0.0, %v6588
      %6590 = vmatmul.f32.gmra.mxu0 %v4019
      %v6591 = vpop.f32.mrf.mxu0
      %v6592 = vadd.f32 0.0, %v6591
      %6593 = vmatmul.f32.gmra.mxu0 %v4022
      %v6594 = vpop.f32.mrf.mxu0
      %v6595 = vadd.f32 0.0, %v6594
      %6596 = vmatmul.f32.gmra.mxu0 %v4025
      %v6597 = vpop.f32.mrf.mxu0
      %v6598 = vadd.f32 0.0, %v6597
      %6599 = vmatmul.f32.gmra.mxu0 %v4028
      %v6600 = vpop.f32.mrf.mxu0
      %v6601 = vadd.f32 0.0, %v6600
      %6602 = vmatmul.f32.gmra.mxu0 %v4031
      %v6603 = vpop.f32.mrf.mxu0
      %v6604 = vadd.f32 0.0, %v6603
      %6605 = vmatmul.f32.gmra.mxu0 %v4034
      %v6606 = vpop.f32.mrf.mxu0
      %v6607 = vadd.f32 0.0, %v6606
      %6608 = vmatmul.f32.gmra.mxu0 %v4037
      %v6609 = vpop.f32.mrf.mxu0
      %v6610 = vadd.f32 0.0, %v6609
      %6611 = vmatmul.f32.gmra.mxu0 %v4040
      %v6612 = vpop.f32.mrf.mxu0
      %v6613 = vadd.f32 0.0, %v6612
      %6614 = vmatmul.f32.gmra.mxu0 %v4043
      %v6615 = vpop.f32.mrf.mxu0
      %v6616 = vadd.f32 0.0, %v6615
      %6617 = vmatmul.f32.gmra.mxu0 %v4046
      %v6618 = vpop.f32.mrf.mxu0
      %v6619 = vadd.f32 0.0, %v6618
      %6620 = vmatmul.f32.gmra.mxu0 %v4049
      %v6621 = vpop.f32.mrf.mxu0
      %v6622 = vadd.f32 0.0, %v6621
      %6623 = vmatmul.f32.gmra.mxu0 %v4052
      %v6624 = vpop.f32.mrf.mxu0
      %v6625 = vadd.f32 0.0, %v6624
      %6626 = vmatmul.f32.gmra.mxu0 %v4055
      %v6627 = vpop.f32.mrf.mxu0
      %v6628 = vadd.f32 0.0, %v6627
      %6629 = vmatmul.f32.gmra.mxu0 %v4058
      %v6630 = vpop.f32.mrf.mxu0
      %v6631 = vadd.f32 0.0, %v6630
      %6632 = vmatmul.f32.gmra.mxu0 %v4061
      %v6633 = vpop.f32.mrf.mxu0
      %v6634 = vadd.f32 0.0, %v6633
      %6635 = vmatmul.f32.gmra.mxu0 %v4064
      %v6636 = vpop.f32.mrf.mxu0
      %v6637 = vadd.f32 0.0, %v6636
      %6638 = vmatmul.f32.gmra.mxu0 %v4067
      %v6639 = vpop.f32.mrf.mxu0
      %v6640 = vadd.f32 0.0, %v6639
      %6641 = vmatmul.f32.gmra.mxu0 %v4070
      %v6642 = vpop.f32.mrf.mxu0
      %v6643 = vadd.f32 0.0, %v6642
      %6644 = vmatmul.f32.gmra.mxu0 %v4073
      %v6645 = vpop.f32.mrf.mxu0
      %v6646 = vadd.f32 0.0, %v6645
      %6647 = vmatmul.f32.gmra.mxu0 %v4076
      %v6648 = vpop.f32.mrf.mxu0
      %v6649 = vadd.f32 0.0, %v6648
      %6650 = vmatmul.f32.gmra.mxu0 %v4079
      %v6651 = vpop.f32.mrf.mxu0
      %v6652 = vadd.f32 0.0, %v6651
      %6653 = vmatmul.f32.gmra.mxu0 %v4082
      %v6654 = vpop.f32.mrf.mxu0
      %v6655 = vadd.f32 0.0, %v6654
      %6656 = vmatmul.f32.gmra.mxu0 %v4085
      %v6657 = vpop.f32.mrf.mxu0
      %v6658 = vadd.f32 0.0, %v6657
      %6659 = vmatmul.f32.gmra.mxu0 %v4088
      %v6660 = vpop.f32.mrf.mxu0
      %v6661 = vadd.f32 0.0, %v6660
      %6662 = vmatmul.f32.gmra.mxu0 %v4091
      %v6663 = vpop.f32.mrf.mxu0
      %v6664 = vadd.f32 0.0, %v6663
      %6665 = vmatmul.f32.gmra.mxu0 %v4094
      %v6666 = vpop.f32.mrf.mxu0
      %v6667 = vadd.f32 0.0, %v6666
      %6668 = vmatmul.f32.gmra.mxu0 %v4097
      %v6669 = vpop.f32.mrf.mxu0
      %v6670 = vadd.f32 0.0, %v6669
      %6671 = vmatmul.f32.gmra.mxu0 %v4100
      %v6672 = vpop.f32.mrf.mxu0
      %v6673 = vadd.f32 0.0, %v6672
      %6674 = vmatmul.f32.gmra.mxu0 %v4103
      %v6675 = vpop.f32.mrf.mxu0
      %v6676 = vadd.f32 0.0, %v6675
      %6677 = vdwg.mxu0
      %v6678 = vrot.slane %v6517, 1
      %v6679 = vrot.slane %v6520, 1
      %v6680 = vrot.slane %v6523, 1
      %v6681 = vrot.slane %v6526, 1
      %v6682 = vrot.slane %v6529, 1
      %v6683 = vrot.slane %v6532, 1
      %v6684 = vrot.slane %v6535, 1
      %v6685 = vrot.slane %v6538, 1
      %v6686 = vrot.slane %v6541, 1
      %v6687 = vrot.slane %v6544, 1
      %v6688 = vrot.slane %v6547, 1
      %v6689 = vrot.slane %v6550, 1
      %v6690 = vrot.slane %v6553, 1
      %v6691 = vrot.slane %v6556, 1
      %v6692 = vrot.slane %v6559, 1
      %v6693 = vrot.slane %v6562, 1
      %v6694 = vrot.slane %v6565, 1
      %v6695 = vrot.slane %v6568, 1
      %v6696 = vrot.slane %v6571, 1
      %v6697 = vrot.slane %v6574, 1
      %v6698 = vrot.slane %v6577, 1
      %v6699 = vrot.slane %v6580, 1
      %v6700 = vrot.slane %v6583, 1
      %v6701 = vrot.slane %v6586, 1
      %v6702 = vrot.slane %v6589, 1
      %v6703 = vrot.slane %v6592, 1
      %v6704 = vrot.slane %v6595, 1
      %v6705 = vrot.slane %v6598, 1
      %v6706 = vrot.slane %v6601, 1
      %v6707 = vrot.slane %v6604, 1
      %v6708 = vrot.slane %v6607, 1
      %v6709 = vrot.slane %v6610, 1
      %v6710 = vrot.slane %v6613, 1
      %v6711 = vrot.slane %v6616, 1
      %v6712 = vrot.slane %v6619, 1
      %v6713 = vrot.slane %v6622, 1
      %v6714 = vrot.slane %v6625, 1
      %v6715 = vrot.slane %v6628, 1
      %v6716 = vrot.slane %v6631, 1
      %v6717 = vrot.slane %v6634, 1
      %v6718 = vrot.slane %v6637, 1
      %v6719 = vrot.slane %v6640, 1
      %v6720 = vrot.slane %v6643, 1
      %v6721 = vrot.slane %v6646, 1
      %v6722 = vrot.slane %v6649, 1
      %v6723 = vrot.slane %v6652, 1
      %v6724 = vrot.slane %v6655, 1
      %v6725 = vrot.slane %v6658, 1
      %v6726 = vrot.slane %v6661, 1
      %v6727 = vrot.slane %v6664, 1
      %v6728 = vrot.slane %v6667, 1
      %v6729 = vrot.slane %v6670, 1
      %v6730 = vrot.slane %v6673, 1
      %v6731 = vrot.slane %v6676, 1
      %v6732 = vsel %vm1230, %v6730, %v6731
      %v6733 = vsel %vm1230, %v6729, %v6730
      %v6734 = vsel %vm1230, %v6728, %v6729
      %v6735 = vsel %vm1230, %v6727, %v6728
      %v6736 = vsel %vm1230, %v6726, %v6727
      %v6737 = vsel %vm1230, %v6725, %v6726
      %v6738 = vsel %vm1230, %v6724, %v6725
      %v6739 = vsel %vm1230, %v6723, %v6724
      %v6740 = vsel %vm1230, %v6722, %v6723
      %v6741 = vsel %vm1230, %v6721, %v6722
      %v6742 = vsel %vm1230, %v6720, %v6721
      %v6743 = vsel %vm1230, %v6719, %v6720
      %v6744 = vsel %vm1230, %v6718, %v6719
      %v6745 = vsel %vm1230, %v6717, %v6718
      %v6746 = vsel %vm1230, %v6716, %v6717
      %v6747 = vsel %vm1230, %v6715, %v6716
      %v6748 = vsel %vm1230, %v6714, %v6715
      %v6749 = vsel %vm1230, %v6713, %v6714
      %v6750 = vsel %vm1230, %v6712, %v6713
      %v6751 = vsel %vm1230, %v6711, %v6712
      %v6752 = vsel %vm1230, %v6710, %v6711
      %v6753 = vsel %vm1230, %v6709, %v6710
      %v6754 = vsel %vm1230, %v6708, %v6709
      %v6755 = vsel %vm1230, %v6707, %v6708
      %v6756 = vsel %vm1230, %v6706, %v6707
      %v6757 = vsel %vm1230, %v6705, %v6706
      %v6758 = vsel %vm1230, %v6704, %v6705
      %v6759 = vsel %vm1230, %v6703, %v6704
      %v6760 = vsel %vm1230, %v6702, %v6703
      %v6761 = vsel %vm1230, %v6701, %v6702
      %v6762 = vsel %vm1230, %v6700, %v6701
      %v6763 = vsel %vm1230, %v6699, %v6700
      %v6764 = vsel %vm1230, %v6698, %v6699
      %v6765 = vsel %vm1230, %v6697, %v6698
      %v6766 = vsel %vm1230, %v6696, %v6697
      %v6767 = vsel %vm1230, %v6695, %v6696
      %v6768 = vsel %vm1230, %v6694, %v6695
      %v6769 = vsel %vm1230, %v6693, %v6694
      %v6770 = vsel %vm1230, %v6692, %v6693
      %v6771 = vsel %vm1230, %v6691, %v6692
      %v6772 = vsel %vm1230, %v6690, %v6691
      %v6773 = vsel %vm1230, %v6689, %v6690
      %v6774 = vsel %vm1230, %v6688, %v6689
      %v6775 = vsel %vm1230, %v6687, %v6688
      %v6776 = vsel %vm1230, %v6686, %v6687
      %v6777 = vsel %vm1230, %v6685, %v6686
      %v6778 = vsel %vm1230, %v6684, %v6685
      %v6779 = vsel %vm1230, %v6683, %v6684
      %v6780 = vsel %vm1230, %v6682, %v6683
      %v6781 = vsel %vm1230, %v6681, %v6682
      %v6782 = vsel %vm1230, %v6680, %v6681
      %v6783 = vsel %vm1230, %v6679, %v6680
      %v6784 = vsel %vm1230, %v6678, %v6679
      %v6785 = vsel %vm1230, %v6731, %v6678
      %v6786 = vadd.f32 %v6440, %v6781
      %v6787 = vadd.f32 %v6441, %v6780
      %v6788 = vadd.f32 %v6442, %v6779
      %v6789 = vadd.f32 %v6443, %v6778
      %v6790 = vadd.f32 %v6444, %v6777
      %v6791 = vadd.f32 %v6445, %v6776
      %v6792 = vadd.f32 %v6446, %v6775
      %v6793 = vadd.f32 %v6447, %v6774
      %v6794 = vadd.f32 %v6448, %v6773
      %v6795 = vadd.f32 %v6449, %v6772
      %v6796 = vadd.f32 %v6450, %v6771
      %v6797 = vadd.f32 %v6451, %v6770
      %v6798 = vadd.f32 %v6452, %v6769
      %v6799 = vadd.f32 %v6453, %v6768
      %v6800 = vadd.f32 %v6454, %v6767
      %v6801 = vadd.f32 %v6455, %v6766
      %v6802 = vadd.f32 %v6456, %v6765
      %v6803 = vadd.f32 %v6457, %v6764
      %v6804 = vadd.f32 %v6458, %v6763
      %v6805 = vadd.f32 %v6459, %v6762
      %v6806 = vadd.f32 %v6460, %v6761
      %v6807 = vadd.f32 %v6461, %v6760
      %v6808 = vadd.f32 %v6462, %v6759
      %v6809 = vadd.f32 %v6463, %v6758
      %v6810 = vadd.f32 %v6464, %v6757
      %v6811 = vadd.f32 %v6465, %v6756
      %v6812 = vadd.f32 %v6466, %v6755
      %v6813 = vadd.f32 %v6467, %v6754
      %v6814 = vadd.f32 %v6468, %v6753
      %v6815 = vadd.f32 %v6469, %v6752
      %v6816 = vadd.f32 %v6470, %v6751
      %v6817 = vadd.f32 %v6471, %v6750
      %v6818 = vadd.f32 %v6472, %v6749
      %v6819 = vadd.f32 %v6473, %v6748
      %v6820 = vadd.f32 %v6474, %v6747
      %v6821 = vadd.f32 %v6475, %v6746
      %v6822 = vadd.f32 %v6476, %v6745
      %v6823 = vadd.f32 %v6477, %v6744
      %v6824 = vadd.f32 %v6478, %v6743
      %v6825 = vadd.f32 %v6479, %v6742
      %v6826 = vadd.f32 %v6480, %v6741
      %v6827 = vadd.f32 %v6481, %v6740
      %v6828 = vadd.f32 %v6482, %v6739
      %v6829 = vadd.f32 %v6483, %v6738
      %v6830 = vadd.f32 %v6484, %v6737
      %v6831 = vadd.f32 %v6485, %v6736
      %v6832 = vadd.f32 %v6486, %v6735
      %v6833 = vadd.f32 %v6487, %v6734
      %v6834 = vadd.f32 %v6488, %v6733
      %v6835 = vadd.f32 %v6489, %v6732
      %v6836 = vadd.f32 %v6490, %v6785
      %v6837 = vadd.f32 %v6491, %v6784
      %v6838 = vadd.f32 %v6492, %v6783
      %v6839 = vadd.f32 %v6493, %v6782
      %v6840 = vld [vmem:[%s5] sm:$0x1]
      %v6842 = vperm.slane %v6840, 0
      %v6844 = vadd.f32 %v6786, %v6842
      %v6845 = vadd.f32 %v6787, %v6842
      %v6846 = vadd.f32 %v6788, %v6842
      %v6847 = vadd.f32 %v6789, %v6842
      %v6848 = vadd.f32 %v6790, %v6842
      %v6849 = vadd.f32 %v6791, %v6842
      %v6850 = vadd.f32 %v6792, %v6842
      %v6851 = vadd.f32 %v6793, %v6842
      %v6852 = vadd.f32 %v6794, %v6842
      %v6853 = vadd.f32 %v6795, %v6842
      %v6854 = vadd.f32 %v6796, %v6842
      %v6855 = vadd.f32 %v6797, %v6842
      %v6856 = vadd.f32 %v6798, %v6842
      %v6857 = vadd.f32 %v6799, %v6842
      %v6858 = vadd.f32 %v6800, %v6842
      %v6859 = vadd.f32 %v6801, %v6842
      %v6860 = vadd.f32 %v6802, %v6842
      %v6861 = vadd.f32 %v6803, %v6842
      %v6862 = vadd.f32 %v6804, %v6842
      %v6863 = vadd.f32 %v6805, %v6842
      %v6864 = vadd.f32 %v6806, %v6842
      %v6865 = vadd.f32 %v6807, %v6842
      %v6866 = vadd.f32 %v6808, %v6842
      %v6867 = vadd.f32 %v6809, %v6842
      %v6868 = vadd.f32 %v6810, %v6842
      %v6869 = vadd.f32 %v6811, %v6842
      %v6870 = vadd.f32 %v6812, %v6842
      %v6871 = vadd.f32 %v6813, %v6842
      %v6872 = vadd.f32 %v6814, %v6842
      %v6873 = vadd.f32 %v6815, %v6842
      %v6874 = vadd.f32 %v6816, %v6842
      %v6875 = vadd.f32 %v6817, %v6842
      %v6876 = vadd.f32 %v6818, %v6842
      %v6877 = vadd.f32 %v6819, %v6842
      %v6878 = vadd.f32 %v6820, %v6842
      %v6879 = vadd.f32 %v6821, %v6842
      %v6880 = vadd.f32 %v6822, %v6842
      %v6881 = vadd.f32 %v6823, %v6842
      %v6882 = vadd.f32 %v6824, %v6842
      %v6883 = vadd.f32 %v6825, %v6842
      %v6884 = vadd.f32 %v6826, %v6842
      %v6885 = vadd.f32 %v6827, %v6842
      %v6886 = vadd.f32 %v6828, %v6842
      %v6887 = vadd.f32 %v6829, %v6842
      %v6888 = vadd.f32 %v6830, %v6842
      %v6889 = vadd.f32 %v6831, %v6842
      %v6890 = vadd.f32 %v6832, %v6842
      %v6891 = vadd.f32 %v6833, %v6842
      %v6892 = vadd.f32 %v6834, %v6842
      %v6893 = vadd.f32 %v6835, %v6842
      %v6894 = vadd.f32 %v6836, %v6842
      %v6895 = vadd.f32 %v6837, %v6842
      %v6896 = vadd.f32 %v6838, %v6842
      %v6897 = vadd.f32 %v6839, %v6842
      %v6898 = vsub.f32 0.0, %v6844
      %v6899 = vsub.f32 0.0, %v6845
      %v6900 = vsub.f32 0.0, %v6846
      %v6901 = vsub.f32 0.0, %v6847
      %v6902 = vsub.f32 0.0, %v6848
      %v6903 = vsub.f32 0.0, %v6849
      %v6904 = vsub.f32 0.0, %v6850
      %v6905 = vsub.f32 0.0, %v6851
      %v6906 = vsub.f32 0.0, %v6852
      %v6907 = vsub.f32 0.0, %v6853
      %v6908 = vsub.f32 0.0, %v6854
      %v6909 = vsub.f32 0.0, %v6855
      %v6910 = vsub.f32 0.0, %v6856
      %v6911 = vsub.f32 0.0, %v6857
      %v6912 = vsub.f32 0.0, %v6858
      %v6913 = vsub.f32 0.0, %v6859
      %v6914 = vsub.f32 0.0, %v6860
      %v6915 = vsub.f32 0.0, %v6861
      %v6916 = vsub.f32 0.0, %v6862
      %v6917 = vsub.f32 0.0, %v6863
      %v6918 = vsub.f32 0.0, %v6864
      %v6919 = vsub.f32 0.0, %v6865
      %v6920 = vsub.f32 0.0, %v6866
      %v6921 = vsub.f32 0.0, %v6867
      %v6922 = vsub.f32 0.0, %v6868
      %v6923 = vsub.f32 0.0, %v6869
      %v6924 = vsub.f32 0.0, %v6870
      %v6925 = vsub.f32 0.0, %v6871
      %v6926 = vsub.f32 0.0, %v6872
      %v6927 = vsub.f32 0.0, %v6873
      %v6928 = vsub.f32 0.0, %v6874
      %v6929 = vsub.f32 0.0, %v6875
      %v6930 = vsub.f32 0.0, %v6876
      %v6931 = vsub.f32 0.0, %v6877
      %v6932 = vsub.f32 0.0, %v6878
      %v6933 = vsub.f32 0.0, %v6879
      %v6934 = vsub.f32 0.0, %v6880
      %v6935 = vsub.f32 0.0, %v6881
      %v6936 = vsub.f32 0.0, %v6882
      %v6937 = vsub.f32 0.0, %v6883
      %v6938 = vsub.f32 0.0, %v6884
      %v6939 = vsub.f32 0.0, %v6885
      %v6940 = vsub.f32 0.0, %v6886
      %v6941 = vsub.f32 0.0, %v6887
      %v6942 = vsub.f32 0.0, %v6888
      %v6943 = vsub.f32 0.0, %v6889
      %v6944 = vsub.f32 0.0, %v6890
      %v6945 = vsub.f32 0.0, %v6891
      %v6946 = vsub.f32 0.0, %v6892
      %v6947 = vsub.f32 0.0, %v6893
      %v6948 = vsub.f32 0.0, %v6894
      %v6949 = vsub.f32 0.0, %v6895
      %v6950 = vsub.f32 0.0, %v6896
      %v6951 = vsub.f32 0.0, %v6897
      %v6952 = vmul.f32 %v6898, 1.442695
      %v6953 = vpow.pop %v6952
      %v6954 = vmul.f32 %v6899, 1.442695
      %v6955 = vpow.pop %v6954
      %v6956 = vmul.f32 %v6900, 1.442695
      %v6957 = vpow.pop %v6956
      %v6958 = vmul.f32 %v6901, 1.442695
      %v6959 = vpow.pop %v6958
      %v6960 = vmul.f32 %v6902, 1.442695
      %v6961 = vpow.pop %v6960
      %v6962 = vmul.f32 %v6903, 1.442695
      %v6963 = vpow.pop %v6962
      %v6964 = vmul.f32 %v6904, 1.442695
      %v6965 = vpow.pop %v6964
      %v6966 = vmul.f32 %v6905, 1.442695
      %v6967 = vpow.pop %v6966
      %v6968 = vmul.f32 %v6906, 1.442695
      %v6969 = vpow.pop %v6968
      %v6970 = vmul.f32 %v6907, 1.442695
      %v6971 = vpow.pop %v6970
      %v6972 = vmul.f32 %v6908, 1.442695
      %v6973 = vpow.pop %v6972
      %v6974 = vmul.f32 %v6909, 1.442695
      %v6975 = vpow.pop %v6974
      %v6976 = vmul.f32 %v6910, 1.442695
      %v6977 = vpow.pop %v6976
      %v6978 = vmul.f32 %v6911, 1.442695
      %v6979 = vpow.pop %v6978
      %v6980 = vmul.f32 %v6912, 1.442695
      %v6981 = vpow.pop %v6980
      %v6982 = vmul.f32 %v6913, 1.442695
      %v6983 = vpow.pop %v6982
      %v6984 = vmul.f32 %v6914, 1.442695
      %v6985 = vpow.pop %v6984
      %v6986 = vmul.f32 %v6915, 1.442695
      %v6987 = vpow.pop %v6986
      %v6988 = vmul.f32 %v6916, 1.442695
      %v6989 = vpow.pop %v6988
      %v6990 = vmul.f32 %v6917, 1.442695
      %v6991 = vpow.pop %v6990
      %v6992 = vmul.f32 %v6918, 1.442695
      %v6993 = vpow.pop %v6992
      %v6994 = vmul.f32 %v6919, 1.442695
      %v6995 = vpow.pop %v6994
      %v6996 = vmul.f32 %v6920, 1.442695
      %v6997 = vpow.pop %v6996
      %v6998 = vmul.f32 %v6921, 1.442695
      %v6999 = vpow.pop %v6998
      %v7000 = vmul.f32 %v6922, 1.442695
      %v7001 = vpow.pop %v7000
      %v7002 = vmul.f32 %v6923, 1.442695
      %v7003 = vpow.pop %v7002
      %v7004 = vmul.f32 %v6924, 1.442695
      %v7005 = vpow.pop %v7004
      %v7006 = vmul.f32 %v6925, 1.442695
      %v7007 = vpow.pop %v7006
      %v7008 = vmul.f32 %v6926, 1.442695
      %v7009 = vpow.pop %v7008
      %v7010 = vmul.f32 %v6927, 1.442695
      %v7011 = vpow.pop %v7010
      %v7012 = vmul.f32 %v6928, 1.442695
      %v7013 = vpow.pop %v7012
      %v7014 = vmul.f32 %v6929, 1.442695
      %v7015 = vpow.pop %v7014
      %v7016 = vmul.f32 %v6930, 1.442695
      %v7017 = vpow.pop %v7016
      %v7018 = vmul.f32 %v6931, 1.442695
      %v7019 = vpow.pop %v7018
      %v7020 = vmul.f32 %v6932, 1.442695
      %v7021 = vpow.pop %v7020
      %v7022 = vmul.f32 %v6933, 1.442695
      %v7023 = vpow.pop %v7022
      %v7024 = vmul.f32 %v6934, 1.442695
      %v7025 = vpow.pop %v7024
      %v7026 = vmul.f32 %v6935, 1.442695
      %v7027 = vpow.pop %v7026
      %v7028 = vmul.f32 %v6936, 1.442695
      %v7029 = vpow.pop %v7028
      %v7030 = vmul.f32 %v6937, 1.442695
      %v7031 = vpow.pop %v7030
      %v7032 = vmul.f32 %v6938, 1.442695
      %v7033 = vpow.pop %v7032
      %v7034 = vmul.f32 %v6939, 1.442695
      %v7035 = vpow.pop %v7034
      %v7036 = vmul.f32 %v6940, 1.442695
      %v7037 = vpow.pop %v7036
      %v7038 = vmul.f32 %v6941, 1.442695
      %v7039 = vpow.pop %v7038
      %v7040 = vmul.f32 %v6942, 1.442695
      %v7041 = vpow.pop %v7040
      %v7042 = vmul.f32 %v6943, 1.442695
      %v7043 = vpow.pop %v7042
      %v7044 = vmul.f32 %v6944, 1.442695
      %v7045 = vpow.pop %v7044
      %v7046 = vmul.f32 %v6945, 1.442695
      %v7047 = vpow.pop %v7046
      %v7048 = vmul.f32 %v6946, 1.442695
      %v7049 = vpow.pop %v7048
      %v7050 = vmul.f32 %v6947, 1.442695
      %v7051 = vpow.pop %v7050
      %v7052 = vmul.f32 %v6948, 1.442695
      %v7053 = vpow.pop %v7052
      %v7054 = vmul.f32 %v6949, 1.442695
      %v7055 = vpow.pop %v7054
      %v7056 = vmul.f32 %v6950, 1.442695
      %v7057 = vpow.pop %v7056
      %v7058 = vmul.f32 %v6951, 1.442695
      %v7059 = vpow.pop %v7058
      %v7060 = vadd.f32 %v6953, 1.0
      %v7061 = vadd.f32 %v6955, 1.0
      %v7062 = vadd.f32 %v6957, 1.0
      %v7063 = vadd.f32 %v6959, 1.0
      %v7064 = vadd.f32 %v6961, 1.0
      %v7065 = vadd.f32 %v6963, 1.0
      %v7066 = vadd.f32 %v6965, 1.0
      %v7067 = vadd.f32 %v6967, 1.0
      %v7068 = vadd.f32 %v6969, 1.0
      %v7069 = vadd.f32 %v6971, 1.0
      %v7070 = vadd.f32 %v6973, 1.0
      %v7071 = vadd.f32 %v6975, 1.0
      %v7072 = vadd.f32 %v6977, 1.0
      %v7073 = vadd.f32 %v6979, 1.0
      %v7074 = vadd.f32 %v6981, 1.0
      %v7075 = vadd.f32 %v6983, 1.0
      %v7076 = vadd.f32 %v6985, 1.0
      %v7077 = vadd.f32 %v6987, 1.0
      %v7078 = vadd.f32 %v6989, 1.0
      %v7079 = vadd.f32 %v6991, 1.0
      %v7080 = vadd.f32 %v6993, 1.0
      %v7081 = vadd.f32 %v6995, 1.0
      %v7082 = vadd.f32 %v6997, 1.0
      %v7083 = vadd.f32 %v6999, 1.0
      %v7084 = vadd.f32 %v7001, 1.0
      %v7085 = vadd.f32 %v7003, 1.0
      %v7086 = vadd.f32 %v7005, 1.0
      %v7087 = vadd.f32 %v7007, 1.0
      %v7088 = vadd.f32 %v7009, 1.0
      %v7089 = vadd.f32 %v7011, 1.0
      %v7090 = vadd.f32 %v7013, 1.0
      %v7091 = vadd.f32 %v7015, 1.0
      %v7092 = vadd.f32 %v7017, 1.0
      %v7093 = vadd.f32 %v7019, 1.0
      %v7094 = vadd.f32 %v7021, 1.0
      %v7095 = vadd.f32 %v7023, 1.0
      %v7096 = vadd.f32 %v7025, 1.0
      %v7097 = vadd.f32 %v7027, 1.0
      %v7098 = vadd.f32 %v7029, 1.0
      %v7099 = vadd.f32 %v7031, 1.0
      %v7100 = vadd.f32 %v7033, 1.0
      %v7101 = vadd.f32 %v7035, 1.0
      %v7102 = vadd.f32 %v7037, 1.0
      %v7103 = vadd.f32 %v7039, 1.0
      %v7104 = vadd.f32 %v7041, 1.0
      %v7105 = vadd.f32 %v7043, 1.0
      %v7106 = vadd.f32 %v7045, 1.0
      %v7107 = vadd.f32 %v7047, 1.0
      %v7108 = vadd.f32 %v7049, 1.0
      %v7109 = vadd.f32 %v7051, 1.0
      %v7110 = vadd.f32 %v7053, 1.0
      %v7111 = vadd.f32 %v7055, 1.0
      %v7112 = vadd.f32 %v7057, 1.0
      %v7113 = vadd.f32 %v7059, 1.0
      %v7114 = vrcp.pop %v7060
      %v7115 = vrcp.pop %v7061
      %v7116 = vrcp.pop %v7062
      %v7117 = vrcp.pop %v7063
      %v7118 = vrcp.pop %v7064
      %v7119 = vrcp.pop %v7065
      %v7120 = vrcp.pop %v7066
      %v7121 = vrcp.pop %v7067
      %v7122 = vrcp.pop %v7068
      %v7123 = vrcp.pop %v7069
      %v7124 = vrcp.pop %v7070
      %v7125 = vrcp.pop %v7071
      %v7126 = vrcp.pop %v7072
      %v7127 = vrcp.pop %v7073
      %v7128 = vrcp.pop %v7074
      %v7129 = vrcp.pop %v7075
      %v7130 = vrcp.pop %v7076
      %v7131 = vrcp.pop %v7077
      %v7132 = vrcp.pop %v7078
      %v7133 = vrcp.pop %v7079
      %v7134 = vrcp.pop %v7080
      %v7135 = vrcp.pop %v7081
      %v7136 = vrcp.pop %v7082
      %v7137 = vrcp.pop %v7083
      %v7138 = vrcp.pop %v7084
      %v7139 = vrcp.pop %v7085
      %v7140 = vrcp.pop %v7086
      %v7141 = vrcp.pop %v7087
      %v7142 = vrcp.pop %v7088
      %v7143 = vrcp.pop %v7089
      %v7144 = vrcp.pop %v7090
      %v7145 = vrcp.pop %v7091
      %v7146 = vrcp.pop %v7092
      %v7147 = vrcp.pop %v7093
      %v7148 = vrcp.pop %v7094
      %v7149 = vrcp.pop %v7095
      %v7150 = vrcp.pop %v7096
      %v7151 = vrcp.pop %v7097
      %v7152 = vrcp.pop %v7098
      %v7153 = vrcp.pop %v7099
      %v7154 = vrcp.pop %v7100
      %v7155 = vrcp.pop %v7101
      %v7156 = vrcp.pop %v7102
      %v7157 = vrcp.pop %v7103
      %v7158 = vrcp.pop %v7104
      %v7159 = vrcp.pop %v7105
      %v7160 = vrcp.pop %v7106
      %v7161 = vrcp.pop %v7107
      %v7162 = vrcp.pop %v7108
      %v7163 = vrcp.pop %v7109
      %v7164 = vrcp.pop %v7110
      %v7165 = vrcp.pop %v7111
      %v7166 = vrcp.pop %v7112
      %v7167 = vrcp.pop %v7113
      %v7168 = vmul.f32 %v6844, %v7114
      %v7169 = vmul.f32 %v6845, %v7115
      %v7170 = vmul.f32 %v6846, %v7116
      %v7171 = vmul.f32 %v6847, %v7117
      %v7172 = vmul.f32 %v6848, %v7118
      %v7173 = vmul.f32 %v6849, %v7119
      %v7174 = vmul.f32 %v6850, %v7120
      %v7175 = vmul.f32 %v6851, %v7121
      %v7176 = vmul.f32 %v6852, %v7122
      %v7177 = vmul.f32 %v6853, %v7123
      %v7178 = vmul.f32 %v6854, %v7124
      %v7179 = vmul.f32 %v6855, %v7125
      %v7180 = vmul.f32 %v6856, %v7126
      %v7181 = vmul.f32 %v6857, %v7127
      %v7182 = vmul.f32 %v6858, %v7128
      %v7183 = vmul.f32 %v6859, %v7129
      %v7184 = vmul.f32 %v6860, %v7130
      %v7185 = vmul.f32 %v6861, %v7131
      %v7186 = vmul.f32 %v6862, %v7132
      %v7187 = vmul.f32 %v6863, %v7133
      %v7188 = vmul.f32 %v6864, %v7134
      %v7189 = vmul.f32 %v6865, %v7135
      %v7190 = vmul.f32 %v6866, %v7136
      %v7191 = vmul.f32 %v6867, %v7137
      %v7192 = vmul.f32 %v6868, %v7138
      %v7193 = vmul.f32 %v6869, %v7139
      %v7194 = vmul.f32 %v6870, %v7140
      %v7195 = vmul.f32 %v6871, %v7141
      %v7196 = vmul.f32 %v6872, %v7142
      %v7197 = vmul.f32 %v6873, %v7143
      %v7198 = vmul.f32 %v6874, %v7144
      %v7199 = vmul.f32 %v6875, %v7145
      %v7200 = vmul.f32 %v6876, %v7146
      %v7201 = vmul.f32 %v6877, %v7147
      %v7202 = vmul.f32 %v6878, %v7148
      %v7203 = vmul.f32 %v6879, %v7149
      %v7204 = vmul.f32 %v6880, %v7150
      %v7205 = vmul.f32 %v6881, %v7151
      %v7206 = vmul.f32 %v6882, %v7152
      %v7207 = vmul.f32 %v6883, %v7153
      %v7208 = vmul.f32 %v6884, %v7154
      %v7209 = vmul.f32 %v6885, %v7155
      %v7210 = vmul.f32 %v6886, %v7156
      %v7211 = vmul.f32 %v6887, %v7157
      %v7212 = vmul.f32 %v6888, %v7158
      %v7213 = vmul.f32 %v6889, %v7159
      %v7214 = vmul.f32 %v6890, %v7160
      %v7215 = vmul.f32 %v6891, %v7161
      %v7216 = vmul.f32 %v6892, %v7162
      %v7217 = vmul.f32 %v6893, %v7163
      %v7218 = vmul.f32 %v6894, %v7164
      %v7219 = vmul.f32 %v6895, %v7165
      %v7220 = vmul.f32 %v6896, %v7166
      %v7221 = vmul.f32 %v6897, %v7167
      %v7222 = vadd.f32 %v7168, %v252
      %v7223 = vadd.f32 %v7169, %v253
      %v7224 = vadd.f32 %v7170, %v254
      %v7225 = vadd.f32 %v7171, %v255
      %v7226 = vadd.f32 %v7172, %v256
      %v7227 = vadd.f32 %v7173, %v257
      %v7228 = vadd.f32 %v7174, %v258
      %v7229 = vadd.f32 %v7175, %v259
      %v7230 = vadd.f32 %v7176, %v260
      %v7231 = vadd.f32 %v7177, %v261
      %v7232 = vadd.f32 %v7178, %v262
      %v7233 = vadd.f32 %v7179, %v263
      %v7234 = vadd.f32 %v7180, %v264
      %v7235 = vadd.f32 %v7181, %v265
      %v7236 = vadd.f32 %v7182, %v266
      %v7237 = vadd.f32 %v7183, %v267
      %v7238 = vadd.f32 %v7184, %v268
      %v7239 = vadd.f32 %v7185, %v269
      %v7240 = vadd.f32 %v7186, %v270
      %v7241 = vadd.f32 %v7187, %v271
      %v7242 = vadd.f32 %v7188, %v272
      %v7243 = vadd.f32 %v7189, %v273
      %v7244 = vadd.f32 %v7190, %v274
      %v7245 = vadd.f32 %v7191, %v275
      %v7246 = vadd.f32 %v7192, %v276
      %v7247 = vadd.f32 %v7193, %v277
      %v7248 = vadd.f32 %v7194, %v278
      %v7249 = vadd.f32 %v7195, %v279
      %v7250 = vadd.f32 %v7196, %v280
      %v7251 = vadd.f32 %v7197, %v281
      %v7252 = vadd.f32 %v7198, %v282
      %v7253 = vadd.f32 %v7199, %v283
      %v7254 = vadd.f32 %v7200, %v284
      %v7255 = vadd.f32 %v7201, %v285
      %v7256 = vadd.f32 %v7202, %v286
      %v7257 = vadd.f32 %v7203, %v287
      %v7258 = vadd.f32 %v7204, %v288
      %v7259 = vadd.f32 %v7205, %v289
      %v7260 = vadd.f32 %v7206, %v290
      %v7261 = vadd.f32 %v7207, %v291
      %v7262 = vadd.f32 %v7208, %v292
      %v7263 = vadd.f32 %v7209, %v293
      %v7264 = vadd.f32 %v7210, %v294
      %v7265 = vadd.f32 %v7211, %v295
      %v7266 = vadd.f32 %v7212, %v296
      %v7267 = vadd.f32 %v7213, %v297
      %v7268 = vadd.f32 %v7214, %v298
      %v7269 = vadd.f32 %v7215, %v299
      %v7270 = vadd.f32 %v7216, %v300
      %v7271 = vadd.f32 %v7217, %v301
      %v7272 = vadd.f32 %v7218, %v302
      %v7273 = vadd.f32 %v7219, %v303
      %v7274 = vadd.f32 %v7220, %v304
      %v7275 = vadd.f32 %v7221, %v305
      %7276 = vst.msk [vmem:[%s251] sm:$0xff] %vm307, %v7222
      %7277 = vst.msk [vmem:[%s251 + $0x8] sm:$0xff] %vm307, %v7223
      %7278 = vst.msk [vmem:[%s251 + $0x10] sm:$0xff] %vm307, %v7224
      %7279 = vst.msk [vmem:[%s251 + $0x18] sm:$0xff] %vm307, %v7225
      %7280 = vst.msk [vmem:[%s251 + $0x20] sm:$0xff] %vm307, %v7226
      %7281 = vst.msk [vmem:[%s251 + $0x28] sm:$0xff] %vm307, %v7227
      %7282 = vst.msk [vmem:[%s251 + $0x30] sm:$0xff] %vm307, %v7228
      %7283 = vst.msk [vmem:[%s251 + $0x38] sm:$0xff] %vm307, %v7229
      %7284 = vst.msk [vmem:[%s251 + $0x40] sm:$0xff] %vm307, %v7230
      %7285 = vst.msk [vmem:[%s251 + $0x48] sm:$0xff] %vm307, %v7231
      %7286 = vst.msk [vmem:[%s251 + $0x50] sm:$0xff] %vm307, %v7232
      %7287 = vst.msk [vmem:[%s251 + $0x58] sm:$0xff] %vm307, %v7233
      %7288 = vst.msk [vmem:[%s251 + $0x60] sm:$0xff] %vm307, %v7234
      %7289 = vst.msk [vmem:[%s251 + $0x68] sm:$0xff] %vm307, %v7235
      %7290 = vst.msk [vmem:[%s251 + $0x70] sm:$0xff] %vm307, %v7236
      %7291 = vst.msk [vmem:[%s251 + $0x78] sm:$0xff] %vm307, %v7237
      %7292 = vst.msk [vmem:[%s251 + $0x80] sm:$0xff] %vm307, %v7238
      %7293 = vst.msk [vmem:[%s251 + $0x88] sm:$0xff] %vm307, %v7239
      %7294 = vst.msk [vmem:[%s251 + $0x90] sm:$0xff] %vm307, %v7240
      %7295 = vst.msk [vmem:[%s251 + $0x98] sm:$0xff] %vm307, %v7241
      %7296 = vst.msk [vmem:[%s251 + $0xa0] sm:$0xff] %vm307, %v7242
      %7297 = vst.msk [vmem:[%s251 + $0xa8] sm:$0xff] %vm307, %v7243
      %7298 = vst.msk [vmem:[%s251 + $0xb0] sm:$0xff] %vm307, %v7244
      %7299 = vst.msk [vmem:[%s251 + $0xb8] sm:$0xff] %vm307, %v7245
      %7300 = vst.msk [vmem:[%s251 + $0xc0] sm:$0xff] %vm307, %v7246
      %7301 = vst.msk [vmem:[%s251 + $0xc8] sm:$0xff] %vm307, %v7247
      %7302 = vst.msk [vmem:[%s251 + $0xd0] sm:$0xff] %vm307, %v7248
      %7303 = vst.msk [vmem:[%s251 + $0xd8] sm:$0xff] %vm307, %v7249
      %7304 = vst.msk [vmem:[%s251 + $0xe0] sm:$0xff] %vm307, %v7250
      %7305 = vst.msk [vmem:[%s251 + $0xe8] sm:$0xff] %vm307, %v7251
      %7306 = vst.msk [vmem:[%s251 + $0xf0] sm:$0xff] %vm307, %v7252
      %7307 = vst.msk [vmem:[%s251 + $0xf8] sm:$0xff] %vm307, %v7253
      %7308 = vst.msk [vmem:[%s251 + $0x100] sm:$0xff] %vm307, %v7254
      %7309 = vst.msk [vmem:[%s251 + $0x108] sm:$0xff] %vm307, %v7255
      %7310 = vst.msk [vmem:[%s251 + $0x110] sm:$0xff] %vm307, %v7256
      %7311 = vst.msk [vmem:[%s251 + $0x118] sm:$0xff] %vm307, %v7257
      %7312 = vst.msk [vmem:[%s251 + $0x120] sm:$0xff] %vm307, %v7258
      %7313 = vst.msk [vmem:[%s251 + $0x128] sm:$0xff] %vm307, %v7259
      %7314 = vst.msk [vmem:[%s251 + $0x130] sm:$0xff] %vm307, %v7260
      %7315 = vst.msk [vmem:[%s251 + $0x138] sm:$0xff] %vm307, %v7261
      %7316 = vst.msk [vmem:[%s251 + $0x140] sm:$0xff] %vm307, %v7262
      %7317 = vst.msk [vmem:[%s251 + $0x148] sm:$0xff] %vm307, %v7263
      %7318 = vst.msk [vmem:[%s251 + $0x150] sm:$0xff] %vm307, %v7264
      %7319 = vst.msk [vmem:[%s251 + $0x158] sm:$0xff] %vm307, %v7265
      %7320 = vst.msk [vmem:[%s251 + $0x160] sm:$0xff] %vm307, %v7266
      %7321 = vst.msk [vmem:[%s251 + $0x168] sm:$0xff] %vm307, %v7267
      %7322 = vst.msk [vmem:[%s251 + $0x170] sm:$0xff] %vm307, %v7268
      %7323 = vst.msk [vmem:[%s251 + $0x178] sm:$0xff] %vm307, %v7269
      %7324 = vst.msk [vmem:[%s251 + $0x180] sm:$0xff] %vm307, %v7270
      %7325 = vst.msk [vmem:[%s251 + $0x188] sm:$0xff] %vm307, %v7271
      %7326 = vst.msk [vmem:[%s251 + $0x190] sm:$0xff] %vm307, %v7272
      %7327 = vst.msk [vmem:[%s251 + $0x198] sm:$0xff] %vm307, %v7273
      %7328 = vst.msk [vmem:[%s251 + $0x1a0] sm:$0xff] %vm307, %v7274
      %7329 = vst.msk [vmem:[%s251 + $0x1a8] sm:$0xff] %vm307, %v7275
      %p7330 = scmp.lt.s32.totalorder %s17, 1
      %s7331 = scalar_select %p7330, %s17, 1
      %s7332 = smul.addr %s7331, 54
      %s7333 = smul.addr %s7332, 8
      %s7334 = scalar_lea.vmem %s6, %s7333
      // Predicated region
      $region45: #{tpu_custom_call.1} parent=43 // pred_check
        %p7335 = pneg %p166
      $region46: #{tpu_custom_call.1} parent=43 // pred_check_branch
        %7337 = sbr.rel (%p7335) target = $region48
      $region47: #{tpu_custom_call.1} parent=43 // pred_region
        _
      $region48: #{tpu_custom_call.1} parent=43 // pred_fallthru
        _
    $region44: #{tpu_custom_call.1} parent=5 // pred_fallthru
      _
    %p7338 = scmp.le.s32.totalorder 2, %s12
    // Predicated region
    $region49: #{tpu_custom_call.1} parent=5 // pred_check
      %p7339 = pneg %p7338
    $region50: #{tpu_custom_call.1} parent=5 // pred_check_branch
      %7341 = sbr.rel (%p7339) target = $region52
    $region51: #{tpu_custom_call.1} parent=5 // pred_region
      %s7342 = ssub.s32 %s12, 2
      // Predicated region
      $region53: #{tpu_custom_call.1} parent=51 // pred_check
        %p7343 = pneg %p172
      $region54: #{tpu_custom_call.1} parent=51 // pred_check_branch
        %7345 = sbr.rel (%p7343) target = $region56
      $region55: #{tpu_custom_call.1} parent=51 // pred_region
        %p7346 = scmp.lt.s32.totalorder %s18, 1
        %s7347 = scalar_select %p7346, %s18, 1
        %s7348 = smul.addr %s7347, 54
        %s7349 = smul.addr %s7348, 8
        %s7350 = scalar_lea.vmem %s6, %s7349
      $region56: #{tpu_custom_call.1} parent=51 // pred_fallthru
        _
    $region52: #{tpu_custom_call.1} parent=5 // pred_fallthru
      _
  $region6: #{tpu_custom_call.1} parent=0 // loop_footer
    %s16 = sadd.s32 1, %s12
  $region7: #{tpu_custom_call.1} parent=0 // loop_footer_branch
    %11 = sbr.rel target = $region3
  $region8: #{tpu_custom_call.1} parent=0 // loop_exit
    _

</llo_original>
